<compile_context>
chip_gen: v7x
topology: tpu7x:2x2x1
jax: 0.10.0
libtpu: 0.0.40
codegen_flags: <defaults>
</compile_context>

<pallas_src>
import functools

import jax
import jax.numpy as jnp
from jax import lax
from jax.experimental import pallas as pl
from jax.experimental.pallas import tpu as pltpu


# --------------------------------------------------------------------------- #
# Kernel
# --------------------------------------------------------------------------- #
def _edge_block_kernel(hp_ref, lp_ref, wh_ref, wl_ref, we_ref,
                       sh_ref, bh_ref, sl_ref, bl_ref, se_ref, be_ref, a_ref,
                       e_ref, r_ref, dpad_ref,
                       *, bt, h, w, lh, lw, p):
    c2 = 2 * p
    hw = h * w
    lhlw = lh * lw
    m_h = bt * hw
    m_l = bt * lhlw

    dot = functools.partial(jnp.dot, preferred_element_type=jnp.float32)

    # ---- convh: 3x3 dilated (d=2) conv as ONE im2col matmul -----------------
    taps_h = jnp.concatenate(
        [hp_ref[:, kh * 2:kh * 2 + h, kw * 2:kw * 2 + w, :].reshape(m_h, p)
         for kh in range(3) for kw in range(3)], axis=-1)            # (m_h, 9p)
    h1 = dot(taps_h, wh_ref[...])                                     # (m_h, c2)
    h1 = jnp.maximum(h1 * sh_ref[...] + bh_ref[...], 0.0)

    # ---- convl: 3x3 dilated (d=2) conv as ONE im2col matmul -----------------
    taps_l = jnp.concatenate(
        [lp_ref[:, kh * 2:kh * 2 + lh, kw * 2:kw * 2 + lw, :].reshape(m_l, c2)
         for kh in range(3) for kw in range(3)], axis=-1)            # (m_l, 9c2)
    l1 = dot(taps_l, wl_ref[...])
    l1 = jnp.maximum(l1 * sl_ref[...] + bl_ref[...], 0.0)            # (m_l, c2)

    # ---- bilinear upsample (align_corners=True): batched matmul -------------
    # TODO(synk): at large resolutions replace the dense (hw, lhlw) matrix with
    #             separable H/W interpolation to bound VMEM and FLOPs.
    a_b = jnp.broadcast_to(a_ref[...], (bt, hw, lhlw))
    l_h = lax.dot_general(a_b, l1.astype(jnp.bfloat16).reshape(bt, lhlw, c2),
                          (((2,), (1,)), ((0,), (0,))),
                          preferred_element_type=jnp.float32)        # (bt, hw, c2)
    d = h1 - l_h.reshape(m_h, c2)                                    # (m_h, c2)

    # ---- conve: zero-bordered scratch + im2col -> one matmul ----------------
    # Only the 1-pixel border needs zeroing; the interior is fully overwritten.
    zrow = jnp.zeros((bt, 1, w + 2, c2), jnp.bfloat16)
    zcol = jnp.zeros((bt, h, 1, c2), jnp.bfloat16)
    dpad_ref[:, 0:1, :, :] = zrow
    dpad_ref[:, h + 1:h + 2, :, :] = zrow
    dpad_ref[:, 1:h + 1, 0:1, :] = zcol
    dpad_ref[:, 1:h + 1, w + 1:w + 2, :] = zcol
    dpad_ref[:, 1:h + 1, 1:w + 1, :] = d.astype(jnp.bfloat16).reshape(bt, h, w, c2)

    taps_e = jnp.concatenate(
        [dpad_ref[:, kh:kh + h, kw:kw + w, :].reshape(m_h, c2)
         for kh in range(3) for kw in range(3)], axis=-1)            # (m_h, 9c2)
    e = dot(taps_e, we_ref[...])                                      # (m_h, p)
    e = jax.nn.sigmoid(e * se_ref[...] + be_ref[...])

    # TODO(synk): with planes this small the channel axis is lane-sparse; a
    #             fully lane-dense (spatial-in-lanes) store layout needs a
    #             minor-dim relayout and is left for a follow-up.
    e_ref[...] = e.reshape(bt, h, w, p).astype(e_ref.dtype)
    r_ref[...] = jnp.maximum(d, 0.0).reshape(bt, h, w, c2).astype(r_ref.dtype)


# --------------------------------------------------------------------------- #
# Host-side helpers
# --------------------------------------------------------------------------- #
def _bilinear_matrix(n_out, n_in, dtype=jnp.float32):
    """Exact bilinear (align_corners=True) 1-D interpolation matrix."""
    if n_in == 1:
        return jnp.ones((n_out, 1), dtype)
    if n_out == 1:
        src = jnp.zeros((1,), jnp.float32)
    else:
        src = jnp.arange(n_out, dtype=jnp.float32) * (n_in - 1) / (n_out - 1)
    lo = jnp.clip(jnp.floor(src).astype(jnp.int32), 0, n_in - 2)
    frac = src - lo.astype(jnp.float32)
    rows = jnp.arange(n_out)
    a = jnp.zeros((n_out, n_in), dtype)
    a = a.at[rows, lo].add((1.0 - frac).astype(dtype))
    a = a.at[rows, lo + 1].add(frac.astype(dtype))
    return a


def edge_block_forward(h_nchw, l_nchw, params, *, bt=None):
    """EdgeBlock forward. h: (B, P, H, W), l: (B, 2P, LH, LW) NCHW float32.

    Returns (e, r) in NCHW: e (B, P, H, W), r (B, 2P, H, W).
    """
    wh, wl, we, sh, bh, sl, bl, se, be = params

    h = jnp.transpose(h_nchw, (0, 2, 3, 1))          # NHWC
    l = jnp.transpose(l_nchw, (0, 2, 3, 1))
    B, H, W, P = h.shape
    _, LH, LW, C2 = l.shape
    assert C2 == 2 * P

    # Per-generation VMEM budget (v5e/v6e: 128 MiB, v7x: 64 MiB per TC).
    try:
        vmem_cap = int(pltpu.get_tpu_info().vmem_capacity_bytes)
    except Exception:
        vmem_cap = 64 * 1024 * 1024
    vmem_limit = min((3 * vmem_cap) // 4, 100 * 1024 * 1024)

    # Streamed bytes per batch element (bf16 inputs, f32 outputs).
    per_elem = (2 * ((H + 4) * (W + 4) * P + (LH + 4) * (LW + 4) * C2)
                + 4 * (H * W * (P + C2)))
    if bt is None:
        bt = max(1, min(B, (vmem_limit // 4) // max(1, 2 * per_elem)))
        if B >= 2:
            bt = min(bt, B // 2)   # grid >= 2: keep both v7x TensorCores busy
        while B % bt:
            bt -= 1
    assert B % bt == 0

    # Pre-pad spatially so every tap is a static VMEM slice (dilation 2 -> pad 2).
    hp = jnp.pad(h, ((0, 0), (2, 2), (2, 2), (0, 0))).astype(jnp.bfloat16)
    lp = jnp.pad(l, ((0, 0), (2, 2), (2, 2), (0, 0))).astype(jnp.bfloat16)

    # align_corners=True bilinear weights -> (H*W, LH*LW) matrix.
    a_h = _bilinear_matrix(H, LH)
    a_w = _bilinear_matrix(W, LW)
    a = jnp.einsum('hk,wj->hwkj', a_h, a_w).reshape(H * W, LH * LW)
    a = a.astype(jnp.bfloat16)

    # im2col weight layout: rows ordered (kh, kw, cin), columns = cout.
    wh_f = wh.reshape(9 * P, C2).astype(jnp.bfloat16)
    wl_f = wl.reshape(9 * C2, C2).astype(jnp.bfloat16)
    we_f = we.reshape(9 * C2, P).astype(jnp.bfloat16)

    kernel = functools.partial(_edge_block_kernel,
                               bt=bt, h=H, w=W, lh=LH, lw=LW, p=P)

    batch4 = lambda i: (i, 0, 0, 0)
    fixed2 = lambda i: (0, 0)

    flops = 2 * B * (H * W * 9 * P * C2 + LH * LW * 9 * C2 * C2
                     + H * W * LH * LW * C2 + H * W * 9 * C2 * P)
    cost = pl.CostEstimate(flops=int(flops),
                           transcendentals=int(B * H * W * P),
                           bytes_accessed=int(B * per_elem))

    e, r = pl.pallas_call(
        kernel,
        grid=(B // bt,),
        in_specs=[
            pl.BlockSpec((bt, H + 4, W + 4, P), batch4),
            pl.BlockSpec((bt, LH + 4, LW + 4, C2), batch4),
            pl.BlockSpec((9 * P, C2), fixed2),
            pl.BlockSpec((9 * C2, C2), fixed2),
            pl.BlockSpec((9 * C2, P), fixed2),
            pl.BlockSpec((1, C2), fixed2),
            pl.BlockSpec((1, C2), fixed2),
            pl.BlockSpec((1, C2), fixed2),
            pl.BlockSpec((1, C2), fixed2),
            pl.BlockSpec((1, P), fixed2),
            pl.BlockSpec((1, P), fixed2),
            pl.BlockSpec((H * W, LH * LW), fixed2),
        ],
        out_specs=(
            pl.BlockSpec((bt, H, W, P), batch4),
            pl.BlockSpec((bt, H, W, C2), batch4),
        ),
        out_shape=(jax.ShapeDtypeStruct((B, H, W, P), jnp.float32),
                   jax.ShapeDtypeStruct((B, H, W, C2), jnp.float32)),
        scratch_shapes=[pltpu.VMEM((bt, H + 2, W + 2, C2), jnp.bfloat16)],
        compiler_params=pltpu.CompilerParams(
            dimension_semantics=("parallel",),
            vmem_limit_bytes=int(vmem_limit)),
        cost_estimate=cost,
    )(hp, lp, wh_f, wl_f, we_f,
      sh.reshape(1, C2), bh.reshape(1, C2), sl.reshape(1, C2), bl.reshape(1, C2),
      se.reshape(1, P), be.reshape(1, P), a)

    return jnp.transpose(e, (0, 3, 1, 2)), jnp.transpose(r, (0, 3, 1, 2))


# --------------------------------------------------------------------------- #
# Parameters & pure-JAX reference
# --------------------------------------------------------------------------- #
def init_params(planes, key):
    """Deterministic synthetic weights (HWIO) + folded eval-mode BN."""
    c2 = 2 * planes
    eps = 1e-5
    ks = jax.random.split(key, 15)

    def u(k, shape, bound):
        return jax.random.uniform(k, shape, jnp.float32, -bound, bound)

    wh = u(ks[0], (3, 3, planes, c2), 1.0 / (3.0 * planes ** 0.5))
    wl = u(ks[1], (3, 3, c2, c2), 1.0 / (3.0 * c2 ** 0.5))
    we = u(ks[2], (3, 3, c2, planes), 1.0 / (3.0 * c2 ** 0.5))

    def bn(kg, kb, km, kv, c):
        gamma = jax.random.uniform(kg, (c,), jnp.float32, 0.5, 1.5)
        beta = jax.random.uniform(kb, (c,), jnp.float32, -0.1, 0.1)
        mean = 0.1 * jax.random.normal(km, (c,), jnp.float32)
        var = jax.random.uniform(kv, (c,), jnp.float32, 0.5, 1.5)
        scale = gamma / jnp.sqrt(var + eps)
        return scale, beta - mean * scale

    sh, bh = bn(ks[3], ks[4], ks[5], ks[6], c2)
    sl, bl = bn(ks[7], ks[8], ks[9], ks[10], c2)
    se, be = bn(ks[11], ks[12], ks[13], ks[14], planes)
    return wh, wl, we, sh, bh, sl, bl, se, be


def edge_block_reference(h, l, params):
    """Pure-JAX reference in NHWC (f32, HIGHEST precision)."""
    wh, wl, we, sh, bh, sl, bl, se, be = params

    def conv(x, w, dil):
        return lax.conv_general_dilated(
            x, w, window_strides=(1, 1),
            padding=((dil, dil), (dil, dil)),
            rhs_dilation=(dil, dil),
            dimension_numbers=('NHWC', 'HWIO', 'NHWC'),
            precision=lax.Precision.HIGHEST)

    h1 = jnp.maximum(conv(h, wh, 2) * sh + bh, 0.0)
    l1 = jnp.maximum(conv(l, wl, 2) * sl + bl, 0.0)
    _, H, W, _ = h1.shape
    _, LH, LW, _ = l1.shape
    a_h = _bilinear_matrix(H, LH)
    a_w = _bilinear_matrix(W, LW)
    l_h = jnp.einsum('hk,wj,bkjc->bhwc', a_h, a_w, l1,
                     precision=lax.Precision.HIGHEST)
    d = h1 - l_h
    e = jax.nn.sigmoid(conv(d, we, 1) * se + be)
    return e, jnp.maximum(d, 0.0)


# --------------------------------------------------------------------------- #
if __name__ == "__main__":
    key = jax.random.PRNGKey(0)
    k_h, k_l, k_p = jax.random.split(key, 3)

    B, P, H, W = 2, 4, 16, 16        # planes = 4
    LH, LW = 8, 8                    # low-res branch

    # Round data/weights to bf16-representable values so the bf16-storage
    # kernel and the f32 reference see identical inputs.
    def q(x):
        return x.astype(jnp.bfloat16).astype(jnp.float32)

    h_nchw = q(jax.random.normal(k_h, (B, P, H, W), jnp.float32))
    l_nchw = q(jax.random.normal(k_l, (B, 2 * P, LH, LW), jnp.float32))
    wh, wl, we, sh, bh, sl, bl, se, be = init_params(P, k_p)
    params = (q(wh), q(wl), q(we), sh, bh, sl, bl, se, be)

    e, r = edge_block_forward(h_nchw, l_nchw, params)
    jax.block_until_ready((e, r))

    h_nhwc = jnp.transpose(h_nchw, (0, 2, 3, 1))
    l_nhwc = jnp.transpose(l_nchw, (0, 2, 3, 1))
    e_ref, r_ref = edge_block_reference(h_nhwc, l_nhwc, params)
    e_ref = jnp.transpose(e_ref, (0, 3, 1, 2))
    r_ref = jnp.transpose(r_ref, (0, 3, 1, 2))

    # Kernel does bf16 MXU arithmetic (f32 accumulation); tolerance is sized
    # for bf16-level error against the f32/HIGHEST reference.
    assert jnp.allclose(e, e_ref, atol=5e-2, rtol=5e-2), \
        float(jnp.max(jnp.abs(e - e_ref)))
    assert jnp.allclose(r, r_ref, atol=5e-2, rtol=5e-2), \
        float(jnp.max(jnp.abs(r - r_ref)))
    print("KERNEL_OK")
</pallas_src>

<mosaic_0001>
module attributes {stable_mosaic.version = 11 : i64} {
  func.func @_edge_block_kernel(%arg0: i32, %arg1: memref<1x20x20x4xbf16, #tpu.memory_space<vmem>>, %arg2: memref<1x12x12x8xbf16, #tpu.memory_space<vmem>>, %arg3: memref<36x8xbf16, #tpu.memory_space<vmem>>, %arg4: memref<72x8xbf16, #tpu.memory_space<vmem>>, %arg5: memref<72x4xbf16, #tpu.memory_space<vmem>>, %arg6: memref<1x8xf32, #tpu.memory_space<vmem>>, %arg7: memref<1x8xf32, #tpu.memory_space<vmem>>, %arg8: memref<1x8xf32, #tpu.memory_space<vmem>>, %arg9: memref<1x8xf32, #tpu.memory_space<vmem>>, %arg10: memref<1x4xf32, #tpu.memory_space<vmem>>, %arg11: memref<1x4xf32, #tpu.memory_space<vmem>>, %arg12: memref<256x64xbf16, #tpu.memory_space<vmem>>, %arg13: memref<1x16x16x4xf32, #tpu.memory_space<vmem>>, %arg14: memref<1x16x16x8xf32, #tpu.memory_space<vmem>>, %arg15: memref<1x18x18x8xbf16, #tpu.memory_space<vmem>>) attributes {dimension_semantics = [#tpu.dimension_semantics<parallel>], iteration_bounds = array<i64: 2>, scalar_prefetch = 0 : i64, scratch_operands = 1 : i64, tpu.core_type = #tpu.core_type<tc>, window_params = [{transform_indices = @transform_0, window_bounds = array<i64: 1, 20, 20, 4>}, {transform_indices = @transform_1, window_bounds = array<i64: 1, 12, 12, 8>}, {pipeline_mode = #tpu.pipeline_mode<synchronous>, transform_indices = @transform_2, window_bounds = array<i64: 36, 8>}, {pipeline_mode = #tpu.pipeline_mode<synchronous>, transform_indices = @transform_3, window_bounds = array<i64: 72, 8>}, {pipeline_mode = #tpu.pipeline_mode<synchronous>, transform_indices = @transform_4, window_bounds = array<i64: 72, 4>}, {pipeline_mode = #tpu.pipeline_mode<synchronous>, transform_indices = @transform_5, window_bounds = array<i64: 1, 8>}, {pipeline_mode = #tpu.pipeline_mode<synchronous>, transform_indices = @transform_6, window_bounds = array<i64: 1, 8>}, {pipeline_mode = #tpu.pipeline_mode<synchronous>, transform_indices = @transform_7, window_bounds = array<i64: 1, 8>}, {pipeline_mode = #tpu.pipeline_mode<synchronous>, transform_indices = @transform_8, window_bounds = array<i64: 1, 8>}, {pipeline_mode = #tpu.pipeline_mode<synchronous>, transform_indices = @transform_9, window_bounds = array<i64: 1, 4>}, {pipeline_mode = #tpu.pipeline_mode<synchronous>, transform_indices = @transform_10, window_bounds = array<i64: 1, 4>}, {pipeline_mode = #tpu.pipeline_mode<synchronous>, transform_indices = @transform_11, window_bounds = array<i64: 256, 64>}, {transform_indices = @transform_12, window_bounds = array<i64: 1, 16, 16, 4>}, {transform_indices = @transform_13, window_bounds = array<i64: 1, 16, 16, 8>}]} {
    %c0 = arith.constant 0 : index
    %c0_0 = arith.constant 0 : index
    %c0_1 = arith.constant 0 : index
    %c0_2 = arith.constant 0 : index
    %0 = vector.load %arg1[%c0, %c0_0, %c0_1, %c0_2] : memref<1x20x20x4xbf16, #tpu.memory_space<vmem>>, vector<1x16x16x4xbf16>
    %1 = vector.shape_cast %0 : vector<1x16x16x4xbf16> to vector<256x4xbf16>
    %c0_3 = arith.constant 0 : index
    %c0_4 = arith.constant 0 : index
    %c2 = arith.constant 2 : index
    %c0_5 = arith.constant 0 : index
    %2 = vector.load %arg1[%c0_3, %c0_4, %c2, %c0_5] : memref<1x20x20x4xbf16, #tpu.memory_space<vmem>>, vector<1x16x16x4xbf16>
    %3 = vector.shape_cast %2 : vector<1x16x16x4xbf16> to vector<256x4xbf16>
    %c0_6 = arith.constant 0 : index
    %c0_7 = arith.constant 0 : index
    %c4 = arith.constant 4 : index
    %c0_8 = arith.constant 0 : index
    %4 = vector.load %arg1[%c0_6, %c0_7, %c4, %c0_8] : memref<1x20x20x4xbf16, #tpu.memory_space<vmem>>, vector<1x16x16x4xbf16>
    %5 = vector.shape_cast %4 : vector<1x16x16x4xbf16> to vector<256x4xbf16>
    %c0_9 = arith.constant 0 : index
    %c2_10 = arith.constant 2 : index
    %c0_11 = arith.constant 0 : index
    %c0_12 = arith.constant 0 : index
    %6 = vector.load %arg1[%c0_9, %c2_10, %c0_11, %c0_12] : memref<1x20x20x4xbf16, #tpu.memory_space<vmem>>, vector<1x16x16x4xbf16>
    %7 = vector.shape_cast %6 : vector<1x16x16x4xbf16> to vector<256x4xbf16>
    %c0_13 = arith.constant 0 : index
    %c2_14 = arith.constant 2 : index
    %c2_15 = arith.constant 2 : index
    %c0_16 = arith.constant 0 : index
    %8 = vector.load %arg1[%c0_13, %c2_14, %c2_15, %c0_16] : memref<1x20x20x4xbf16, #tpu.memory_space<vmem>>, vector<1x16x16x4xbf16>
    %9 = vector.shape_cast %8 : vector<1x16x16x4xbf16> to vector<256x4xbf16>
    %c0_17 = arith.constant 0 : index
    %c2_18 = arith.constant 2 : index
    %c4_19 = arith.constant 4 : index
    %c0_20 = arith.constant 0 : index
    %10 = vector.load %arg1[%c0_17, %c2_18, %c4_19, %c0_20] : memref<1x20x20x4xbf16, #tpu.memory_space<vmem>>, vector<1x16x16x4xbf16>
    %11 = vector.shape_cast %10 : vector<1x16x16x4xbf16> to vector<256x4xbf16>
    %c0_21 = arith.constant 0 : index
    %c4_22 = arith.constant 4 : index
    %c0_23 = arith.constant 0 : index
    %c0_24 = arith.constant 0 : index
    %12 = vector.load %arg1[%c0_21, %c4_22, %c0_23, %c0_24] : memref<1x20x20x4xbf16, #tpu.memory_space<vmem>>, vector<1x16x16x4xbf16>
    %13 = vector.shape_cast %12 : vector<1x16x16x4xbf16> to vector<256x4xbf16>
    %c0_25 = arith.constant 0 : index
    %c4_26 = arith.constant 4 : index
    %c2_27 = arith.constant 2 : index
    %c0_28 = arith.constant 0 : index
    %14 = vector.load %arg1[%c0_25, %c4_26, %c2_27, %c0_28] : memref<1x20x20x4xbf16, #tpu.memory_space<vmem>>, vector<1x16x16x4xbf16>
    %15 = vector.shape_cast %14 : vector<1x16x16x4xbf16> to vector<256x4xbf16>
    %c0_29 = arith.constant 0 : index
    %c4_30 = arith.constant 4 : index
    %c4_31 = arith.constant 4 : index
    %c0_32 = arith.constant 0 : index
    %16 = vector.load %arg1[%c0_29, %c4_30, %c4_31, %c0_32] : memref<1x20x20x4xbf16, #tpu.memory_space<vmem>>, vector<1x16x16x4xbf16>
    %17 = vector.shape_cast %16 : vector<1x16x16x4xbf16> to vector<256x4xbf16>
    %18 = tpu.concatenate %1, %3, %5, %7, %9, %11, %13, %15, %17 in 1 : vector<256x4xbf16>, vector<256x4xbf16>, vector<256x4xbf16>, vector<256x4xbf16>, vector<256x4xbf16>, vector<256x4xbf16>, vector<256x4xbf16>, vector<256x4xbf16>, vector<256x4xbf16> -> vector<256x36xbf16>
    %c0_33 = arith.constant 0 : index
    %c0_34 = arith.constant 0 : index
    %19 = vector.load %arg3[%c0_33, %c0_34] : memref<36x8xbf16, #tpu.memory_space<vmem>>, vector<36x8xbf16>
    %cst = arith.constant dense<0.000000e+00> : vector<256x8xf32>
    %20 = tpu.matmul %18, %19, %cst {dimension_numbers = #tpu.dot_dimension_numbers<[1], [0], [0], [1], [0, 0, 1, 1], [], []>} : vector<256x36xbf16>, vector<36x8xbf16>, vector<256x8xf32> -> vector<256x8xf32>
    %c0_35 = arith.constant 0 : index
    %c0_36 = arith.constant 0 : index
    %21 = vector.load %arg6[%c0_35, %c0_36] : memref<1x8xf32, #tpu.memory_space<vmem>>, vector<1x8xf32>
    %22 = vector.broadcast %21 : vector<1x8xf32> to vector<256x8xf32>
    %23 = arith.mulf %20, %22 : vector<256x8xf32>
    %c0_37 = arith.constant 0 : index
    %c0_38 = arith.constant 0 : index
    %24 = vector.load %arg7[%c0_37, %c0_38] : memref<1x8xf32, #tpu.memory_space<vmem>>, vector<1x8xf32>
    %25 = vector.broadcast %24 : vector<1x8xf32> to vector<256x8xf32>
    %26 = arith.addf %23, %25 : vector<256x8xf32>
    %cst_39 = arith.constant 0.000000e+00 : f32
    %27 = vector.broadcast %cst_39 : f32 to vector<256x8xf32>
    %28 = arith.maximumf %26, %27 : vector<256x8xf32>
    %c0_40 = arith.constant 0 : index
    %c0_41 = arith.constant 0 : index
    %c0_42 = arith.constant 0 : index
    %c0_43 = arith.constant 0 : index
    %29 = vector.load %arg2[%c0_40, %c0_41, %c0_42, %c0_43] : memref<1x12x12x8xbf16, #tpu.memory_space<vmem>>, vector<1x8x8x8xbf16>
    %30 = vector.shape_cast %29 : vector<1x8x8x8xbf16> to vector<64x8xbf16>
    %c0_44 = arith.constant 0 : index
    %c0_45 = arith.constant 0 : index
    %c2_46 = arith.constant 2 : index
    %c0_47 = arith.constant 0 : index
    %31 = vector.load %arg2[%c0_44, %c0_45, %c2_46, %c0_47] : memref<1x12x12x8xbf16, #tpu.memory_space<vmem>>, vector<1x8x8x8xbf16>
    %32 = vector.shape_cast %31 : vector<1x8x8x8xbf16> to vector<64x8xbf16>
    %c0_48 = arith.constant 0 : index
    %c0_49 = arith.constant 0 : index
    %c4_50 = arith.constant 4 : index
    %c0_51 = arith.constant 0 : index
    %33 = vector.load %arg2[%c0_48, %c0_49, %c4_50, %c0_51] : memref<1x12x12x8xbf16, #tpu.memory_space<vmem>>, vector<1x8x8x8xbf16>
    %34 = vector.shape_cast %33 : vector<1x8x8x8xbf16> to vector<64x8xbf16>
    %c0_52 = arith.constant 0 : index
    %c2_53 = arith.constant 2 : index
    %c0_54 = arith.constant 0 : index
    %c0_55 = arith.constant 0 : index
    %35 = vector.load %arg2[%c0_52, %c2_53, %c0_54, %c0_55] : memref<1x12x12x8xbf16, #tpu.memory_space<vmem>>, vector<1x8x8x8xbf16>
    %36 = vector.shape_cast %35 : vector<1x8x8x8xbf16> to vector<64x8xbf16>
    %c0_56 = arith.constant 0 : index
    %c2_57 = arith.constant 2 : index
    %c2_58 = arith.constant 2 : index
    %c0_59 = arith.constant 0 : index
    %37 = vector.load %arg2[%c0_56, %c2_57, %c2_58, %c0_59] : memref<1x12x12x8xbf16, #tpu.memory_space<vmem>>, vector<1x8x8x8xbf16>
    %38 = vector.shape_cast %37 : vector<1x8x8x8xbf16> to vector<64x8xbf16>
    %c0_60 = arith.constant 0 : index
    %c2_61 = arith.constant 2 : index
    %c4_62 = arith.constant 4 : index
    %c0_63 = arith.constant 0 : index
    %39 = vector.load %arg2[%c0_60, %c2_61, %c4_62, %c0_63] : memref<1x12x12x8xbf16, #tpu.memory_space<vmem>>, vector<1x8x8x8xbf16>
    %40 = vector.shape_cast %39 : vector<1x8x8x8xbf16> to vector<64x8xbf16>
    %c0_64 = arith.constant 0 : index
    %c4_65 = arith.constant 4 : index
    %c0_66 = arith.constant 0 : index
    %c0_67 = arith.constant 0 : index
    %41 = vector.load %arg2[%c0_64, %c4_65, %c0_66, %c0_67] : memref<1x12x12x8xbf16, #tpu.memory_space<vmem>>, vector<1x8x8x8xbf16>
    %42 = vector.shape_cast %41 : vector<1x8x8x8xbf16> to vector<64x8xbf16>
    %c0_68 = arith.constant 0 : index
    %c4_69 = arith.constant 4 : index
    %c2_70 = arith.constant 2 : index
    %c0_71 = arith.constant 0 : index
    %43 = vector.load %arg2[%c0_68, %c4_69, %c2_70, %c0_71] : memref<1x12x12x8xbf16, #tpu.memory_space<vmem>>, vector<1x8x8x8xbf16>
    %44 = vector.shape_cast %43 : vector<1x8x8x8xbf16> to vector<64x8xbf16>
    %c0_72 = arith.constant 0 : index
    %c4_73 = arith.constant 4 : index
    %c4_74 = arith.constant 4 : index
    %c0_75 = arith.constant 0 : index
    %45 = vector.load %arg2[%c0_72, %c4_73, %c4_74, %c0_75] : memref<1x12x12x8xbf16, #tpu.memory_space<vmem>>, vector<1x8x8x8xbf16>
    %46 = vector.shape_cast %45 : vector<1x8x8x8xbf16> to vector<64x8xbf16>
    %47 = tpu.concatenate %30, %32, %34, %36, %38, %40, %42, %44, %46 in 1 : vector<64x8xbf16>, vector<64x8xbf16>, vector<64x8xbf16>, vector<64x8xbf16>, vector<64x8xbf16>, vector<64x8xbf16>, vector<64x8xbf16>, vector<64x8xbf16>, vector<64x8xbf16> -> vector<64x72xbf16>
    %c0_76 = arith.constant 0 : index
    %c0_77 = arith.constant 0 : index
    %48 = vector.load %arg4[%c0_76, %c0_77] : memref<72x8xbf16, #tpu.memory_space<vmem>>, vector<72x8xbf16>
    %cst_78 = arith.constant dense<0.000000e+00> : vector<64x8xf32>
    %49 = tpu.matmul %47, %48, %cst_78 {dimension_numbers = #tpu.dot_dimension_numbers<[1], [0], [0], [1], [0, 0, 1, 1], [], []>} : vector<64x72xbf16>, vector<72x8xbf16>, vector<64x8xf32> -> vector<64x8xf32>
    %c0_79 = arith.constant 0 : index
    %c0_80 = arith.constant 0 : index
    %50 = vector.load %arg8[%c0_79, %c0_80] : memref<1x8xf32, #tpu.memory_space<vmem>>, vector<1x8xf32>
    %51 = vector.broadcast %50 : vector<1x8xf32> to vector<64x8xf32>
    %52 = arith.mulf %49, %51 : vector<64x8xf32>
    %c0_81 = arith.constant 0 : index
    %c0_82 = arith.constant 0 : index
    %53 = vector.load %arg9[%c0_81, %c0_82] : memref<1x8xf32, #tpu.memory_space<vmem>>, vector<1x8xf32>
    %54 = vector.broadcast %53 : vector<1x8xf32> to vector<64x8xf32>
    %55 = arith.addf %52, %54 : vector<64x8xf32>
    %cst_83 = arith.constant 0.000000e+00 : f32
    %56 = vector.broadcast %cst_83 : f32 to vector<64x8xf32>
    %57 = arith.maximumf %55, %56 : vector<64x8xf32>
    %c0_84 = arith.constant 0 : index
    %c0_85 = arith.constant 0 : index
    %58 = vector.load %arg12[%c0_84, %c0_85] : memref<256x64xbf16, #tpu.memory_space<vmem>>, vector<256x64xbf16>
    %59 = vector.shape_cast %58 : vector<256x64xbf16> to vector<1x256x64xbf16>
    %60 = arith.truncf %57 : vector<64x8xf32> to vector<64x8xbf16>
    %61 = vector.shape_cast %60 : vector<64x8xbf16> to vector<1x64x8xbf16>
    %cst_86 = arith.constant dense<0.000000e+00> : vector<1x256x8xf32>
    %62 = tpu.matmul %59, %61, %cst_86 {dimension_numbers = #tpu.dot_dimension_numbers<[2], [1], [1], [2], [0, 0, 0, 1, 1, 2], [0], [0]>} : vector<1x256x64xbf16>, vector<1x64x8xbf16>, vector<1x256x8xf32> -> vector<1x256x8xf32>
    %63 = vector.shape_cast %62 : vector<1x256x8xf32> to vector<256x8xf32>
    %64 = arith.subf %28, %63 : vector<256x8xf32>
    %cst_87 = arith.constant 0.000000e+00 : bf16
    %65 = vector.broadcast %cst_87 : bf16 to vector<1x1x18x8xbf16>
    %cst_88 = arith.constant 0.000000e+00 : bf16
    %66 = vector.broadcast %cst_88 : bf16 to vector<1x16x1x8xbf16>
    %c0_89 = arith.constant 0 : index
    %c0_90 = arith.constant 0 : index
    %c0_91 = arith.constant 0 : index
    %c0_92 = arith.constant 0 : index
    %67 = vector.load %arg15[%c0_89, %c0_90, %c0_91, %c0_92] : memref<1x18x18x8xbf16, #tpu.memory_space<vmem>>, vector<1x1x18x8xbf16>
    tpu.vector_store %arg15[%c0_89, %c0_90, %c0_91, %c0_92], %65 {strides = array<i32>} : memref<1x18x18x8xbf16, #tpu.memory_space<vmem>>, vector<1x1x18x8xbf16>,
    %c0_93 = arith.constant 0 : index
    %c17 = arith.constant 17 : index
    %c0_94 = arith.constant 0 : index
    %c0_95 = arith.constant 0 : index
    %68 = vector.load %arg15[%c0_93, %c17, %c0_94, %c0_95] : memref<1x18x18x8xbf16, #tpu.memory_space<vmem>>, vector<1x1x18x8xbf16>
    tpu.vector_store %arg15[%c0_93, %c17, %c0_94, %c0_95], %65 {strides = array<i32>} : memref<1x18x18x8xbf16, #tpu.memory_space<vmem>>, vector<1x1x18x8xbf16>,
    %c0_96 = arith.constant 0 : index
    %c1 = arith.constant 1 : index
    %c0_97 = arith.constant 0 : index
    %c0_98 = arith.constant 0 : index
    %69 = vector.load %arg15[%c0_96, %c1, %c0_97, %c0_98] : memref<1x18x18x8xbf16, #tpu.memory_space<vmem>>, vector<1x16x1x8xbf16>
    tpu.vector_store %arg15[%c0_96, %c1, %c0_97, %c0_98], %66 {strides = array<i32>} : memref<1x18x18x8xbf16, #tpu.memory_space<vmem>>, vector<1x16x1x8xbf16>,
    %c0_99 = arith.constant 0 : index
    %c1_100 = arith.constant 1 : index
    %c17_101 = arith.constant 17 : index
    %c0_102 = arith.constant 0 : index
    %70 = vector.load %arg15[%c0_99, %c1_100, %c17_101, %c0_102] : memref<1x18x18x8xbf16, #tpu.memory_space<vmem>>, vector<1x16x1x8xbf16>
    tpu.vector_store %arg15[%c0_99, %c1_100, %c17_101, %c0_102], %66 {strides = array<i32>} : memref<1x18x18x8xbf16, #tpu.memory_space<vmem>>, vector<1x16x1x8xbf16>,
    %71 = arith.truncf %64 : vector<256x8xf32> to vector<256x8xbf16>
    %72 = vector.shape_cast %71 : vector<256x8xbf16> to vector<1x16x16x8xbf16>
    %c0_103 = arith.constant 0 : index
    %c1_104 = arith.constant 1 : index
    %c1_105 = arith.constant 1 : index
    %c0_106 = arith.constant 0 : index
    %73 = vector.load %arg15[%c0_103, %c1_104, %c1_105, %c0_106] : memref<1x18x18x8xbf16, #tpu.memory_space<vmem>>, vector<1x16x16x8xbf16>
    tpu.vector_store %arg15[%c0_103, %c1_104, %c1_105, %c0_106], %72 {strides = array<i32>} : memref<1x18x18x8xbf16, #tpu.memory_space<vmem>>, vector<1x16x16x8xbf16>,
    %c0_107 = arith.constant 0 : index
    %c0_108 = arith.constant 0 : index
    %c0_109 = arith.constant 0 : index
    %c0_110 = arith.constant 0 : index
    %74 = vector.load %arg15[%c0_107, %c0_108, %c0_109, %c0_110] : memref<1x18x18x8xbf16, #tpu.memory_space<vmem>>, vector<1x16x16x8xbf16>
    %75 = vector.shape_cast %74 : vector<1x16x16x8xbf16> to vector<256x8xbf16>
    %c0_111 = arith.constant 0 : index
    %c0_112 = arith.constant 0 : index
    %c1_113 = arith.constant 1 : index
    %c0_114 = arith.constant 0 : index
    %76 = vector.load %arg15[%c0_111, %c0_112, %c1_113, %c0_114] : memref<1x18x18x8xbf16, #tpu.memory_space<vmem>>, vector<1x16x16x8xbf16>
    %77 = vector.shape_cast %76 : vector<1x16x16x8xbf16> to vector<256x8xbf16>
    %c0_115 = arith.constant 0 : index
    %c0_116 = arith.constant 0 : index
    %c2_117 = arith.constant 2 : index
    %c0_118 = arith.constant 0 : index
    %78 = vector.load %arg15[%c0_115, %c0_116, %c2_117, %c0_118] : memref<1x18x18x8xbf16, #tpu.memory_space<vmem>>, vector<1x16x16x8xbf16>
    %79 = vector.shape_cast %78 : vector<1x16x16x8xbf16> to vector<256x8xbf16>
    %c0_119 = arith.constant 0 : index
    %c1_120 = arith.constant 1 : index
    %c0_121 = arith.constant 0 : index
    %c0_122 = arith.constant 0 : index
    %80 = vector.load %arg15[%c0_119, %c1_120, %c0_121, %c0_122] : memref<1x18x18x8xbf16, #tpu.memory_space<vmem>>, vector<1x16x16x8xbf16>
    %81 = vector.shape_cast %80 : vector<1x16x16x8xbf16> to vector<256x8xbf16>
    %c0_123 = arith.constant 0 : index
    %c1_124 = arith.constant 1 : index
    %c1_125 = arith.constant 1 : index
    %c0_126 = arith.constant 0 : index
    %82 = vector.load %arg15[%c0_123, %c1_124, %c1_125, %c0_126] : memref<1x18x18x8xbf16, #tpu.memory_space<vmem>>, vector<1x16x16x8xbf16>
    %83 = vector.shape_cast %82 : vector<1x16x16x8xbf16> to vector<256x8xbf16>
    %c0_127 = arith.constant 0 : index
    %c1_128 = arith.constant 1 : index
    %c2_129 = arith.constant 2 : index
    %c0_130 = arith.constant 0 : index
    %84 = vector.load %arg15[%c0_127, %c1_128, %c2_129, %c0_130] : memref<1x18x18x8xbf16, #tpu.memory_space<vmem>>, vector<1x16x16x8xbf16>
    %85 = vector.shape_cast %84 : vector<1x16x16x8xbf16> to vector<256x8xbf16>
    %c0_131 = arith.constant 0 : index
    %c2_132 = arith.constant 2 : index
    %c0_133 = arith.constant 0 : index
    %c0_134 = arith.constant 0 : index
    %86 = vector.load %arg15[%c0_131, %c2_132, %c0_133, %c0_134] : memref<1x18x18x8xbf16, #tpu.memory_space<vmem>>, vector<1x16x16x8xbf16>
    %87 = vector.shape_cast %86 : vector<1x16x16x8xbf16> to vector<256x8xbf16>
    %c0_135 = arith.constant 0 : index
    %c2_136 = arith.constant 2 : index
    %c1_137 = arith.constant 1 : index
    %c0_138 = arith.constant 0 : index
    %88 = vector.load %arg15[%c0_135, %c2_136, %c1_137, %c0_138] : memref<1x18x18x8xbf16, #tpu.memory_space<vmem>>, vector<1x16x16x8xbf16>
    %89 = vector.shape_cast %88 : vector<1x16x16x8xbf16> to vector<256x8xbf16>
    %c0_139 = arith.constant 0 : index
    %c2_140 = arith.constant 2 : index
    %c2_141 = arith.constant 2 : index
    %c0_142 = arith.constant 0 : index
    %90 = vector.load %arg15[%c0_139, %c2_140, %c2_141, %c0_142] : memref<1x18x18x8xbf16, #tpu.memory_space<vmem>>, vector<1x16x16x8xbf16>
    %91 = vector.shape_cast %90 : vector<1x16x16x8xbf16> to vector<256x8xbf16>
    %92 = tpu.concatenate %75, %77, %79, %81, %83, %85, %87, %89, %91 in 1 : vector<256x8xbf16>, vector<256x8xbf16>, vector<256x8xbf16>, vector<256x8xbf16>, vector<256x8xbf16>, vector<256x8xbf16>, vector<256x8xbf16>, vector<256x8xbf16>, vector<256x8xbf16> -> vector<256x72xbf16>
    %c0_143 = arith.constant 0 : index
    %c0_144 = arith.constant 0 : index
    %93 = vector.load %arg5[%c0_143, %c0_144] : memref<72x4xbf16, #tpu.memory_space<vmem>>, vector<72x4xbf16>
    %cst_145 = arith.constant dense<0.000000e+00> : vector<256x4xf32>
    %94 = tpu.matmul %92, %93, %cst_145 {dimension_numbers = #tpu.dot_dimension_numbers<[1], [0], [0], [1], [0, 0, 1, 1], [], []>} : vector<256x72xbf16>, vector<72x4xbf16>, vector<256x4xf32> -> vector<256x4xf32>
    %c0_146 = arith.constant 0 : index
    %c0_147 = arith.constant 0 : index
    %95 = vector.load %arg10[%c0_146, %c0_147] : memref<1x4xf32, #tpu.memory_space<vmem>>, vector<1x4xf32>
    %96 = vector.broadcast %95 : vector<1x4xf32> to vector<256x4xf32>
    %97 = arith.mulf %94, %96 : vector<256x4xf32>
    %c0_148 = arith.constant 0 : index
    %c0_149 = arith.constant 0 : index
    %98 = vector.load %arg11[%c0_148, %c0_149] : memref<1x4xf32, #tpu.memory_space<vmem>>, vector<1x4xf32>
    %99 = vector.broadcast %98 : vector<1x4xf32> to vector<256x4xf32>
    %100 = arith.addf %97, %99 : vector<256x4xf32>
    %101 = arith.negf %100 : vector<256x4xf32>
    %102 = math.exp %101 : vector<256x4xf32>
    %cst_150 = arith.constant 1.000000e+00 : f32
    %103 = vector.broadcast %cst_150 : f32 to vector<256x4xf32>
    %104 = arith.addf %103, %102 : vector<256x4xf32>
    %105 = arith.divf %103, %104 : vector<256x4xf32>
    %106 = vector.shape_cast %105 : vector<256x4xf32> to vector<1x16x16x4xf32>
    %c0_151 = arith.constant 0 : index
    %c0_152 = arith.constant 0 : index
    %c0_153 = arith.constant 0 : index
    %c0_154 = arith.constant 0 : index
    %107 = vector.load %arg13[%c0_151, %c0_152, %c0_153, %c0_154] : memref<1x16x16x4xf32, #tpu.memory_space<vmem>>, vector<1x16x16x4xf32>
    tpu.vector_store %arg13[%c0_151, %c0_152, %c0_153, %c0_154], %106 {strides = array<i32>} : memref<1x16x16x4xf32, #tpu.memory_space<vmem>>, vector<1x16x16x4xf32>,
    %cst_155 = arith.constant 0.000000e+00 : f32
    %108 = vector.broadcast %cst_155 : f32 to vector<256x8xf32>
    %109 = arith.maximumf %64, %108 : vector<256x8xf32>
    %110 = vector.shape_cast %109 : vector<256x8xf32> to vector<1x16x16x8xf32>
    %c0_156 = arith.constant 0 : index
    %c0_157 = arith.constant 0 : index
    %c0_158 = arith.constant 0 : index
    %c0_159 = arith.constant 0 : index
    %111 = vector.load %arg14[%c0_156, %c0_157, %c0_158, %c0_159] : memref<1x16x16x8xf32, #tpu.memory_space<vmem>>, vector<1x16x16x8xf32>
    tpu.vector_store %arg14[%c0_156, %c0_157, %c0_158, %c0_159], %110 {strides = array<i32>} : memref<1x16x16x8xf32, #tpu.memory_space<vmem>>, vector<1x16x16x8xf32>,
    return
  }
  func.func @transform_0(%arg0: i32) -> (i32, i32, i32, i32) {
    %c0_i32 = arith.constant 0 : i32
    %c0_i32_0 = arith.constant 0 : i32
    %c0_i32_1 = arith.constant 0 : i32
    %c0_i32_2 = arith.constant 0 : i32
    return %arg0, %c0_i32, %c0_i32_0, %c0_i32_1 : i32, i32, i32, i32
  }
  func.func @transform_1(%arg0: i32) -> (i32, i32, i32, i32) {
    %c0_i32 = arith.constant 0 : i32
    %c0_i32_0 = arith.constant 0 : i32
    %c0_i32_1 = arith.constant 0 : i32
    %c0_i32_2 = arith.constant 0 : i32
    return %arg0, %c0_i32, %c0_i32_0, %c0_i32_1 : i32, i32, i32, i32
  }
  func.func @transform_2(%arg0: i32) -> (i32, i32) {
    %c0_i32 = arith.constant 0 : i32
    %c0_i32_0 = arith.constant 0 : i32
    %c0_i32_1 = arith.constant 0 : i32
    return %c0_i32, %c0_i32_0 : i32, i32
  }
  func.func @transform_3(%arg0: i32) -> (i32, i32) {
    %c0_i32 = arith.constant 0 : i32
    %c0_i32_0 = arith.constant 0 : i32
    %c0_i32_1 = arith.constant 0 : i32
    return %c0_i32, %c0_i32_0 : i32, i32
  }
  func.func @transform_4(%arg0: i32) -> (i32, i32) {
    %c0_i32 = arith.constant 0 : i32
    %c0_i32_0 = arith.constant 0 : i32
    %c0_i32_1 = arith.constant 0 : i32
    return %c0_i32, %c0_i32_0 : i32, i32
  }
  func.func @transform_5(%arg0: i32) -> (i32, i32) {
    %c0_i32 = arith.constant 0 : i32
    %c0_i32_0 = arith.constant 0 : i32
    %c0_i32_1 = arith.constant 0 : i32
    return %c0_i32, %c0_i32_0 : i32, i32
  }
  func.func @transform_6(%arg0: i32) -> (i32, i32) {
    %c0_i32 = arith.constant 0 : i32
    %c0_i32_0 = arith.constant 0 : i32
    %c0_i32_1 = arith.constant 0 : i32
    return %c0_i32, %c0_i32_0 : i32, i32
  }
  func.func @transform_7(%arg0: i32) -> (i32, i32) {
    %c0_i32 = arith.constant 0 : i32
    %c0_i32_0 = arith.constant 0 : i32
    %c0_i32_1 = arith.constant 0 : i32
    return %c0_i32, %c0_i32_0 : i32, i32
  }
  func.func @transform_8(%arg0: i32) -> (i32, i32) {
    %c0_i32 = arith.constant 0 : i32
    %c0_i32_0 = arith.constant 0 : i32
    %c0_i32_1 = arith.constant 0 : i32
    return %c0_i32, %c0_i32_0 : i32, i32
  }
  func.func @transform_9(%arg0: i32) -> (i32, i32) {
    %c0_i32 = arith.constant 0 : i32
    %c0_i32_0 = arith.constant 0 : i32
    %c0_i32_1 = arith.constant 0 : i32
    return %c0_i32, %c0_i32_0 : i32, i32
  }
  func.func @transform_10(%arg0: i32) -> (i32, i32) {
    %c0_i32 = arith.constant 0 : i32
    %c0_i32_0 = arith.constant 0 : i32
    %c0_i32_1 = arith.constant 0 : i32
    return %c0_i32, %c0_i32_0 : i32, i32
  }
  func.func @transform_11(%arg0: i32) -> (i32, i32) {
    %c0_i32 = arith.constant 0 : i32
    %c0_i32_0 = arith.constant 0 : i32
    %c0_i32_1 = arith.constant 0 : i32
    return %c0_i32, %c0_i32_0 : i32, i32
  }
  func.func @transform_12(%arg0: i32) -> (i32, i32, i32, i32) {
    %c0_i32 = arith.constant 0 : i32
    %c0_i32_0 = arith.constant 0 : i32
    %c0_i32_1 = arith.constant 0 : i32
    %c0_i32_2 = arith.constant 0 : i32
    return %arg0, %c0_i32, %c0_i32_0, %c0_i32_1 : i32, i32, i32, i32
  }
  func.func @transform_13(%arg0: i32) -> (i32, i32, i32, i32) {
    %c0_i32 = arith.constant 0 : i32
    %c0_i32_0 = arith.constant 0 : i32
    %c0_i32_1 = arith.constant 0 : i32
    %c0_i32_2 = arith.constant 0 : i32
    return %arg0, %c0_i32, %c0_i32_0, %c0_i32_1 : i32, i32, i32, i32
  }
}

</mosaic_0001>

<llo_original>
// kernel: tpu_custom_call.1
$region0: #{tpu_custom_call.1}
  #allocation0 [shape = 'u32[]', space=smem, size = 0x4, offset = 0x4, fixed_abs, tag = 'smem constant byte address 0x4 - core index']
  #allocation1 [shape = 'u32[144,128]{1,0:T(1,128)}', space=vmem, size = 0x12000, scoped, tag = 'internal scratch']
  #allocation2 [shape = 'bf16[1,18,18,8]{3,2,1,0:T(8,128)(2,1)}', space=vmem, size = 0x1b000, scoped, tag = 'scratch operand']
  %s0 = inlined_call_operand.vmem [shape: bf16[2,20,20,4], index: 0, kind: input, shape index: {}]
  %s1 = inlined_call_operand.vmem [shape: bf16[2,12,12,8], index: 1, kind: input, shape index: {}]
  %s2 = inlined_call_operand.vmem [shape: bf16[36,8], index: 2, kind: input, shape index: {}]
  %s3 = inlined_call_operand.vmem [shape: bf16[72,8], index: 3, kind: input, shape index: {}]
  %s4 = inlined_call_operand.vmem [shape: bf16[72,4], index: 4, kind: input, shape index: {}]
  %s5 = inlined_call_operand.vmem [shape: f32[1,8], index: 5, kind: input, shape index: {}]
  %s6 = inlined_call_operand.vmem [shape: f32[1,8], index: 6, kind: input, shape index: {}]
  %s7 = inlined_call_operand.vmem [shape: f32[1,8], index: 7, kind: input, shape index: {}]
  %s8 = inlined_call_operand.vmem [shape: f32[1,8], index: 8, kind: input, shape index: {}]
  %s9 = inlined_call_operand.vmem [shape: f32[1,4], index: 9, kind: input, shape index: {}]
  %s10 = inlined_call_operand.vmem [shape: f32[1,4], index: 10, kind: input, shape index: {}]
  %s11 = inlined_call_operand.vmem [shape: bf16[256,64], index: 11, kind: input, shape index: {}]
  %s12 = inlined_call_operand.vmem [shape: f32[2,16,16,4], index: 12, kind: output, shape index: {0}]
  %s13 = inlined_call_operand.vmem [shape: f32[2,16,16,8], index: 13, kind: output, shape index: {1}]
  %14 = xla_tuple %s12, %s13
  %s15 = sld [smem:[#allocation0]]
  $region89: #{tpu_custom_call.1} parent=0
    _
  %s17 = ssub.s32 1, %s15
  %s18 = scalar_select 0, %s17, %s15
  loop: start=0, step=1, limit=4
  $region2: #{tpu_custom_call.1} parent=0 // loop_pre_header
    _
  $region3: #{tpu_custom_call.1} parent=0 // loop_header
    %s20 = sphi 0, %s24
    %p21 = scmp.ge.s32.totalorder %s20, 4
    %s30 = sphi 0, %s32
    %s33 = sphi 0, %s30
    %s34 = sphi 0, %s33
    %s50 = sphi 0, %s34
    %s56 = sphi 0, %s58
    %s59 = sphi 0, %s56
    %s60 = sphi 0, %s59
    %s76 = sphi 0, %s60
    %s80 = sphi 0, %s80
    %s82 = sphi 0, %s80
    %s83 = sphi 0, %s82
    %s97 = sphi 0, %s83
    %s101 = sphi 0, %s101
    %s103 = sphi 0, %s101
    %s104 = sphi 0, %s103
    %s118 = sphi 0, %s104
    %s122 = sphi 0, %s122
    %s124 = sphi 0, %s122
    %s125 = sphi 0, %s124
    %s139 = sphi 0, %s125
    %s143 = sphi 0, %s143
    %s145 = sphi 0, %s143
    %s146 = sphi 0, %s145
    %s160 = sphi 0, %s146
    %s164 = sphi 0, %s164
    %s166 = sphi 0, %s164
    %s167 = sphi 0, %s166
    %s181 = sphi 0, %s167
    %s185 = sphi 0, %s185
    %s187 = sphi 0, %s185
    %s188 = sphi 0, %s187
    %s202 = sphi 0, %s188
    %s206 = sphi 0, %s206
    %s208 = sphi 0, %s206
    %s209 = sphi 0, %s208
    %s223 = sphi 0, %s209
    %s227 = sphi 0, %s227
    %s229 = sphi 0, %s227
    %s230 = sphi 0, %s229
    %s244 = sphi 0, %s230
    %s248 = sphi 0, %s248
    %s250 = sphi 0, %s248
    %s251 = sphi 0, %s250
    %s265 = sphi 0, %s251
    %s269 = sphi 0, %s269
    %s271 = sphi 0, %s269
    %s272 = sphi 0, %s271
    %s286 = sphi 0, %s272
    %s292 = sphi 0, %s294
    %s295 = sphi 0, %s292
    %s296 = sphi 0, %s295
    %s312 = sphi 0, %s296
    %s318 = sphi 0, %s320
    %s321 = sphi 0, %s318
    %s322 = sphi 0, %s321
    %s338 = sphi 0, %s322
  $region4: #{tpu_custom_call.1} parent=0 // loop_header_branch
    %23 = sbr.rel (%p21) target = $region8
  $region5: #{tpu_custom_call.1} parent=0 // loop_body
    %s25 = ssub.s32 %s20, 1
    %s26 = ssub.s32 %s20, 2
    %s27 = sadd.s32 %s20, 1
    %s28 = ssub.s32 %s20, %s27
    %p29 = scmp.eq.s32.totalorder %s28, 0
    %s31 = sadd.s32 %s30, 1
    %s32 = scalar_select %p29, %s30, %s31
    %p35 = pneg %p29
    %p36 = scmp.eq.s32.totalorder %s20, 1
    %p37 = por %p35, %p36
    %p38 = scmp.ne.s32.totalorder %s30, %s33
    %p39 = scmp.eq.s32.totalorder %s20, 0
    %p40 = por %p38, %p39
    %p41 = scmp.ne.s32.totalorder %s30, %s33
    %p42 = scmp.eq.s32.totalorder %s25, 1
    %p43 = por %p41, %p42
    %p44 = scmp.ne.s32.totalorder %s33, %s34
    %p45 = scmp.eq.s32.totalorder %s25, 0
    %p46 = por %p44, %p45
    %p47 = scmp.ne.s32.totalorder %s33, %s34
    %p48 = scmp.eq.s32.totalorder %s26, 1
    %p49 = por %p47, %p48
    %p51 = scmp.ne.s32.totalorder %s34, %s50
    %p52 = scmp.eq.s32.totalorder %s26, 0
    %p53 = por %p51, %p52
    %s54 = ssub.s32 %s20, %s27
    %p55 = scmp.eq.s32.totalorder %s54, 0
    %s57 = sadd.s32 %s56, 1
    %s58 = scalar_select %p55, %s56, %s57
    %p61 = pneg %p55
    %p62 = scmp.eq.s32.totalorder %s20, 1
    %p63 = por %p61, %p62
    %p64 = scmp.ne.s32.totalorder %s56, %s59
    %p65 = scmp.eq.s32.totalorder %s20, 0
    %p66 = por %p64, %p65
    %p67 = scmp.ne.s32.totalorder %s56, %s59
    %p68 = scmp.eq.s32.totalorder %s25, 1
    %p69 = por %p67, %p68
    %p70 = scmp.ne.s32.totalorder %s59, %s60
    %p71 = scmp.eq.s32.totalorder %s25, 0
    %p72 = por %p70, %p71
    %p73 = scmp.ne.s32.totalorder %s59, %s60
    %p74 = scmp.eq.s32.totalorder %s26, 1
    %p75 = por %p73, %p74
    %p77 = scmp.ne.s32.totalorder %s60, %s76
    %p78 = scmp.eq.s32.totalorder %s26, 0
    %p79 = por %p77, %p78
    %s81 = sadd.s32 %s80, 1
    %p84 = scmp.eq.s32.totalorder %s20, 1
    %p85 = scmp.ne.s32.totalorder %s80, %s82
    %p86 = scmp.eq.s32.totalorder %s20, 0
    %p87 = por %p85, %p86
    %p88 = scmp.ne.s32.totalorder %s80, %s82
    %p89 = scmp.eq.s32.totalorder %s25, 1
    %p90 = por %p88, %p89
    %p91 = scmp.ne.s32.totalorder %s82, %s83
    %p92 = scmp.eq.s32.totalorder %s25, 0
    %p93 = por %p91, %p92
    %p94 = scmp.ne.s32.totalorder %s82, %s83
    %p95 = scmp.eq.s32.totalorder %s26, 1
    %p96 = por %p94, %p95
    %p98 = scmp.ne.s32.totalorder %s83, %s97
    %p99 = scmp.eq.s32.totalorder %s26, 0
    %p100 = por %p98, %p99
    %s102 = sadd.s32 %s101, 1
    %p105 = scmp.eq.s32.totalorder %s20, 1
    %p106 = scmp.ne.s32.totalorder %s101, %s103
    %p107 = scmp.eq.s32.totalorder %s20, 0
    %p108 = por %p106, %p107
    %p109 = scmp.ne.s32.totalorder %s101, %s103
    %p110 = scmp.eq.s32.totalorder %s25, 1
    %p111 = por %p109, %p110
    %p112 = scmp.ne.s32.totalorder %s103, %s104
    %p113 = scmp.eq.s32.totalorder %s25, 0
    %p114 = por %p112, %p113
    %p115 = scmp.ne.s32.totalorder %s103, %s104
    %p116 = scmp.eq.s32.totalorder %s26, 1
    %p117 = por %p115, %p116
    %p119 = scmp.ne.s32.totalorder %s104, %s118
    %p120 = scmp.eq.s32.totalorder %s26, 0
    %p121 = por %p119, %p120
    %s123 = sadd.s32 %s122, 1
    %p126 = scmp.eq.s32.totalorder %s20, 1
    %p127 = scmp.ne.s32.totalorder %s122, %s124
    %p128 = scmp.eq.s32.totalorder %s20, 0
    %p129 = por %p127, %p128
    %p130 = scmp.ne.s32.totalorder %s122, %s124
    %p131 = scmp.eq.s32.totalorder %s25, 1
    %p132 = por %p130, %p131
    %p133 = scmp.ne.s32.totalorder %s124, %s125
    %p134 = scmp.eq.s32.totalorder %s25, 0
    %p135 = por %p133, %p134
    %p136 = scmp.ne.s32.totalorder %s124, %s125
    %p137 = scmp.eq.s32.totalorder %s26, 1
    %p138 = por %p136, %p137
    %p140 = scmp.ne.s32.totalorder %s125, %s139
    %p141 = scmp.eq.s32.totalorder %s26, 0
    %p142 = por %p140, %p141
    %s144 = sadd.s32 %s143, 1
    %p147 = scmp.eq.s32.totalorder %s20, 1
    %p148 = scmp.ne.s32.totalorder %s143, %s145
    %p149 = scmp.eq.s32.totalorder %s20, 0
    %p150 = por %p148, %p149
    %p151 = scmp.ne.s32.totalorder %s143, %s145
    %p152 = scmp.eq.s32.totalorder %s25, 1
    %p153 = por %p151, %p152
    %p154 = scmp.ne.s32.totalorder %s145, %s146
    %p155 = scmp.eq.s32.totalorder %s25, 0
    %p156 = por %p154, %p155
    %p157 = scmp.ne.s32.totalorder %s145, %s146
    %p158 = scmp.eq.s32.totalorder %s26, 1
    %p159 = por %p157, %p158
    %p161 = scmp.ne.s32.totalorder %s146, %s160
    %p162 = scmp.eq.s32.totalorder %s26, 0
    %p163 = por %p161, %p162
    %s165 = sadd.s32 %s164, 1
    %p168 = scmp.eq.s32.totalorder %s20, 1
    %p169 = scmp.ne.s32.totalorder %s164, %s166
    %p170 = scmp.eq.s32.totalorder %s20, 0
    %p171 = por %p169, %p170
    %p172 = scmp.ne.s32.totalorder %s164, %s166
    %p173 = scmp.eq.s32.totalorder %s25, 1
    %p174 = por %p172, %p173
    %p175 = scmp.ne.s32.totalorder %s166, %s167
    %p176 = scmp.eq.s32.totalorder %s25, 0
    %p177 = por %p175, %p176
    %p178 = scmp.ne.s32.totalorder %s166, %s167
    %p179 = scmp.eq.s32.totalorder %s26, 1
    %p180 = por %p178, %p179
    %p182 = scmp.ne.s32.totalorder %s167, %s181
    %p183 = scmp.eq.s32.totalorder %s26, 0
    %p184 = por %p182, %p183
    %s186 = sadd.s32 %s185, 1
    %p189 = scmp.eq.s32.totalorder %s20, 1
    %p190 = scmp.ne.s32.totalorder %s185, %s187
    %p191 = scmp.eq.s32.totalorder %s20, 0
    %p192 = por %p190, %p191
    %p193 = scmp.ne.s32.totalorder %s185, %s187
    %p194 = scmp.eq.s32.totalorder %s25, 1
    %p195 = por %p193, %p194
    %p196 = scmp.ne.s32.totalorder %s187, %s188
    %p197 = scmp.eq.s32.totalorder %s25, 0
    %p198 = por %p196, %p197
    %p199 = scmp.ne.s32.totalorder %s187, %s188
    %p200 = scmp.eq.s32.totalorder %s26, 1
    %p201 = por %p199, %p200
    %p203 = scmp.ne.s32.totalorder %s188, %s202
    %p204 = scmp.eq.s32.totalorder %s26, 0
    %p205 = por %p203, %p204
    %s207 = sadd.s32 %s206, 1
    %p210 = scmp.eq.s32.totalorder %s20, 1
    %p211 = scmp.ne.s32.totalorder %s206, %s208
    %p212 = scmp.eq.s32.totalorder %s20, 0
    %p213 = por %p211, %p212
    %p214 = scmp.ne.s32.totalorder %s206, %s208
    %p215 = scmp.eq.s32.totalorder %s25, 1
    %p216 = por %p214, %p215
    %p217 = scmp.ne.s32.totalorder %s208, %s209
    %p218 = scmp.eq.s32.totalorder %s25, 0
    %p219 = por %p217, %p218
    %p220 = scmp.ne.s32.totalorder %s208, %s209
    %p221 = scmp.eq.s32.totalorder %s26, 1
    %p222 = por %p220, %p221
    %p224 = scmp.ne.s32.totalorder %s209, %s223
    %p225 = scmp.eq.s32.totalorder %s26, 0
    %p226 = por %p224, %p225
    %s228 = sadd.s32 %s227, 1
    %p231 = scmp.eq.s32.totalorder %s20, 1
    %p232 = scmp.ne.s32.totalorder %s227, %s229
    %p233 = scmp.eq.s32.totalorder %s20, 0
    %p234 = por %p232, %p233
    %p235 = scmp.ne.s32.totalorder %s227, %s229
    %p236 = scmp.eq.s32.totalorder %s25, 1
    %p237 = por %p235, %p236
    %p238 = scmp.ne.s32.totalorder %s229, %s230
    %p239 = scmp.eq.s32.totalorder %s25, 0
    %p240 = por %p238, %p239
    %p241 = scmp.ne.s32.totalorder %s229, %s230
    %p242 = scmp.eq.s32.totalorder %s26, 1
    %p243 = por %p241, %p242
    %p245 = scmp.ne.s32.totalorder %s230, %s244
    %p246 = scmp.eq.s32.totalorder %s26, 0
    %p247 = por %p245, %p246
    %s249 = sadd.s32 %s248, 1
    %p252 = scmp.eq.s32.totalorder %s20, 1
    %p253 = scmp.ne.s32.totalorder %s248, %s250
    %p254 = scmp.eq.s32.totalorder %s20, 0
    %p255 = por %p253, %p254
    %p256 = scmp.ne.s32.totalorder %s248, %s250
    %p257 = scmp.eq.s32.totalorder %s25, 1
    %p258 = por %p256, %p257
    %p259 = scmp.ne.s32.totalorder %s250, %s251
    %p260 = scmp.eq.s32.totalorder %s25, 0
    %p261 = por %p259, %p260
    %p262 = scmp.ne.s32.totalorder %s250, %s251
    %p263 = scmp.eq.s32.totalorder %s26, 1
    %p264 = por %p262, %p263
    %p266 = scmp.ne.s32.totalorder %s251, %s265
    %p267 = scmp.eq.s32.totalorder %s26, 0
    %p268 = por %p266, %p267
    %s270 = sadd.s32 %s269, 1
    %p273 = scmp.eq.s32.totalorder %s20, 1
    %p274 = scmp.ne.s32.totalorder %s269, %s271
    %p275 = scmp.eq.s32.totalorder %s20, 0
    %p276 = por %p274, %p275
    %p277 = scmp.ne.s32.totalorder %s269, %s271
    %p278 = scmp.eq.s32.totalorder %s25, 1
    %p279 = por %p277, %p278
    %p280 = scmp.ne.s32.totalorder %s271, %s272
    %p281 = scmp.eq.s32.totalorder %s25, 0
    %p282 = por %p280, %p281
    %p283 = scmp.ne.s32.totalorder %s271, %s272
    %p284 = scmp.eq.s32.totalorder %s26, 1
    %p285 = por %p283, %p284
    %p287 = scmp.ne.s32.totalorder %s272, %s286
    %p288 = scmp.eq.s32.totalorder %s26, 0
    %p289 = por %p287, %p288
    %s290 = ssub.s32 %s20, %s27
    %p291 = scmp.eq.s32.totalorder %s290, 0
    %s293 = sadd.s32 %s292, 1
    %s294 = scalar_select %p291, %s292, %s293
    %p297 = pneg %p291
    %p298 = scmp.eq.s32.totalorder %s20, 1
    %p299 = por %p297, %p298
    %p300 = scmp.ne.s32.totalorder %s292, %s295
    %p301 = scmp.eq.s32.totalorder %s20, 0
    %p302 = por %p300, %p301
    %p303 = scmp.ne.s32.totalorder %s292, %s295
    %p304 = scmp.eq.s32.totalorder %s25, 1
    %p305 = por %p303, %p304
    %p306 = scmp.ne.s32.totalorder %s295, %s296
    %p307 = scmp.eq.s32.totalorder %s25, 0
    %p308 = por %p306, %p307
    %p309 = scmp.ne.s32.totalorder %s295, %s296
    %p310 = scmp.eq.s32.totalorder %s26, 1
    %p311 = por %p309, %p310
    %p313 = scmp.ne.s32.totalorder %s296, %s312
    %p314 = scmp.eq.s32.totalorder %s26, 0
    %p315 = por %p313, %p314
    %s316 = ssub.s32 %s20, %s27
    %p317 = scmp.eq.s32.totalorder %s316, 0
    %s319 = sadd.s32 %s318, 1
    %s320 = scalar_select %p317, %s318, %s319
    %p323 = pneg %p317
    %p324 = scmp.eq.s32.totalorder %s20, 1
    %p325 = por %p323, %p324
    %p326 = scmp.ne.s32.totalorder %s318, %s321
    %p327 = scmp.eq.s32.totalorder %s20, 0
    %p328 = por %p326, %p327
    %p329 = scmp.ne.s32.totalorder %s318, %s321
    %p330 = scmp.eq.s32.totalorder %s25, 1
    %p331 = por %p329, %p330
    %p332 = scmp.ne.s32.totalorder %s321, %s322
    %p333 = scmp.eq.s32.totalorder %s25, 0
    %p334 = por %p332, %p333
    %p335 = scmp.ne.s32.totalorder %s321, %s322
    %p336 = scmp.eq.s32.totalorder %s26, 1
    %p337 = por %p335, %p336
    %p339 = scmp.ne.s32.totalorder %s322, %s338
    %p340 = scmp.eq.s32.totalorder %s26, 0
    %p341 = por %p339, %p340
    %p342 = scmp.le.s32.totalorder 1, %s20
    %p343 = scmp.lt.s32.totalorder %s20, 3
    %p344 = pnand %p342, %p343
    %p345 = pneg %p344
    // Predicated region
    $region9: #{tpu_custom_call.1} parent=5 // pred_check
      _
    $region10: #{tpu_custom_call.1} parent=5 // pred_check_branch
      %347 = sbr.rel (%p344) target = $region12
    $region11: #{tpu_custom_call.1} parent=5 // pred_region
      %s348 = ssub.s32 %s20, 1
      // Predicated region
      $region13: #{tpu_custom_call.1} parent=11 // pred_check
        %p349 = pneg %p93
      $region14: #{tpu_custom_call.1} parent=11 // pred_check_branch
        %351 = sbr.rel (%p349) target = $region16
      $region15: #{tpu_custom_call.1} parent=11 // pred_region
        _
      $region16: #{tpu_custom_call.1} parent=11 // pred_fallthru
        _
      // Predicated region
      $region17: #{tpu_custom_call.1} parent=11 // pred_check
        %p352 = pneg %p114
      $region18: #{tpu_custom_call.1} parent=11 // pred_check_branch
        %354 = sbr.rel (%p352) target = $region20
      $region19: #{tpu_custom_call.1} parent=11 // pred_region
        _
      $region20: #{tpu_custom_call.1} parent=11 // pred_fallthru
        _
      // Predicated region
      $region21: #{tpu_custom_call.1} parent=11 // pred_check
        %p355 = pneg %p135
      $region22: #{tpu_custom_call.1} parent=11 // pred_check_branch
        %357 = sbr.rel (%p355) target = $region24
      $region23: #{tpu_custom_call.1} parent=11 // pred_region
        _
      $region24: #{tpu_custom_call.1} parent=11 // pred_fallthru
        _
      // Predicated region
      $region25: #{tpu_custom_call.1} parent=11 // pred_check
        %p358 = pneg %p156
      $region26: #{tpu_custom_call.1} parent=11 // pred_check_branch
        %360 = sbr.rel (%p358) target = $region28
      $region27: #{tpu_custom_call.1} parent=11 // pred_region
        _
      $region28: #{tpu_custom_call.1} parent=11 // pred_fallthru
        _
      // Predicated region
      $region29: #{tpu_custom_call.1} parent=11 // pred_check
        %p361 = pneg %p177
      $region30: #{tpu_custom_call.1} parent=11 // pred_check_branch
        %363 = sbr.rel (%p361) target = $region32
      $region31: #{tpu_custom_call.1} parent=11 // pred_region
        _
      $region32: #{tpu_custom_call.1} parent=11 // pred_fallthru
        _
      // Predicated region
      $region33: #{tpu_custom_call.1} parent=11 // pred_check
        %p364 = pneg %p198
      $region34: #{tpu_custom_call.1} parent=11 // pred_check_branch
        %366 = sbr.rel (%p364) target = $region36
      $region35: #{tpu_custom_call.1} parent=11 // pred_region
        _
      $region36: #{tpu_custom_call.1} parent=11 // pred_fallthru
        _
      // Predicated region
      $region37: #{tpu_custom_call.1} parent=11 // pred_check
        %p367 = pneg %p219
      $region38: #{tpu_custom_call.1} parent=11 // pred_check_branch
        %369 = sbr.rel (%p367) target = $region40
      $region39: #{tpu_custom_call.1} parent=11 // pred_region
        _
      $region40: #{tpu_custom_call.1} parent=11 // pred_fallthru
        _
      // Predicated region
      $region41: #{tpu_custom_call.1} parent=11 // pred_check
        %p370 = pneg %p240
      $region42: #{tpu_custom_call.1} parent=11 // pred_check_branch
        %372 = sbr.rel (%p370) target = $region44
      $region43: #{tpu_custom_call.1} parent=11 // pred_region
        _
      $region44: #{tpu_custom_call.1} parent=11 // pred_fallthru
        _
      // Predicated region
      $region45: #{tpu_custom_call.1} parent=11 // pred_check
        %p373 = pneg %p261
      $region46: #{tpu_custom_call.1} parent=11 // pred_check_branch
        %375 = sbr.rel (%p373) target = $region48
      $region47: #{tpu_custom_call.1} parent=11 // pred_region
        _
      $region48: #{tpu_custom_call.1} parent=11 // pred_fallthru
        _
      // Predicated region
      $region49: #{tpu_custom_call.1} parent=11 // pred_check
        %p376 = pneg %p282
      $region50: #{tpu_custom_call.1} parent=11 // pred_check_branch
        %378 = sbr.rel (%p376) target = $region52
      $region51: #{tpu_custom_call.1} parent=11 // pred_region
        _
      $region52: #{tpu_custom_call.1} parent=11 // pred_fallthru
        _
    $region12: #{tpu_custom_call.1} parent=5 // pred_fallthru
      _
    %p379 = scmp.lt.s32.totalorder %s20, 2
    // Predicated region
    $region53: #{tpu_custom_call.1} parent=5 // pred_check
      %p380 = pneg %p379
    $region54: #{tpu_custom_call.1} parent=5 // pred_check_branch
      %382 = sbr.rel (%p380) target = $region56
    $region55: #{tpu_custom_call.1} parent=5 // pred_region
      // Predicated region
      $region57: #{tpu_custom_call.1} parent=55 // pred_check
        %p383 = pneg %p40
      $region58: #{tpu_custom_call.1} parent=55 // pred_check_branch
        %385 = sbr.rel (%p383) target = $region60
      $region59: #{tpu_custom_call.1} parent=55 // pred_region
        %p386 = scmp.lt.s32.totalorder %s20, 1
        %s387 = scalar_select %p386, %s20, 1
        %s388 = smul.addr %s387, 60
        %s389 = smul.addr %s388, 4
        %s390 = scalar_lea.vmem %s0, %s389
      $region60: #{tpu_custom_call.1} parent=55 // pred_fallthru
        _
      // Predicated region
      $region61: #{tpu_custom_call.1} parent=55 // pred_check
        %p391 = pneg %p66
      $region62: #{tpu_custom_call.1} parent=55 // pred_check_branch
        %393 = sbr.rel (%p391) target = $region64
      $region63: #{tpu_custom_call.1} parent=55 // pred_region
        %p394 = scmp.lt.s32.totalorder %s20, 1
        %s395 = scalar_select %p394, %s20, 1
        %s396 = smul.addr %s395, 24
        %s397 = smul.addr %s396, 4
        %s398 = scalar_lea.vmem %s1, %s397
      $region64: #{tpu_custom_call.1} parent=55 // pred_fallthru
        _
    $region56: #{tpu_custom_call.1} parent=5 // pred_fallthru
      _
    %p399 = scmp.le.s32.totalorder 1, %s20
    %p400 = scmp.lt.s32.totalorder %s20, 3
    %p401 = pnand %p399, %p400
    %p402 = pneg %p401
    // Predicated region
    $region65: #{tpu_custom_call.1} parent=5 // pred_check
      _
    $region66: #{tpu_custom_call.1} parent=5 // pred_check_branch
      %404 = sbr.rel (%p401) target = $region68
    $region67: #{tpu_custom_call.1} parent=5 // pred_region
      %s405 = ssub.s32 %s20, 1
      %p406 = scmp.lt.s32.totalorder %s25, 1
      %s407 = scalar_select %p406, %s25, 1
      %s408 = smul.addr %s407, 60
      %s409 = smul.addr %s408, 4
      %s410 = scalar_lea.vmem %s0, %s409
      %p411 = pneg %p46
      %p412 = pneg %p43
      %p413 = scmp.lt.s32.totalorder %s25, 1
      %s414 = scalar_select %p413, %s25, 1
      %s415 = smul.addr %s414, 24
      %s416 = smul.addr %s415, 4
      %s417 = scalar_lea.vmem %s1, %s416
      %p418 = pneg %p72
      %p419 = pneg %p69
      %p420 = pneg %p93
      %p421 = pneg %p90
      %p422 = pneg %p114
      %p423 = pneg %p111
      %p424 = pneg %p135
      %p425 = pneg %p132
      %p426 = pneg %p156
      %p427 = pneg %p153
      %p428 = pneg %p177
      %p429 = pneg %p174
      %p430 = pneg %p198
      %p431 = pneg %p195
      %p432 = pneg %p219
      %p433 = pneg %p216
      %p434 = pneg %p240
      %p435 = pneg %p237
      %p436 = pneg %p261
      %p437 = pneg %p258
      %p438 = pneg %p282
      %p439 = pneg %p279
      %p440 = pneg %p308
      %p441 = pneg %p305
      %p442 = scmp.lt.s32.totalorder %s25, 1
      %s443 = scalar_select %p442, %s25, 1
      %s444 = smul.addr %s443, 32
      %s445 = smul.addr %s444, 8
      %s446 = scalar_lea.vmem %s12, %s445
      %p447 = pneg %p334
      %p448 = pneg %p331
      %p449 = scmp.lt.s32.totalorder %s25, 1
      %s450 = scalar_select %p449, %s25, 1
      %s451 = smul.addr %s450, 32
      %s452 = smul.addr %s451, 8
      %s453 = scalar_lea.vmem %s13, %s452
      %p454 = scmp.lt.s32.totalorder %s25, 1
      %s455 = scalar_select %p454, %s25, 1
      %s456 = smul.addr %s455, 60
      %s457 = smul.addr %s456, 4
      %s458 = scalar_lea.vmem %s0, %s457
      %p459 = scmp.lt.s32.totalorder %s25, 1
      %s460 = scalar_select %p459, %s25, 1
      %s461 = smul.addr %s460, 24
      %s462 = smul.addr %s461, 4
      %s463 = scalar_lea.vmem %s1, %s462
      %p464 = scmp.lt.s32.totalorder %s25, 1
      %s465 = scalar_select %p464, %s25, 1
      %s466 = smul.addr %s465, 32
      %s467 = smul.addr %s466, 8
      %s468 = scalar_lea.vmem %s12, %s467
      %p469 = scmp.lt.s32.totalorder %s25, 1
      %s470 = scalar_select %p469, %s25, 1
      %s471 = smul.addr %s470, 32
      %s472 = smul.addr %s471, 8
      %s473 = scalar_lea.vmem %s13, %s472
      %v475 = vld [vmem:[%s458] sm:$0xf]
      %v476 = vld [vmem:[%s458 + $0x4] sm:$0xf]
      %v477 = vld [vmem:[%s458 + $0xc] sm:$0xf]
      %v478 = vld [vmem:[%s458 + $0x10] sm:$0xf]
      %v479 = vld [vmem:[%s458 + $0x18] sm:$0xf]
      %v480 = vld [vmem:[%s458 + $0x1c] sm:$0xf]
      %v481 = vld [vmem:[%s458 + $0x24] sm:$0xf]
      %v482 = vld [vmem:[%s458 + $0x28] sm:$0xf]
      %v483 = vld [vmem:[%s458 + $0x30] sm:$0xf]
      %v484 = vld [vmem:[%s458 + $0x34] sm:$0xf]
      %v485 = vld [vmem:[%s458 + $0x3c] sm:$0xf]
      %v486 = vld [vmem:[%s458 + $0x40] sm:$0xf]
      %v487 = vld [vmem:[%s458 + $0x48] sm:$0xf]
      %v488 = vld [vmem:[%s458 + $0x4c] sm:$0xf]
      %v489 = vld [vmem:[%s458 + $0x54] sm:$0xf]
      %v490 = vld [vmem:[%s458 + $0x58] sm:$0xf]
      %v491 = vld [vmem:[%s458 + $0x60] sm:$0xf]
      %v492 = vld [vmem:[%s458 + $0x64] sm:$0xf]
      %v493 = vld [vmem:[%s458 + $0x6c] sm:$0xf]
      %v494 = vld [vmem:[%s458 + $0x70] sm:$0xf]
      %v495 = vld [vmem:[%s458 + $0x78] sm:$0xf]
      %v496 = vld [vmem:[%s458 + $0x7c] sm:$0xf]
      %v497 = vld [vmem:[%s458 + $0x84] sm:$0xf]
      %v498 = vld [vmem:[%s458 + $0x88] sm:$0xf]
      %v499 = vld [vmem:[%s458 + $0x90] sm:$0xf]
      %v500 = vld [vmem:[%s458 + $0x94] sm:$0xf]
      %v501 = vld [vmem:[%s458 + $0x9c] sm:$0xf]
      %v502 = vld [vmem:[%s458 + $0xa0] sm:$0xf]
      %v503 = vld [vmem:[%s458 + $0xa8] sm:$0xf]
      %v504 = vld [vmem:[%s458 + $0xac] sm:$0xf]
      %v505 = vld [vmem:[%s458 + $0xb4] sm:$0xf]
      %v506 = vld [vmem:[%s458 + $0xb8] sm:$0xf]
      %v507 = vld [vmem:[%s458] sm:$0xe]
      %v508 = vld [vmem:[%s458 + $0x8] sm:$0x1]
      %v509 = vld [vmem:[%s458 + $0xc] sm:$0xe]
      %v510 = vld [vmem:[%s458 + $0x14] sm:$0x1]
      %v511 = vld [vmem:[%s458 + $0x18] sm:$0xe]
      %v512 = vld [vmem:[%s458 + $0x20] sm:$0x1]
      %v513 = vld [vmem:[%s458 + $0x24] sm:$0xe]
      %v514 = vld [vmem:[%s458 + $0x2c] sm:$0x1]
      %v515 = vld [vmem:[%s458 + $0x30] sm:$0xe]
      %v516 = vld [vmem:[%s458 + $0x38] sm:$0x1]
      %v517 = vld [vmem:[%s458 + $0x3c] sm:$0xe]
      %v518 = vld [vmem:[%s458 + $0x44] sm:$0x1]
      %v519 = vld [vmem:[%s458 + $0x48] sm:$0xe]
      %v520 = vld [vmem:[%s458 + $0x50] sm:$0x1]
      %v521 = vld [vmem:[%s458 + $0x54] sm:$0xe]
      %v522 = vld [vmem:[%s458 + $0x5c] sm:$0x1]
      %v523 = vld [vmem:[%s458 + $0x60] sm:$0xe]
      %v524 = vld [vmem:[%s458 + $0x68] sm:$0x1]
      %v525 = vld [vmem:[%s458 + $0x6c] sm:$0xe]
      %v526 = vld [vmem:[%s458 + $0x74] sm:$0x1]
      %v527 = vld [vmem:[%s458 + $0x78] sm:$0xe]
      %v528 = vld [vmem:[%s458 + $0x80] sm:$0x1]
      %v529 = vld [vmem:[%s458 + $0x84] sm:$0xe]
      %v530 = vld [vmem:[%s458 + $0x8c] sm:$0x1]
      %v531 = vld [vmem:[%s458 + $0x90] sm:$0xe]
      %v532 = vld [vmem:[%s458 + $0x98] sm:$0x1]
      %v533 = vld [vmem:[%s458 + $0x9c] sm:$0xe]
      %v534 = vld [vmem:[%s458 + $0xa4] sm:$0x1]
      %v535 = vld [vmem:[%s458 + $0xa8] sm:$0xe]
      %v536 = vld [vmem:[%s458 + $0xb0] sm:$0x1]
      %v537 = vld [vmem:[%s458 + $0xb4] sm:$0xe]
      %v538 = vld [vmem:[%s458 + $0xbc] sm:$0x1]
      %vm587 = vcmask 1042432
      %vm588 = vcmask 1046532
      %vm589 = vmor %vm587, %vm588
      %v590 = vrot.slane %v507, 5
      %v591 = vrot.slane %v590, 4
      %v592 = vrot.slane %v476, 5
      %v593 = vsel %vm589, %v591, %v592
      %v594 = vrot.slane %v592, 4
      %v595 = vrot.slane %v508, 5
      %v596 = vsel %vm589, %v594, %v595
      %v597 = vrot.slane %v509, 5
      %v598 = vrot.slane %v597, 4
      %v599 = vrot.slane %v478, 5
      %v600 = vsel %vm589, %v598, %v599
      %v601 = vrot.slane %v599, 4
      %v602 = vrot.slane %v510, 5
      %v603 = vsel %vm589, %v601, %v602
      %v604 = vrot.slane %v511, 5
      %v605 = vrot.slane %v604, 4
      %v606 = vrot.slane %v480, 5
      %v607 = vsel %vm589, %v605, %v606
      %v608 = vrot.slane %v606, 4
      %v609 = vrot.slane %v512, 5
      %v610 = vsel %vm589, %v608, %v609
      %v611 = vrot.slane %v513, 5
      %v612 = vrot.slane %v611, 4
      %v613 = vrot.slane %v482, 5
      %v614 = vsel %vm589, %v612, %v613
      %v615 = vrot.slane %v613, 4
      %v616 = vrot.slane %v514, 5
      %v617 = vsel %vm589, %v615, %v616
      %v618 = vrot.slane %v515, 5
      %v619 = vrot.slane %v618, 4
      %v620 = vrot.slane %v484, 5
      %v621 = vsel %vm589, %v619, %v620
      %v622 = vrot.slane %v620, 4
      %v623 = vrot.slane %v516, 5
      %v624 = vsel %vm589, %v622, %v623
      %v625 = vrot.slane %v517, 5
      %v626 = vrot.slane %v625, 4
      %v627 = vrot.slane %v486, 5
      %v628 = vsel %vm589, %v626, %v627
      %v629 = vrot.slane %v627, 4
      %v630 = vrot.slane %v518, 5
      %v631 = vsel %vm589, %v629, %v630
      %v632 = vrot.slane %v519, 5
      %v633 = vrot.slane %v632, 4
      %v634 = vrot.slane %v488, 5
      %v635 = vsel %vm589, %v633, %v634
      %v636 = vrot.slane %v634, 4
      %v637 = vrot.slane %v520, 5
      %v638 = vsel %vm589, %v636, %v637
      %v639 = vrot.slane %v521, 5
      %v640 = vrot.slane %v639, 4
      %v641 = vrot.slane %v490, 5
      %v642 = vsel %vm589, %v640, %v641
      %v643 = vrot.slane %v641, 4
      %v644 = vrot.slane %v522, 5
      %v645 = vsel %vm589, %v643, %v644
      %v646 = vrot.slane %v523, 5
      %v647 = vrot.slane %v646, 4
      %v648 = vrot.slane %v492, 5
      %v649 = vsel %vm589, %v647, %v648
      %v650 = vrot.slane %v648, 4
      %v651 = vrot.slane %v524, 5
      %v652 = vsel %vm589, %v650, %v651
      %v653 = vrot.slane %v525, 5
      %v654 = vrot.slane %v653, 4
      %v655 = vrot.slane %v494, 5
      %v656 = vsel %vm589, %v654, %v655
      %v657 = vrot.slane %v655, 4
      %v658 = vrot.slane %v526, 5
      %v659 = vsel %vm589, %v657, %v658
      %v660 = vrot.slane %v527, 5
      %v661 = vrot.slane %v660, 4
      %v662 = vrot.slane %v496, 5
      %v663 = vsel %vm589, %v661, %v662
      %v664 = vrot.slane %v662, 4
      %v665 = vrot.slane %v528, 5
      %v666 = vsel %vm589, %v664, %v665
      %v667 = vrot.slane %v529, 5
      %v668 = vrot.slane %v667, 4
      %v669 = vrot.slane %v498, 5
      %v670 = vsel %vm589, %v668, %v669
      %v671 = vrot.slane %v669, 4
      %v672 = vrot.slane %v530, 5
      %v673 = vsel %vm589, %v671, %v672
      %v674 = vrot.slane %v531, 5
      %v675 = vrot.slane %v674, 4
      %v676 = vrot.slane %v500, 5
      %v677 = vsel %vm589, %v675, %v676
      %v678 = vrot.slane %v676, 4
      %v679 = vrot.slane %v532, 5
      %v680 = vsel %vm589, %v678, %v679
      %v681 = vrot.slane %v533, 5
      %v682 = vrot.slane %v681, 4
      %v683 = vrot.slane %v502, 5
      %v684 = vsel %vm589, %v682, %v683
      %v685 = vrot.slane %v683, 4
      %v686 = vrot.slane %v534, 5
      %v687 = vsel %vm589, %v685, %v686
      %v688 = vrot.slane %v535, 5
      %v689 = vrot.slane %v688, 4
      %v690 = vrot.slane %v504, 5
      %v691 = vsel %vm589, %v689, %v690
      %v692 = vrot.slane %v690, 4
      %v693 = vrot.slane %v536, 5
      %v694 = vsel %vm589, %v692, %v693
      %v695 = vrot.slane %v537, 5
      %v696 = vrot.slane %v695, 4
      %v697 = vrot.slane %v506, 5
      %v698 = vsel %vm589, %v696, %v697
      %v699 = vrot.slane %v697, 4
      %v700 = vrot.slane %v538, 5
      %v701 = vsel %vm589, %v699, %v700
      %v702 = vld [vmem:[%s458] sm:$0xc]
      %v703 = vld [vmem:[%s458 + $0x8] sm:$0x3]
      %v704 = vld [vmem:[%s458 + $0xc] sm:$0xc]
      %v705 = vld [vmem:[%s458 + $0x14] sm:$0x3]
      %v706 = vld [vmem:[%s458 + $0x18] sm:$0xc]
      %v707 = vld [vmem:[%s458 + $0x20] sm:$0x3]
      %v708 = vld [vmem:[%s458 + $0x24] sm:$0xc]
      %v709 = vld [vmem:[%s458 + $0x2c] sm:$0x3]
      %v710 = vld [vmem:[%s458 + $0x30] sm:$0xc]
      %v711 = vld [vmem:[%s458 + $0x38] sm:$0x3]
      %v712 = vld [vmem:[%s458 + $0x3c] sm:$0xc]
      %v713 = vld [vmem:[%s458 + $0x44] sm:$0x3]
      %v714 = vld [vmem:[%s458 + $0x48] sm:$0xc]
      %v715 = vld [vmem:[%s458 + $0x50] sm:$0x3]
      %v716 = vld [vmem:[%s458 + $0x54] sm:$0xc]
      %v717 = vld [vmem:[%s458 + $0x5c] sm:$0x3]
      %v718 = vld [vmem:[%s458 + $0x60] sm:$0xc]
      %v719 = vld [vmem:[%s458 + $0x68] sm:$0x3]
      %v720 = vld [vmem:[%s458 + $0x6c] sm:$0xc]
      %v721 = vld [vmem:[%s458 + $0x74] sm:$0x3]
      %v722 = vld [vmem:[%s458 + $0x78] sm:$0xc]
      %v723 = vld [vmem:[%s458 + $0x80] sm:$0x3]
      %v724 = vld [vmem:[%s458 + $0x84] sm:$0xc]
      %v725 = vld [vmem:[%s458 + $0x8c] sm:$0x3]
      %v726 = vld [vmem:[%s458 + $0x90] sm:$0xc]
      %v727 = vld [vmem:[%s458 + $0x98] sm:$0x3]
      %v728 = vld [vmem:[%s458 + $0x9c] sm:$0xc]
      %v729 = vld [vmem:[%s458 + $0xa4] sm:$0x3]
      %v730 = vld [vmem:[%s458 + $0xa8] sm:$0xc]
      %v731 = vld [vmem:[%s458 + $0xb0] sm:$0x3]
      %v732 = vld [vmem:[%s458 + $0xb4] sm:$0xc]
      %v733 = vld [vmem:[%s458 + $0xbc] sm:$0x3]
      %vm766 = vcmask 1041408
      %vm767 = vcmask 1045508
      %vm768 = vmor %vm766, %vm767
      %v769 = vrot.slane %v702, 6
      %v770 = vrot.slane %v769, 4
      %v771 = vrot.slane %v476, 6
      %v772 = vsel %vm768, %v770, %v771
      %v773 = vrot.slane %v771, 4
      %v774 = vrot.slane %v703, 6
      %v775 = vsel %vm768, %v773, %v774
      %v776 = vrot.slane %v704, 6
      %v777 = vrot.slane %v776, 4
      %v778 = vrot.slane %v478, 6
      %v779 = vsel %vm768, %v777, %v778
      %v780 = vrot.slane %v778, 4
      %v781 = vrot.slane %v705, 6
      %v782 = vsel %vm768, %v780, %v781
      %v783 = vrot.slane %v706, 6
      %v784 = vrot.slane %v783, 4
      %v785 = vrot.slane %v480, 6
      %v786 = vsel %vm768, %v784, %v785
      %v787 = vrot.slane %v785, 4
      %v788 = vrot.slane %v707, 6
      %v789 = vsel %vm768, %v787, %v788
      %v790 = vrot.slane %v708, 6
      %v791 = vrot.slane %v790, 4
      %v792 = vrot.slane %v482, 6
      %v793 = vsel %vm768, %v791, %v792
      %v794 = vrot.slane %v792, 4
      %v795 = vrot.slane %v709, 6
      %v796 = vsel %vm768, %v794, %v795
      %v797 = vrot.slane %v710, 6
      %v798 = vrot.slane %v797, 4
      %v799 = vrot.slane %v484, 6
      %v800 = vsel %vm768, %v798, %v799
      %v801 = vrot.slane %v799, 4
      %v802 = vrot.slane %v711, 6
      %v803 = vsel %vm768, %v801, %v802
      %v804 = vrot.slane %v712, 6
      %v805 = vrot.slane %v804, 4
      %v806 = vrot.slane %v486, 6
      %v807 = vsel %vm768, %v805, %v806
      %v808 = vrot.slane %v806, 4
      %v809 = vrot.slane %v713, 6
      %v810 = vsel %vm768, %v808, %v809
      %v811 = vrot.slane %v714, 6
      %v812 = vrot.slane %v811, 4
      %v813 = vrot.slane %v488, 6
      %v814 = vsel %vm768, %v812, %v813
      %v815 = vrot.slane %v813, 4
      %v816 = vrot.slane %v715, 6
      %v817 = vsel %vm768, %v815, %v816
      %v818 = vrot.slane %v716, 6
      %v819 = vrot.slane %v818, 4
      %v820 = vrot.slane %v490, 6
      %v821 = vsel %vm768, %v819, %v820
      %v822 = vrot.slane %v820, 4
      %v823 = vrot.slane %v717, 6
      %v824 = vsel %vm768, %v822, %v823
      %v825 = vrot.slane %v718, 6
      %v826 = vrot.slane %v825, 4
      %v827 = vrot.slane %v492, 6
      %v828 = vsel %vm768, %v826, %v827
      %v829 = vrot.slane %v827, 4
      %v830 = vrot.slane %v719, 6
      %v831 = vsel %vm768, %v829, %v830
      %v832 = vrot.slane %v720, 6
      %v833 = vrot.slane %v832, 4
      %v834 = vrot.slane %v494, 6
      %v835 = vsel %vm768, %v833, %v834
      %v836 = vrot.slane %v834, 4
      %v837 = vrot.slane %v721, 6
      %v838 = vsel %vm768, %v836, %v837
      %v839 = vrot.slane %v722, 6
      %v840 = vrot.slane %v839, 4
      %v841 = vrot.slane %v496, 6
      %v842 = vsel %vm768, %v840, %v841
      %v843 = vrot.slane %v841, 4
      %v844 = vrot.slane %v723, 6
      %v845 = vsel %vm768, %v843, %v844
      %v846 = vrot.slane %v724, 6
      %v847 = vrot.slane %v846, 4
      %v848 = vrot.slane %v498, 6
      %v849 = vsel %vm768, %v847, %v848
      %v850 = vrot.slane %v848, 4
      %v851 = vrot.slane %v725, 6
      %v852 = vsel %vm768, %v850, %v851
      %v853 = vrot.slane %v726, 6
      %v854 = vrot.slane %v853, 4
      %v855 = vrot.slane %v500, 6
      %v856 = vsel %vm768, %v854, %v855
      %v857 = vrot.slane %v855, 4
      %v858 = vrot.slane %v727, 6
      %v859 = vsel %vm768, %v857, %v858
      %v860 = vrot.slane %v728, 6
      %v861 = vrot.slane %v860, 4
      %v862 = vrot.slane %v502, 6
      %v863 = vsel %vm768, %v861, %v862
      %v864 = vrot.slane %v862, 4
      %v865 = vrot.slane %v729, 6
      %v866 = vsel %vm768, %v864, %v865
      %v867 = vrot.slane %v730, 6
      %v868 = vrot.slane %v867, 4
      %v869 = vrot.slane %v504, 6
      %v870 = vsel %vm768, %v868, %v869
      %v871 = vrot.slane %v869, 4
      %v872 = vrot.slane %v731, 6
      %v873 = vsel %vm768, %v871, %v872
      %v874 = vrot.slane %v732, 6
      %v875 = vrot.slane %v874, 4
      %v876 = vrot.slane %v506, 6
      %v877 = vsel %vm768, %v875, %v876
      %v878 = vrot.slane %v876, 4
      %v879 = vrot.slane %v733, 6
      %v880 = vsel %vm768, %v878, %v879
      %s881 = scalar_lea.vmem %s458, 24
      %v882 = vld [vmem:[%s881] sm:$0xf]
      %v883 = vld [vmem:[%s881 + $0x4] sm:$0xf]
      %v884 = vld [vmem:[%s881 + $0xc] sm:$0xf]
      %v885 = vld [vmem:[%s881 + $0x10] sm:$0xf]
      %v886 = vld [vmem:[%s881 + $0x18] sm:$0xf]
      %v887 = vld [vmem:[%s881 + $0x1c] sm:$0xf]
      %v888 = vld [vmem:[%s881 + $0x24] sm:$0xf]
      %v889 = vld [vmem:[%s881 + $0x28] sm:$0xf]
      %v890 = vld [vmem:[%s881 + $0x30] sm:$0xf]
      %v891 = vld [vmem:[%s881 + $0x34] sm:$0xf]
      %v892 = vld [vmem:[%s881 + $0x3c] sm:$0xf]
      %v893 = vld [vmem:[%s881 + $0x40] sm:$0xf]
      %v894 = vld [vmem:[%s881 + $0x48] sm:$0xf]
      %v895 = vld [vmem:[%s881 + $0x4c] sm:$0xf]
      %v896 = vld [vmem:[%s881 + $0x54] sm:$0xf]
      %v897 = vld [vmem:[%s881 + $0x58] sm:$0xf]
      %v898 = vld [vmem:[%s881 + $0x60] sm:$0xf]
      %v899 = vld [vmem:[%s881 + $0x64] sm:$0xf]
      %v900 = vld [vmem:[%s881 + $0x6c] sm:$0xf]
      %v901 = vld [vmem:[%s881 + $0x70] sm:$0xf]
      %v902 = vld [vmem:[%s881 + $0x78] sm:$0xf]
      %v903 = vld [vmem:[%s881 + $0x7c] sm:$0xf]
      %v904 = vld [vmem:[%s881 + $0x84] sm:$0xf]
      %v905 = vld [vmem:[%s881 + $0x88] sm:$0xf]
      %v906 = vld [vmem:[%s881 + $0x90] sm:$0xf]
      %v907 = vld [vmem:[%s881 + $0x94] sm:$0xf]
      %v908 = vld [vmem:[%s881 + $0x9c] sm:$0xf]
      %v909 = vld [vmem:[%s881 + $0xa0] sm:$0xf]
      %v910 = vld [vmem:[%s881 + $0xa8] sm:$0xf]
      %v911 = vld [vmem:[%s881 + $0xac] sm:$0xf]
      %v912 = vld [vmem:[%s881 + $0xb4] sm:$0xf]
      %v913 = vld [vmem:[%s881 + $0xb8] sm:$0xf]
      %v914 = vld [vmem:[%s881] sm:$0xe]
      %v915 = vld [vmem:[%s881 + $0x8] sm:$0x1]
      %v916 = vld [vmem:[%s881 + $0xc] sm:$0xe]
      %v917 = vld [vmem:[%s881 + $0x14] sm:$0x1]
      %v918 = vld [vmem:[%s881 + $0x18] sm:$0xe]
      %v919 = vld [vmem:[%s881 + $0x20] sm:$0x1]
      %v920 = vld [vmem:[%s881 + $0x24] sm:$0xe]
      %v921 = vld [vmem:[%s881 + $0x2c] sm:$0x1]
      %v922 = vld [vmem:[%s881 + $0x30] sm:$0xe]
      %v923 = vld [vmem:[%s881 + $0x38] sm:$0x1]
      %v924 = vld [vmem:[%s881 + $0x3c] sm:$0xe]
      %v925 = vld [vmem:[%s881 + $0x44] sm:$0x1]
      %v926 = vld [vmem:[%s881 + $0x48] sm:$0xe]
      %v927 = vld [vmem:[%s881 + $0x50] sm:$0x1]
      %v928 = vld [vmem:[%s881 + $0x54] sm:$0xe]
      %v929 = vld [vmem:[%s881 + $0x5c] sm:$0x1]
      %v930 = vld [vmem:[%s881 + $0x60] sm:$0xe]
      %v931 = vld [vmem:[%s881 + $0x68] sm:$0x1]
      %v932 = vld [vmem:[%s881 + $0x6c] sm:$0xe]
      %v933 = vld [vmem:[%s881 + $0x74] sm:$0x1]
      %v934 = vld [vmem:[%s881 + $0x78] sm:$0xe]
      %v935 = vld [vmem:[%s881 + $0x80] sm:$0x1]
      %v936 = vld [vmem:[%s881 + $0x84] sm:$0xe]
      %v937 = vld [vmem:[%s881 + $0x8c] sm:$0x1]
      %v938 = vld [vmem:[%s881 + $0x90] sm:$0xe]
      %v939 = vld [vmem:[%s881 + $0x98] sm:$0x1]
      %v940 = vld [vmem:[%s881 + $0x9c] sm:$0xe]
      %v941 = vld [vmem:[%s881 + $0xa4] sm:$0x1]
      %v942 = vld [vmem:[%s881 + $0xa8] sm:$0xe]
      %v943 = vld [vmem:[%s881 + $0xb0] sm:$0x1]
      %v944 = vld [vmem:[%s881 + $0xb4] sm:$0xe]
      %v945 = vld [vmem:[%s881 + $0xbc] sm:$0x1]
      %v994 = vrot.slane %v914, 5
      %v995 = vrot.slane %v994, 4
      %v996 = vrot.slane %v883, 5
      %v997 = vsel %vm589, %v995, %v996
      %v998 = vrot.slane %v996, 4
      %v999 = vrot.slane %v915, 5
      %v1000 = vsel %vm589, %v998, %v999
      %v1001 = vrot.slane %v916, 5
      %v1002 = vrot.slane %v1001, 4
      %v1003 = vrot.slane %v885, 5
      %v1004 = vsel %vm589, %v1002, %v1003
      %v1005 = vrot.slane %v1003, 4
      %v1006 = vrot.slane %v917, 5
      %v1007 = vsel %vm589, %v1005, %v1006
      %v1008 = vrot.slane %v918, 5
      %v1009 = vrot.slane %v1008, 4
      %v1010 = vrot.slane %v887, 5
      %v1011 = vsel %vm589, %v1009, %v1010
      %v1012 = vrot.slane %v1010, 4
      %v1013 = vrot.slane %v919, 5
      %v1014 = vsel %vm589, %v1012, %v1013
      %v1015 = vrot.slane %v920, 5
      %v1016 = vrot.slane %v1015, 4
      %v1017 = vrot.slane %v889, 5
      %v1018 = vsel %vm589, %v1016, %v1017
      %v1019 = vrot.slane %v1017, 4
      %v1020 = vrot.slane %v921, 5
      %v1021 = vsel %vm589, %v1019, %v1020
      %v1022 = vrot.slane %v922, 5
      %v1023 = vrot.slane %v1022, 4
      %v1024 = vrot.slane %v891, 5
      %v1025 = vsel %vm589, %v1023, %v1024
      %v1026 = vrot.slane %v1024, 4
      %v1027 = vrot.slane %v923, 5
      %v1028 = vsel %vm589, %v1026, %v1027
      %v1029 = vrot.slane %v924, 5
      %v1030 = vrot.slane %v1029, 4
      %v1031 = vrot.slane %v893, 5
      %v1032 = vsel %vm589, %v1030, %v1031
      %v1033 = vrot.slane %v1031, 4
      %v1034 = vrot.slane %v925, 5
      %v1035 = vsel %vm589, %v1033, %v1034
      %v1036 = vrot.slane %v926, 5
      %v1037 = vrot.slane %v1036, 4
      %v1038 = vrot.slane %v895, 5
      %v1039 = vsel %vm589, %v1037, %v1038
      %v1040 = vrot.slane %v1038, 4
      %v1041 = vrot.slane %v927, 5
      %v1042 = vsel %vm589, %v1040, %v1041
      %v1043 = vrot.slane %v928, 5
      %v1044 = vrot.slane %v1043, 4
      %v1045 = vrot.slane %v897, 5
      %v1046 = vsel %vm589, %v1044, %v1045
      %v1047 = vrot.slane %v1045, 4
      %v1048 = vrot.slane %v929, 5
      %v1049 = vsel %vm589, %v1047, %v1048
      %v1050 = vrot.slane %v930, 5
      %v1051 = vrot.slane %v1050, 4
      %v1052 = vrot.slane %v899, 5
      %v1053 = vsel %vm589, %v1051, %v1052
      %v1054 = vrot.slane %v1052, 4
      %v1055 = vrot.slane %v931, 5
      %v1056 = vsel %vm589, %v1054, %v1055
      %v1057 = vrot.slane %v932, 5
      %v1058 = vrot.slane %v1057, 4
      %v1059 = vrot.slane %v901, 5
      %v1060 = vsel %vm589, %v1058, %v1059
      %v1061 = vrot.slane %v1059, 4
      %v1062 = vrot.slane %v933, 5
      %v1063 = vsel %vm589, %v1061, %v1062
      %v1064 = vrot.slane %v934, 5
      %v1065 = vrot.slane %v1064, 4
      %v1066 = vrot.slane %v903, 5
      %v1067 = vsel %vm589, %v1065, %v1066
      %v1068 = vrot.slane %v1066, 4
      %v1069 = vrot.slane %v935, 5
      %v1070 = vsel %vm589, %v1068, %v1069
      %v1071 = vrot.slane %v936, 5
      %v1072 = vrot.slane %v1071, 4
      %v1073 = vrot.slane %v905, 5
      %v1074 = vsel %vm589, %v1072, %v1073
      %v1075 = vrot.slane %v1073, 4
      %v1076 = vrot.slane %v937, 5
      %v1077 = vsel %vm589, %v1075, %v1076
      %v1078 = vrot.slane %v938, 5
      %v1079 = vrot.slane %v1078, 4
      %v1080 = vrot.slane %v907, 5
      %v1081 = vsel %vm589, %v1079, %v1080
      %v1082 = vrot.slane %v1080, 4
      %v1083 = vrot.slane %v939, 5
      %v1084 = vsel %vm589, %v1082, %v1083
      %v1085 = vrot.slane %v940, 5
      %v1086 = vrot.slane %v1085, 4
      %v1087 = vrot.slane %v909, 5
      %v1088 = vsel %vm589, %v1086, %v1087
      %v1089 = vrot.slane %v1087, 4
      %v1090 = vrot.slane %v941, 5
      %v1091 = vsel %vm589, %v1089, %v1090
      %v1092 = vrot.slane %v942, 5
      %v1093 = vrot.slane %v1092, 4
      %v1094 = vrot.slane %v911, 5
      %v1095 = vsel %vm589, %v1093, %v1094
      %v1096 = vrot.slane %v1094, 4
      %v1097 = vrot.slane %v943, 5
      %v1098 = vsel %vm589, %v1096, %v1097
      %v1099 = vrot.slane %v944, 5
      %v1100 = vrot.slane %v1099, 4
      %v1101 = vrot.slane %v913, 5
      %v1102 = vsel %vm589, %v1100, %v1101
      %v1103 = vrot.slane %v1101, 4
      %v1104 = vrot.slane %v945, 5
      %v1105 = vsel %vm589, %v1103, %v1104
      %v1106 = vld [vmem:[%s881] sm:$0xc]
      %v1107 = vld [vmem:[%s881 + $0x8] sm:$0x3]
      %v1108 = vld [vmem:[%s881 + $0xc] sm:$0xc]
      %v1109 = vld [vmem:[%s881 + $0x14] sm:$0x3]
      %v1110 = vld [vmem:[%s881 + $0x18] sm:$0xc]
      %v1111 = vld [vmem:[%s881 + $0x20] sm:$0x3]
      %v1112 = vld [vmem:[%s881 + $0x24] sm:$0xc]
      %v1113 = vld [vmem:[%s881 + $0x2c] sm:$0x3]
      %v1114 = vld [vmem:[%s881 + $0x30] sm:$0xc]
      %v1115 = vld [vmem:[%s881 + $0x38] sm:$0x3]
      %v1116 = vld [vmem:[%s881 + $0x3c] sm:$0xc]
      %v1117 = vld [vmem:[%s881 + $0x44] sm:$0x3]
      %v1118 = vld [vmem:[%s881 + $0x48] sm:$0xc]
      %v1119 = vld [vmem:[%s881 + $0x50] sm:$0x3]
      %v1120 = vld [vmem:[%s881 + $0x54] sm:$0xc]
      %v1121 = vld [vmem:[%s881 + $0x5c] sm:$0x3]
      %v1122 = vld [vmem:[%s881 + $0x60] sm:$0xc]
      %v1123 = vld [vmem:[%s881 + $0x68] sm:$0x3]
      %v1124 = vld [vmem:[%s881 + $0x6c] sm:$0xc]
      %v1125 = vld [vmem:[%s881 + $0x74] sm:$0x3]
      %v1126 = vld [vmem:[%s881 + $0x78] sm:$0xc]
      %v1127 = vld [vmem:[%s881 + $0x80] sm:$0x3]
      %v1128 = vld [vmem:[%s881 + $0x84] sm:$0xc]
      %v1129 = vld [vmem:[%s881 + $0x8c] sm:$0x3]
      %v1130 = vld [vmem:[%s881 + $0x90] sm:$0xc]
      %v1131 = vld [vmem:[%s881 + $0x98] sm:$0x3]
      %v1132 = vld [vmem:[%s881 + $0x9c] sm:$0xc]
      %v1133 = vld [vmem:[%s881 + $0xa4] sm:$0x3]
      %v1134 = vld [vmem:[%s881 + $0xa8] sm:$0xc]
      %v1135 = vld [vmem:[%s881 + $0xb0] sm:$0x3]
      %v1136 = vld [vmem:[%s881 + $0xb4] sm:$0xc]
      %v1137 = vld [vmem:[%s881 + $0xbc] sm:$0x3]
      %v1170 = vrot.slane %v1106, 6
      %v1171 = vrot.slane %v1170, 4
      %v1172 = vrot.slane %v883, 6
      %v1173 = vsel %vm768, %v1171, %v1172
      %v1174 = vrot.slane %v1172, 4
      %v1175 = vrot.slane %v1107, 6
      %v1176 = vsel %vm768, %v1174, %v1175
      %v1177 = vrot.slane %v1108, 6
      %v1178 = vrot.slane %v1177, 4
      %v1179 = vrot.slane %v885, 6
      %v1180 = vsel %vm768, %v1178, %v1179
      %v1181 = vrot.slane %v1179, 4
      %v1182 = vrot.slane %v1109, 6
      %v1183 = vsel %vm768, %v1181, %v1182
      %v1184 = vrot.slane %v1110, 6
      %v1185 = vrot.slane %v1184, 4
      %v1186 = vrot.slane %v887, 6
      %v1187 = vsel %vm768, %v1185, %v1186
      %v1188 = vrot.slane %v1186, 4
      %v1189 = vrot.slane %v1111, 6
      %v1190 = vsel %vm768, %v1188, %v1189
      %v1191 = vrot.slane %v1112, 6
      %v1192 = vrot.slane %v1191, 4
      %v1193 = vrot.slane %v889, 6
      %v1194 = vsel %vm768, %v1192, %v1193
      %v1195 = vrot.slane %v1193, 4
      %v1196 = vrot.slane %v1113, 6
      %v1197 = vsel %vm768, %v1195, %v1196
      %v1198 = vrot.slane %v1114, 6
      %v1199 = vrot.slane %v1198, 4
      %v1200 = vrot.slane %v891, 6
      %v1201 = vsel %vm768, %v1199, %v1200
      %v1202 = vrot.slane %v1200, 4
      %v1203 = vrot.slane %v1115, 6
      %v1204 = vsel %vm768, %v1202, %v1203
      %v1205 = vrot.slane %v1116, 6
      %v1206 = vrot.slane %v1205, 4
      %v1207 = vrot.slane %v893, 6
      %v1208 = vsel %vm768, %v1206, %v1207
      %v1209 = vrot.slane %v1207, 4
      %v1210 = vrot.slane %v1117, 6
      %v1211 = vsel %vm768, %v1209, %v1210
      %v1212 = vrot.slane %v1118, 6
      %v1213 = vrot.slane %v1212, 4
      %v1214 = vrot.slane %v895, 6
      %v1215 = vsel %vm768, %v1213, %v1214
      %v1216 = vrot.slane %v1214, 4
      %v1217 = vrot.slane %v1119, 6
      %v1218 = vsel %vm768, %v1216, %v1217
      %v1219 = vrot.slane %v1120, 6
      %v1220 = vrot.slane %v1219, 4
      %v1221 = vrot.slane %v897, 6
      %v1222 = vsel %vm768, %v1220, %v1221
      %v1223 = vrot.slane %v1221, 4
      %v1224 = vrot.slane %v1121, 6
      %v1225 = vsel %vm768, %v1223, %v1224
      %v1226 = vrot.slane %v1122, 6
      %v1227 = vrot.slane %v1226, 4
      %v1228 = vrot.slane %v899, 6
      %v1229 = vsel %vm768, %v1227, %v1228
      %v1230 = vrot.slane %v1228, 4
      %v1231 = vrot.slane %v1123, 6
      %v1232 = vsel %vm768, %v1230, %v1231
      %v1233 = vrot.slane %v1124, 6
      %v1234 = vrot.slane %v1233, 4
      %v1235 = vrot.slane %v901, 6
      %v1236 = vsel %vm768, %v1234, %v1235
      %v1237 = vrot.slane %v1235, 4
      %v1238 = vrot.slane %v1125, 6
      %v1239 = vsel %vm768, %v1237, %v1238
      %v1240 = vrot.slane %v1126, 6
      %v1241 = vrot.slane %v1240, 4
      %v1242 = vrot.slane %v903, 6
      %v1243 = vsel %vm768, %v1241, %v1242
      %v1244 = vrot.slane %v1242, 4
      %v1245 = vrot.slane %v1127, 6
      %v1246 = vsel %vm768, %v1244, %v1245
      %v1247 = vrot.slane %v1128, 6
      %v1248 = vrot.slane %v1247, 4
      %v1249 = vrot.slane %v905, 6
      %v1250 = vsel %vm768, %v1248, %v1249
      %v1251 = vrot.slane %v1249, 4
      %v1252 = vrot.slane %v1129, 6
      %v1253 = vsel %vm768, %v1251, %v1252
      %v1254 = vrot.slane %v1130, 6
      %v1255 = vrot.slane %v1254, 4
      %v1256 = vrot.slane %v907, 6
      %v1257 = vsel %vm768, %v1255, %v1256
      %v1258 = vrot.slane %v1256, 4
      %v1259 = vrot.slane %v1131, 6
      %v1260 = vsel %vm768, %v1258, %v1259
      %v1261 = vrot.slane %v1132, 6
      %v1262 = vrot.slane %v1261, 4
      %v1263 = vrot.slane %v909, 6
      %v1264 = vsel %vm768, %v1262, %v1263
      %v1265 = vrot.slane %v1263, 4
      %v1266 = vrot.slane %v1133, 6
      %v1267 = vsel %vm768, %v1265, %v1266
      %v1268 = vrot.slane %v1134, 6
      %v1269 = vrot.slane %v1268, 4
      %v1270 = vrot.slane %v911, 6
      %v1271 = vsel %vm768, %v1269, %v1270
      %v1272 = vrot.slane %v1270, 4
      %v1273 = vrot.slane %v1135, 6
      %v1274 = vsel %vm768, %v1272, %v1273
      %v1275 = vrot.slane %v1136, 6
      %v1276 = vrot.slane %v1275, 4
      %v1277 = vrot.slane %v913, 6
      %v1278 = vsel %vm768, %v1276, %v1277
      %v1279 = vrot.slane %v1277, 4
      %v1280 = vrot.slane %v1137, 6
      %v1281 = vsel %vm768, %v1279, %v1280
      %s1282 = scalar_lea.vmem %s458, 48
      %v1283 = vld [vmem:[%s1282] sm:$0xf]
      %v1284 = vld [vmem:[%s1282 + $0x4] sm:$0xf]
      %v1285 = vld [vmem:[%s1282 + $0xc] sm:$0xf]
      %v1286 = vld [vmem:[%s1282 + $0x10] sm:$0xf]
      %v1287 = vld [vmem:[%s1282 + $0x18] sm:$0xf]
      %v1288 = vld [vmem:[%s1282 + $0x1c] sm:$0xf]
      %v1289 = vld [vmem:[%s1282 + $0x24] sm:$0xf]
      %v1290 = vld [vmem:[%s1282 + $0x28] sm:$0xf]
      %v1291 = vld [vmem:[%s1282 + $0x30] sm:$0xf]
      %v1292 = vld [vmem:[%s1282 + $0x34] sm:$0xf]
      %v1293 = vld [vmem:[%s1282 + $0x3c] sm:$0xf]
      %v1294 = vld [vmem:[%s1282 + $0x40] sm:$0xf]
      %v1295 = vld [vmem:[%s1282 + $0x48] sm:$0xf]
      %v1296 = vld [vmem:[%s1282 + $0x4c] sm:$0xf]
      %v1297 = vld [vmem:[%s1282 + $0x54] sm:$0xf]
      %v1298 = vld [vmem:[%s1282 + $0x58] sm:$0xf]
      %v1299 = vld [vmem:[%s1282 + $0x60] sm:$0xf]
      %v1300 = vld [vmem:[%s1282 + $0x64] sm:$0xf]
      %v1301 = vld [vmem:[%s1282 + $0x6c] sm:$0xf]
      %v1302 = vld [vmem:[%s1282 + $0x70] sm:$0xf]
      %v1303 = vld [vmem:[%s1282 + $0x78] sm:$0xf]
      %v1304 = vld [vmem:[%s1282 + $0x7c] sm:$0xf]
      %v1305 = vld [vmem:[%s1282 + $0x84] sm:$0xf]
      %v1306 = vld [vmem:[%s1282 + $0x88] sm:$0xf]
      %v1307 = vld [vmem:[%s1282 + $0x90] sm:$0xf]
      %v1308 = vld [vmem:[%s1282 + $0x94] sm:$0xf]
      %v1309 = vld [vmem:[%s1282 + $0x9c] sm:$0xf]
      %v1310 = vld [vmem:[%s1282 + $0xa0] sm:$0xf]
      %v1311 = vld [vmem:[%s1282 + $0xa8] sm:$0xf]
      %v1312 = vld [vmem:[%s1282 + $0xac] sm:$0xf]
      %v1313 = vld [vmem:[%s1282 + $0xb4] sm:$0xf]
      %v1314 = vld [vmem:[%s1282 + $0xb8] sm:$0xf]
      %v1315 = vld [vmem:[%s1282] sm:$0xe]
      %v1316 = vld [vmem:[%s1282 + $0x8] sm:$0x1]
      %v1317 = vld [vmem:[%s1282 + $0xc] sm:$0xe]
      %v1318 = vld [vmem:[%s1282 + $0x14] sm:$0x1]
      %v1319 = vld [vmem:[%s1282 + $0x18] sm:$0xe]
      %v1320 = vld [vmem:[%s1282 + $0x20] sm:$0x1]
      %v1321 = vld [vmem:[%s1282 + $0x24] sm:$0xe]
      %v1322 = vld [vmem:[%s1282 + $0x2c] sm:$0x1]
      %v1323 = vld [vmem:[%s1282 + $0x30] sm:$0xe]
      %v1324 = vld [vmem:[%s1282 + $0x38] sm:$0x1]
      %v1325 = vld [vmem:[%s1282 + $0x3c] sm:$0xe]
      %v1326 = vld [vmem:[%s1282 + $0x44] sm:$0x1]
      %v1327 = vld [vmem:[%s1282 + $0x48] sm:$0xe]
      %v1328 = vld [vmem:[%s1282 + $0x50] sm:$0x1]
      %v1329 = vld [vmem:[%s1282 + $0x54] sm:$0xe]
      %v1330 = vld [vmem:[%s1282 + $0x5c] sm:$0x1]
      %v1331 = vld [vmem:[%s1282 + $0x60] sm:$0xe]
      %v1332 = vld [vmem:[%s1282 + $0x68] sm:$0x1]
      %v1333 = vld [vmem:[%s1282 + $0x6c] sm:$0xe]
      %v1334 = vld [vmem:[%s1282 + $0x74] sm:$0x1]
      %v1335 = vld [vmem:[%s1282 + $0x78] sm:$0xe]
      %v1336 = vld [vmem:[%s1282 + $0x80] sm:$0x1]
      %v1337 = vld [vmem:[%s1282 + $0x84] sm:$0xe]
      %v1338 = vld [vmem:[%s1282 + $0x8c] sm:$0x1]
      %v1339 = vld [vmem:[%s1282 + $0x90] sm:$0xe]
      %v1340 = vld [vmem:[%s1282 + $0x98] sm:$0x1]
      %v1341 = vld [vmem:[%s1282 + $0x9c] sm:$0xe]
      %v1342 = vld [vmem:[%s1282 + $0xa4] sm:$0x1]
      %v1343 = vld [vmem:[%s1282 + $0xa8] sm:$0xe]
      %v1344 = vld [vmem:[%s1282 + $0xb0] sm:$0x1]
      %v1345 = vld [vmem:[%s1282 + $0xb4] sm:$0xe]
      %v1346 = vld [vmem:[%s1282 + $0xbc] sm:$0x1]
      %v1395 = vrot.slane %v1315, 5
      %v1396 = vrot.slane %v1395, 4
      %v1397 = vrot.slane %v1284, 5
      %v1398 = vsel %vm589, %v1396, %v1397
      %v1399 = vrot.slane %v1397, 4
      %v1400 = vrot.slane %v1316, 5
      %v1401 = vsel %vm589, %v1399, %v1400
      %v1402 = vrot.slane %v1317, 5
      %v1403 = vrot.slane %v1402, 4
      %v1404 = vrot.slane %v1286, 5
      %v1405 = vsel %vm589, %v1403, %v1404
      %v1406 = vrot.slane %v1404, 4
      %v1407 = vrot.slane %v1318, 5
      %v1408 = vsel %vm589, %v1406, %v1407
      %v1409 = vrot.slane %v1319, 5
      %v1410 = vrot.slane %v1409, 4
      %v1411 = vrot.slane %v1288, 5
      %v1412 = vsel %vm589, %v1410, %v1411
      %v1413 = vrot.slane %v1411, 4
      %v1414 = vrot.slane %v1320, 5
      %v1415 = vsel %vm589, %v1413, %v1414
      %v1416 = vrot.slane %v1321, 5
      %v1417 = vrot.slane %v1416, 4
      %v1418 = vrot.slane %v1290, 5
      %v1419 = vsel %vm589, %v1417, %v1418
      %v1420 = vrot.slane %v1418, 4
      %v1421 = vrot.slane %v1322, 5
      %v1422 = vsel %vm589, %v1420, %v1421
      %v1423 = vrot.slane %v1323, 5
      %v1424 = vrot.slane %v1423, 4
      %v1425 = vrot.slane %v1292, 5
      %v1426 = vsel %vm589, %v1424, %v1425
      %v1427 = vrot.slane %v1425, 4
      %v1428 = vrot.slane %v1324, 5
      %v1429 = vsel %vm589, %v1427, %v1428
      %v1430 = vrot.slane %v1325, 5
      %v1431 = vrot.slane %v1430, 4
      %v1432 = vrot.slane %v1294, 5
      %v1433 = vsel %vm589, %v1431, %v1432
      %v1434 = vrot.slane %v1432, 4
      %v1435 = vrot.slane %v1326, 5
      %v1436 = vsel %vm589, %v1434, %v1435
      %v1437 = vrot.slane %v1327, 5
      %v1438 = vrot.slane %v1437, 4
      %v1439 = vrot.slane %v1296, 5
      %v1440 = vsel %vm589, %v1438, %v1439
      %v1441 = vrot.slane %v1439, 4
      %v1442 = vrot.slane %v1328, 5
      %v1443 = vsel %vm589, %v1441, %v1442
      %v1444 = vrot.slane %v1329, 5
      %v1445 = vrot.slane %v1444, 4
      %v1446 = vrot.slane %v1298, 5
      %v1447 = vsel %vm589, %v1445, %v1446
      %v1448 = vrot.slane %v1446, 4
      %v1449 = vrot.slane %v1330, 5
      %v1450 = vsel %vm589, %v1448, %v1449
      %v1451 = vrot.slane %v1331, 5
      %v1452 = vrot.slane %v1451, 4
      %v1453 = vrot.slane %v1300, 5
      %v1454 = vsel %vm589, %v1452, %v1453
      %v1455 = vrot.slane %v1453, 4
      %v1456 = vrot.slane %v1332, 5
      %v1457 = vsel %vm589, %v1455, %v1456
      %v1458 = vrot.slane %v1333, 5
      %v1459 = vrot.slane %v1458, 4
      %v1460 = vrot.slane %v1302, 5
      %v1461 = vsel %vm589, %v1459, %v1460
      %v1462 = vrot.slane %v1460, 4
      %v1463 = vrot.slane %v1334, 5
      %v1464 = vsel %vm589, %v1462, %v1463
      %v1465 = vrot.slane %v1335, 5
      %v1466 = vrot.slane %v1465, 4
      %v1467 = vrot.slane %v1304, 5
      %v1468 = vsel %vm589, %v1466, %v1467
      %v1469 = vrot.slane %v1467, 4
      %v1470 = vrot.slane %v1336, 5
      %v1471 = vsel %vm589, %v1469, %v1470
      %v1472 = vrot.slane %v1337, 5
      %v1473 = vrot.slane %v1472, 4
      %v1474 = vrot.slane %v1306, 5
      %v1475 = vsel %vm589, %v1473, %v1474
      %v1476 = vrot.slane %v1474, 4
      %v1477 = vrot.slane %v1338, 5
      %v1478 = vsel %vm589, %v1476, %v1477
      %v1479 = vrot.slane %v1339, 5
      %v1480 = vrot.slane %v1479, 4
      %v1481 = vrot.slane %v1308, 5
      %v1482 = vsel %vm589, %v1480, %v1481
      %v1483 = vrot.slane %v1481, 4
      %v1484 = vrot.slane %v1340, 5
      %v1485 = vsel %vm589, %v1483, %v1484
      %v1486 = vrot.slane %v1341, 5
      %v1487 = vrot.slane %v1486, 4
      %v1488 = vrot.slane %v1310, 5
      %v1489 = vsel %vm589, %v1487, %v1488
      %v1490 = vrot.slane %v1488, 4
      %v1491 = vrot.slane %v1342, 5
      %v1492 = vsel %vm589, %v1490, %v1491
      %v1493 = vrot.slane %v1343, 5
      %v1494 = vrot.slane %v1493, 4
      %v1495 = vrot.slane %v1312, 5
      %v1496 = vsel %vm589, %v1494, %v1495
      %v1497 = vrot.slane %v1495, 4
      %v1498 = vrot.slane %v1344, 5
      %v1499 = vsel %vm589, %v1497, %v1498
      %v1500 = vrot.slane %v1345, 5
      %v1501 = vrot.slane %v1500, 4
      %v1502 = vrot.slane %v1314, 5
      %v1503 = vsel %vm589, %v1501, %v1502
      %v1504 = vrot.slane %v1502, 4
      %v1505 = vrot.slane %v1346, 5
      %v1506 = vsel %vm589, %v1504, %v1505
      %v1507 = vld [vmem:[%s1282] sm:$0xc]
      %v1508 = vld [vmem:[%s1282 + $0x8] sm:$0x3]
      %v1509 = vld [vmem:[%s1282 + $0xc] sm:$0xc]
      %v1510 = vld [vmem:[%s1282 + $0x14] sm:$0x3]
      %v1511 = vld [vmem:[%s1282 + $0x18] sm:$0xc]
      %v1512 = vld [vmem:[%s1282 + $0x20] sm:$0x3]
      %v1513 = vld [vmem:[%s1282 + $0x24] sm:$0xc]
      %v1514 = vld [vmem:[%s1282 + $0x2c] sm:$0x3]
      %v1515 = vld [vmem:[%s1282 + $0x30] sm:$0xc]
      %v1516 = vld [vmem:[%s1282 + $0x38] sm:$0x3]
      %v1517 = vld [vmem:[%s1282 + $0x3c] sm:$0xc]
      %v1518 = vld [vmem:[%s1282 + $0x44] sm:$0x3]
      %v1519 = vld [vmem:[%s1282 + $0x48] sm:$0xc]
      %v1520 = vld [vmem:[%s1282 + $0x50] sm:$0x3]
      %v1521 = vld [vmem:[%s1282 + $0x54] sm:$0xc]
      %v1522 = vld [vmem:[%s1282 + $0x5c] sm:$0x3]
      %v1523 = vld [vmem:[%s1282 + $0x60] sm:$0xc]
      %v1524 = vld [vmem:[%s1282 + $0x68] sm:$0x3]
      %v1525 = vld [vmem:[%s1282 + $0x6c] sm:$0xc]
      %v1526 = vld [vmem:[%s1282 + $0x74] sm:$0x3]
      %v1527 = vld [vmem:[%s1282 + $0x78] sm:$0xc]
      %v1528 = vld [vmem:[%s1282 + $0x80] sm:$0x3]
      %v1529 = vld [vmem:[%s1282 + $0x84] sm:$0xc]
      %v1530 = vld [vmem:[%s1282 + $0x8c] sm:$0x3]
      %v1531 = vld [vmem:[%s1282 + $0x90] sm:$0xc]
      %v1532 = vld [vmem:[%s1282 + $0x98] sm:$0x3]
      %v1533 = vld [vmem:[%s1282 + $0x9c] sm:$0xc]
      %v1534 = vld [vmem:[%s1282 + $0xa4] sm:$0x3]
      %v1535 = vld [vmem:[%s1282 + $0xa8] sm:$0xc]
      %v1536 = vld [vmem:[%s1282 + $0xb0] sm:$0x3]
      %v1537 = vld [vmem:[%s1282 + $0xb4] sm:$0xc]
      %v1538 = vld [vmem:[%s1282 + $0xbc] sm:$0x3]
      %v1571 = vrot.slane %v1507, 6
      %v1572 = vrot.slane %v1571, 4
      %v1573 = vrot.slane %v1284, 6
      %v1574 = vsel %vm768, %v1572, %v1573
      %v1575 = vrot.slane %v1573, 4
      %v1576 = vrot.slane %v1508, 6
      %v1577 = vsel %vm768, %v1575, %v1576
      %v1578 = vrot.slane %v1509, 6
      %v1579 = vrot.slane %v1578, 4
      %v1580 = vrot.slane %v1286, 6
      %v1581 = vsel %vm768, %v1579, %v1580
      %v1582 = vrot.slane %v1580, 4
      %v1583 = vrot.slane %v1510, 6
      %v1584 = vsel %vm768, %v1582, %v1583
      %v1585 = vrot.slane %v1511, 6
      %v1586 = vrot.slane %v1585, 4
      %v1587 = vrot.slane %v1288, 6
      %v1588 = vsel %vm768, %v1586, %v1587
      %v1589 = vrot.slane %v1587, 4
      %v1590 = vrot.slane %v1512, 6
      %v1591 = vsel %vm768, %v1589, %v1590
      %v1592 = vrot.slane %v1513, 6
      %v1593 = vrot.slane %v1592, 4
      %v1594 = vrot.slane %v1290, 6
      %v1595 = vsel %vm768, %v1593, %v1594
      %v1596 = vrot.slane %v1594, 4
      %v1597 = vrot.slane %v1514, 6
      %v1598 = vsel %vm768, %v1596, %v1597
      %v1599 = vrot.slane %v1515, 6
      %v1600 = vrot.slane %v1599, 4
      %v1601 = vrot.slane %v1292, 6
      %v1602 = vsel %vm768, %v1600, %v1601
      %v1603 = vrot.slane %v1601, 4
      %v1604 = vrot.slane %v1516, 6
      %v1605 = vsel %vm768, %v1603, %v1604
      %v1606 = vrot.slane %v1517, 6
      %v1607 = vrot.slane %v1606, 4
      %v1608 = vrot.slane %v1294, 6
      %v1609 = vsel %vm768, %v1607, %v1608
      %v1610 = vrot.slane %v1608, 4
      %v1611 = vrot.slane %v1518, 6
      %v1612 = vsel %vm768, %v1610, %v1611
      %v1613 = vrot.slane %v1519, 6
      %v1614 = vrot.slane %v1613, 4
      %v1615 = vrot.slane %v1296, 6
      %v1616 = vsel %vm768, %v1614, %v1615
      %v1617 = vrot.slane %v1615, 4
      %v1618 = vrot.slane %v1520, 6
      %v1619 = vsel %vm768, %v1617, %v1618
      %v1620 = vrot.slane %v1521, 6
      %v1621 = vrot.slane %v1620, 4
      %v1622 = vrot.slane %v1298, 6
      %v1623 = vsel %vm768, %v1621, %v1622
      %v1624 = vrot.slane %v1622, 4
      %v1625 = vrot.slane %v1522, 6
      %v1626 = vsel %vm768, %v1624, %v1625
      %v1627 = vrot.slane %v1523, 6
      %v1628 = vrot.slane %v1627, 4
      %v1629 = vrot.slane %v1300, 6
      %v1630 = vsel %vm768, %v1628, %v1629
      %v1631 = vrot.slane %v1629, 4
      %v1632 = vrot.slane %v1524, 6
      %v1633 = vsel %vm768, %v1631, %v1632
      %v1634 = vrot.slane %v1525, 6
      %v1635 = vrot.slane %v1634, 4
      %v1636 = vrot.slane %v1302, 6
      %v1637 = vsel %vm768, %v1635, %v1636
      %v1638 = vrot.slane %v1636, 4
      %v1639 = vrot.slane %v1526, 6
      %v1640 = vsel %vm768, %v1638, %v1639
      %v1641 = vrot.slane %v1527, 6
      %v1642 = vrot.slane %v1641, 4
      %v1643 = vrot.slane %v1304, 6
      %v1644 = vsel %vm768, %v1642, %v1643
      %v1645 = vrot.slane %v1643, 4
      %v1646 = vrot.slane %v1528, 6
      %v1647 = vsel %vm768, %v1645, %v1646
      %v1648 = vrot.slane %v1529, 6
      %v1649 = vrot.slane %v1648, 4
      %v1650 = vrot.slane %v1306, 6
      %v1651 = vsel %vm768, %v1649, %v1650
      %v1652 = vrot.slane %v1650, 4
      %v1653 = vrot.slane %v1530, 6
      %v1654 = vsel %vm768, %v1652, %v1653
      %v1655 = vrot.slane %v1531, 6
      %v1656 = vrot.slane %v1655, 4
      %v1657 = vrot.slane %v1308, 6
      %v1658 = vsel %vm768, %v1656, %v1657
      %v1659 = vrot.slane %v1657, 4
      %v1660 = vrot.slane %v1532, 6
      %v1661 = vsel %vm768, %v1659, %v1660
      %v1662 = vrot.slane %v1533, 6
      %v1663 = vrot.slane %v1662, 4
      %v1664 = vrot.slane %v1310, 6
      %v1665 = vsel %vm768, %v1663, %v1664
      %v1666 = vrot.slane %v1664, 4
      %v1667 = vrot.slane %v1534, 6
      %v1668 = vsel %vm768, %v1666, %v1667
      %v1669 = vrot.slane %v1535, 6
      %v1670 = vrot.slane %v1669, 4
      %v1671 = vrot.slane %v1312, 6
      %v1672 = vsel %vm768, %v1670, %v1671
      %v1673 = vrot.slane %v1671, 4
      %v1674 = vrot.slane %v1536, 6
      %v1675 = vsel %vm768, %v1673, %v1674
      %v1676 = vrot.slane %v1537, 6
      %v1677 = vrot.slane %v1676, 4
      %v1678 = vrot.slane %v1314, 6
      %v1679 = vsel %vm768, %v1677, %v1678
      %v1680 = vrot.slane %v1678, 4
      %v1681 = vrot.slane %v1538, 6
      %v1682 = vsel %vm768, %v1680, %v1681
      %v1699 = vunpack.c.l.b16 %v475
      %v1700 = vunpack.c.l.b16 %v476
      %v1701 = vunpack.c.l.b16 %v477
      %v1702 = vunpack.c.l.b16 %v478
      %v1703 = vunpack.c.l.b16 %v479
      %v1704 = vunpack.c.l.b16 %v480
      %v1705 = vunpack.c.l.b16 %v481
      %v1706 = vunpack.c.l.b16 %v482
      %v1707 = vunpack.c.l.b16 %v483
      %v1708 = vunpack.c.l.b16 %v484
      %v1709 = vunpack.c.l.b16 %v485
      %v1710 = vunpack.c.l.b16 %v486
      %v1711 = vunpack.c.l.b16 %v487
      %v1712 = vunpack.c.l.b16 %v488
      %v1713 = vunpack.c.l.b16 %v489
      %v1714 = vunpack.c.l.b16 %v490
      %v1715 = vunpack.c.l.b16 %v491
      %v1716 = vunpack.c.l.b16 %v492
      %v1717 = vunpack.c.l.b16 %v493
      %v1718 = vunpack.c.l.b16 %v494
      %v1719 = vunpack.c.l.b16 %v495
      %v1720 = vunpack.c.l.b16 %v496
      %v1721 = vunpack.c.l.b16 %v497
      %v1722 = vunpack.c.l.b16 %v498
      %v1723 = vunpack.c.l.b16 %v499
      %v1724 = vunpack.c.l.b16 %v500
      %v1725 = vunpack.c.l.b16 %v501
      %v1726 = vunpack.c.l.b16 %v502
      %v1727 = vunpack.c.l.b16 %v503
      %v1728 = vunpack.c.l.b16 %v504
      %v1729 = vunpack.c.l.b16 %v505
      %v1730 = vunpack.c.l.b16 %v506
      %v1731 = vpack.c.b16 %v1700, %v1699
      %v1732 = vpack.c.b16 %v1702, %v1701
      %v1733 = vpack.c.b16 %v1704, %v1703
      %v1734 = vpack.c.b16 %v1706, %v1705
      %v1735 = vpack.c.b16 %v1708, %v1707
      %v1736 = vpack.c.b16 %v1710, %v1709
      %v1737 = vpack.c.b16 %v1712, %v1711
      %v1738 = vpack.c.b16 %v1714, %v1713
      %v1739 = vpack.c.b16 %v1716, %v1715
      %v1740 = vpack.c.b16 %v1718, %v1717
      %v1741 = vpack.c.b16 %v1720, %v1719
      %v1742 = vpack.c.b16 %v1722, %v1721
      %v1743 = vpack.c.b16 %v1724, %v1723
      %v1744 = vpack.c.b16 %v1726, %v1725
      %v1745 = vpack.c.b16 %v1728, %v1727
      %v1746 = vpack.c.b16 %v1730, %v1729
      %v1747 = vunpack.c.l.b16 %v593
      %v1748 = vunpack.c.l.b16 %v596
      %v1749 = vunpack.c.l.b16 %v600
      %v1750 = vunpack.c.l.b16 %v603
      %v1751 = vunpack.c.l.b16 %v607
      %v1752 = vunpack.c.l.b16 %v610
      %v1753 = vunpack.c.l.b16 %v614
      %v1754 = vunpack.c.l.b16 %v617
      %v1755 = vunpack.c.l.b16 %v621
      %v1756 = vunpack.c.l.b16 %v624
      %v1757 = vunpack.c.l.b16 %v628
      %v1758 = vunpack.c.l.b16 %v631
      %v1759 = vunpack.c.l.b16 %v635
      %v1760 = vunpack.c.l.b16 %v638
      %v1761 = vunpack.c.l.b16 %v642
      %v1762 = vunpack.c.l.b16 %v645
      %v1763 = vunpack.c.l.b16 %v649
      %v1764 = vunpack.c.l.b16 %v652
      %v1765 = vunpack.c.l.b16 %v656
      %v1766 = vunpack.c.l.b16 %v659
      %v1767 = vunpack.c.l.b16 %v663
      %v1768 = vunpack.c.l.b16 %v666
      %v1769 = vunpack.c.l.b16 %v670
      %v1770 = vunpack.c.l.b16 %v673
      %v1771 = vunpack.c.l.b16 %v677
      %v1772 = vunpack.c.l.b16 %v680
      %v1773 = vunpack.c.l.b16 %v684
      %v1774 = vunpack.c.l.b16 %v687
      %v1775 = vunpack.c.l.b16 %v691
      %v1776 = vunpack.c.l.b16 %v694
      %v1777 = vunpack.c.l.b16 %v698
      %v1778 = vunpack.c.l.b16 %v701
      %v1779 = vpack.c.b16 %v1748, %v1747
      %v1780 = vpack.c.b16 %v1750, %v1749
      %v1781 = vpack.c.b16 %v1752, %v1751
      %v1782 = vpack.c.b16 %v1754, %v1753
      %v1783 = vpack.c.b16 %v1756, %v1755
      %v1784 = vpack.c.b16 %v1758, %v1757
      %v1785 = vpack.c.b16 %v1760, %v1759
      %v1786 = vpack.c.b16 %v1762, %v1761
      %v1787 = vpack.c.b16 %v1764, %v1763
      %v1788 = vpack.c.b16 %v1766, %v1765
      %v1789 = vpack.c.b16 %v1768, %v1767
      %v1790 = vpack.c.b16 %v1770, %v1769
      %v1791 = vpack.c.b16 %v1772, %v1771
      %v1792 = vpack.c.b16 %v1774, %v1773
      %v1793 = vpack.c.b16 %v1776, %v1775
      %v1794 = vpack.c.b16 %v1778, %v1777
      %1795 = vrot.lane.b32.xlu0 %v1779, 4
      %v1796 = vpop.permute.xlu0 %1795
      %1797 = vrot.lane.b32.xlu0 %v1780, 4
      %v1798 = vpop.permute.xlu0 %1797
      %1799 = vrot.lane.b32.xlu0 %v1781, 4
      %v1800 = vpop.permute.xlu0 %1799
      %1801 = vrot.lane.b32.xlu0 %v1782, 4
      %v1802 = vpop.permute.xlu0 %1801
      %1803 = vrot.lane.b32.xlu0 %v1783, 4
      %v1804 = vpop.permute.xlu0 %1803
      %1805 = vrot.lane.b32.xlu0 %v1784, 4
      %v1806 = vpop.permute.xlu0 %1805
      %1807 = vrot.lane.b32.xlu0 %v1785, 4
      %v1808 = vpop.permute.xlu0 %1807
      %1809 = vrot.lane.b32.xlu0 %v1786, 4
      %v1810 = vpop.permute.xlu0 %1809
      %1811 = vrot.lane.b32.xlu0 %v1787, 4
      %v1812 = vpop.permute.xlu0 %1811
      %1813 = vrot.lane.b32.xlu0 %v1788, 4
      %v1814 = vpop.permute.xlu0 %1813
      %1815 = vrot.lane.b32.xlu0 %v1789, 4
      %v1816 = vpop.permute.xlu0 %1815
      %1817 = vrot.lane.b32.xlu0 %v1790, 4
      %v1818 = vpop.permute.xlu0 %1817
      %1819 = vrot.lane.b32.xlu0 %v1791, 4
      %v1820 = vpop.permute.xlu0 %1819
      %1821 = vrot.lane.b32.xlu0 %v1792, 4
      %v1822 = vpop.permute.xlu0 %1821
      %1823 = vrot.lane.b32.xlu0 %v1793, 4
      %v1824 = vpop.permute.xlu0 %1823
      %1825 = vrot.lane.b32.xlu0 %v1794, 4
      %v1826 = vpop.permute.xlu0 %1825
      %v1827 = vunpack.c.l.b16 %v772
      %v1828 = vunpack.c.l.b16 %v775
      %v1829 = vunpack.c.l.b16 %v779
      %v1830 = vunpack.c.l.b16 %v782
      %v1831 = vunpack.c.l.b16 %v786
      %v1832 = vunpack.c.l.b16 %v789
      %v1833 = vunpack.c.l.b16 %v793
      %v1834 = vunpack.c.l.b16 %v796
      %v1835 = vunpack.c.l.b16 %v800
      %v1836 = vunpack.c.l.b16 %v803
      %v1837 = vunpack.c.l.b16 %v807
      %v1838 = vunpack.c.l.b16 %v810
      %v1839 = vunpack.c.l.b16 %v814
      %v1840 = vunpack.c.l.b16 %v817
      %v1841 = vunpack.c.l.b16 %v821
      %v1842 = vunpack.c.l.b16 %v824
      %v1843 = vunpack.c.l.b16 %v828
      %v1844 = vunpack.c.l.b16 %v831
      %v1845 = vunpack.c.l.b16 %v835
      %v1846 = vunpack.c.l.b16 %v838
      %v1847 = vunpack.c.l.b16 %v842
      %v1848 = vunpack.c.l.b16 %v845
      %v1849 = vunpack.c.l.b16 %v849
      %v1850 = vunpack.c.l.b16 %v852
      %v1851 = vunpack.c.l.b16 %v856
      %v1852 = vunpack.c.l.b16 %v859
      %v1853 = vunpack.c.l.b16 %v863
      %v1854 = vunpack.c.l.b16 %v866
      %v1855 = vunpack.c.l.b16 %v870
      %v1856 = vunpack.c.l.b16 %v873
      %v1857 = vunpack.c.l.b16 %v877
      %v1858 = vunpack.c.l.b16 %v880
      %v1859 = vpack.c.b16 %v1828, %v1827
      %v1860 = vpack.c.b16 %v1830, %v1829
      %v1861 = vpack.c.b16 %v1832, %v1831
      %v1862 = vpack.c.b16 %v1834, %v1833
      %v1863 = vpack.c.b16 %v1836, %v1835
      %v1864 = vpack.c.b16 %v1838, %v1837
      %v1865 = vpack.c.b16 %v1840, %v1839
      %v1866 = vpack.c.b16 %v1842, %v1841
      %v1867 = vpack.c.b16 %v1844, %v1843
      %v1868 = vpack.c.b16 %v1846, %v1845
      %v1869 = vpack.c.b16 %v1848, %v1847
      %v1870 = vpack.c.b16 %v1850, %v1849
      %v1871 = vpack.c.b16 %v1852, %v1851
      %v1872 = vpack.c.b16 %v1854, %v1853
      %v1873 = vpack.c.b16 %v1856, %v1855
      %v1874 = vpack.c.b16 %v1858, %v1857
      %1875 = vrot.lane.b32.xlu0 %v1859, 8
      %v1876 = vpop.permute.xlu0 %1875
      %1877 = vrot.lane.b32.xlu0 %v1860, 8
      %v1878 = vpop.permute.xlu0 %1877
      %1879 = vrot.lane.b32.xlu0 %v1861, 8
      %v1880 = vpop.permute.xlu0 %1879
      %1881 = vrot.lane.b32.xlu0 %v1862, 8
      %v1882 = vpop.permute.xlu0 %1881
      %1883 = vrot.lane.b32.xlu0 %v1863, 8
      %v1884 = vpop.permute.xlu0 %1883
      %1885 = vrot.lane.b32.xlu0 %v1864, 8
      %v1886 = vpop.permute.xlu0 %1885
      %1887 = vrot.lane.b32.xlu0 %v1865, 8
      %v1888 = vpop.permute.xlu0 %1887
      %1889 = vrot.lane.b32.xlu0 %v1866, 8
      %v1890 = vpop.permute.xlu0 %1889
      %1891 = vrot.lane.b32.xlu0 %v1867, 8
      %v1892 = vpop.permute.xlu0 %1891
      %1893 = vrot.lane.b32.xlu0 %v1868, 8
      %v1894 = vpop.permute.xlu0 %1893
      %1895 = vrot.lane.b32.xlu0 %v1869, 8
      %v1896 = vpop.permute.xlu0 %1895
      %1897 = vrot.lane.b32.xlu0 %v1870, 8
      %v1898 = vpop.permute.xlu0 %1897
      %1899 = vrot.lane.b32.xlu0 %v1871, 8
      %v1900 = vpop.permute.xlu0 %1899
      %1901 = vrot.lane.b32.xlu0 %v1872, 8
      %v1902 = vpop.permute.xlu0 %1901
      %1903 = vrot.lane.b32.xlu0 %v1873, 8
      %v1904 = vpop.permute.xlu0 %1903
      %1905 = vrot.lane.b32.xlu0 %v1874, 8
      %v1906 = vpop.permute.xlu0 %1905
      %v1923 = vunpack.c.l.b16 %v882
      %v1924 = vunpack.c.l.b16 %v883
      %v1925 = vunpack.c.l.b16 %v884
      %v1926 = vunpack.c.l.b16 %v885
      %v1927 = vunpack.c.l.b16 %v886
      %v1928 = vunpack.c.l.b16 %v887
      %v1929 = vunpack.c.l.b16 %v888
      %v1930 = vunpack.c.l.b16 %v889
      %v1931 = vunpack.c.l.b16 %v890
      %v1932 = vunpack.c.l.b16 %v891
      %v1933 = vunpack.c.l.b16 %v892
      %v1934 = vunpack.c.l.b16 %v893
      %v1935 = vunpack.c.l.b16 %v894
      %v1936 = vunpack.c.l.b16 %v895
      %v1937 = vunpack.c.l.b16 %v896
      %v1938 = vunpack.c.l.b16 %v897
      %v1939 = vunpack.c.l.b16 %v898
      %v1940 = vunpack.c.l.b16 %v899
      %v1941 = vunpack.c.l.b16 %v900
      %v1942 = vunpack.c.l.b16 %v901
      %v1943 = vunpack.c.l.b16 %v902
      %v1944 = vunpack.c.l.b16 %v903
      %v1945 = vunpack.c.l.b16 %v904
      %v1946 = vunpack.c.l.b16 %v905
      %v1947 = vunpack.c.l.b16 %v906
      %v1948 = vunpack.c.l.b16 %v907
      %v1949 = vunpack.c.l.b16 %v908
      %v1950 = vunpack.c.l.b16 %v909
      %v1951 = vunpack.c.l.b16 %v910
      %v1952 = vunpack.c.l.b16 %v911
      %v1953 = vunpack.c.l.b16 %v912
      %v1954 = vunpack.c.l.b16 %v913
      %v1955 = vpack.c.b16 %v1924, %v1923
      %v1956 = vpack.c.b16 %v1926, %v1925
      %v1957 = vpack.c.b16 %v1928, %v1927
      %v1958 = vpack.c.b16 %v1930, %v1929
      %v1959 = vpack.c.b16 %v1932, %v1931
      %v1960 = vpack.c.b16 %v1934, %v1933
      %v1961 = vpack.c.b16 %v1936, %v1935
      %v1962 = vpack.c.b16 %v1938, %v1937
      %v1963 = vpack.c.b16 %v1940, %v1939
      %v1964 = vpack.c.b16 %v1942, %v1941
      %v1965 = vpack.c.b16 %v1944, %v1943
      %v1966 = vpack.c.b16 %v1946, %v1945
      %v1967 = vpack.c.b16 %v1948, %v1947
      %v1968 = vpack.c.b16 %v1950, %v1949
      %v1969 = vpack.c.b16 %v1952, %v1951
      %v1970 = vpack.c.b16 %v1954, %v1953
      %1971 = vrot.lane.b32.xlu0 %v1955, 12
      %v1972 = vpop.permute.xlu0 %1971
      %1973 = vrot.lane.b32.xlu0 %v1956, 12
      %v1974 = vpop.permute.xlu0 %1973
      %1975 = vrot.lane.b32.xlu0 %v1957, 12
      %v1976 = vpop.permute.xlu0 %1975
      %1977 = vrot.lane.b32.xlu0 %v1958, 12
      %v1978 = vpop.permute.xlu0 %1977
      %1979 = vrot.lane.b32.xlu0 %v1959, 12
      %v1980 = vpop.permute.xlu0 %1979
      %1981 = vrot.lane.b32.xlu0 %v1960, 12
      %v1982 = vpop.permute.xlu0 %1981
      %1983 = vrot.lane.b32.xlu0 %v1961, 12
      %v1984 = vpop.permute.xlu0 %1983
      %1985 = vrot.lane.b32.xlu0 %v1962, 12
      %v1986 = vpop.permute.xlu0 %1985
      %1987 = vrot.lane.b32.xlu0 %v1963, 12
      %v1988 = vpop.permute.xlu0 %1987
      %1989 = vrot.lane.b32.xlu0 %v1964, 12
      %v1990 = vpop.permute.xlu0 %1989
      %1991 = vrot.lane.b32.xlu0 %v1965, 12
      %v1992 = vpop.permute.xlu0 %1991
      %1993 = vrot.lane.b32.xlu0 %v1966, 12
      %v1994 = vpop.permute.xlu0 %1993
      %1995 = vrot.lane.b32.xlu0 %v1967, 12
      %v1996 = vpop.permute.xlu0 %1995
      %1997 = vrot.lane.b32.xlu0 %v1968, 12
      %v1998 = vpop.permute.xlu0 %1997
      %1999 = vrot.lane.b32.xlu0 %v1969, 12
      %v2000 = vpop.permute.xlu0 %1999
      %2001 = vrot.lane.b32.xlu0 %v1970, 12
      %v2002 = vpop.permute.xlu0 %2001
      %v2003 = vunpack.c.l.b16 %v997
      %v2004 = vunpack.c.l.b16 %v1000
      %v2005 = vunpack.c.l.b16 %v1004
      %v2006 = vunpack.c.l.b16 %v1007
      %v2007 = vunpack.c.l.b16 %v1011
      %v2008 = vunpack.c.l.b16 %v1014
      %v2009 = vunpack.c.l.b16 %v1018
      %v2010 = vunpack.c.l.b16 %v1021
      %v2011 = vunpack.c.l.b16 %v1025
      %v2012 = vunpack.c.l.b16 %v1028
      %v2013 = vunpack.c.l.b16 %v1032
      %v2014 = vunpack.c.l.b16 %v1035
      %v2015 = vunpack.c.l.b16 %v1039
      %v2016 = vunpack.c.l.b16 %v1042
      %v2017 = vunpack.c.l.b16 %v1046
      %v2018 = vunpack.c.l.b16 %v1049
      %v2019 = vunpack.c.l.b16 %v1053
      %v2020 = vunpack.c.l.b16 %v1056
      %v2021 = vunpack.c.l.b16 %v1060
      %v2022 = vunpack.c.l.b16 %v1063
      %v2023 = vunpack.c.l.b16 %v1067
      %v2024 = vunpack.c.l.b16 %v1070
      %v2025 = vunpack.c.l.b16 %v1074
      %v2026 = vunpack.c.l.b16 %v1077
      %v2027 = vunpack.c.l.b16 %v1081
      %v2028 = vunpack.c.l.b16 %v1084
      %v2029 = vunpack.c.l.b16 %v1088
      %v2030 = vunpack.c.l.b16 %v1091
      %v2031 = vunpack.c.l.b16 %v1095
      %v2032 = vunpack.c.l.b16 %v1098
      %v2033 = vunpack.c.l.b16 %v1102
      %v2034 = vunpack.c.l.b16 %v1105
      %v2035 = vpack.c.b16 %v2004, %v2003
      %v2036 = vpack.c.b16 %v2006, %v2005
      %v2037 = vpack.c.b16 %v2008, %v2007
      %v2038 = vpack.c.b16 %v2010, %v2009
      %v2039 = vpack.c.b16 %v2012, %v2011
      %v2040 = vpack.c.b16 %v2014, %v2013
      %v2041 = vpack.c.b16 %v2016, %v2015
      %v2042 = vpack.c.b16 %v2018, %v2017
      %v2043 = vpack.c.b16 %v2020, %v2019
      %v2044 = vpack.c.b16 %v2022, %v2021
      %v2045 = vpack.c.b16 %v2024, %v2023
      %v2046 = vpack.c.b16 %v2026, %v2025
      %v2047 = vpack.c.b16 %v2028, %v2027
      %v2048 = vpack.c.b16 %v2030, %v2029
      %v2049 = vpack.c.b16 %v2032, %v2031
      %v2050 = vpack.c.b16 %v2034, %v2033
      %2051 = vrot.lane.b32.xlu0 %v2035, 16
      %v2052 = vpop.permute.xlu0 %2051
      %2053 = vrot.lane.b32.xlu0 %v2036, 16
      %v2054 = vpop.permute.xlu0 %2053
      %2055 = vrot.lane.b32.xlu0 %v2037, 16
      %v2056 = vpop.permute.xlu0 %2055
      %2057 = vrot.lane.b32.xlu0 %v2038, 16
      %v2058 = vpop.permute.xlu0 %2057
      %2059 = vrot.lane.b32.xlu0 %v2039, 16
      %v2060 = vpop.permute.xlu0 %2059
      %2061 = vrot.lane.b32.xlu0 %v2040, 16
      %v2062 = vpop.permute.xlu0 %2061
      %2063 = vrot.lane.b32.xlu0 %v2041, 16
      %v2064 = vpop.permute.xlu0 %2063
      %2065 = vrot.lane.b32.xlu0 %v2042, 16
      %v2066 = vpop.permute.xlu0 %2065
      %2067 = vrot.lane.b32.xlu0 %v2043, 16
      %v2068 = vpop.permute.xlu0 %2067
      %2069 = vrot.lane.b32.xlu0 %v2044, 16
      %v2070 = vpop.permute.xlu0 %2069
      %2071 = vrot.lane.b32.xlu0 %v2045, 16
      %v2072 = vpop.permute.xlu0 %2071
      %2073 = vrot.lane.b32.xlu0 %v2046, 16
      %v2074 = vpop.permute.xlu0 %2073
      %2075 = vrot.lane.b32.xlu0 %v2047, 16
      %v2076 = vpop.permute.xlu0 %2075
      %2077 = vrot.lane.b32.xlu0 %v2048, 16
      %v2078 = vpop.permute.xlu0 %2077
      %2079 = vrot.lane.b32.xlu0 %v2049, 16
      %v2080 = vpop.permute.xlu0 %2079
      %2081 = vrot.lane.b32.xlu0 %v2050, 16
      %v2082 = vpop.permute.xlu0 %2081
      %v2083 = vunpack.c.l.b16 %v1173
      %v2084 = vunpack.c.l.b16 %v1176
      %v2085 = vunpack.c.l.b16 %v1180
      %v2086 = vunpack.c.l.b16 %v1183
      %v2087 = vunpack.c.l.b16 %v1187
      %v2088 = vunpack.c.l.b16 %v1190
      %v2089 = vunpack.c.l.b16 %v1194
      %v2090 = vunpack.c.l.b16 %v1197
      %v2091 = vunpack.c.l.b16 %v1201
      %v2092 = vunpack.c.l.b16 %v1204
      %v2093 = vunpack.c.l.b16 %v1208
      %v2094 = vunpack.c.l.b16 %v1211
      %v2095 = vunpack.c.l.b16 %v1215
      %v2096 = vunpack.c.l.b16 %v1218
      %v2097 = vunpack.c.l.b16 %v1222
      %v2098 = vunpack.c.l.b16 %v1225
      %v2099 = vunpack.c.l.b16 %v1229
      %v2100 = vunpack.c.l.b16 %v1232
      %v2101 = vunpack.c.l.b16 %v1236
      %v2102 = vunpack.c.l.b16 %v1239
      %v2103 = vunpack.c.l.b16 %v1243
      %v2104 = vunpack.c.l.b16 %v1246
      %v2105 = vunpack.c.l.b16 %v1250
      %v2106 = vunpack.c.l.b16 %v1253
      %v2107 = vunpack.c.l.b16 %v1257
      %v2108 = vunpack.c.l.b16 %v1260
      %v2109 = vunpack.c.l.b16 %v1264
      %v2110 = vunpack.c.l.b16 %v1267
      %v2111 = vunpack.c.l.b16 %v1271
      %v2112 = vunpack.c.l.b16 %v1274
      %v2113 = vunpack.c.l.b16 %v1278
      %v2114 = vunpack.c.l.b16 %v1281
      %v2115 = vpack.c.b16 %v2084, %v2083
      %v2116 = vpack.c.b16 %v2086, %v2085
      %v2117 = vpack.c.b16 %v2088, %v2087
      %v2118 = vpack.c.b16 %v2090, %v2089
      %v2119 = vpack.c.b16 %v2092, %v2091
      %v2120 = vpack.c.b16 %v2094, %v2093
      %v2121 = vpack.c.b16 %v2096, %v2095
      %v2122 = vpack.c.b16 %v2098, %v2097
      %v2123 = vpack.c.b16 %v2100, %v2099
      %v2124 = vpack.c.b16 %v2102, %v2101
      %v2125 = vpack.c.b16 %v2104, %v2103
      %v2126 = vpack.c.b16 %v2106, %v2105
      %v2127 = vpack.c.b16 %v2108, %v2107
      %v2128 = vpack.c.b16 %v2110, %v2109
      %v2129 = vpack.c.b16 %v2112, %v2111
      %v2130 = vpack.c.b16 %v2114, %v2113
      %2131 = vrot.lane.b32.xlu0 %v2115, 20
      %v2132 = vpop.permute.xlu0 %2131
      %2133 = vrot.lane.b32.xlu0 %v2116, 20
      %v2134 = vpop.permute.xlu0 %2133
      %2135 = vrot.lane.b32.xlu0 %v2117, 20
      %v2136 = vpop.permute.xlu0 %2135
      %2137 = vrot.lane.b32.xlu0 %v2118, 20
      %v2138 = vpop.permute.xlu0 %2137
      %2139 = vrot.lane.b32.xlu0 %v2119, 20
      %v2140 = vpop.permute.xlu0 %2139
      %2141 = vrot.lane.b32.xlu0 %v2120, 20
      %v2142 = vpop.permute.xlu0 %2141
      %2143 = vrot.lane.b32.xlu0 %v2121, 20
      %v2144 = vpop.permute.xlu0 %2143
      %2145 = vrot.lane.b32.xlu0 %v2122, 20
      %v2146 = vpop.permute.xlu0 %2145
      %2147 = vrot.lane.b32.xlu0 %v2123, 20
      %v2148 = vpop.permute.xlu0 %2147
      %2149 = vrot.lane.b32.xlu0 %v2124, 20
      %v2150 = vpop.permute.xlu0 %2149
      %2151 = vrot.lane.b32.xlu0 %v2125, 20
      %v2152 = vpop.permute.xlu0 %2151
      %2153 = vrot.lane.b32.xlu0 %v2126, 20
      %v2154 = vpop.permute.xlu0 %2153
      %2155 = vrot.lane.b32.xlu0 %v2127, 20
      %v2156 = vpop.permute.xlu0 %2155
      %2157 = vrot.lane.b32.xlu0 %v2128, 20
      %v2158 = vpop.permute.xlu0 %2157
      %2159 = vrot.lane.b32.xlu0 %v2129, 20
      %v2160 = vpop.permute.xlu0 %2159
      %2161 = vrot.lane.b32.xlu0 %v2130, 20
      %v2162 = vpop.permute.xlu0 %2161
      %v2179 = vunpack.c.l.b16 %v1283
      %v2180 = vunpack.c.l.b16 %v1284
      %v2181 = vunpack.c.l.b16 %v1285
      %v2182 = vunpack.c.l.b16 %v1286
      %v2183 = vunpack.c.l.b16 %v1287
      %v2184 = vunpack.c.l.b16 %v1288
      %v2185 = vunpack.c.l.b16 %v1289
      %v2186 = vunpack.c.l.b16 %v1290
      %v2187 = vunpack.c.l.b16 %v1291
      %v2188 = vunpack.c.l.b16 %v1292
      %v2189 = vunpack.c.l.b16 %v1293
      %v2190 = vunpack.c.l.b16 %v1294
      %v2191 = vunpack.c.l.b16 %v1295
      %v2192 = vunpack.c.l.b16 %v1296
      %v2193 = vunpack.c.l.b16 %v1297
      %v2194 = vunpack.c.l.b16 %v1298
      %v2195 = vunpack.c.l.b16 %v1299
      %v2196 = vunpack.c.l.b16 %v1300
      %v2197 = vunpack.c.l.b16 %v1301
      %v2198 = vunpack.c.l.b16 %v1302
      %v2199 = vunpack.c.l.b16 %v1303
      %v2200 = vunpack.c.l.b16 %v1304
      %v2201 = vunpack.c.l.b16 %v1305
      %v2202 = vunpack.c.l.b16 %v1306
      %v2203 = vunpack.c.l.b16 %v1307
      %v2204 = vunpack.c.l.b16 %v1308
      %v2205 = vunpack.c.l.b16 %v1309
      %v2206 = vunpack.c.l.b16 %v1310
      %v2207 = vunpack.c.l.b16 %v1311
      %v2208 = vunpack.c.l.b16 %v1312
      %v2209 = vunpack.c.l.b16 %v1313
      %v2210 = vunpack.c.l.b16 %v1314
      %v2211 = vpack.c.b16 %v2180, %v2179
      %v2212 = vpack.c.b16 %v2182, %v2181
      %v2213 = vpack.c.b16 %v2184, %v2183
      %v2214 = vpack.c.b16 %v2186, %v2185
      %v2215 = vpack.c.b16 %v2188, %v2187
      %v2216 = vpack.c.b16 %v2190, %v2189
      %v2217 = vpack.c.b16 %v2192, %v2191
      %v2218 = vpack.c.b16 %v2194, %v2193
      %v2219 = vpack.c.b16 %v2196, %v2195
      %v2220 = vpack.c.b16 %v2198, %v2197
      %v2221 = vpack.c.b16 %v2200, %v2199
      %v2222 = vpack.c.b16 %v2202, %v2201
      %v2223 = vpack.c.b16 %v2204, %v2203
      %v2224 = vpack.c.b16 %v2206, %v2205
      %v2225 = vpack.c.b16 %v2208, %v2207
      %v2226 = vpack.c.b16 %v2210, %v2209
      %2227 = vrot.lane.b32.xlu0 %v2211, 24
      %v2228 = vpop.permute.xlu0 %2227
      %2229 = vrot.lane.b32.xlu0 %v2212, 24
      %v2230 = vpop.permute.xlu0 %2229
      %2231 = vrot.lane.b32.xlu0 %v2213, 24
      %v2232 = vpop.permute.xlu0 %2231
      %2233 = vrot.lane.b32.xlu0 %v2214, 24
      %v2234 = vpop.permute.xlu0 %2233
      %2235 = vrot.lane.b32.xlu0 %v2215, 24
      %v2236 = vpop.permute.xlu0 %2235
      %2237 = vrot.lane.b32.xlu0 %v2216, 24
      %v2238 = vpop.permute.xlu0 %2237
      %2239 = vrot.lane.b32.xlu0 %v2217, 24
      %v2240 = vpop.permute.xlu0 %2239
      %2241 = vrot.lane.b32.xlu0 %v2218, 24
      %v2242 = vpop.permute.xlu0 %2241
      %2243 = vrot.lane.b32.xlu0 %v2219, 24
      %v2244 = vpop.permute.xlu0 %2243
      %2245 = vrot.lane.b32.xlu0 %v2220, 24
      %v2246 = vpop.permute.xlu0 %2245
      %2247 = vrot.lane.b32.xlu0 %v2221, 24
      %v2248 = vpop.permute.xlu0 %2247
      %2249 = vrot.lane.b32.xlu0 %v2222, 24
      %v2250 = vpop.permute.xlu0 %2249
      %2251 = vrot.lane.b32.xlu0 %v2223, 24
      %v2252 = vpop.permute.xlu0 %2251
      %2253 = vrot.lane.b32.xlu0 %v2224, 24
      %v2254 = vpop.permute.xlu0 %2253
      %2255 = vrot.lane.b32.xlu0 %v2225, 24
      %v2256 = vpop.permute.xlu0 %2255
      %2257 = vrot.lane.b32.xlu0 %v2226, 24
      %v2258 = vpop.permute.xlu0 %2257
      %v2259 = vunpack.c.l.b16 %v1398
      %v2260 = vunpack.c.l.b16 %v1401
      %v2261 = vunpack.c.l.b16 %v1405
      %v2262 = vunpack.c.l.b16 %v1408
      %v2263 = vunpack.c.l.b16 %v1412
      %v2264 = vunpack.c.l.b16 %v1415
      %v2265 = vunpack.c.l.b16 %v1419
      %v2266 = vunpack.c.l.b16 %v1422
      %v2267 = vunpack.c.l.b16 %v1426
      %v2268 = vunpack.c.l.b16 %v1429
      %v2269 = vunpack.c.l.b16 %v1433
      %v2270 = vunpack.c.l.b16 %v1436
      %v2271 = vunpack.c.l.b16 %v1440
      %v2272 = vunpack.c.l.b16 %v1443
      %v2273 = vunpack.c.l.b16 %v1447
      %v2274 = vunpack.c.l.b16 %v1450
      %v2275 = vunpack.c.l.b16 %v1454
      %v2276 = vunpack.c.l.b16 %v1457
      %v2277 = vunpack.c.l.b16 %v1461
      %v2278 = vunpack.c.l.b16 %v1464
      %v2279 = vunpack.c.l.b16 %v1468
      %v2280 = vunpack.c.l.b16 %v1471
      %v2281 = vunpack.c.l.b16 %v1475
      %v2282 = vunpack.c.l.b16 %v1478
      %v2283 = vunpack.c.l.b16 %v1482
      %v2284 = vunpack.c.l.b16 %v1485
      %v2285 = vunpack.c.l.b16 %v1489
      %v2286 = vunpack.c.l.b16 %v1492
      %v2287 = vunpack.c.l.b16 %v1496
      %v2288 = vunpack.c.l.b16 %v1499
      %v2289 = vunpack.c.l.b16 %v1503
      %v2290 = vunpack.c.l.b16 %v1506
      %v2291 = vpack.c.b16 %v2260, %v2259
      %v2292 = vpack.c.b16 %v2262, %v2261
      %v2293 = vpack.c.b16 %v2264, %v2263
      %v2294 = vpack.c.b16 %v2266, %v2265
      %v2295 = vpack.c.b16 %v2268, %v2267
      %v2296 = vpack.c.b16 %v2270, %v2269
      %v2297 = vpack.c.b16 %v2272, %v2271
      %v2298 = vpack.c.b16 %v2274, %v2273
      %v2299 = vpack.c.b16 %v2276, %v2275
      %v2300 = vpack.c.b16 %v2278, %v2277
      %v2301 = vpack.c.b16 %v2280, %v2279
      %v2302 = vpack.c.b16 %v2282, %v2281
      %v2303 = vpack.c.b16 %v2284, %v2283
      %v2304 = vpack.c.b16 %v2286, %v2285
      %v2305 = vpack.c.b16 %v2288, %v2287
      %v2306 = vpack.c.b16 %v2290, %v2289
      %2307 = vrot.lane.b32.xlu0 %v2291, 28
      %v2308 = vpop.permute.xlu0 %2307
      %2309 = vrot.lane.b32.xlu0 %v2292, 28
      %v2310 = vpop.permute.xlu0 %2309
      %2311 = vrot.lane.b32.xlu0 %v2293, 28
      %v2312 = vpop.permute.xlu0 %2311
      %2313 = vrot.lane.b32.xlu0 %v2294, 28
      %v2314 = vpop.permute.xlu0 %2313
      %2315 = vrot.lane.b32.xlu0 %v2295, 28
      %v2316 = vpop.permute.xlu0 %2315
      %2317 = vrot.lane.b32.xlu0 %v2296, 28
      %v2318 = vpop.permute.xlu0 %2317
      %2319 = vrot.lane.b32.xlu0 %v2297, 28
      %v2320 = vpop.permute.xlu0 %2319
      %2321 = vrot.lane.b32.xlu0 %v2298, 28
      %v2322 = vpop.permute.xlu0 %2321
      %2323 = vrot.lane.b32.xlu0 %v2299, 28
      %v2324 = vpop.permute.xlu0 %2323
      %2325 = vrot.lane.b32.xlu0 %v2300, 28
      %v2326 = vpop.permute.xlu0 %2325
      %2327 = vrot.lane.b32.xlu0 %v2301, 28
      %v2328 = vpop.permute.xlu0 %2327
      %2329 = vrot.lane.b32.xlu0 %v2302, 28
      %v2330 = vpop.permute.xlu0 %2329
      %2331 = vrot.lane.b32.xlu0 %v2303, 28
      %v2332 = vpop.permute.xlu0 %2331
      %2333 = vrot.lane.b32.xlu0 %v2304, 28
      %v2334 = vpop.permute.xlu0 %2333
      %2335 = vrot.lane.b32.xlu0 %v2305, 28
      %v2336 = vpop.permute.xlu0 %2335
      %2337 = vrot.lane.b32.xlu0 %v2306, 28
      %v2338 = vpop.permute.xlu0 %2337
      %v2339 = vunpack.c.l.b16 %v1574
      %v2340 = vunpack.c.l.b16 %v1577
      %v2341 = vunpack.c.l.b16 %v1581
      %v2342 = vunpack.c.l.b16 %v1584
      %v2343 = vunpack.c.l.b16 %v1588
      %v2344 = vunpack.c.l.b16 %v1591
      %v2345 = vunpack.c.l.b16 %v1595
      %v2346 = vunpack.c.l.b16 %v1598
      %v2347 = vunpack.c.l.b16 %v1602
      %v2348 = vunpack.c.l.b16 %v1605
      %v2349 = vunpack.c.l.b16 %v1609
      %v2350 = vunpack.c.l.b16 %v1612
      %v2351 = vunpack.c.l.b16 %v1616
      %v2352 = vunpack.c.l.b16 %v1619
      %v2353 = vunpack.c.l.b16 %v1623
      %v2354 = vunpack.c.l.b16 %v1626
      %v2355 = vunpack.c.l.b16 %v1630
      %v2356 = vunpack.c.l.b16 %v1633
      %v2357 = vunpack.c.l.b16 %v1637
      %v2358 = vunpack.c.l.b16 %v1640
      %v2359 = vunpack.c.l.b16 %v1644
      %v2360 = vunpack.c.l.b16 %v1647
      %v2361 = vunpack.c.l.b16 %v1651
      %v2362 = vunpack.c.l.b16 %v1654
      %v2363 = vunpack.c.l.b16 %v1658
      %v2364 = vunpack.c.l.b16 %v1661
      %v2365 = vunpack.c.l.b16 %v1665
      %v2366 = vunpack.c.l.b16 %v1668
      %v2367 = vunpack.c.l.b16 %v1672
      %v2368 = vunpack.c.l.b16 %v1675
      %v2369 = vunpack.c.l.b16 %v1679
      %v2370 = vunpack.c.l.b16 %v1682
      %v2371 = vpack.c.b16 %v2340, %v2339
      %v2372 = vpack.c.b16 %v2342, %v2341
      %v2373 = vpack.c.b16 %v2344, %v2343
      %v2374 = vpack.c.b16 %v2346, %v2345
      %v2375 = vpack.c.b16 %v2348, %v2347
      %v2376 = vpack.c.b16 %v2350, %v2349
      %v2377 = vpack.c.b16 %v2352, %v2351
      %v2378 = vpack.c.b16 %v2354, %v2353
      %v2379 = vpack.c.b16 %v2356, %v2355
      %v2380 = vpack.c.b16 %v2358, %v2357
      %v2381 = vpack.c.b16 %v2360, %v2359
      %v2382 = vpack.c.b16 %v2362, %v2361
      %v2383 = vpack.c.b16 %v2364, %v2363
      %v2384 = vpack.c.b16 %v2366, %v2365
      %v2385 = vpack.c.b16 %v2368, %v2367
      %v2386 = vpack.c.b16 %v2370, %v2369
      %2387 = vrot.lane.b32.xlu0 %v2371, 32
      %v2388 = vpop.permute.xlu0 %2387
      %2389 = vrot.lane.b32.xlu0 %v2372, 32
      %v2390 = vpop.permute.xlu0 %2389
      %2391 = vrot.lane.b32.xlu0 %v2373, 32
      %v2392 = vpop.permute.xlu0 %2391
      %2393 = vrot.lane.b32.xlu0 %v2374, 32
      %v2394 = vpop.permute.xlu0 %2393
      %2395 = vrot.lane.b32.xlu0 %v2375, 32
      %v2396 = vpop.permute.xlu0 %2395
      %2397 = vrot.lane.b32.xlu0 %v2376, 32
      %v2398 = vpop.permute.xlu0 %2397
      %2399 = vrot.lane.b32.xlu0 %v2377, 32
      %v2400 = vpop.permute.xlu0 %2399
      %2401 = vrot.lane.b32.xlu0 %v2378, 32
      %v2402 = vpop.permute.xlu0 %2401
      %2403 = vrot.lane.b32.xlu0 %v2379, 32
      %v2404 = vpop.permute.xlu0 %2403
      %2405 = vrot.lane.b32.xlu0 %v2380, 32
      %v2406 = vpop.permute.xlu0 %2405
      %2407 = vrot.lane.b32.xlu0 %v2381, 32
      %v2408 = vpop.permute.xlu0 %2407
      %2409 = vrot.lane.b32.xlu0 %v2382, 32
      %v2410 = vpop.permute.xlu0 %2409
      %2411 = vrot.lane.b32.xlu0 %v2383, 32
      %v2412 = vpop.permute.xlu0 %2411
      %2413 = vrot.lane.b32.xlu0 %v2384, 32
      %v2414 = vpop.permute.xlu0 %2413
      %2415 = vrot.lane.b32.xlu0 %v2385, 32
      %v2416 = vpop.permute.xlu0 %2415
      %2417 = vrot.lane.b32.xlu0 %v2386, 32
      %v2418 = vpop.permute.xlu0 %2417
      %vm2419 = vcmask 31744
      %v2422 = vsel %vm2419, %v1731, %v1796
      %v2425 = vsel %vm2419, %v1732, %v1798
      %v2428 = vsel %vm2419, %v1733, %v1800
      %v2431 = vsel %vm2419, %v1734, %v1802
      %v2434 = vsel %vm2419, %v1735, %v1804
      %v2437 = vsel %vm2419, %v1736, %v1806
      %v2440 = vsel %vm2419, %v1737, %v1808
      %v2443 = vsel %vm2419, %v1738, %v1810
      %v2446 = vsel %vm2419, %v1739, %v1812
      %v2449 = vsel %vm2419, %v1740, %v1814
      %v2452 = vsel %vm2419, %v1741, %v1816
      %v2455 = vsel %vm2419, %v1742, %v1818
      %v2458 = vsel %vm2419, %v1743, %v1820
      %v2461 = vsel %vm2419, %v1744, %v1822
      %v2464 = vsel %vm2419, %v1745, %v1824
      %v2467 = vsel %vm2419, %v1746, %v1826
      %vm2468 = vcmask 64512
      %v2470 = vsel %vm2468, %v2422, %v1876
      %v2472 = vsel %vm2468, %v2425, %v1878
      %v2474 = vsel %vm2468, %v2428, %v1880
      %v2476 = vsel %vm2468, %v2431, %v1882
      %v2478 = vsel %vm2468, %v2434, %v1884
      %v2480 = vsel %vm2468, %v2437, %v1886
      %v2482 = vsel %vm2468, %v2440, %v1888
      %v2484 = vsel %vm2468, %v2443, %v1890
      %v2486 = vsel %vm2468, %v2446, %v1892
      %v2488 = vsel %vm2468, %v2449, %v1894
      %v2490 = vsel %vm2468, %v2452, %v1896
      %v2492 = vsel %vm2468, %v2455, %v1898
      %v2494 = vsel %vm2468, %v2458, %v1900
      %v2496 = vsel %vm2468, %v2461, %v1902
      %v2498 = vsel %vm2468, %v2464, %v1904
      %v2500 = vsel %vm2468, %v2467, %v1906
      %vm2501 = vcmask 97280
      %v2503 = vsel %vm2501, %v2470, %v1972
      %v2505 = vsel %vm2501, %v2472, %v1974
      %v2507 = vsel %vm2501, %v2474, %v1976
      %v2509 = vsel %vm2501, %v2476, %v1978
      %v2511 = vsel %vm2501, %v2478, %v1980
      %v2513 = vsel %vm2501, %v2480, %v1982
      %v2515 = vsel %vm2501, %v2482, %v1984
      %v2517 = vsel %vm2501, %v2484, %v1986
      %v2519 = vsel %vm2501, %v2486, %v1988
      %v2521 = vsel %vm2501, %v2488, %v1990
      %v2523 = vsel %vm2501, %v2490, %v1992
      %v2525 = vsel %vm2501, %v2492, %v1994
      %v2527 = vsel %vm2501, %v2494, %v1996
      %v2529 = vsel %vm2501, %v2496, %v1998
      %v2531 = vsel %vm2501, %v2498, %v2000
      %v2533 = vsel %vm2501, %v2500, %v2002
      %vm2534 = vcmask 130048
      %v2536 = vsel %vm2534, %v2503, %v2052
      %v2538 = vsel %vm2534, %v2505, %v2054
      %v2540 = vsel %vm2534, %v2507, %v2056
      %v2542 = vsel %vm2534, %v2509, %v2058
      %v2544 = vsel %vm2534, %v2511, %v2060
      %v2546 = vsel %vm2534, %v2513, %v2062
      %v2548 = vsel %vm2534, %v2515, %v2064
      %v2550 = vsel %vm2534, %v2517, %v2066
      %v2552 = vsel %vm2534, %v2519, %v2068
      %v2554 = vsel %vm2534, %v2521, %v2070
      %v2556 = vsel %vm2534, %v2523, %v2072
      %v2558 = vsel %vm2534, %v2525, %v2074
      %v2560 = vsel %vm2534, %v2527, %v2076
      %v2562 = vsel %vm2534, %v2529, %v2078
      %v2564 = vsel %vm2534, %v2531, %v2080
      %v2566 = vsel %vm2534, %v2533, %v2082
      %vm2567 = vcmask 162816
      %v2569 = vsel %vm2567, %v2536, %v2132
      %v2571 = vsel %vm2567, %v2538, %v2134
      %v2573 = vsel %vm2567, %v2540, %v2136
      %v2575 = vsel %vm2567, %v2542, %v2138
      %v2577 = vsel %vm2567, %v2544, %v2140
      %v2579 = vsel %vm2567, %v2546, %v2142
      %v2581 = vsel %vm2567, %v2548, %v2144
      %v2583 = vsel %vm2567, %v2550, %v2146
      %v2585 = vsel %vm2567, %v2552, %v2148
      %v2587 = vsel %vm2567, %v2554, %v2150
      %v2589 = vsel %vm2567, %v2556, %v2152
      %v2591 = vsel %vm2567, %v2558, %v2154
      %v2593 = vsel %vm2567, %v2560, %v2156
      %v2595 = vsel %vm2567, %v2562, %v2158
      %v2597 = vsel %vm2567, %v2564, %v2160
      %v2599 = vsel %vm2567, %v2566, %v2162
      %vm2600 = vcmask 195584
      %v2602 = vsel %vm2600, %v2569, %v2228
      %v2604 = vsel %vm2600, %v2571, %v2230
      %v2606 = vsel %vm2600, %v2573, %v2232
      %v2608 = vsel %vm2600, %v2575, %v2234
      %v2610 = vsel %vm2600, %v2577, %v2236
      %v2612 = vsel %vm2600, %v2579, %v2238
      %v2614 = vsel %vm2600, %v2581, %v2240
      %v2616 = vsel %vm2600, %v2583, %v2242
      %v2618 = vsel %vm2600, %v2585, %v2244
      %v2620 = vsel %vm2600, %v2587, %v2246
      %v2622 = vsel %vm2600, %v2589, %v2248
      %v2624 = vsel %vm2600, %v2591, %v2250
      %v2626 = vsel %vm2600, %v2593, %v2252
      %v2628 = vsel %vm2600, %v2595, %v2254
      %v2630 = vsel %vm2600, %v2597, %v2256
      %v2632 = vsel %vm2600, %v2599, %v2258
      %vm2633 = vcmask 228352
      %v2635 = vsel %vm2633, %v2602, %v2308
      %v2637 = vsel %vm2633, %v2604, %v2310
      %v2639 = vsel %vm2633, %v2606, %v2312
      %v2641 = vsel %vm2633, %v2608, %v2314
      %v2643 = vsel %vm2633, %v2610, %v2316
      %v2645 = vsel %vm2633, %v2612, %v2318
      %v2647 = vsel %vm2633, %v2614, %v2320
      %v2649 = vsel %vm2633, %v2616, %v2322
      %v2651 = vsel %vm2633, %v2618, %v2324
      %v2653 = vsel %vm2633, %v2620, %v2326
      %v2655 = vsel %vm2633, %v2622, %v2328
      %v2657 = vsel %vm2633, %v2624, %v2330
      %v2659 = vsel %vm2633, %v2626, %v2332
      %v2661 = vsel %vm2633, %v2628, %v2334
      %v2663 = vsel %vm2633, %v2630, %v2336
      %v2665 = vsel %vm2633, %v2632, %v2338
      %vm2666 = vcmask 261120
      %v2668 = vsel %vm2666, %v2635, %v2388
      %v2670 = vsel %vm2666, %v2637, %v2390
      %v2672 = vsel %vm2666, %v2639, %v2392
      %v2674 = vsel %vm2666, %v2641, %v2394
      %v2676 = vsel %vm2666, %v2643, %v2396
      %v2678 = vsel %vm2666, %v2645, %v2398
      %v2680 = vsel %vm2666, %v2647, %v2400
      %v2682 = vsel %vm2666, %v2649, %v2402
      %v2684 = vsel %vm2666, %v2651, %v2404
      %v2686 = vsel %vm2666, %v2653, %v2406
      %v2688 = vsel %vm2666, %v2655, %v2408
      %v2690 = vsel %vm2666, %v2657, %v2410
      %v2692 = vsel %vm2666, %v2659, %v2412
      %v2694 = vsel %vm2666, %v2661, %v2414
      %v2696 = vsel %vm2666, %v2663, %v2416
      %v2698 = vsel %vm2666, %v2665, %v2418
      %v2699 = vld [vmem:[%s2] sm:$0xf]
      %v2700 = vld [vmem:[%s2 + $0x4] sm:$0xf]
      %v2701 = vld [vmem:[%s2 + $0x8] sm:$0xf]
      %v2702 = vld [vmem:[%s2 + $0xc] sm:$0xf]
      %v2703 = vld [vmem:[%s2 + $0x10] sm:$0x3]
      %v2709 = vunpack.c.l.b16 %v2699
      %v2710 = vunpack.c.l.b16 %v2700
      %v2711 = vunpack.c.l.b16 %v2701
      %v2712 = vunpack.c.l.b16 %v2702
      %v2713 = vunpack.c.l.b16 %v2703
      %v2714 = vpack.c.b16 %v2710, %v2709
      %v2715 = vpack.c.b16 %v2712, %v2711
      %v2716 = vpack.c.b16 %v2713, %v2713
      %vm2719 = vcmask 293888
      %v2720 = vsel %vm2719, %v2668, 0
      %v2722 = vsel %vm2719, %v2670, 0
      %v2724 = vsel %vm2719, %v2672, 0
      %v2726 = vsel %vm2719, %v2674, 0
      %v2728 = vsel %vm2719, %v2676, 0
      %v2730 = vsel %vm2719, %v2678, 0
      %v2732 = vsel %vm2719, %v2680, 0
      %v2734 = vsel %vm2719, %v2682, 0
      %v2736 = vsel %vm2719, %v2684, 0
      %v2738 = vsel %vm2719, %v2686, 0
      %v2740 = vsel %vm2719, %v2688, 0
      %v2742 = vsel %vm2719, %v2690, 0
      %v2744 = vsel %vm2719, %v2692, 0
      %v2746 = vsel %vm2719, %v2694, 0
      %v2748 = vsel %vm2719, %v2696, 0
      %v2750 = vsel %vm2719, %v2698, 0
      %vm2752 = vcmask 1041408
      %v2754 = vsel %vm2752, %v2716, 0
      %2756 = vmatprep.subr.bf16.mxu0 0
      %2757 = vmatpush1.bf16.msra.mxu0 %v2714
      %2758 = vmatprep.subr.bf16.mxu0 0
      %2759 = vmatpush1.bf16.msra.mxu0 %v2715
      %2760 = vmatprep.subr.bf16.mxu0 0
      %2761 = vmatpush1.bf16.msra.mxu0 %v2754
      %2762 = vmatprep.subr.bf16.mxu0 0
      %2763 = vmatpush1.bf16.msra.mxu0 0
      %2764 = vmatprep.subr.bf16.mxu0 0
      %2765 = vmatpush1.bf16.msra.mxu0 0
      %2766 = vmatprep.subr.bf16.mxu0 0
      %2767 = vmatpush1.bf16.msra.mxu0 0
      %2768 = vmatprep.subr.bf16.mxu0 0
      %2769 = vmatpush1.bf16.msra.mxu0 0
      %2770 = vmatprep.subr.bf16.mxu0 0
      %2771 = vmatpush1.bf16.msra.mxu0 0
      %2772 = vmatprep.subr.bf16.mxu0 0
      %2773 = vmatpush1.bf16.msra.mxu0 0
      %2774 = vmatprep.subr.bf16.mxu0 0
      %2775 = vmatpush1.bf16.msra.mxu0 0
      %2776 = vmatprep.subr.bf16.mxu0 0
      %2777 = vmatpush1.bf16.msra.mxu0 0
      %2778 = vmatprep.subr.bf16.mxu0 0
      %2779 = vmatpush1.bf16.msra.mxu0 0
      %2780 = vmatprep.subr.bf16.mxu0 0
      %2781 = vmatpush1.bf16.msra.mxu0 0
      %2782 = vmatprep.subr.bf16.mxu0 0
      %2783 = vmatpush1.bf16.msra.mxu0 0
      %2784 = vmatprep.subr.bf16.mxu0 0
      %2785 = vmatpush1.bf16.msra.mxu0 0
      %2786 = vmatprep.subr.bf16.mxu0 0
      %2787 = vmatpush1.bf16.msra.mxu0 0
      %2788 = vmatprep.mubr.bf16.mxu0 0
      %2789 = vmatmul.mubr.bf16.gmra.mrb[0].mxu0 %v2720
      %v2790 = vpop.f32.mrb[0].mxu0
      %v2791 = vadd.f32 0.0, %v2790
      %v2792 = vpop.f32.mrb[0].mxu0
      %v2793 = vpop.f32.mrb[0].mxu0
      %v2794 = vadd.f32 0.0, %v2793
      %v2795 = vpop.f32.mrb[0].mxu0
      %2796 = vmatprep.mubr.bf16.mxu0 0
      %2797 = vmatmul.mubr.bf16.gmra.mrb[0].mxu0 %v2722
      %v2798 = vpop.f32.mrb[0].mxu0
      %v2799 = vadd.f32 0.0, %v2798
      %v2800 = vpop.f32.mrb[0].mxu0
      %v2801 = vpop.f32.mrb[0].mxu0
      %v2802 = vadd.f32 0.0, %v2801
      %v2803 = vpop.f32.mrb[0].mxu0
      %2804 = vmatprep.mubr.bf16.mxu0 0
      %2805 = vmatmul.mubr.bf16.gmra.mrb[0].mxu0 %v2724
      %v2806 = vpop.f32.mrb[0].mxu0
      %v2807 = vadd.f32 0.0, %v2806
      %v2808 = vpop.f32.mrb[0].mxu0
      %v2809 = vpop.f32.mrb[0].mxu0
      %v2810 = vadd.f32 0.0, %v2809
      %v2811 = vpop.f32.mrb[0].mxu0
      %2812 = vmatprep.mubr.bf16.mxu0 0
      %2813 = vmatmul.mubr.bf16.gmra.mrb[0].mxu0 %v2726
      %v2814 = vpop.f32.mrb[0].mxu0
      %v2815 = vadd.f32 0.0, %v2814
      %v2816 = vpop.f32.mrb[0].mxu0
      %v2817 = vpop.f32.mrb[0].mxu0
      %v2818 = vadd.f32 0.0, %v2817
      %v2819 = vpop.f32.mrb[0].mxu0
      %2820 = vmatprep.mubr.bf16.mxu0 0
      %2821 = vmatmul.mubr.bf16.gmra.mrb[0].mxu0 %v2728
      %v2822 = vpop.f32.mrb[0].mxu0
      %v2823 = vadd.f32 0.0, %v2822
      %v2824 = vpop.f32.mrb[0].mxu0
      %v2825 = vpop.f32.mrb[0].mxu0
      %v2826 = vadd.f32 0.0, %v2825
      %v2827 = vpop.f32.mrb[0].mxu0
      %2828 = vmatprep.mubr.bf16.mxu0 0
      %2829 = vmatmul.mubr.bf16.gmra.mrb[0].mxu0 %v2730
      %v2830 = vpop.f32.mrb[0].mxu0
      %v2831 = vadd.f32 0.0, %v2830
      %v2832 = vpop.f32.mrb[0].mxu0
      %v2833 = vpop.f32.mrb[0].mxu0
      %v2834 = vadd.f32 0.0, %v2833
      %v2835 = vpop.f32.mrb[0].mxu0
      %2836 = vmatprep.mubr.bf16.mxu0 0
      %2837 = vmatmul.mubr.bf16.gmra.mrb[0].mxu0 %v2732
      %v2838 = vpop.f32.mrb[0].mxu0
      %v2839 = vadd.f32 0.0, %v2838
      %v2840 = vpop.f32.mrb[0].mxu0
      %v2841 = vpop.f32.mrb[0].mxu0
      %v2842 = vadd.f32 0.0, %v2841
      %v2843 = vpop.f32.mrb[0].mxu0
      %2844 = vmatprep.mubr.bf16.mxu0 0
      %2845 = vmatmul.mubr.bf16.gmra.mrb[0].mxu0 %v2734
      %v2846 = vpop.f32.mrb[0].mxu0
      %v2847 = vadd.f32 0.0, %v2846
      %v2848 = vpop.f32.mrb[0].mxu0
      %v2849 = vpop.f32.mrb[0].mxu0
      %v2850 = vadd.f32 0.0, %v2849
      %v2851 = vpop.f32.mrb[0].mxu0
      %2852 = vmatprep.mubr.bf16.mxu0 0
      %2853 = vmatmul.mubr.bf16.gmra.mrb[0].mxu0 %v2736
      %v2854 = vpop.f32.mrb[0].mxu0
      %v2855 = vadd.f32 0.0, %v2854
      %v2856 = vpop.f32.mrb[0].mxu0
      %v2857 = vpop.f32.mrb[0].mxu0
      %v2858 = vadd.f32 0.0, %v2857
      %v2859 = vpop.f32.mrb[0].mxu0
      %2860 = vmatprep.mubr.bf16.mxu0 0
      %2861 = vmatmul.mubr.bf16.gmra.mrb[0].mxu0 %v2738
      %v2862 = vpop.f32.mrb[0].mxu0
      %v2863 = vadd.f32 0.0, %v2862
      %v2864 = vpop.f32.mrb[0].mxu0
      %v2865 = vpop.f32.mrb[0].mxu0
      %v2866 = vadd.f32 0.0, %v2865
      %v2867 = vpop.f32.mrb[0].mxu0
      %2868 = vmatprep.mubr.bf16.mxu0 0
      %2869 = vmatmul.mubr.bf16.gmra.mrb[0].mxu0 %v2740
      %v2870 = vpop.f32.mrb[0].mxu0
      %v2871 = vadd.f32 0.0, %v2870
      %v2872 = vpop.f32.mrb[0].mxu0
      %v2873 = vpop.f32.mrb[0].mxu0
      %v2874 = vadd.f32 0.0, %v2873
      %v2875 = vpop.f32.mrb[0].mxu0
      %2876 = vmatprep.mubr.bf16.mxu0 0
      %2877 = vmatmul.mubr.bf16.gmra.mrb[0].mxu0 %v2742
      %v2878 = vpop.f32.mrb[0].mxu0
      %v2879 = vadd.f32 0.0, %v2878
      %v2880 = vpop.f32.mrb[0].mxu0
      %v2881 = vpop.f32.mrb[0].mxu0
      %v2882 = vadd.f32 0.0, %v2881
      %v2883 = vpop.f32.mrb[0].mxu0
      %2884 = vmatprep.mubr.bf16.mxu0 0
      %2885 = vmatmul.mubr.bf16.gmra.mrb[0].mxu0 %v2744
      %v2886 = vpop.f32.mrb[0].mxu0
      %v2887 = vadd.f32 0.0, %v2886
      %v2888 = vpop.f32.mrb[0].mxu0
      %v2889 = vpop.f32.mrb[0].mxu0
      %v2890 = vadd.f32 0.0, %v2889
      %v2891 = vpop.f32.mrb[0].mxu0
      %2892 = vmatprep.mubr.bf16.mxu0 0
      %2893 = vmatmul.mubr.bf16.gmra.mrb[0].mxu0 %v2746
      %v2894 = vpop.f32.mrb[0].mxu0
      %v2895 = vadd.f32 0.0, %v2894
      %v2896 = vpop.f32.mrb[0].mxu0
      %v2897 = vpop.f32.mrb[0].mxu0
      %v2898 = vadd.f32 0.0, %v2897
      %v2899 = vpop.f32.mrb[0].mxu0
      %2900 = vmatprep.mubr.bf16.mxu0 0
      %2901 = vmatmul.mubr.bf16.gmra.mrb[0].mxu0 %v2748
      %v2902 = vpop.f32.mrb[0].mxu0
      %v2903 = vadd.f32 0.0, %v2902
      %v2904 = vpop.f32.mrb[0].mxu0
      %v2905 = vpop.f32.mrb[0].mxu0
      %v2906 = vadd.f32 0.0, %v2905
      %v2907 = vpop.f32.mrb[0].mxu0
      %2908 = vmatprep.mubr.bf16.mxu0 0
      %2909 = vmatmul.mubr.bf16.gmra.mrb[0].mxu0 %v2750
      %v2910 = vpop.f32.mrb[0].mxu0
      %v2911 = vadd.f32 0.0, %v2910
      %v2912 = vpop.f32.mrb[0].mxu0
      %v2913 = vpop.f32.mrb[0].mxu0
      %v2914 = vadd.f32 0.0, %v2913
      %v2915 = vpop.f32.mrb[0].mxu0
      %2916 = vdwg.mxu0
      %v2917 = vld [vmem:[%s5] sm:$0x1]
      %v2919 = vlaneseq
      %v2920 = vshrl.u32 %v2919, 7
      %v2921 = vsub.s32 0, %v2920
      %v2922 = vrot.slane %v2917, %v2921
      %v2924 = vmul.f32 %v2791, %v2922
      %v2925 = vmul.f32 %v2794, %v2922
      %v2926 = vmul.f32 %v2799, %v2922
      %v2927 = vmul.f32 %v2802, %v2922
      %v2928 = vmul.f32 %v2807, %v2922
      %v2929 = vmul.f32 %v2810, %v2922
      %v2930 = vmul.f32 %v2815, %v2922
      %v2931 = vmul.f32 %v2818, %v2922
      %v2932 = vmul.f32 %v2823, %v2922
      %v2933 = vmul.f32 %v2826, %v2922
      %v2934 = vmul.f32 %v2831, %v2922
      %v2935 = vmul.f32 %v2834, %v2922
      %v2936 = vmul.f32 %v2839, %v2922
      %v2937 = vmul.f32 %v2842, %v2922
      %v2938 = vmul.f32 %v2847, %v2922
      %v2939 = vmul.f32 %v2850, %v2922
      %v2940 = vmul.f32 %v2855, %v2922
      %v2941 = vmul.f32 %v2858, %v2922
      %v2942 = vmul.f32 %v2863, %v2922
      %v2943 = vmul.f32 %v2866, %v2922
      %v2944 = vmul.f32 %v2871, %v2922
      %v2945 = vmul.f32 %v2874, %v2922
      %v2946 = vmul.f32 %v2879, %v2922
      %v2947 = vmul.f32 %v2882, %v2922
      %v2948 = vmul.f32 %v2887, %v2922
      %v2949 = vmul.f32 %v2890, %v2922
      %v2950 = vmul.f32 %v2895, %v2922
      %v2951 = vmul.f32 %v2898, %v2922
      %v2952 = vmul.f32 %v2903, %v2922
      %v2953 = vmul.f32 %v2906, %v2922
      %v2954 = vmul.f32 %v2911, %v2922
      %v2955 = vmul.f32 %v2914, %v2922
      %v2956 = vld [vmem:[%s6] sm:$0x1]
      %v2958 = vlaneseq
      %v2959 = vshrl.u32 %v2958, 7
      %v2960 = vsub.s32 0, %v2959
      %v2961 = vrot.slane %v2956, %v2960
      %v2963 = vadd.f32 %v2924, %v2961
      %v2964 = vadd.f32 %v2925, %v2961
      %v2965 = vadd.f32 %v2926, %v2961
      %v2966 = vadd.f32 %v2927, %v2961
      %v2967 = vadd.f32 %v2928, %v2961
      %v2968 = vadd.f32 %v2929, %v2961
      %v2969 = vadd.f32 %v2930, %v2961
      %v2970 = vadd.f32 %v2931, %v2961
      %v2971 = vadd.f32 %v2932, %v2961
      %v2972 = vadd.f32 %v2933, %v2961
      %v2973 = vadd.f32 %v2934, %v2961
      %v2974 = vadd.f32 %v2935, %v2961
      %v2975 = vadd.f32 %v2936, %v2961
      %v2976 = vadd.f32 %v2937, %v2961
      %v2977 = vadd.f32 %v2938, %v2961
      %v2978 = vadd.f32 %v2939, %v2961
      %v2979 = vadd.f32 %v2940, %v2961
      %v2980 = vadd.f32 %v2941, %v2961
      %v2981 = vadd.f32 %v2942, %v2961
      %v2982 = vadd.f32 %v2943, %v2961
      %v2983 = vadd.f32 %v2944, %v2961
      %v2984 = vadd.f32 %v2945, %v2961
      %v2985 = vadd.f32 %v2946, %v2961
      %v2986 = vadd.f32 %v2947, %v2961
      %v2987 = vadd.f32 %v2948, %v2961
      %v2988 = vadd.f32 %v2949, %v2961
      %v2989 = vadd.f32 %v2950, %v2961
      %v2990 = vadd.f32 %v2951, %v2961
      %v2991 = vadd.f32 %v2952, %v2961
      %v2992 = vadd.f32 %v2953, %v2961
      %v2993 = vadd.f32 %v2954, %v2961
      %v2994 = vadd.f32 %v2955, %v2961
      %v2995 = vmax.f32 %v2963, 0.0
      %v2996 = vmax.f32 %v2964, 0.0
      %v2997 = vmax.f32 %v2965, 0.0
      %v2998 = vmax.f32 %v2966, 0.0
      %v2999 = vmax.f32 %v2967, 0.0
      %v3000 = vmax.f32 %v2968, 0.0
      %v3001 = vmax.f32 %v2969, 0.0
      %v3002 = vmax.f32 %v2970, 0.0
      %v3003 = vmax.f32 %v2971, 0.0
      %v3004 = vmax.f32 %v2972, 0.0
      %v3005 = vmax.f32 %v2973, 0.0
      %v3006 = vmax.f32 %v2974, 0.0
      %v3007 = vmax.f32 %v2975, 0.0
      %v3008 = vmax.f32 %v2976, 0.0
      %v3009 = vmax.f32 %v2977, 0.0
      %v3010 = vmax.f32 %v2978, 0.0
      %v3011 = vmax.f32 %v2979, 0.0
      %v3012 = vmax.f32 %v2980, 0.0
      %v3013 = vmax.f32 %v2981, 0.0
      %v3014 = vmax.f32 %v2982, 0.0
      %v3015 = vmax.f32 %v2983, 0.0
      %v3016 = vmax.f32 %v2984, 0.0
      %v3017 = vmax.f32 %v2985, 0.0
      %v3018 = vmax.f32 %v2986, 0.0
      %v3019 = vmax.f32 %v2987, 0.0
      %v3020 = vmax.f32 %v2988, 0.0
      %v3021 = vmax.f32 %v2989, 0.0
      %v3022 = vmax.f32 %v2990, 0.0
      %v3023 = vmax.f32 %v2991, 0.0
      %v3024 = vmax.f32 %v2992, 0.0
      %v3025 = vmax.f32 %v2993, 0.0
      %v3026 = vmax.f32 %v2994, 0.0
      %v3027 = vld [vmem:[%s463] sm:$0xf]
      %v3028 = vld [vmem:[%s463 + $0x8] sm:$0xf]
      %v3029 = vld [vmem:[%s463 + $0x10] sm:$0xf]
      %v3030 = vld [vmem:[%s463 + $0x18] sm:$0xf]
      %v3031 = vld [vmem:[%s463 + $0x20] sm:$0xf]
      %v3032 = vld [vmem:[%s463 + $0x28] sm:$0xf]
      %v3033 = vld [vmem:[%s463 + $0x30] sm:$0xf]
      %v3034 = vld [vmem:[%s463 + $0x38] sm:$0xf]
      %v3035 = vld [vmem:[%s463] sm:$0xe]
      %v3036 = vld [vmem:[%s463 + $0x4] sm:$0x1]
      %v3037 = vld [vmem:[%s463 + $0x8] sm:$0xe]
      %v3038 = vld [vmem:[%s463 + $0xc] sm:$0x1]
      %v3039 = vld [vmem:[%s463 + $0x10] sm:$0xe]
      %v3040 = vld [vmem:[%s463 + $0x14] sm:$0x1]
      %v3041 = vld [vmem:[%s463 + $0x18] sm:$0xe]
      %v3042 = vld [vmem:[%s463 + $0x1c] sm:$0x1]
      %v3043 = vld [vmem:[%s463 + $0x20] sm:$0xe]
      %v3044 = vld [vmem:[%s463 + $0x24] sm:$0x1]
      %v3045 = vld [vmem:[%s463 + $0x28] sm:$0xe]
      %v3046 = vld [vmem:[%s463 + $0x2c] sm:$0x1]
      %v3047 = vld [vmem:[%s463 + $0x30] sm:$0xe]
      %v3048 = vld [vmem:[%s463 + $0x34] sm:$0x1]
      %v3049 = vld [vmem:[%s463 + $0x38] sm:$0xe]
      %v3050 = vld [vmem:[%s463 + $0x3c] sm:$0x1]
      %v3067 = vrot.slane %v3035, 5
      %v3068 = vrot.slane %v3067, 4
      %v3069 = vrot.slane %v3036, 5
      %v3070 = vsel %vm589, %v3068, %v3069
      %v3071 = vrot.slane %v3037, 5
      %v3072 = vrot.slane %v3071, 4
      %v3073 = vrot.slane %v3038, 5
      %v3074 = vsel %vm589, %v3072, %v3073
      %v3075 = vrot.slane %v3039, 5
      %v3076 = vrot.slane %v3075, 4
      %v3077 = vrot.slane %v3040, 5
      %v3078 = vsel %vm589, %v3076, %v3077
      %v3079 = vrot.slane %v3041, 5
      %v3080 = vrot.slane %v3079, 4
      %v3081 = vrot.slane %v3042, 5
      %v3082 = vsel %vm589, %v3080, %v3081
      %v3083 = vrot.slane %v3043, 5
      %v3084 = vrot.slane %v3083, 4
      %v3085 = vrot.slane %v3044, 5
      %v3086 = vsel %vm589, %v3084, %v3085
      %v3087 = vrot.slane %v3045, 5
      %v3088 = vrot.slane %v3087, 4
      %v3089 = vrot.slane %v3046, 5
      %v3090 = vsel %vm589, %v3088, %v3089
      %v3091 = vrot.slane %v3047, 5
      %v3092 = vrot.slane %v3091, 4
      %v3093 = vrot.slane %v3048, 5
      %v3094 = vsel %vm589, %v3092, %v3093
      %v3095 = vrot.slane %v3049, 5
      %v3096 = vrot.slane %v3095, 4
      %v3097 = vrot.slane %v3050, 5
      %v3098 = vsel %vm589, %v3096, %v3097
      %v3099 = vld [vmem:[%s463] sm:$0xc]
      %v3100 = vld [vmem:[%s463 + $0x4] sm:$0x3]
      %v3101 = vld [vmem:[%s463 + $0x8] sm:$0xc]
      %v3102 = vld [vmem:[%s463 + $0xc] sm:$0x3]
      %v3103 = vld [vmem:[%s463 + $0x10] sm:$0xc]
      %v3104 = vld [vmem:[%s463 + $0x14] sm:$0x3]
      %v3105 = vld [vmem:[%s463 + $0x18] sm:$0xc]
      %v3106 = vld [vmem:[%s463 + $0x1c] sm:$0x3]
      %v3107 = vld [vmem:[%s463 + $0x20] sm:$0xc]
      %v3108 = vld [vmem:[%s463 + $0x24] sm:$0x3]
      %v3109 = vld [vmem:[%s463 + $0x28] sm:$0xc]
      %v3110 = vld [vmem:[%s463 + $0x2c] sm:$0x3]
      %v3111 = vld [vmem:[%s463 + $0x30] sm:$0xc]
      %v3112 = vld [vmem:[%s463 + $0x34] sm:$0x3]
      %v3113 = vld [vmem:[%s463 + $0x38] sm:$0xc]
      %v3114 = vld [vmem:[%s463 + $0x3c] sm:$0x3]
      %v3131 = vrot.slane %v3099, 6
      %v3132 = vrot.slane %v3131, 4
      %v3133 = vrot.slane %v3100, 6
      %v3134 = vsel %vm768, %v3132, %v3133
      %v3135 = vrot.slane %v3101, 6
      %v3136 = vrot.slane %v3135, 4
      %v3137 = vrot.slane %v3102, 6
      %v3138 = vsel %vm768, %v3136, %v3137
      %v3139 = vrot.slane %v3103, 6
      %v3140 = vrot.slane %v3139, 4
      %v3141 = vrot.slane %v3104, 6
      %v3142 = vsel %vm768, %v3140, %v3141
      %v3143 = vrot.slane %v3105, 6
      %v3144 = vrot.slane %v3143, 4
      %v3145 = vrot.slane %v3106, 6
      %v3146 = vsel %vm768, %v3144, %v3145
      %v3147 = vrot.slane %v3107, 6
      %v3148 = vrot.slane %v3147, 4
      %v3149 = vrot.slane %v3108, 6
      %v3150 = vsel %vm768, %v3148, %v3149
      %v3151 = vrot.slane %v3109, 6
      %v3152 = vrot.slane %v3151, 4
      %v3153 = vrot.slane %v3110, 6
      %v3154 = vsel %vm768, %v3152, %v3153
      %v3155 = vrot.slane %v3111, 6
      %v3156 = vrot.slane %v3155, 4
      %v3157 = vrot.slane %v3112, 6
      %v3158 = vsel %vm768, %v3156, %v3157
      %v3159 = vrot.slane %v3113, 6
      %v3160 = vrot.slane %v3159, 4
      %v3161 = vrot.slane %v3114, 6
      %v3162 = vsel %vm768, %v3160, %v3161
      %s3163 = scalar_lea.vmem %s463, 16
      %v3164 = vld [vmem:[%s3163] sm:$0xf]
      %v3165 = vld [vmem:[%s3163 + $0x8] sm:$0xf]
      %v3166 = vld [vmem:[%s3163 + $0x10] sm:$0xf]
      %v3167 = vld [vmem:[%s3163 + $0x18] sm:$0xf]
      %v3168 = vld [vmem:[%s3163 + $0x20] sm:$0xf]
      %v3169 = vld [vmem:[%s3163 + $0x28] sm:$0xf]
      %v3170 = vld [vmem:[%s3163 + $0x30] sm:$0xf]
      %v3171 = vld [vmem:[%s3163 + $0x38] sm:$0xf]
      %v3172 = vld [vmem:[%s3163] sm:$0xe]
      %v3173 = vld [vmem:[%s3163 + $0x4] sm:$0x1]
      %v3174 = vld [vmem:[%s3163 + $0x8] sm:$0xe]
      %v3175 = vld [vmem:[%s3163 + $0xc] sm:$0x1]
      %v3176 = vld [vmem:[%s3163 + $0x10] sm:$0xe]
      %v3177 = vld [vmem:[%s3163 + $0x14] sm:$0x1]
      %v3178 = vld [vmem:[%s3163 + $0x18] sm:$0xe]
      %v3179 = vld [vmem:[%s3163 + $0x1c] sm:$0x1]
      %v3180 = vld [vmem:[%s3163 + $0x20] sm:$0xe]
      %v3181 = vld [vmem:[%s3163 + $0x24] sm:$0x1]
      %v3182 = vld [vmem:[%s3163 + $0x28] sm:$0xe]
      %v3183 = vld [vmem:[%s3163 + $0x2c] sm:$0x1]
      %v3184 = vld [vmem:[%s3163 + $0x30] sm:$0xe]
      %v3185 = vld [vmem:[%s3163 + $0x34] sm:$0x1]
      %v3186 = vld [vmem:[%s3163 + $0x38] sm:$0xe]
      %v3187 = vld [vmem:[%s3163 + $0x3c] sm:$0x1]
      %v3204 = vrot.slane %v3172, 5
      %v3205 = vrot.slane %v3204, 4
      %v3206 = vrot.slane %v3173, 5
      %v3207 = vsel %vm589, %v3205, %v3206
      %v3208 = vrot.slane %v3174, 5
      %v3209 = vrot.slane %v3208, 4
      %v3210 = vrot.slane %v3175, 5
      %v3211 = vsel %vm589, %v3209, %v3210
      %v3212 = vrot.slane %v3176, 5
      %v3213 = vrot.slane %v3212, 4
      %v3214 = vrot.slane %v3177, 5
      %v3215 = vsel %vm589, %v3213, %v3214
      %v3216 = vrot.slane %v3178, 5
      %v3217 = vrot.slane %v3216, 4
      %v3218 = vrot.slane %v3179, 5
      %v3219 = vsel %vm589, %v3217, %v3218
      %v3220 = vrot.slane %v3180, 5
      %v3221 = vrot.slane %v3220, 4
      %v3222 = vrot.slane %v3181, 5
      %v3223 = vsel %vm589, %v3221, %v3222
      %v3224 = vrot.slane %v3182, 5
      %v3225 = vrot.slane %v3224, 4
      %v3226 = vrot.slane %v3183, 5
      %v3227 = vsel %vm589, %v3225, %v3226
      %v3228 = vrot.slane %v3184, 5
      %v3229 = vrot.slane %v3228, 4
      %v3230 = vrot.slane %v3185, 5
      %v3231 = vsel %vm589, %v3229, %v3230
      %v3232 = vrot.slane %v3186, 5
      %v3233 = vrot.slane %v3232, 4
      %v3234 = vrot.slane %v3187, 5
      %v3235 = vsel %vm589, %v3233, %v3234
      %v3236 = vld [vmem:[%s3163] sm:$0xc]
      %v3237 = vld [vmem:[%s3163 + $0x4] sm:$0x3]
      %v3238 = vld [vmem:[%s3163 + $0x8] sm:$0xc]
      %v3239 = vld [vmem:[%s3163 + $0xc] sm:$0x3]
      %v3240 = vld [vmem:[%s3163 + $0x10] sm:$0xc]
      %v3241 = vld [vmem:[%s3163 + $0x14] sm:$0x3]
      %v3242 = vld [vmem:[%s3163 + $0x18] sm:$0xc]
      %v3243 = vld [vmem:[%s3163 + $0x1c] sm:$0x3]
      %v3244 = vld [vmem:[%s3163 + $0x20] sm:$0xc]
      %v3245 = vld [vmem:[%s3163 + $0x24] sm:$0x3]
      %v3246 = vld [vmem:[%s3163 + $0x28] sm:$0xc]
      %v3247 = vld [vmem:[%s3163 + $0x2c] sm:$0x3]
      %v3248 = vld [vmem:[%s3163 + $0x30] sm:$0xc]
      %v3249 = vld [vmem:[%s3163 + $0x34] sm:$0x3]
      %v3250 = vld [vmem:[%s3163 + $0x38] sm:$0xc]
      %v3251 = vld [vmem:[%s3163 + $0x3c] sm:$0x3]
      %v3268 = vrot.slane %v3236, 6
      %v3269 = vrot.slane %v3268, 4
      %v3270 = vrot.slane %v3237, 6
      %v3271 = vsel %vm768, %v3269, %v3270
      %v3272 = vrot.slane %v3238, 6
      %v3273 = vrot.slane %v3272, 4
      %v3274 = vrot.slane %v3239, 6
      %v3275 = vsel %vm768, %v3273, %v3274
      %v3276 = vrot.slane %v3240, 6
      %v3277 = vrot.slane %v3276, 4
      %v3278 = vrot.slane %v3241, 6
      %v3279 = vsel %vm768, %v3277, %v3278
      %v3280 = vrot.slane %v3242, 6
      %v3281 = vrot.slane %v3280, 4
      %v3282 = vrot.slane %v3243, 6
      %v3283 = vsel %vm768, %v3281, %v3282
      %v3284 = vrot.slane %v3244, 6
      %v3285 = vrot.slane %v3284, 4
      %v3286 = vrot.slane %v3245, 6
      %v3287 = vsel %vm768, %v3285, %v3286
      %v3288 = vrot.slane %v3246, 6
      %v3289 = vrot.slane %v3288, 4
      %v3290 = vrot.slane %v3247, 6
      %v3291 = vsel %vm768, %v3289, %v3290
      %v3292 = vrot.slane %v3248, 6
      %v3293 = vrot.slane %v3292, 4
      %v3294 = vrot.slane %v3249, 6
      %v3295 = vsel %vm768, %v3293, %v3294
      %v3296 = vrot.slane %v3250, 6
      %v3297 = vrot.slane %v3296, 4
      %v3298 = vrot.slane %v3251, 6
      %v3299 = vsel %vm768, %v3297, %v3298
      %s3300 = scalar_lea.vmem %s463, 32
      %v3301 = vld [vmem:[%s3300] sm:$0xf]
      %v3302 = vld [vmem:[%s3300 + $0x8] sm:$0xf]
      %v3303 = vld [vmem:[%s3300 + $0x10] sm:$0xf]
      %v3304 = vld [vmem:[%s3300 + $0x18] sm:$0xf]
      %v3305 = vld [vmem:[%s3300 + $0x20] sm:$0xf]
      %v3306 = vld [vmem:[%s3300 + $0x28] sm:$0xf]
      %v3307 = vld [vmem:[%s3300 + $0x30] sm:$0xf]
      %v3308 = vld [vmem:[%s3300 + $0x38] sm:$0xf]
      %v3309 = vld [vmem:[%s3300] sm:$0xe]
      %v3310 = vld [vmem:[%s3300 + $0x4] sm:$0x1]
      %v3311 = vld [vmem:[%s3300 + $0x8] sm:$0xe]
      %v3312 = vld [vmem:[%s3300 + $0xc] sm:$0x1]
      %v3313 = vld [vmem:[%s3300 + $0x10] sm:$0xe]
      %v3314 = vld [vmem:[%s3300 + $0x14] sm:$0x1]
      %v3315 = vld [vmem:[%s3300 + $0x18] sm:$0xe]
      %v3316 = vld [vmem:[%s3300 + $0x1c] sm:$0x1]
      %v3317 = vld [vmem:[%s3300 + $0x20] sm:$0xe]
      %v3318 = vld [vmem:[%s3300 + $0x24] sm:$0x1]
      %v3319 = vld [vmem:[%s3300 + $0x28] sm:$0xe]
      %v3320 = vld [vmem:[%s3300 + $0x2c] sm:$0x1]
      %v3321 = vld [vmem:[%s3300 + $0x30] sm:$0xe]
      %v3322 = vld [vmem:[%s3300 + $0x34] sm:$0x1]
      %v3323 = vld [vmem:[%s3300 + $0x38] sm:$0xe]
      %v3324 = vld [vmem:[%s3300 + $0x3c] sm:$0x1]
      %v3341 = vrot.slane %v3309, 5
      %v3342 = vrot.slane %v3341, 4
      %v3343 = vrot.slane %v3310, 5
      %v3344 = vsel %vm589, %v3342, %v3343
      %v3345 = vrot.slane %v3311, 5
      %v3346 = vrot.slane %v3345, 4
      %v3347 = vrot.slane %v3312, 5
      %v3348 = vsel %vm589, %v3346, %v3347
      %v3349 = vrot.slane %v3313, 5
      %v3350 = vrot.slane %v3349, 4
      %v3351 = vrot.slane %v3314, 5
      %v3352 = vsel %vm589, %v3350, %v3351
      %v3353 = vrot.slane %v3315, 5
      %v3354 = vrot.slane %v3353, 4
      %v3355 = vrot.slane %v3316, 5
      %v3356 = vsel %vm589, %v3354, %v3355
      %v3357 = vrot.slane %v3317, 5
      %v3358 = vrot.slane %v3357, 4
      %v3359 = vrot.slane %v3318, 5
      %v3360 = vsel %vm589, %v3358, %v3359
      %v3361 = vrot.slane %v3319, 5
      %v3362 = vrot.slane %v3361, 4
      %v3363 = vrot.slane %v3320, 5
      %v3364 = vsel %vm589, %v3362, %v3363
      %v3365 = vrot.slane %v3321, 5
      %v3366 = vrot.slane %v3365, 4
      %v3367 = vrot.slane %v3322, 5
      %v3368 = vsel %vm589, %v3366, %v3367
      %v3369 = vrot.slane %v3323, 5
      %v3370 = vrot.slane %v3369, 4
      %v3371 = vrot.slane %v3324, 5
      %v3372 = vsel %vm589, %v3370, %v3371
      %v3373 = vld [vmem:[%s3300] sm:$0xc]
      %v3374 = vld [vmem:[%s3300 + $0x4] sm:$0x3]
      %v3375 = vld [vmem:[%s3300 + $0x8] sm:$0xc]
      %v3376 = vld [vmem:[%s3300 + $0xc] sm:$0x3]
      %v3377 = vld [vmem:[%s3300 + $0x10] sm:$0xc]
      %v3378 = vld [vmem:[%s3300 + $0x14] sm:$0x3]
      %v3379 = vld [vmem:[%s3300 + $0x18] sm:$0xc]
      %v3380 = vld [vmem:[%s3300 + $0x1c] sm:$0x3]
      %v3381 = vld [vmem:[%s3300 + $0x20] sm:$0xc]
      %v3382 = vld [vmem:[%s3300 + $0x24] sm:$0x3]
      %v3383 = vld [vmem:[%s3300 + $0x28] sm:$0xc]
      %v3384 = vld [vmem:[%s3300 + $0x2c] sm:$0x3]
      %v3385 = vld [vmem:[%s3300 + $0x30] sm:$0xc]
      %v3386 = vld [vmem:[%s3300 + $0x34] sm:$0x3]
      %v3387 = vld [vmem:[%s3300 + $0x38] sm:$0xc]
      %v3388 = vld [vmem:[%s3300 + $0x3c] sm:$0x3]
      %v3405 = vrot.slane %v3373, 6
      %v3406 = vrot.slane %v3405, 4
      %v3407 = vrot.slane %v3374, 6
      %v3408 = vsel %vm768, %v3406, %v3407
      %v3409 = vrot.slane %v3375, 6
      %v3410 = vrot.slane %v3409, 4
      %v3411 = vrot.slane %v3376, 6
      %v3412 = vsel %vm768, %v3410, %v3411
      %v3413 = vrot.slane %v3377, 6
      %v3414 = vrot.slane %v3413, 4
      %v3415 = vrot.slane %v3378, 6
      %v3416 = vsel %vm768, %v3414, %v3415
      %v3417 = vrot.slane %v3379, 6
      %v3418 = vrot.slane %v3417, 4
      %v3419 = vrot.slane %v3380, 6
      %v3420 = vsel %vm768, %v3418, %v3419
      %v3421 = vrot.slane %v3381, 6
      %v3422 = vrot.slane %v3421, 4
      %v3423 = vrot.slane %v3382, 6
      %v3424 = vsel %vm768, %v3422, %v3423
      %v3425 = vrot.slane %v3383, 6
      %v3426 = vrot.slane %v3425, 4
      %v3427 = vrot.slane %v3384, 6
      %v3428 = vsel %vm768, %v3426, %v3427
      %v3429 = vrot.slane %v3385, 6
      %v3430 = vrot.slane %v3429, 4
      %v3431 = vrot.slane %v3386, 6
      %v3432 = vsel %vm768, %v3430, %v3431
      %v3433 = vrot.slane %v3387, 6
      %v3434 = vrot.slane %v3433, 4
      %v3435 = vrot.slane %v3388, 6
      %v3436 = vsel %vm768, %v3434, %v3435
      %v3445 = vunpack.c.l.b16 %v3027
      %v3446 = vunpack.c.l.b16 %v3028
      %v3447 = vunpack.c.l.b16 %v3029
      %v3448 = vunpack.c.l.b16 %v3030
      %v3449 = vunpack.c.l.b16 %v3031
      %v3450 = vunpack.c.l.b16 %v3032
      %v3451 = vunpack.c.l.b16 %v3033
      %v3452 = vunpack.c.l.b16 %v3034
      %v3453 = vpack.c.b16 %v3446, %v3445
      %v3454 = vpack.c.b16 %v3448, %v3447
      %v3455 = vpack.c.b16 %v3450, %v3449
      %v3456 = vpack.c.b16 %v3452, %v3451
      %v3457 = vunpack.c.l.b16 %v3070
      %v3458 = vunpack.c.l.b16 %v3074
      %v3459 = vunpack.c.l.b16 %v3078
      %v3460 = vunpack.c.l.b16 %v3082
      %v3461 = vunpack.c.l.b16 %v3086
      %v3462 = vunpack.c.l.b16 %v3090
      %v3463 = vunpack.c.l.b16 %v3094
      %v3464 = vunpack.c.l.b16 %v3098
      %v3465 = vpack.c.b16 %v3458, %v3457
      %v3466 = vpack.c.b16 %v3460, %v3459
      %v3467 = vpack.c.b16 %v3462, %v3461
      %v3468 = vpack.c.b16 %v3464, %v3463
      %3469 = vrot.lane.b32.xlu0 %v3465, 8
      %v3470 = vpop.permute.xlu0 %3469
      %3471 = vrot.lane.b32.xlu0 %v3466, 8
      %v3472 = vpop.permute.xlu0 %3471
      %3473 = vrot.lane.b32.xlu0 %v3467, 8
      %v3474 = vpop.permute.xlu0 %3473
      %3475 = vrot.lane.b32.xlu0 %v3468, 8
      %v3476 = vpop.permute.xlu0 %3475
      %v3477 = vunpack.c.l.b16 %v3134
      %v3478 = vunpack.c.l.b16 %v3138
      %v3479 = vunpack.c.l.b16 %v3142
      %v3480 = vunpack.c.l.b16 %v3146
      %v3481 = vunpack.c.l.b16 %v3150
      %v3482 = vunpack.c.l.b16 %v3154
      %v3483 = vunpack.c.l.b16 %v3158
      %v3484 = vunpack.c.l.b16 %v3162
      %v3485 = vpack.c.b16 %v3478, %v3477
      %v3486 = vpack.c.b16 %v3480, %v3479
      %v3487 = vpack.c.b16 %v3482, %v3481
      %v3488 = vpack.c.b16 %v3484, %v3483
      %3489 = vrot.lane.b32.xlu0 %v3485, 16
      %v3490 = vpop.permute.xlu0 %3489
      %3491 = vrot.lane.b32.xlu0 %v3486, 16
      %v3492 = vpop.permute.xlu0 %3491
      %3493 = vrot.lane.b32.xlu0 %v3487, 16
      %v3494 = vpop.permute.xlu0 %3493
      %3495 = vrot.lane.b32.xlu0 %v3488, 16
      %v3496 = vpop.permute.xlu0 %3495
      %v3505 = vunpack.c.l.b16 %v3164
      %v3506 = vunpack.c.l.b16 %v3165
      %v3507 = vunpack.c.l.b16 %v3166
      %v3508 = vunpack.c.l.b16 %v3167
      %v3509 = vunpack.c.l.b16 %v3168
      %v3510 = vunpack.c.l.b16 %v3169
      %v3511 = vunpack.c.l.b16 %v3170
      %v3512 = vunpack.c.l.b16 %v3171
      %v3513 = vpack.c.b16 %v3506, %v3505
      %v3514 = vpack.c.b16 %v3508, %v3507
      %v3515 = vpack.c.b16 %v3510, %v3509
      %v3516 = vpack.c.b16 %v3512, %v3511
      %3517 = vrot.lane.b32.xlu0 %v3513, 24
      %v3518 = vpop.permute.xlu0 %3517
      %3519 = vrot.lane.b32.xlu0 %v3514, 24
      %v3520 = vpop.permute.xlu0 %3519
      %3521 = vrot.lane.b32.xlu0 %v3515, 24
      %v3522 = vpop.permute.xlu0 %3521
      %3523 = vrot.lane.b32.xlu0 %v3516, 24
      %v3524 = vpop.permute.xlu0 %3523
      %v3525 = vunpack.c.l.b16 %v3207
      %v3526 = vunpack.c.l.b16 %v3211
      %v3527 = vunpack.c.l.b16 %v3215
      %v3528 = vunpack.c.l.b16 %v3219
      %v3529 = vunpack.c.l.b16 %v3223
      %v3530 = vunpack.c.l.b16 %v3227
      %v3531 = vunpack.c.l.b16 %v3231
      %v3532 = vunpack.c.l.b16 %v3235
      %v3533 = vpack.c.b16 %v3526, %v3525
      %v3534 = vpack.c.b16 %v3528, %v3527
      %v3535 = vpack.c.b16 %v3530, %v3529
      %v3536 = vpack.c.b16 %v3532, %v3531
      %3537 = vrot.lane.b32.xlu0 %v3533, 32
      %v3538 = vpop.permute.xlu0 %3537
      %3539 = vrot.lane.b32.xlu0 %v3534, 32
      %v3540 = vpop.permute.xlu0 %3539
      %3541 = vrot.lane.b32.xlu0 %v3535, 32
      %v3542 = vpop.permute.xlu0 %3541
      %3543 = vrot.lane.b32.xlu0 %v3536, 32
      %v3544 = vpop.permute.xlu0 %3543
      %v3545 = vunpack.c.l.b16 %v3271
      %v3546 = vunpack.c.l.b16 %v3275
      %v3547 = vunpack.c.l.b16 %v3279
      %v3548 = vunpack.c.l.b16 %v3283
      %v3549 = vunpack.c.l.b16 %v3287
      %v3550 = vunpack.c.l.b16 %v3291
      %v3551 = vunpack.c.l.b16 %v3295
      %v3552 = vunpack.c.l.b16 %v3299
      %v3553 = vpack.c.b16 %v3546, %v3545
      %v3554 = vpack.c.b16 %v3548, %v3547
      %v3555 = vpack.c.b16 %v3550, %v3549
      %v3556 = vpack.c.b16 %v3552, %v3551
      %3557 = vrot.lane.b32.xlu0 %v3553, 40
      %v3558 = vpop.permute.xlu0 %3557
      %3559 = vrot.lane.b32.xlu0 %v3554, 40
      %v3560 = vpop.permute.xlu0 %3559
      %3561 = vrot.lane.b32.xlu0 %v3555, 40
      %v3562 = vpop.permute.xlu0 %3561
      %3563 = vrot.lane.b32.xlu0 %v3556, 40
      %v3564 = vpop.permute.xlu0 %3563
      %v3573 = vunpack.c.l.b16 %v3301
      %v3574 = vunpack.c.l.b16 %v3302
      %v3575 = vunpack.c.l.b16 %v3303
      %v3576 = vunpack.c.l.b16 %v3304
      %v3577 = vunpack.c.l.b16 %v3305
      %v3578 = vunpack.c.l.b16 %v3306
      %v3579 = vunpack.c.l.b16 %v3307
      %v3580 = vunpack.c.l.b16 %v3308
      %v3581 = vpack.c.b16 %v3574, %v3573
      %v3582 = vpack.c.b16 %v3576, %v3575
      %v3583 = vpack.c.b16 %v3578, %v3577
      %v3584 = vpack.c.b16 %v3580, %v3579
      %3585 = vrot.lane.b32.xlu0 %v3581, 48
      %v3586 = vpop.permute.xlu0 %3585
      %3587 = vrot.lane.b32.xlu0 %v3582, 48
      %v3588 = vpop.permute.xlu0 %3587
      %3589 = vrot.lane.b32.xlu0 %v3583, 48
      %v3590 = vpop.permute.xlu0 %3589
      %3591 = vrot.lane.b32.xlu0 %v3584, 48
      %v3592 = vpop.permute.xlu0 %3591
      %v3593 = vunpack.c.l.b16 %v3344
      %v3594 = vunpack.c.l.b16 %v3348
      %v3595 = vunpack.c.l.b16 %v3352
      %v3596 = vunpack.c.l.b16 %v3356
      %v3597 = vunpack.c.l.b16 %v3360
      %v3598 = vunpack.c.l.b16 %v3364
      %v3599 = vunpack.c.l.b16 %v3368
      %v3600 = vunpack.c.l.b16 %v3372
      %v3601 = vpack.c.b16 %v3594, %v3593
      %v3602 = vpack.c.b16 %v3596, %v3595
      %v3603 = vpack.c.b16 %v3598, %v3597
      %v3604 = vpack.c.b16 %v3600, %v3599
      %3605 = vrot.lane.b32.xlu0 %v3601, 56
      %v3606 = vpop.permute.xlu0 %3605
      %3607 = vrot.lane.b32.xlu0 %v3602, 56
      %v3608 = vpop.permute.xlu0 %3607
      %3609 = vrot.lane.b32.xlu0 %v3603, 56
      %v3610 = vpop.permute.xlu0 %3609
      %3611 = vrot.lane.b32.xlu0 %v3604, 56
      %v3612 = vpop.permute.xlu0 %3611
      %v3613 = vunpack.c.l.b16 %v3408
      %v3614 = vunpack.c.l.b16 %v3412
      %v3615 = vunpack.c.l.b16 %v3416
      %v3616 = vunpack.c.l.b16 %v3420
      %v3617 = vunpack.c.l.b16 %v3424
      %v3618 = vunpack.c.l.b16 %v3428
      %v3619 = vunpack.c.l.b16 %v3432
      %v3620 = vunpack.c.l.b16 %v3436
      %v3621 = vpack.c.b16 %v3614, %v3613
      %v3622 = vpack.c.b16 %v3616, %v3615
      %v3623 = vpack.c.b16 %v3618, %v3617
      %v3624 = vpack.c.b16 %v3620, %v3619
      %3625 = vrot.lane.b32.xlu0 %v3621, 64
      %v3626 = vpop.permute.xlu0 %3625
      %3627 = vrot.lane.b32.xlu0 %v3622, 64
      %v3628 = vpop.permute.xlu0 %3627
      %3629 = vrot.lane.b32.xlu0 %v3623, 64
      %v3630 = vpop.permute.xlu0 %3629
      %3631 = vrot.lane.b32.xlu0 %v3624, 64
      %v3632 = vpop.permute.xlu0 %3631
      %v3635 = vsel %vm2468, %v3453, %v3470
      %v3638 = vsel %vm2468, %v3454, %v3472
      %v3641 = vsel %vm2468, %v3455, %v3474
      %v3644 = vsel %vm2468, %v3456, %v3476
      %v3646 = vsel %vm2534, %v3635, %v3490
      %v3648 = vsel %vm2534, %v3638, %v3492
      %v3650 = vsel %vm2534, %v3641, %v3494
      %v3652 = vsel %vm2534, %v3644, %v3496
      %v3654 = vsel %vm2600, %v3646, %v3518
      %v3656 = vsel %vm2600, %v3648, %v3520
      %v3658 = vsel %vm2600, %v3650, %v3522
      %v3660 = vsel %vm2600, %v3652, %v3524
      %v3662 = vsel %vm2666, %v3654, %v3538
      %v3664 = vsel %vm2666, %v3656, %v3540
      %v3666 = vsel %vm2666, %v3658, %v3542
      %v3668 = vsel %vm2666, %v3660, %v3544
      %vm3669 = vcmask 326656
      %v3671 = vsel %vm3669, %v3662, %v3558
      %v3673 = vsel %vm3669, %v3664, %v3560
      %v3675 = vsel %vm3669, %v3666, %v3562
      %v3677 = vsel %vm3669, %v3668, %v3564
      %vm3678 = vcmask 392192
      %v3680 = vsel %vm3678, %v3671, %v3586
      %v3682 = vsel %vm3678, %v3673, %v3588
      %v3684 = vsel %vm3678, %v3675, %v3590
      %v3686 = vsel %vm3678, %v3677, %v3592
      %vm3687 = vcmask 457728
      %v3689 = vsel %vm3687, %v3680, %v3606
      %v3691 = vsel %vm3687, %v3682, %v3608
      %v3693 = vsel %vm3687, %v3684, %v3610
      %v3695 = vsel %vm3687, %v3686, %v3612
      %vm3696 = vcmask 523264
      %v3698 = vsel %vm3696, %v3689, %v3626
      %v3700 = vsel %vm3696, %v3691, %v3628
      %v3702 = vsel %vm3696, %v3693, %v3630
      %v3704 = vsel %vm3696, %v3695, %v3632
      %v3705 = vld [vmem:[%s3] sm:$0xf]
      %v3706 = vld [vmem:[%s3 + $0x4] sm:$0xf]
      %v3707 = vld [vmem:[%s3 + $0x8] sm:$0xf]
      %v3708 = vld [vmem:[%s3 + $0xc] sm:$0xf]
      %v3709 = vld [vmem:[%s3 + $0x10] sm:$0xf]
      %v3710 = vld [vmem:[%s3 + $0x14] sm:$0xf]
      %v3711 = vld [vmem:[%s3 + $0x18] sm:$0xf]
      %v3712 = vld [vmem:[%s3 + $0x1c] sm:$0xf]
      %v3713 = vld [vmem:[%s3 + $0x20] sm:$0xf]
      %v3723 = vunpack.c.l.b16 %v3705
      %v3724 = vunpack.c.l.b16 %v3706
      %v3725 = vunpack.c.l.b16 %v3707
      %v3726 = vunpack.c.l.b16 %v3708
      %v3727 = vunpack.c.l.b16 %v3709
      %v3728 = vunpack.c.l.b16 %v3710
      %v3729 = vunpack.c.l.b16 %v3711
      %v3730 = vunpack.c.l.b16 %v3712
      %v3731 = vunpack.c.l.b16 %v3713
      %v3732 = vpack.c.b16 %v3724, %v3723
      %v3733 = vpack.c.b16 %v3726, %v3725
      %v3734 = vpack.c.b16 %v3728, %v3727
      %v3735 = vpack.c.b16 %v3730, %v3729
      %v3736 = vpack.c.b16 %v3731, %v3731
      %vm3741 = vcmask 588800
      %v3742 = vsel %vm3741, %v3698, 0
      %v3744 = vsel %vm3741, %v3700, 0
      %v3746 = vsel %vm3741, %v3702, 0
      %v3748 = vsel %vm3741, %v3704, 0
      %vm3750 = vcmask 1043456
      %v3752 = vsel %vm3750, %v3736, 0
      %3754 = vmatprep.subr.bf16.mxu0 0
      %3755 = vmatpush1.bf16.msra.mxu0 %v3732
      %3756 = vmatprep.subr.bf16.mxu0 0
      %3757 = vmatpush1.bf16.msra.mxu0 %v3733
      %3758 = vmatprep.subr.bf16.mxu0 0
      %3759 = vmatpush1.bf16.msra.mxu0 %v3734
      %3760 = vmatprep.subr.bf16.mxu0 0
      %3761 = vmatpush1.bf16.msra.mxu0 %v3735
      %3762 = vmatprep.subr.bf16.mxu0 0
      %3763 = vmatpush1.bf16.msra.mxu0 %v3752
      %3764 = vmatprep.subr.bf16.mxu0 0
      %3765 = vmatpush1.bf16.msra.mxu0 0
      %3766 = vmatprep.subr.bf16.mxu0 0
      %3767 = vmatpush1.bf16.msra.mxu0 0
      %3768 = vmatprep.subr.bf16.mxu0 0
      %3769 = vmatpush1.bf16.msra.mxu0 0
      %3770 = vmatprep.subr.bf16.mxu0 0
      %3771 = vmatpush1.bf16.msra.mxu0 0
      %3772 = vmatprep.subr.bf16.mxu0 0
      %3773 = vmatpush1.bf16.msra.mxu0 0
      %3774 = vmatprep.subr.bf16.mxu0 0
      %3775 = vmatpush1.bf16.msra.mxu0 0
      %3776 = vmatprep.subr.bf16.mxu0 0
      %3777 = vmatpush1.bf16.msra.mxu0 0
      %3778 = vmatprep.subr.bf16.mxu0 0
      %3779 = vmatpush1.bf16.msra.mxu0 0
      %3780 = vmatprep.subr.bf16.mxu0 0
      %3781 = vmatpush1.bf16.msra.mxu0 0
      %3782 = vmatprep.subr.bf16.mxu0 0
      %3783 = vmatpush1.bf16.msra.mxu0 0
      %3784 = vmatprep.subr.bf16.mxu0 0
      %3785 = vmatpush1.bf16.msra.mxu0 0
      %3786 = vmatprep.mubr.bf16.mxu0 0
      %3787 = vmatmul.mubr.bf16.gmra.mrb[0].mxu0 %v3742
      %v3788 = vpop.f32.mrb[0].mxu0
      %v3789 = vadd.f32 0.0, %v3788
      %v3790 = vpop.f32.mrb[0].mxu0
      %v3791 = vpop.f32.mrb[0].mxu0
      %v3792 = vadd.f32 0.0, %v3791
      %v3793 = vpop.f32.mrb[0].mxu0
      %3794 = vmatprep.mubr.bf16.mxu0 0
      %3795 = vmatmul.mubr.bf16.gmra.mrb[0].mxu0 %v3744
      %v3796 = vpop.f32.mrb[0].mxu0
      %v3797 = vadd.f32 0.0, %v3796
      %v3798 = vpop.f32.mrb[0].mxu0
      %v3799 = vpop.f32.mrb[0].mxu0
      %v3800 = vadd.f32 0.0, %v3799
      %v3801 = vpop.f32.mrb[0].mxu0
      %3802 = vmatprep.mubr.bf16.mxu0 0
      %3803 = vmatmul.mubr.bf16.gmra.mrb[0].mxu0 %v3746
      %v3804 = vpop.f32.mrb[0].mxu0
      %v3805 = vadd.f32 0.0, %v3804
      %v3806 = vpop.f32.mrb[0].mxu0
      %v3807 = vpop.f32.mrb[0].mxu0
      %v3808 = vadd.f32 0.0, %v3807
      %v3809 = vpop.f32.mrb[0].mxu0
      %3810 = vmatprep.mubr.bf16.mxu0 0
      %3811 = vmatmul.mubr.bf16.gmra.mrb[0].mxu0 %v3748
      %v3812 = vpop.f32.mrb[0].mxu0
      %v3813 = vadd.f32 0.0, %v3812
      %v3814 = vpop.f32.mrb[0].mxu0
      %v3815 = vpop.f32.mrb[0].mxu0
      %v3816 = vadd.f32 0.0, %v3815
      %v3817 = vpop.f32.mrb[0].mxu0
      %3818 = vdwg.mxu0
      %v3819 = vld [vmem:[%s7] sm:$0x1]
      %v3821 = vlaneseq
      %v3822 = vshrl.u32 %v3821, 7
      %v3823 = vsub.s32 0, %v3822
      %v3824 = vrot.slane %v3819, %v3823
      %v3826 = vmul.f32 %v3789, %v3824
      %v3827 = vmul.f32 %v3792, %v3824
      %v3828 = vmul.f32 %v3797, %v3824
      %v3829 = vmul.f32 %v3800, %v3824
      %v3830 = vmul.f32 %v3805, %v3824
      %v3831 = vmul.f32 %v3808, %v3824
      %v3832 = vmul.f32 %v3813, %v3824
      %v3833 = vmul.f32 %v3816, %v3824
      %v3834 = vld [vmem:[%s8] sm:$0x1]
      %v3836 = vlaneseq
      %v3837 = vshrl.u32 %v3836, 7
      %v3838 = vsub.s32 0, %v3837
      %v3839 = vrot.slane %v3834, %v3838
      %v3841 = vadd.f32 %v3826, %v3839
      %v3842 = vadd.f32 %v3827, %v3839
      %v3843 = vadd.f32 %v3828, %v3839
      %v3844 = vadd.f32 %v3829, %v3839
      %v3845 = vadd.f32 %v3830, %v3839
      %v3846 = vadd.f32 %v3831, %v3839
      %v3847 = vadd.f32 %v3832, %v3839
      %v3848 = vadd.f32 %v3833, %v3839
      %v3849 = vmax.f32 %v3841, 0.0
      %v3850 = vmax.f32 %v3842, 0.0
      %v3851 = vmax.f32 %v3843, 0.0
      %v3852 = vmax.f32 %v3844, 0.0
      %v3853 = vmax.f32 %v3845, 0.0
      %v3854 = vmax.f32 %v3846, 0.0
      %v3855 = vmax.f32 %v3847, 0.0
      %v3856 = vmax.f32 %v3848, 0.0
      %v3857 = vld [vmem:[%s11] sm:$0xf]
      %v3858 = vld [vmem:[%s11 + $0x4] sm:$0xf]
      %v3859 = vld [vmem:[%s11 + $0x8] sm:$0xf]
      %v3860 = vld [vmem:[%s11 + $0xc] sm:$0xf]
      %v3861 = vld [vmem:[%s11 + $0x10] sm:$0xf]
      %v3862 = vld [vmem:[%s11 + $0x14] sm:$0xf]
      %v3863 = vld [vmem:[%s11 + $0x18] sm:$0xf]
      %v3864 = vld [vmem:[%s11 + $0x1c] sm:$0xf]
      %v3865 = vld [vmem:[%s11 + $0x20] sm:$0xf]
      %v3866 = vld [vmem:[%s11 + $0x24] sm:$0xf]
      %v3867 = vld [vmem:[%s11 + $0x28] sm:$0xf]
      %v3868 = vld [vmem:[%s11 + $0x2c] sm:$0xf]
      %v3869 = vld [vmem:[%s11 + $0x30] sm:$0xf]
      %v3870 = vld [vmem:[%s11 + $0x34] sm:$0xf]
      %v3871 = vld [vmem:[%s11 + $0x38] sm:$0xf]
      %v3872 = vld [vmem:[%s11 + $0x3c] sm:$0xf]
      %v3873 = vld [vmem:[%s11 + $0x40] sm:$0xf]
      %v3874 = vld [vmem:[%s11 + $0x44] sm:$0xf]
      %v3875 = vld [vmem:[%s11 + $0x48] sm:$0xf]
      %v3876 = vld [vmem:[%s11 + $0x4c] sm:$0xf]
      %v3877 = vld [vmem:[%s11 + $0x50] sm:$0xf]
      %v3878 = vld [vmem:[%s11 + $0x54] sm:$0xf]
      %v3879 = vld [vmem:[%s11 + $0x58] sm:$0xf]
      %v3880 = vld [vmem:[%s11 + $0x5c] sm:$0xf]
      %v3881 = vld [vmem:[%s11 + $0x60] sm:$0xf]
      %v3882 = vld [vmem:[%s11 + $0x64] sm:$0xf]
      %v3883 = vld [vmem:[%s11 + $0x68] sm:$0xf]
      %v3884 = vld [vmem:[%s11 + $0x6c] sm:$0xf]
      %v3885 = vld [vmem:[%s11 + $0x70] sm:$0xf]
      %v3886 = vld [vmem:[%s11 + $0x74] sm:$0xf]
      %v3887 = vld [vmem:[%s11 + $0x78] sm:$0xf]
      %v3888 = vld [vmem:[%s11 + $0x7c] sm:$0xf]
      %v3889 = vpack.c.bf16 %v3850, %v3849
      %v3890 = vpack.c.bf16 %v3852, %v3851
      %v3891 = vpack.c.bf16 %v3854, %v3853
      %v3892 = vpack.c.bf16 %v3856, %v3855
      %v3925 = vunpack.c.l.b16 %v3857
      %v3926 = vunpack.c.l.b16 %v3858
      %v3927 = vunpack.c.l.b16 %v3859
      %v3928 = vunpack.c.l.b16 %v3860
      %v3929 = vunpack.c.l.b16 %v3861
      %v3930 = vunpack.c.l.b16 %v3862
      %v3931 = vunpack.c.l.b16 %v3863
      %v3932 = vunpack.c.l.b16 %v3864
      %v3933 = vunpack.c.l.b16 %v3865
      %v3934 = vunpack.c.l.b16 %v3866
      %v3935 = vunpack.c.l.b16 %v3867
      %v3936 = vunpack.c.l.b16 %v3868
      %v3937 = vunpack.c.l.b16 %v3869
      %v3938 = vunpack.c.l.b16 %v3870
      %v3939 = vunpack.c.l.b16 %v3871
      %v3940 = vunpack.c.l.b16 %v3872
      %v3941 = vunpack.c.l.b16 %v3873
      %v3942 = vunpack.c.l.b16 %v3874
      %v3943 = vunpack.c.l.b16 %v3875
      %v3944 = vunpack.c.l.b16 %v3876
      %v3945 = vunpack.c.l.b16 %v3877
      %v3946 = vunpack.c.l.b16 %v3878
      %v3947 = vunpack.c.l.b16 %v3879
      %v3948 = vunpack.c.l.b16 %v3880
      %v3949 = vunpack.c.l.b16 %v3881
      %v3950 = vunpack.c.l.b16 %v3882
      %v3951 = vunpack.c.l.b16 %v3883
      %v3952 = vunpack.c.l.b16 %v3884
      %v3953 = vunpack.c.l.b16 %v3885
      %v3954 = vunpack.c.l.b16 %v3886
      %v3955 = vunpack.c.l.b16 %v3887
      %v3956 = vunpack.c.l.b16 %v3888
      %v3957 = vpack.c.b16 %v3926, %v3925
      %v3958 = vpack.c.b16 %v3928, %v3927
      %v3959 = vpack.c.b16 %v3930, %v3929
      %v3960 = vpack.c.b16 %v3932, %v3931
      %v3961 = vpack.c.b16 %v3934, %v3933
      %v3962 = vpack.c.b16 %v3936, %v3935
      %v3963 = vpack.c.b16 %v3938, %v3937
      %v3964 = vpack.c.b16 %v3940, %v3939
      %v3965 = vpack.c.b16 %v3942, %v3941
      %v3966 = vpack.c.b16 %v3944, %v3943
      %v3967 = vpack.c.b16 %v3946, %v3945
      %v3968 = vpack.c.b16 %v3948, %v3947
      %v3969 = vpack.c.b16 %v3950, %v3949
      %v3970 = vpack.c.b16 %v3952, %v3951
      %v3971 = vpack.c.b16 %v3954, %v3953
      %v3972 = vpack.c.b16 %v3956, %v3955
      %v3974 = vsel %vm3696, %v3957, 0
      %v3977 = vsel %vm3696, %v3958, 0
      %v3980 = vsel %vm3696, %v3959, 0
      %v3983 = vsel %vm3696, %v3960, 0
      %v3986 = vsel %vm3696, %v3961, 0
      %v3989 = vsel %vm3696, %v3962, 0
      %v3992 = vsel %vm3696, %v3963, 0
      %v3995 = vsel %vm3696, %v3964, 0
      %v3998 = vsel %vm3696, %v3965, 0
      %v4001 = vsel %vm3696, %v3966, 0
      %v4004 = vsel %vm3696, %v3967, 0
      %v4007 = vsel %vm3696, %v3968, 0
      %v4010 = vsel %vm3696, %v3969, 0
      %v4013 = vsel %vm3696, %v3970, 0
      %v4016 = vsel %vm3696, %v3971, 0
      %v4019 = vsel %vm3696, %v3972, 0
      %4021 = vmatprep.subr.bf16.mxu0 0
      %4022 = vmatpush1.bf16.msra.mxu0 %v3889
      %4023 = vmatprep.subr.bf16.mxu0 0
      %4024 = vmatpush1.bf16.msra.mxu0 %v3890
      %4025 = vmatprep.subr.bf16.mxu0 0
      %4026 = vmatpush1.bf16.msra.mxu0 %v3891
      %4027 = vmatprep.subr.bf16.mxu0 0
      %4028 = vmatpush1.bf16.msra.mxu0 %v3892
      %4029 = vmatprep.subr.bf16.mxu0 0
      %4030 = vmatpush1.bf16.msra.mxu0 0
      %4031 = vmatprep.subr.bf16.mxu0 0
      %4032 = vmatpush1.bf16.msra.mxu0 0
      %4033 = vmatprep.subr.bf16.mxu0 0
      %4034 = vmatpush1.bf16.msra.mxu0 0
      %4035 = vmatprep.subr.bf16.mxu0 0
      %4036 = vmatpush1.bf16.msra.mxu0 0
      %4037 = vmatprep.subr.bf16.mxu0 0
      %4038 = vmatpush1.bf16.msra.mxu0 0
      %4039 = vmatprep.subr.bf16.mxu0 0
      %4040 = vmatpush1.bf16.msra.mxu0 0
      %4041 = vmatprep.subr.bf16.mxu0 0
      %4042 = vmatpush1.bf16.msra.mxu0 0
      %4043 = vmatprep.subr.bf16.mxu0 0
      %4044 = vmatpush1.bf16.msra.mxu0 0
      %4045 = vmatprep.subr.bf16.mxu0 0
      %4046 = vmatpush1.bf16.msra.mxu0 0
      %4047 = vmatprep.subr.bf16.mxu0 0
      %4048 = vmatpush1.bf16.msra.mxu0 0
      %4049 = vmatprep.subr.bf16.mxu0 0
      %4050 = vmatpush1.bf16.msra.mxu0 0
      %4051 = vmatprep.subr.bf16.mxu0 0
      %4052 = vmatpush1.bf16.msra.mxu0 0
      %4053 = vmatprep.mubr.bf16.mxu0 0
      %4054 = vmatmul.mubr.bf16.gmra.mrb[0].mxu0 %v3974
      %v4055 = vpop.f32.mrb[0].mxu0
      %v4056 = vadd.f32 0.0, %v4055
      %v4057 = vpop.f32.mrb[0].mxu0
      %v4058 = vpop.f32.mrb[0].mxu0
      %v4059 = vadd.f32 0.0, %v4058
      %v4060 = vpop.f32.mrb[0].mxu0
      %4061 = vmatprep.mubr.bf16.mxu0 0
      %4062 = vmatmul.mubr.bf16.gmra.mrb[0].mxu0 %v3977
      %v4063 = vpop.f32.mrb[0].mxu0
      %v4064 = vadd.f32 0.0, %v4063
      %v4065 = vpop.f32.mrb[0].mxu0
      %v4066 = vpop.f32.mrb[0].mxu0
      %v4067 = vadd.f32 0.0, %v4066
      %v4068 = vpop.f32.mrb[0].mxu0
      %4069 = vmatprep.mubr.bf16.mxu0 0
      %4070 = vmatmul.mubr.bf16.gmra.mrb[0].mxu0 %v3980
      %v4071 = vpop.f32.mrb[0].mxu0
      %v4072 = vadd.f32 0.0, %v4071
      %v4073 = vpop.f32.mrb[0].mxu0
      %v4074 = vpop.f32.mrb[0].mxu0
      %v4075 = vadd.f32 0.0, %v4074
      %v4076 = vpop.f32.mrb[0].mxu0
      %4077 = vmatprep.mubr.bf16.mxu0 0
      %4078 = vmatmul.mubr.bf16.gmra.mrb[0].mxu0 %v3983
      %v4079 = vpop.f32.mrb[0].mxu0
      %v4080 = vadd.f32 0.0, %v4079
      %v4081 = vpop.f32.mrb[0].mxu0
      %v4082 = vpop.f32.mrb[0].mxu0
      %v4083 = vadd.f32 0.0, %v4082
      %v4084 = vpop.f32.mrb[0].mxu0
      %4085 = vmatprep.mubr.bf16.mxu0 0
      %4086 = vmatmul.mubr.bf16.gmra.mrb[0].mxu0 %v3986
      %v4087 = vpop.f32.mrb[0].mxu0
      %v4088 = vadd.f32 0.0, %v4087
      %v4089 = vpop.f32.mrb[0].mxu0
      %v4090 = vpop.f32.mrb[0].mxu0
      %v4091 = vadd.f32 0.0, %v4090
      %v4092 = vpop.f32.mrb[0].mxu0
      %4093 = vmatprep.mubr.bf16.mxu0 0
      %4094 = vmatmul.mubr.bf16.gmra.mrb[0].mxu0 %v3989
      %v4095 = vpop.f32.mrb[0].mxu0
      %v4096 = vadd.f32 0.0, %v4095
      %v4097 = vpop.f32.mrb[0].mxu0
      %v4098 = vpop.f32.mrb[0].mxu0
      %v4099 = vadd.f32 0.0, %v4098
      %v4100 = vpop.f32.mrb[0].mxu0
      %4101 = vmatprep.mubr.bf16.mxu0 0
      %4102 = vmatmul.mubr.bf16.gmra.mrb[0].mxu0 %v3992
      %v4103 = vpop.f32.mrb[0].mxu0
      %v4104 = vadd.f32 0.0, %v4103
      %v4105 = vpop.f32.mrb[0].mxu0
      %v4106 = vpop.f32.mrb[0].mxu0
      %v4107 = vadd.f32 0.0, %v4106
      %v4108 = vpop.f32.mrb[0].mxu0
      %4109 = vmatprep.mubr.bf16.mxu0 0
      %4110 = vmatmul.mubr.bf16.gmra.mrb[0].mxu0 %v3995
      %v4111 = vpop.f32.mrb[0].mxu0
      %v4112 = vadd.f32 0.0, %v4111
      %v4113 = vpop.f32.mrb[0].mxu0
      %v4114 = vpop.f32.mrb[0].mxu0
      %v4115 = vadd.f32 0.0, %v4114
      %v4116 = vpop.f32.mrb[0].mxu0
      %4117 = vmatprep.mubr.bf16.mxu0 0
      %4118 = vmatmul.mubr.bf16.gmra.mrb[0].mxu0 %v3998
      %v4119 = vpop.f32.mrb[0].mxu0
      %v4120 = vadd.f32 0.0, %v4119
      %v4121 = vpop.f32.mrb[0].mxu0
      %v4122 = vpop.f32.mrb[0].mxu0
      %v4123 = vadd.f32 0.0, %v4122
      %v4124 = vpop.f32.mrb[0].mxu0
      %4125 = vmatprep.mubr.bf16.mxu0 0
      %4126 = vmatmul.mubr.bf16.gmra.mrb[0].mxu0 %v4001
      %v4127 = vpop.f32.mrb[0].mxu0
      %v4128 = vadd.f32 0.0, %v4127
      %v4129 = vpop.f32.mrb[0].mxu0
      %v4130 = vpop.f32.mrb[0].mxu0
      %v4131 = vadd.f32 0.0, %v4130
      %v4132 = vpop.f32.mrb[0].mxu0
      %4133 = vmatprep.mubr.bf16.mxu0 0
      %4134 = vmatmul.mubr.bf16.gmra.mrb[0].mxu0 %v4004
      %v4135 = vpop.f32.mrb[0].mxu0
      %v4136 = vadd.f32 0.0, %v4135
      %v4137 = vpop.f32.mrb[0].mxu0
      %v4138 = vpop.f32.mrb[0].mxu0
      %v4139 = vadd.f32 0.0, %v4138
      %v4140 = vpop.f32.mrb[0].mxu0
      %4141 = vmatprep.mubr.bf16.mxu0 0
      %4142 = vmatmul.mubr.bf16.gmra.mrb[0].mxu0 %v4007
      %v4143 = vpop.f32.mrb[0].mxu0
      %v4144 = vadd.f32 0.0, %v4143
      %v4145 = vpop.f32.mrb[0].mxu0
      %v4146 = vpop.f32.mrb[0].mxu0
      %v4147 = vadd.f32 0.0, %v4146
      %v4148 = vpop.f32.mrb[0].mxu0
      %4149 = vmatprep.mubr.bf16.mxu0 0
      %4150 = vmatmul.mubr.bf16.gmra.mrb[0].mxu0 %v4010
      %v4151 = vpop.f32.mrb[0].mxu0
      %v4152 = vadd.f32 0.0, %v4151
      %v4153 = vpop.f32.mrb[0].mxu0
      %v4154 = vpop.f32.mrb[0].mxu0
      %v4155 = vadd.f32 0.0, %v4154
      %v4156 = vpop.f32.mrb[0].mxu0
      %4157 = vmatprep.mubr.bf16.mxu0 0
      %4158 = vmatmul.mubr.bf16.gmra.mrb[0].mxu0 %v4013
      %v4159 = vpop.f32.mrb[0].mxu0
      %v4160 = vadd.f32 0.0, %v4159
      %v4161 = vpop.f32.mrb[0].mxu0
      %v4162 = vpop.f32.mrb[0].mxu0
      %v4163 = vadd.f32 0.0, %v4162
      %v4164 = vpop.f32.mrb[0].mxu0
      %4165 = vmatprep.mubr.bf16.mxu0 0
      %4166 = vmatmul.mubr.bf16.gmra.mrb[0].mxu0 %v4016
      %v4167 = vpop.f32.mrb[0].mxu0
      %v4168 = vadd.f32 0.0, %v4167
      %v4169 = vpop.f32.mrb[0].mxu0
      %v4170 = vpop.f32.mrb[0].mxu0
      %v4171 = vadd.f32 0.0, %v4170
      %v4172 = vpop.f32.mrb[0].mxu0
      %4173 = vmatprep.mubr.bf16.mxu0 0
      %4174 = vmatmul.mubr.bf16.gmra.mrb[0].mxu0 %v4019
      %v4175 = vpop.f32.mrb[0].mxu0
      %v4176 = vadd.f32 0.0, %v4175
      %v4177 = vpop.f32.mrb[0].mxu0
      %v4178 = vpop.f32.mrb[0].mxu0
      %v4179 = vadd.f32 0.0, %v4178
      %v4180 = vpop.f32.mrb[0].mxu0
      %4181 = vdwg.mxu0
      %v4182 = vsub.f32 %v2995, %v4056
      %v4183 = vsub.f32 %v2996, %v4059
      %v4184 = vsub.f32 %v2997, %v4064
      %v4185 = vsub.f32 %v2998, %v4067
      %v4186 = vsub.f32 %v2999, %v4072
      %v4187 = vsub.f32 %v3000, %v4075
      %v4188 = vsub.f32 %v3001, %v4080
      %v4189 = vsub.f32 %v3002, %v4083
      %v4190 = vsub.f32 %v3003, %v4088
      %v4191 = vsub.f32 %v3004, %v4091
      %v4192 = vsub.f32 %v3005, %v4096
      %v4193 = vsub.f32 %v3006, %v4099
      %v4194 = vsub.f32 %v3007, %v4104
      %v4195 = vsub.f32 %v3008, %v4107
      %v4196 = vsub.f32 %v3009, %v4112
      %v4197 = vsub.f32 %v3010, %v4115
      %v4198 = vsub.f32 %v3011, %v4120
      %v4199 = vsub.f32 %v3012, %v4123
      %v4200 = vsub.f32 %v3013, %v4128
      %v4201 = vsub.f32 %v3014, %v4131
      %v4202 = vsub.f32 %v3015, %v4136
      %v4203 = vsub.f32 %v3016, %v4139
      %v4204 = vsub.f32 %v3017, %v4144
      %v4205 = vsub.f32 %v3018, %v4147
      %v4206 = vsub.f32 %v3019, %v4152
      %v4207 = vsub.f32 %v3020, %v4155
      %v4208 = vsub.f32 %v3021, %v4160
      %v4209 = vsub.f32 %v3022, %v4163
      %v4210 = vsub.f32 %v3023, %v4168
      %v4211 = vsub.f32 %v3024, %v4171
      %v4212 = vsub.f32 %v3025, %v4176
      %v4213 = vsub.f32 %v3026, %v4179
      %vm4214 = vcmask 60416
      %4215 = vst.msk [vmem:[#allocation2] sm:$0xf] %vm4214, 0
      %4216 = vst.msk [vmem:[#allocation2 + $0x4] sm:$0xf] %vm4214, 0
      %vm4217 = vcmask 57344
      %4218 = vst.msk [vmem:[#allocation2 + $0x8] sm:$0x1] %vm4217, 0
      %s4219 = scalar_lea.vmem [#allocation2], 204
      %4220 = vst.msk [vmem:[%s4219] sm:$0xf] %vm4214, 0
      %4221 = vst.msk [vmem:[%s4219 + $0x4] sm:$0xf] %vm4214, 0
      %4222 = vst.msk [vmem:[%s4219 + $0x8] sm:$0x1] %vm4217, 0
      %s4223 = scalar_lea.vmem [#allocation2], 12
      %vm4224 = vcmask 57344
      %vm4225 = vsmask.f32 256
      %vm4226 = vmand %vm4224, %vm4225
      %v4227 = vld [vmem:[%s4223] sm:$0x1]
      %v4228 = vsel %vm4226, 0, %v4227
      %4229 = vst [vmem:[%s4223] sm:$0x1] %v4228
      %v4230 = vld [vmem:[%s4223 + $0xc] sm:$0x1]
      %v4231 = vsel %vm4226, 0, %v4230
      %4232 = vst [vmem:[%s4223 + $0xc] sm:$0x1] %v4231
      %v4233 = vld [vmem:[%s4223 + $0x18] sm:$0x1]
      %v4234 = vsel %vm4226, 0, %v4233
      %4235 = vst [vmem:[%s4223 + $0x18] sm:$0x1] %v4234
      %v4236 = vld [vmem:[%s4223 + $0x24] sm:$0x1]
      %v4237 = vsel %vm4226, 0, %v4236
      %4238 = vst [vmem:[%s4223 + $0x24] sm:$0x1] %v4237
      %v4239 = vld [vmem:[%s4223 + $0x30] sm:$0x1]
      %v4240 = vsel %vm4226, 0, %v4239
      %4241 = vst [vmem:[%s4223 + $0x30] sm:$0x1] %v4240
      %v4242 = vld [vmem:[%s4223 + $0x3c] sm:$0x1]
      %v4243 = vsel %vm4226, 0, %v4242
      %4244 = vst [vmem:[%s4223 + $0x3c] sm:$0x1] %v4243
      %v4245 = vld [vmem:[%s4223 + $0x48] sm:$0x1]
      %v4246 = vsel %vm4226, 0, %v4245
      %4247 = vst [vmem:[%s4223 + $0x48] sm:$0x1] %v4246
      %v4248 = vld [vmem:[%s4223 + $0x54] sm:$0x1]
      %v4249 = vsel %vm4226, 0, %v4248
      %4250 = vst [vmem:[%s4223 + $0x54] sm:$0x1] %v4249
      %v4251 = vld [vmem:[%s4223 + $0x60] sm:$0x1]
      %v4252 = vsel %vm4226, 0, %v4251
      %4253 = vst [vmem:[%s4223 + $0x60] sm:$0x1] %v4252
      %v4254 = vld [vmem:[%s4223 + $0x6c] sm:$0x1]
      %v4255 = vsel %vm4226, 0, %v4254
      %4256 = vst [vmem:[%s4223 + $0x6c] sm:$0x1] %v4255
      %v4257 = vld [vmem:[%s4223 + $0x78] sm:$0x1]
      %v4258 = vsel %vm4226, 0, %v4257
      %4259 = vst [vmem:[%s4223 + $0x78] sm:$0x1] %v4258
      %v4260 = vld [vmem:[%s4223 + $0x84] sm:$0x1]
      %v4261 = vsel %vm4226, 0, %v4260
      %4262 = vst [vmem:[%s4223 + $0x84] sm:$0x1] %v4261
      %v4263 = vld [vmem:[%s4223 + $0x90] sm:$0x1]
      %v4264 = vsel %vm4226, 0, %v4263
      %4265 = vst [vmem:[%s4223 + $0x90] sm:$0x1] %v4264
      %v4266 = vld [vmem:[%s4223 + $0x9c] sm:$0x1]
      %v4267 = vsel %vm4226, 0, %v4266
      %4268 = vst [vmem:[%s4223 + $0x9c] sm:$0x1] %v4267
      %v4269 = vld [vmem:[%s4223 + $0xa8] sm:$0x1]
      %v4270 = vsel %vm4226, 0, %v4269
      %4271 = vst [vmem:[%s4223 + $0xa8] sm:$0x1] %v4270
      %v4272 = vld [vmem:[%s4223 + $0xb4] sm:$0x1]
      %v4273 = vsel %vm4226, 0, %v4272
      %4274 = vst [vmem:[%s4223 + $0xb4] sm:$0x1] %v4273
      %vm4275 = vsmask.f32 7938
      %vm4276 = vmand %vm4224, %vm4275
      %v4277 = vld [vmem:[%s4223 + $0x8] sm:$0x1]
      %v4278 = vsel %vm4276, 0, %v4277
      %4279 = vst [vmem:[%s4223 + $0x8] sm:$0x1] %v4278
      %v4280 = vld [vmem:[%s4223 + $0x14] sm:$0x1]
      %v4281 = vsel %vm4276, 0, %v4280
      %4282 = vst [vmem:[%s4223 + $0x14] sm:$0x1] %v4281
      %v4283 = vld [vmem:[%s4223 + $0x20] sm:$0x1]
      %v4284 = vsel %vm4276, 0, %v4283
      %4285 = vst [vmem:[%s4223 + $0x20] sm:$0x1] %v4284
      %v4286 = vld [vmem:[%s4223 + $0x2c] sm:$0x1]
      %v4287 = vsel %vm4276, 0, %v4286
      %4288 = vst [vmem:[%s4223 + $0x2c] sm:$0x1] %v4287
      %v4289 = vld [vmem:[%s4223 + $0x38] sm:$0x1]
      %v4290 = vsel %vm4276, 0, %v4289
      %4291 = vst [vmem:[%s4223 + $0x38] sm:$0x1] %v4290
      %v4292 = vld [vmem:[%s4223 + $0x44] sm:$0x1]
      %v4293 = vsel %vm4276, 0, %v4292
      %4294 = vst [vmem:[%s4223 + $0x44] sm:$0x1] %v4293
      %v4295 = vld [vmem:[%s4223 + $0x50] sm:$0x1]
      %v4296 = vsel %vm4276, 0, %v4295
      %4297 = vst [vmem:[%s4223 + $0x50] sm:$0x1] %v4296
      %v4298 = vld [vmem:[%s4223 + $0x5c] sm:$0x1]
      %v4299 = vsel %vm4276, 0, %v4298
      %4300 = vst [vmem:[%s4223 + $0x5c] sm:$0x1] %v4299
      %v4301 = vld [vmem:[%s4223 + $0x68] sm:$0x1]
      %v4302 = vsel %vm4276, 0, %v4301
      %4303 = vst [vmem:[%s4223 + $0x68] sm:$0x1] %v4302
      %v4304 = vld [vmem:[%s4223 + $0x74] sm:$0x1]
      %v4305 = vsel %vm4276, 0, %v4304
      %4306 = vst [vmem:[%s4223 + $0x74] sm:$0x1] %v4305
      %v4307 = vld [vmem:[%s4223 + $0x80] sm:$0x1]
      %v4308 = vsel %vm4276, 0, %v4307
      %4309 = vst [vmem:[%s4223 + $0x80] sm:$0x1] %v4308
      %v4310 = vld [vmem:[%s4223 + $0x8c] sm:$0x1]
      %v4311 = vsel %vm4276, 0, %v4310
      %4312 = vst [vmem:[%s4223 + $0x8c] sm:$0x1] %v4311
      %v4313 = vld [vmem:[%s4223 + $0x98] sm:$0x1]
      %v4314 = vsel %vm4276, 0, %v4313
      %4315 = vst [vmem:[%s4223 + $0x98] sm:$0x1] %v4314
      %v4316 = vld [vmem:[%s4223 + $0xa4] sm:$0x1]
      %v4317 = vsel %vm4276, 0, %v4316
      %4318 = vst [vmem:[%s4223 + $0xa4] sm:$0x1] %v4317
      %v4319 = vld [vmem:[%s4223 + $0xb0] sm:$0x1]
      %v4320 = vsel %vm4276, 0, %v4319
      %4321 = vst [vmem:[%s4223 + $0xb0] sm:$0x1] %v4320
      %v4322 = vld [vmem:[%s4223 + $0xbc] sm:$0x1]
      %v4323 = vsel %vm4276, 0, %v4322
      %4324 = vst [vmem:[%s4223 + $0xbc] sm:$0x1] %v4323
      %v4325 = vpack.c.bf16 %v4183, %v4182
      %v4326 = vpack.c.bf16 %v4185, %v4184
      %v4327 = vpack.c.bf16 %v4187, %v4186
      %v4328 = vpack.c.bf16 %v4189, %v4188
      %v4329 = vpack.c.bf16 %v4191, %v4190
      %v4330 = vpack.c.bf16 %v4193, %v4192
      %v4331 = vpack.c.bf16 %v4195, %v4194
      %v4332 = vpack.c.bf16 %v4197, %v4196
      %v4333 = vpack.c.bf16 %v4199, %v4198
      %v4334 = vpack.c.bf16 %v4201, %v4200
      %v4335 = vpack.c.bf16 %v4203, %v4202
      %v4336 = vpack.c.bf16 %v4205, %v4204
      %v4337 = vpack.c.bf16 %v4207, %v4206
      %v4338 = vpack.c.bf16 %v4209, %v4208
      %v4339 = vpack.c.bf16 %v4211, %v4210
      %v4340 = vpack.c.bf16 %v4213, %v4212
      %v4357 = vunpack.c.l.b16 %v4325
      %v4358 = vunpack.c.h.b16 %v4325
      %v4359 = vunpack.c.l.b16 %v4326
      %v4360 = vunpack.c.h.b16 %v4326
      %v4361 = vunpack.c.l.b16 %v4327
      %v4362 = vunpack.c.h.b16 %v4327
      %v4363 = vunpack.c.l.b16 %v4328
      %v4364 = vunpack.c.h.b16 %v4328
      %v4365 = vunpack.c.l.b16 %v4329
      %v4366 = vunpack.c.h.b16 %v4329
      %v4367 = vunpack.c.l.b16 %v4330
      %v4368 = vunpack.c.h.b16 %v4330
      %v4369 = vunpack.c.l.b16 %v4331
      %v4370 = vunpack.c.h.b16 %v4331
      %v4371 = vunpack.c.l.b16 %v4332
      %v4372 = vunpack.c.h.b16 %v4332
      %v4373 = vunpack.c.l.b16 %v4333
      %v4374 = vunpack.c.h.b16 %v4333
      %v4375 = vunpack.c.l.b16 %v4334
      %v4376 = vunpack.c.h.b16 %v4334
      %v4377 = vunpack.c.l.b16 %v4335
      %v4378 = vunpack.c.h.b16 %v4335
      %v4379 = vunpack.c.l.b16 %v4336
      %v4380 = vunpack.c.h.b16 %v4336
      %v4381 = vunpack.c.l.b16 %v4337
      %v4382 = vunpack.c.h.b16 %v4337
      %v4383 = vunpack.c.l.b16 %v4338
      %v4384 = vunpack.c.h.b16 %v4338
      %v4385 = vunpack.c.l.b16 %v4339
      %v4386 = vunpack.c.h.b16 %v4339
      %v4387 = vunpack.c.l.b16 %v4340
      %v4388 = vunpack.c.h.b16 %v4340
      %v4389 = vpack.c.b16 %v4357, %v4357
      %v4390 = vpack.c.b16 %v4358, %v4358
      %v4391 = vpack.c.b16 %v4359, %v4359
      %v4392 = vpack.c.b16 %v4360, %v4360
      %v4393 = vpack.c.b16 %v4361, %v4361
      %v4394 = vpack.c.b16 %v4362, %v4362
      %v4395 = vpack.c.b16 %v4363, %v4363
      %v4396 = vpack.c.b16 %v4364, %v4364
      %v4397 = vpack.c.b16 %v4365, %v4365
      %v4398 = vpack.c.b16 %v4366, %v4366
      %v4399 = vpack.c.b16 %v4367, %v4367
      %v4400 = vpack.c.b16 %v4368, %v4368
      %v4401 = vpack.c.b16 %v4369, %v4369
      %v4402 = vpack.c.b16 %v4370, %v4370
      %v4403 = vpack.c.b16 %v4371, %v4371
      %v4404 = vpack.c.b16 %v4372, %v4372
      %v4405 = vpack.c.b16 %v4373, %v4373
      %v4406 = vpack.c.b16 %v4374, %v4374
      %v4407 = vpack.c.b16 %v4375, %v4375
      %v4408 = vpack.c.b16 %v4376, %v4376
      %v4409 = vpack.c.b16 %v4377, %v4377
      %v4410 = vpack.c.b16 %v4378, %v4378
      %v4411 = vpack.c.b16 %v4379, %v4379
      %v4412 = vpack.c.b16 %v4380, %v4380
      %v4413 = vpack.c.b16 %v4381, %v4381
      %v4414 = vpack.c.b16 %v4382, %v4382
      %v4415 = vpack.c.b16 %v4383, %v4383
      %v4416 = vpack.c.b16 %v4384, %v4384
      %v4417 = vpack.c.b16 %v4385, %v4385
      %v4418 = vpack.c.b16 %v4386, %v4386
      %v4419 = vpack.c.b16 %v4387, %v4387
      %v4420 = vpack.c.b16 %v4388, %v4388
      %vm4421 = vsmask.f32 4368
      %vm4422 = vmor %vm4225, %vm4421
      %v4424 = vshrl.u32 %v4389, 16
      %v4426 = vrot.slane %v4424, 7
      %v4427 = vshll.u32 %v4389, 16
      %v4429 = vor.u32 %v4426, %v4427
      %v4430 = vrot.slane %v4426, 4
      %v4432 = vshrl.u32 %v4390, 16
      %v4434 = vrot.slane %v4432, 7
      %v4435 = vshll.u32 %v4390, 16
      %v4437 = vor.u32 %v4434, %v4435
      %v4438 = vsel %vm4422, %v4430, %v4437
      %v4439 = vrot.slane %v4434, 4
      %v4441 = vshrl.u32 %v4391, 16
      %v4443 = vrot.slane %v4441, 7
      %v4444 = vshll.u32 %v4391, 16
      %v4446 = vor.u32 %v4443, %v4444
      %v4447 = vrot.slane %v4443, 4
      %v4449 = vshrl.u32 %v4392, 16
      %v4451 = vrot.slane %v4449, 7
      %v4452 = vshll.u32 %v4392, 16
      %v4454 = vor.u32 %v4451, %v4452
      %v4455 = vsel %vm4422, %v4447, %v4454
      %v4456 = vrot.slane %v4451, 4
      %v4458 = vshrl.u32 %v4393, 16
      %v4460 = vrot.slane %v4458, 7
      %v4461 = vshll.u32 %v4393, 16
      %v4463 = vor.u32 %v4460, %v4461
      %v4464 = vrot.slane %v4460, 4
      %v4466 = vshrl.u32 %v4394, 16
      %v4468 = vrot.slane %v4466, 7
      %v4469 = vshll.u32 %v4394, 16
      %v4471 = vor.u32 %v4468, %v4469
      %v4472 = vsel %vm4422, %v4464, %v4471
      %v4473 = vrot.slane %v4468, 4
      %v4475 = vshrl.u32 %v4395, 16
      %v4477 = vrot.slane %v4475, 7
      %v4478 = vshll.u32 %v4395, 16
      %v4480 = vor.u32 %v4477, %v4478
      %v4481 = vrot.slane %v4477, 4
      %v4483 = vshrl.u32 %v4396, 16
      %v4485 = vrot.slane %v4483, 7
      %v4486 = vshll.u32 %v4396, 16
      %v4488 = vor.u32 %v4485, %v4486
      %v4489 = vsel %vm4422, %v4481, %v4488
      %v4490 = vrot.slane %v4485, 4
      %v4492 = vshrl.u32 %v4397, 16
      %v4494 = vrot.slane %v4492, 7
      %v4495 = vshll.u32 %v4397, 16
      %v4497 = vor.u32 %v4494, %v4495
      %v4498 = vrot.slane %v4494, 4
      %v4500 = vshrl.u32 %v4398, 16
      %v4502 = vrot.slane %v4500, 7
      %v4503 = vshll.u32 %v4398, 16
      %v4505 = vor.u32 %v4502, %v4503
      %v4506 = vsel %vm4422, %v4498, %v4505
      %v4507 = vrot.slane %v4502, 4
      %v4509 = vshrl.u32 %v4399, 16
      %v4511 = vrot.slane %v4509, 7
      %v4512 = vshll.u32 %v4399, 16
      %v4514 = vor.u32 %v4511, %v4512
      %v4515 = vrot.slane %v4511, 4
      %v4517 = vshrl.u32 %v4400, 16
      %v4519 = vrot.slane %v4517, 7
      %v4520 = vshll.u32 %v4400, 16
      %v4522 = vor.u32 %v4519, %v4520
      %v4523 = vsel %vm4422, %v4515, %v4522
      %v4524 = vrot.slane %v4519, 4
      %v4526 = vshrl.u32 %v4401, 16
      %v4528 = vrot.slane %v4526, 7
      %v4529 = vshll.u32 %v4401, 16
      %v4531 = vor.u32 %v4528, %v4529
      %v4532 = vrot.slane %v4528, 4
      %v4534 = vshrl.u32 %v4402, 16
      %v4536 = vrot.slane %v4534, 7
      %v4537 = vshll.u32 %v4402, 16
      %v4539 = vor.u32 %v4536, %v4537
      %v4540 = vsel %vm4422, %v4532, %v4539
      %v4541 = vrot.slane %v4536, 4
      %v4543 = vshrl.u32 %v4403, 16
      %v4545 = vrot.slane %v4543, 7
      %v4546 = vshll.u32 %v4403, 16
      %v4548 = vor.u32 %v4545, %v4546
      %v4549 = vrot.slane %v4545, 4
      %v4551 = vshrl.u32 %v4404, 16
      %v4553 = vrot.slane %v4551, 7
      %v4554 = vshll.u32 %v4404, 16
      %v4556 = vor.u32 %v4553, %v4554
      %v4557 = vsel %vm4422, %v4549, %v4556
      %v4558 = vrot.slane %v4553, 4
      %v4560 = vshrl.u32 %v4405, 16
      %v4562 = vrot.slane %v4560, 7
      %v4563 = vshll.u32 %v4405, 16
      %v4565 = vor.u32 %v4562, %v4563
      %v4566 = vrot.slane %v4562, 4
      %v4568 = vshrl.u32 %v4406, 16
      %v4570 = vrot.slane %v4568, 7
      %v4571 = vshll.u32 %v4406, 16
      %v4573 = vor.u32 %v4570, %v4571
      %v4574 = vsel %vm4422, %v4566, %v4573
      %v4575 = vrot.slane %v4570, 4
      %v4577 = vshrl.u32 %v4407, 16
      %v4579 = vrot.slane %v4577, 7
      %v4580 = vshll.u32 %v4407, 16
      %v4582 = vor.u32 %v4579, %v4580
      %v4583 = vrot.slane %v4579, 4
      %v4585 = vshrl.u32 %v4408, 16
      %v4587 = vrot.slane %v4585, 7
      %v4588 = vshll.u32 %v4408, 16
      %v4590 = vor.u32 %v4587, %v4588
      %v4591 = vsel %vm4422, %v4583, %v4590
      %v4592 = vrot.slane %v4587, 4
      %v4594 = vshrl.u32 %v4409, 16
      %v4596 = vrot.slane %v4594, 7
      %v4597 = vshll.u32 %v4409, 16
      %v4599 = vor.u32 %v4596, %v4597
      %v4600 = vrot.slane %v4596, 4
      %v4602 = vshrl.u32 %v4410, 16
      %v4604 = vrot.slane %v4602, 7
      %v4605 = vshll.u32 %v4410, 16
      %v4607 = vor.u32 %v4604, %v4605
      %v4608 = vsel %vm4422, %v4600, %v4607
      %v4609 = vrot.slane %v4604, 4
      %v4611 = vshrl.u32 %v4411, 16
      %v4613 = vrot.slane %v4611, 7
      %v4614 = vshll.u32 %v4411, 16
      %v4616 = vor.u32 %v4613, %v4614
      %v4617 = vrot.slane %v4613, 4
      %v4619 = vshrl.u32 %v4412, 16
      %v4621 = vrot.slane %v4619, 7
      %v4622 = vshll.u32 %v4412, 16
      %v4624 = vor.u32 %v4621, %v4622
      %v4625 = vsel %vm4422, %v4617, %v4624
      %v4626 = vrot.slane %v4621, 4
      %v4628 = vshrl.u32 %v4413, 16
      %v4630 = vrot.slane %v4628, 7
      %v4631 = vshll.u32 %v4413, 16
      %v4633 = vor.u32 %v4630, %v4631
      %v4634 = vrot.slane %v4630, 4
      %v4636 = vshrl.u32 %v4414, 16
      %v4638 = vrot.slane %v4636, 7
      %v4639 = vshll.u32 %v4414, 16
      %v4641 = vor.u32 %v4638, %v4639
      %v4642 = vsel %vm4422, %v4634, %v4641
      %v4643 = vrot.slane %v4638, 4
      %v4645 = vshrl.u32 %v4415, 16
      %v4647 = vrot.slane %v4645, 7
      %v4648 = vshll.u32 %v4415, 16
      %v4650 = vor.u32 %v4647, %v4648
      %v4651 = vrot.slane %v4647, 4
      %v4653 = vshrl.u32 %v4416, 16
      %v4655 = vrot.slane %v4653, 7
      %v4656 = vshll.u32 %v4416, 16
      %v4658 = vor.u32 %v4655, %v4656
      %v4659 = vsel %vm4422, %v4651, %v4658
      %v4660 = vrot.slane %v4655, 4
      %v4662 = vshrl.u32 %v4417, 16
      %v4664 = vrot.slane %v4662, 7
      %v4665 = vshll.u32 %v4417, 16
      %v4667 = vor.u32 %v4664, %v4665
      %v4668 = vrot.slane %v4664, 4
      %v4670 = vshrl.u32 %v4418, 16
      %v4672 = vrot.slane %v4670, 7
      %v4673 = vshll.u32 %v4418, 16
      %v4675 = vor.u32 %v4672, %v4673
      %v4676 = vsel %vm4422, %v4668, %v4675
      %v4677 = vrot.slane %v4672, 4
      %v4679 = vshrl.u32 %v4419, 16
      %v4681 = vrot.slane %v4679, 7
      %v4682 = vshll.u32 %v4419, 16
      %v4684 = vor.u32 %v4681, %v4682
      %v4685 = vrot.slane %v4681, 4
      %v4687 = vshrl.u32 %v4420, 16
      %v4689 = vrot.slane %v4687, 7
      %v4690 = vshll.u32 %v4420, 16
      %v4692 = vor.u32 %v4689, %v4690
      %v4693 = vsel %vm4422, %v4685, %v4692
      %v4694 = vrot.slane %v4689, 4
      %vm4743 = vcmask 60416
      %vm4744 = vmand %vm4743, %vm4275
      %v4745 = vld [vmem:[%s4223] sm:$0xf]
      %v4746 = vsel %vm4744, %v4429, %v4745
      %4747 = vst [vmem:[%s4223] sm:$0xf] %v4746
      %4748 = vst.msk [vmem:[%s4223 + $0x4] sm:$0xf] %vm4214, %v4438
      %v4749 = vld [vmem:[%s4223 + $0x8] sm:$0x1]
      %v4750 = vsel %vm4226, %v4439, %v4749
      %4751 = vst [vmem:[%s4223 + $0x8] sm:$0x1] %v4750
      %v4752 = vld [vmem:[%s4223 + $0xc] sm:$0xf]
      %v4753 = vsel %vm4744, %v4446, %v4752
      %4754 = vst [vmem:[%s4223 + $0xc] sm:$0xf] %v4753
      %4755 = vst.msk [vmem:[%s4223 + $0x10] sm:$0xf] %vm4214, %v4455
      %v4756 = vld [vmem:[%s4223 + $0x14] sm:$0x1]
      %v4757 = vsel %vm4226, %v4456, %v4756
      %4758 = vst [vmem:[%s4223 + $0x14] sm:$0x1] %v4757
      %v4759 = vld [vmem:[%s4223 + $0x18] sm:$0xf]
      %v4760 = vsel %vm4744, %v4463, %v4759
      %4761 = vst [vmem:[%s4223 + $0x18] sm:$0xf] %v4760
      %4762 = vst.msk [vmem:[%s4223 + $0x1c] sm:$0xf] %vm4214, %v4472
      %v4763 = vld [vmem:[%s4223 + $0x20] sm:$0x1]
      %v4764 = vsel %vm4226, %v4473, %v4763
      %4765 = vst [vmem:[%s4223 + $0x20] sm:$0x1] %v4764
      %v4766 = vld [vmem:[%s4223 + $0x24] sm:$0xf]
      %v4767 = vsel %vm4744, %v4480, %v4766
      %4768 = vst [vmem:[%s4223 + $0x24] sm:$0xf] %v4767
      %4769 = vst.msk [vmem:[%s4223 + $0x28] sm:$0xf] %vm4214, %v4489
      %v4770 = vld [vmem:[%s4223 + $0x2c] sm:$0x1]
      %v4771 = vsel %vm4226, %v4490, %v4770
      %4772 = vst [vmem:[%s4223 + $0x2c] sm:$0x1] %v4771
      %v4773 = vld [vmem:[%s4223 + $0x30] sm:$0xf]
      %v4774 = vsel %vm4744, %v4497, %v4773
      %4775 = vst [vmem:[%s4223 + $0x30] sm:$0xf] %v4774
      %4776 = vst.msk [vmem:[%s4223 + $0x34] sm:$0xf] %vm4214, %v4506
      %v4777 = vld [vmem:[%s4223 + $0x38] sm:$0x1]
      %v4778 = vsel %vm4226, %v4507, %v4777
      %4779 = vst [vmem:[%s4223 + $0x38] sm:$0x1] %v4778
      %v4780 = vld [vmem:[%s4223 + $0x3c] sm:$0xf]
      %v4781 = vsel %vm4744, %v4514, %v4780
      %4782 = vst [vmem:[%s4223 + $0x3c] sm:$0xf] %v4781
      %4783 = vst.msk [vmem:[%s4223 + $0x40] sm:$0xf] %vm4214, %v4523
      %v4784 = vld [vmem:[%s4223 + $0x44] sm:$0x1]
      %v4785 = vsel %vm4226, %v4524, %v4784
      %4786 = vst [vmem:[%s4223 + $0x44] sm:$0x1] %v4785
      %v4787 = vld [vmem:[%s4223 + $0x48] sm:$0xf]
      %v4788 = vsel %vm4744, %v4531, %v4787
      %4789 = vst [vmem:[%s4223 + $0x48] sm:$0xf] %v4788
      %4790 = vst.msk [vmem:[%s4223 + $0x4c] sm:$0xf] %vm4214, %v4540
      %v4791 = vld [vmem:[%s4223 + $0x50] sm:$0x1]
      %v4792 = vsel %vm4226, %v4541, %v4791
      %4793 = vst [vmem:[%s4223 + $0x50] sm:$0x1] %v4792
      %v4794 = vld [vmem:[%s4223 + $0x54] sm:$0xf]
      %v4795 = vsel %vm4744, %v4548, %v4794
      %4796 = vst [vmem:[%s4223 + $0x54] sm:$0xf] %v4795
      %4797 = vst.msk [vmem:[%s4223 + $0x58] sm:$0xf] %vm4214, %v4557
      %v4798 = vld [vmem:[%s4223 + $0x5c] sm:$0x1]
      %v4799 = vsel %vm4226, %v4558, %v4798
      %4800 = vst [vmem:[%s4223 + $0x5c] sm:$0x1] %v4799
      %v4801 = vld [vmem:[%s4223 + $0x60] sm:$0xf]
      %v4802 = vsel %vm4744, %v4565, %v4801
      %4803 = vst [vmem:[%s4223 + $0x60] sm:$0xf] %v4802
      %4804 = vst.msk [vmem:[%s4223 + $0x64] sm:$0xf] %vm4214, %v4574
      %v4805 = vld [vmem:[%s4223 + $0x68] sm:$0x1]
      %v4806 = vsel %vm4226, %v4575, %v4805
      %4807 = vst [vmem:[%s4223 + $0x68] sm:$0x1] %v4806
      %v4808 = vld [vmem:[%s4223 + $0x6c] sm:$0xf]
      %v4809 = vsel %vm4744, %v4582, %v4808
      %4810 = vst [vmem:[%s4223 + $0x6c] sm:$0xf] %v4809
      %4811 = vst.msk [vmem:[%s4223 + $0x70] sm:$0xf] %vm4214, %v4591
      %v4812 = vld [vmem:[%s4223 + $0x74] sm:$0x1]
      %v4813 = vsel %vm4226, %v4592, %v4812
      %4814 = vst [vmem:[%s4223 + $0x74] sm:$0x1] %v4813
      %v4815 = vld [vmem:[%s4223 + $0x78] sm:$0xf]
      %v4816 = vsel %vm4744, %v4599, %v4815
      %4817 = vst [vmem:[%s4223 + $0x78] sm:$0xf] %v4816
      %4818 = vst.msk [vmem:[%s4223 + $0x7c] sm:$0xf] %vm4214, %v4608
      %v4819 = vld [vmem:[%s4223 + $0x80] sm:$0x1]
      %v4820 = vsel %vm4226, %v4609, %v4819
      %4821 = vst [vmem:[%s4223 + $0x80] sm:$0x1] %v4820
      %v4822 = vld [vmem:[%s4223 + $0x84] sm:$0xf]
      %v4823 = vsel %vm4744, %v4616, %v4822
      %4824 = vst [vmem:[%s4223 + $0x84] sm:$0xf] %v4823
      %4825 = vst.msk [vmem:[%s4223 + $0x88] sm:$0xf] %vm4214, %v4625
      %v4826 = vld [vmem:[%s4223 + $0x8c] sm:$0x1]
      %v4827 = vsel %vm4226, %v4626, %v4826
      %4828 = vst [vmem:[%s4223 + $0x8c] sm:$0x1] %v4827
      %v4829 = vld [vmem:[%s4223 + $0x90] sm:$0xf]
      %v4830 = vsel %vm4744, %v4633, %v4829
      %4831 = vst [vmem:[%s4223 + $0x90] sm:$0xf] %v4830
      %4832 = vst.msk [vmem:[%s4223 + $0x94] sm:$0xf] %vm4214, %v4642
      %v4833 = vld [vmem:[%s4223 + $0x98] sm:$0x1]
      %v4834 = vsel %vm4226, %v4643, %v4833
      %4835 = vst [vmem:[%s4223 + $0x98] sm:$0x1] %v4834
      %v4836 = vld [vmem:[%s4223 + $0x9c] sm:$0xf]
      %v4837 = vsel %vm4744, %v4650, %v4836
      %4838 = vst [vmem:[%s4223 + $0x9c] sm:$0xf] %v4837
      %4839 = vst.msk [vmem:[%s4223 + $0xa0] sm:$0xf] %vm4214, %v4659
      %v4840 = vld [vmem:[%s4223 + $0xa4] sm:$0x1]
      %v4841 = vsel %vm4226, %v4660, %v4840
      %4842 = vst [vmem:[%s4223 + $0xa4] sm:$0x1] %v4841
      %v4843 = vld [vmem:[%s4223 + $0xa8] sm:$0xf]
      %v4844 = vsel %vm4744, %v4667, %v4843
      %4845 = vst [vmem:[%s4223 + $0xa8] sm:$0xf] %v4844
      %4846 = vst.msk [vmem:[%s4223 + $0xac] sm:$0xf] %vm4214, %v4676
      %v4847 = vld [vmem:[%s4223 + $0xb0] sm:$0x1]
      %v4848 = vsel %vm4226, %v4677, %v4847
      %4849 = vst [vmem:[%s4223 + $0xb0] sm:$0x1] %v4848
      %v4850 = vld [vmem:[%s4223 + $0xb4] sm:$0xf]
      %v4851 = vsel %vm4744, %v4684, %v4850
      %4852 = vst [vmem:[%s4223 + $0xb4] sm:$0xf] %v4851
      %4853 = vst.msk [vmem:[%s4223 + $0xb8] sm:$0xf] %vm4214, %v4693
      %v4854 = vld [vmem:[%s4223 + $0xbc] sm:$0x1]
      %v4855 = vsel %vm4226, %v4694, %v4854
      %4856 = vst [vmem:[%s4223 + $0xbc] sm:$0x1] %v4855
      %v4857 = vld [vmem:[#allocation2] sm:$0xf]
      %v4858 = vld [vmem:[#allocation2 + $0x4] sm:$0xf]
      %v4859 = vld [vmem:[#allocation2 + $0xc] sm:$0xf]
      %v4860 = vld [vmem:[#allocation2 + $0x10] sm:$0xf]
      %v4861 = vld [vmem:[#allocation2 + $0x18] sm:$0xf]
      %v4862 = vld [vmem:[#allocation2 + $0x1c] sm:$0xf]
      %v4863 = vld [vmem:[#allocation2 + $0x24] sm:$0xf]
      %v4864 = vld [vmem:[#allocation2 + $0x28] sm:$0xf]
      %v4865 = vld [vmem:[#allocation2 + $0x30] sm:$0xf]
      %v4866 = vld [vmem:[#allocation2 + $0x34] sm:$0xf]
      %v4867 = vld [vmem:[#allocation2 + $0x3c] sm:$0xf]
      %v4868 = vld [vmem:[#allocation2 + $0x40] sm:$0xf]
      %v4869 = vld [vmem:[#allocation2 + $0x48] sm:$0xf]
      %v4870 = vld [vmem:[#allocation2 + $0x4c] sm:$0xf]
      %v4871 = vld [vmem:[#allocation2 + $0x54] sm:$0xf]
      %v4872 = vld [vmem:[#allocation2 + $0x58] sm:$0xf]
      %v4873 = vld [vmem:[#allocation2 + $0x60] sm:$0xf]
      %v4874 = vld [vmem:[#allocation2 + $0x64] sm:$0xf]
      %v4875 = vld [vmem:[#allocation2 + $0x6c] sm:$0xf]
      %v4876 = vld [vmem:[#allocation2 + $0x70] sm:$0xf]
      %v4877 = vld [vmem:[#allocation2 + $0x78] sm:$0xf]
      %v4878 = vld [vmem:[#allocation2 + $0x7c] sm:$0xf]
      %v4879 = vld [vmem:[#allocation2 + $0x84] sm:$0xf]
      %v4880 = vld [vmem:[#allocation2 + $0x88] sm:$0xf]
      %v4881 = vld [vmem:[#allocation2 + $0x90] sm:$0xf]
      %v4882 = vld [vmem:[#allocation2 + $0x94] sm:$0xf]
      %v4883 = vld [vmem:[#allocation2 + $0x9c] sm:$0xf]
      %v4884 = vld [vmem:[#allocation2 + $0xa0] sm:$0xf]
      %v4885 = vld [vmem:[#allocation2 + $0xa8] sm:$0xf]
      %v4886 = vld [vmem:[#allocation2 + $0xac] sm:$0xf]
      %v4887 = vld [vmem:[#allocation2 + $0xb4] sm:$0xf]
      %v4888 = vld [vmem:[#allocation2 + $0xb8] sm:$0xf]
      %v4889 = vld [vmem:[#allocation2 + $0x8] sm:$0x1]
      %v4890 = vld [vmem:[#allocation2 + $0x14] sm:$0x1]
      %v4891 = vld [vmem:[#allocation2 + $0x20] sm:$0x1]
      %v4892 = vld [vmem:[#allocation2 + $0x2c] sm:$0x1]
      %v4893 = vld [vmem:[#allocation2 + $0x38] sm:$0x1]
      %v4894 = vld [vmem:[#allocation2 + $0x44] sm:$0x1]
      %v4895 = vld [vmem:[#allocation2 + $0x50] sm:$0x1]
      %v4896 = vld [vmem:[#allocation2 + $0x5c] sm:$0x1]
      %v4897 = vld [vmem:[#allocation2 + $0x68] sm:$0x1]
      %v4898 = vld [vmem:[#allocation2 + $0x74] sm:$0x1]
      %v4899 = vld [vmem:[#allocation2 + $0x80] sm:$0x1]
      %v4900 = vld [vmem:[#allocation2 + $0x8c] sm:$0x1]
      %v4901 = vld [vmem:[#allocation2 + $0x98] sm:$0x1]
      %v4902 = vld [vmem:[#allocation2 + $0xa4] sm:$0x1]
      %v4903 = vld [vmem:[#allocation2 + $0xb0] sm:$0x1]
      %v4904 = vld [vmem:[#allocation2 + $0xbc] sm:$0x1]
      %vm4905 = vsmask.f32 3328
      %vm4906 = vsmask.f32 7440
      %vm4907 = vmor %vm4905, %vm4906
      %v4909 = vshrl.u32 %v4857, 16
      %v4911 = vrot.slane %v4909, 4
      %v4912 = vshll.u32 %v4857, 16
      %v4914 = vrot.slane %v4912, 5
      %v4915 = vor.u32 %v4911, %v4914
      %v4916 = vrot.slane %v4915, 4
      %v4918 = vshll.u32 %v4858, 16
      %v4920 = vrot.slane %v4918, 5
      %v4921 = vsel %vm4907, %v4916, %v4920
      %v4922 = vshrl.u32 %v4858, 16
      %v4924 = vrot.slane %v4922, 4
      %v4925 = vor.u32 %v4924, %v4920
      %v4926 = vrot.slane %v4925, 4
      %v4928 = vshll.u32 %v4889, 16
      %v4930 = vrot.slane %v4928, 5
      %v4931 = vsel %vm4907, %v4926, %v4930
      %v4933 = vshrl.u32 %v4859, 16
      %v4935 = vrot.slane %v4933, 4
      %v4936 = vshll.u32 %v4859, 16
      %v4938 = vrot.slane %v4936, 5
      %v4939 = vor.u32 %v4935, %v4938
      %v4940 = vrot.slane %v4939, 4
      %v4942 = vshll.u32 %v4860, 16
      %v4944 = vrot.slane %v4942, 5
      %v4945 = vsel %vm4907, %v4940, %v4944
      %v4946 = vshrl.u32 %v4860, 16
      %v4948 = vrot.slane %v4946, 4
      %v4949 = vor.u32 %v4948, %v4944
      %v4950 = vrot.slane %v4949, 4
      %v4952 = vshll.u32 %v4890, 16
      %v4954 = vrot.slane %v4952, 5
      %v4955 = vsel %vm4907, %v4950, %v4954
      %v4957 = vshrl.u32 %v4861, 16
      %v4959 = vrot.slane %v4957, 4
      %v4960 = vshll.u32 %v4861, 16
      %v4962 = vrot.slane %v4960, 5
      %v4963 = vor.u32 %v4959, %v4962
      %v4964 = vrot.slane %v4963, 4
      %v4966 = vshll.u32 %v4862, 16
      %v4968 = vrot.slane %v4966, 5
      %v4969 = vsel %vm4907, %v4964, %v4968
      %v4970 = vshrl.u32 %v4862, 16
      %v4972 = vrot.slane %v4970, 4
      %v4973 = vor.u32 %v4972, %v4968
      %v4974 = vrot.slane %v4973, 4
      %v4976 = vshll.u32 %v4891, 16
      %v4978 = vrot.slane %v4976, 5
      %v4979 = vsel %vm4907, %v4974, %v4978
      %v4981 = vshrl.u32 %v4863, 16
      %v4983 = vrot.slane %v4981, 4
      %v4984 = vshll.u32 %v4863, 16
      %v4986 = vrot.slane %v4984, 5
      %v4987 = vor.u32 %v4983, %v4986
      %v4988 = vrot.slane %v4987, 4
      %v4990 = vshll.u32 %v4864, 16
      %v4992 = vrot.slane %v4990, 5
      %v4993 = vsel %vm4907, %v4988, %v4992
      %v4994 = vshrl.u32 %v4864, 16
      %v4996 = vrot.slane %v4994, 4
      %v4997 = vor.u32 %v4996, %v4992
      %v4998 = vrot.slane %v4997, 4
      %v5000 = vshll.u32 %v4892, 16
      %v5002 = vrot.slane %v5000, 5
      %v5003 = vsel %vm4907, %v4998, %v5002
      %v5005 = vshrl.u32 %v4865, 16
      %v5007 = vrot.slane %v5005, 4
      %v5008 = vshll.u32 %v4865, 16
      %v5010 = vrot.slane %v5008, 5
      %v5011 = vor.u32 %v5007, %v5010
      %v5012 = vrot.slane %v5011, 4
      %v5014 = vshll.u32 %v4866, 16
      %v5016 = vrot.slane %v5014, 5
      %v5017 = vsel %vm4907, %v5012, %v5016
      %v5018 = vshrl.u32 %v4866, 16
      %v5020 = vrot.slane %v5018, 4
      %v5021 = vor.u32 %v5020, %v5016
      %v5022 = vrot.slane %v5021, 4
      %v5024 = vshll.u32 %v4893, 16
      %v5026 = vrot.slane %v5024, 5
      %v5027 = vsel %vm4907, %v5022, %v5026
      %v5029 = vshrl.u32 %v4867, 16
      %v5031 = vrot.slane %v5029, 4
      %v5032 = vshll.u32 %v4867, 16
      %v5034 = vrot.slane %v5032, 5
      %v5035 = vor.u32 %v5031, %v5034
      %v5036 = vrot.slane %v5035, 4
      %v5038 = vshll.u32 %v4868, 16
      %v5040 = vrot.slane %v5038, 5
      %v5041 = vsel %vm4907, %v5036, %v5040
      %v5042 = vshrl.u32 %v4868, 16
      %v5044 = vrot.slane %v5042, 4
      %v5045 = vor.u32 %v5044, %v5040
      %v5046 = vrot.slane %v5045, 4
      %v5048 = vshll.u32 %v4894, 16
      %v5050 = vrot.slane %v5048, 5
      %v5051 = vsel %vm4907, %v5046, %v5050
      %v5053 = vshrl.u32 %v4869, 16
      %v5055 = vrot.slane %v5053, 4
      %v5056 = vshll.u32 %v4869, 16
      %v5058 = vrot.slane %v5056, 5
      %v5059 = vor.u32 %v5055, %v5058
      %v5060 = vrot.slane %v5059, 4
      %v5062 = vshll.u32 %v4870, 16
      %v5064 = vrot.slane %v5062, 5
      %v5065 = vsel %vm4907, %v5060, %v5064
      %v5066 = vshrl.u32 %v4870, 16
      %v5068 = vrot.slane %v5066, 4
      %v5069 = vor.u32 %v5068, %v5064
      %v5070 = vrot.slane %v5069, 4
      %v5072 = vshll.u32 %v4895, 16
      %v5074 = vrot.slane %v5072, 5
      %v5075 = vsel %vm4907, %v5070, %v5074
      %v5077 = vshrl.u32 %v4871, 16
      %v5079 = vrot.slane %v5077, 4
      %v5080 = vshll.u32 %v4871, 16
      %v5082 = vrot.slane %v5080, 5
      %v5083 = vor.u32 %v5079, %v5082
      %v5084 = vrot.slane %v5083, 4
      %v5086 = vshll.u32 %v4872, 16
      %v5088 = vrot.slane %v5086, 5
      %v5089 = vsel %vm4907, %v5084, %v5088
      %v5090 = vshrl.u32 %v4872, 16
      %v5092 = vrot.slane %v5090, 4
      %v5093 = vor.u32 %v5092, %v5088
      %v5094 = vrot.slane %v5093, 4
      %v5096 = vshll.u32 %v4896, 16
      %v5098 = vrot.slane %v5096, 5
      %v5099 = vsel %vm4907, %v5094, %v5098
      %v5101 = vshrl.u32 %v4873, 16
      %v5103 = vrot.slane %v5101, 4
      %v5104 = vshll.u32 %v4873, 16
      %v5106 = vrot.slane %v5104, 5
      %v5107 = vor.u32 %v5103, %v5106
      %v5108 = vrot.slane %v5107, 4
      %v5110 = vshll.u32 %v4874, 16
      %v5112 = vrot.slane %v5110, 5
      %v5113 = vsel %vm4907, %v5108, %v5112
      %v5114 = vshrl.u32 %v4874, 16
      %v5116 = vrot.slane %v5114, 4
      %v5117 = vor.u32 %v5116, %v5112
      %v5118 = vrot.slane %v5117, 4
      %v5120 = vshll.u32 %v4897, 16
      %v5122 = vrot.slane %v5120, 5
      %v5123 = vsel %vm4907, %v5118, %v5122
      %v5125 = vshrl.u32 %v4875, 16
      %v5127 = vrot.slane %v5125, 4
      %v5128 = vshll.u32 %v4875, 16
      %v5130 = vrot.slane %v5128, 5
      %v5131 = vor.u32 %v5127, %v5130
      %v5132 = vrot.slane %v5131, 4
      %v5134 = vshll.u32 %v4876, 16
      %v5136 = vrot.slane %v5134, 5
      %v5137 = vsel %vm4907, %v5132, %v5136
      %v5138 = vshrl.u32 %v4876, 16
      %v5140 = vrot.slane %v5138, 4
      %v5141 = vor.u32 %v5140, %v5136
      %v5142 = vrot.slane %v5141, 4
      %v5144 = vshll.u32 %v4898, 16
      %v5146 = vrot.slane %v5144, 5
      %v5147 = vsel %vm4907, %v5142, %v5146
      %v5149 = vshrl.u32 %v4877, 16
      %v5151 = vrot.slane %v5149, 4
      %v5152 = vshll.u32 %v4877, 16
      %v5154 = vrot.slane %v5152, 5
      %v5155 = vor.u32 %v5151, %v5154
      %v5156 = vrot.slane %v5155, 4
      %v5158 = vshll.u32 %v4878, 16
      %v5160 = vrot.slane %v5158, 5
      %v5161 = vsel %vm4907, %v5156, %v5160
      %v5162 = vshrl.u32 %v4878, 16
      %v5164 = vrot.slane %v5162, 4
      %v5165 = vor.u32 %v5164, %v5160
      %v5166 = vrot.slane %v5165, 4
      %v5168 = vshll.u32 %v4899, 16
      %v5170 = vrot.slane %v5168, 5
      %v5171 = vsel %vm4907, %v5166, %v5170
      %v5173 = vshrl.u32 %v4879, 16
      %v5175 = vrot.slane %v5173, 4
      %v5176 = vshll.u32 %v4879, 16
      %v5178 = vrot.slane %v5176, 5
      %v5179 = vor.u32 %v5175, %v5178
      %v5180 = vrot.slane %v5179, 4
      %v5182 = vshll.u32 %v4880, 16
      %v5184 = vrot.slane %v5182, 5
      %v5185 = vsel %vm4907, %v5180, %v5184
      %v5186 = vshrl.u32 %v4880, 16
      %v5188 = vrot.slane %v5186, 4
      %v5189 = vor.u32 %v5188, %v5184
      %v5190 = vrot.slane %v5189, 4
      %v5192 = vshll.u32 %v4900, 16
      %v5194 = vrot.slane %v5192, 5
      %v5195 = vsel %vm4907, %v5190, %v5194
      %v5197 = vshrl.u32 %v4881, 16
      %v5199 = vrot.slane %v5197, 4
      %v5200 = vshll.u32 %v4881, 16
      %v5202 = vrot.slane %v5200, 5
      %v5203 = vor.u32 %v5199, %v5202
      %v5204 = vrot.slane %v5203, 4
      %v5206 = vshll.u32 %v4882, 16
      %v5208 = vrot.slane %v5206, 5
      %v5209 = vsel %vm4907, %v5204, %v5208
      %v5210 = vshrl.u32 %v4882, 16
      %v5212 = vrot.slane %v5210, 4
      %v5213 = vor.u32 %v5212, %v5208
      %v5214 = vrot.slane %v5213, 4
      %v5216 = vshll.u32 %v4901, 16
      %v5218 = vrot.slane %v5216, 5
      %v5219 = vsel %vm4907, %v5214, %v5218
      %v5221 = vshrl.u32 %v4883, 16
      %v5223 = vrot.slane %v5221, 4
      %v5224 = vshll.u32 %v4883, 16
      %v5226 = vrot.slane %v5224, 5
      %v5227 = vor.u32 %v5223, %v5226
      %v5228 = vrot.slane %v5227, 4
      %v5230 = vshll.u32 %v4884, 16
      %v5232 = vrot.slane %v5230, 5
      %v5233 = vsel %vm4907, %v5228, %v5232
      %v5234 = vshrl.u32 %v4884, 16
      %v5236 = vrot.slane %v5234, 4
      %v5237 = vor.u32 %v5236, %v5232
      %v5238 = vrot.slane %v5237, 4
      %v5240 = vshll.u32 %v4902, 16
      %v5242 = vrot.slane %v5240, 5
      %v5243 = vsel %vm4907, %v5238, %v5242
      %v5245 = vshrl.u32 %v4885, 16
      %v5247 = vrot.slane %v5245, 4
      %v5248 = vshll.u32 %v4885, 16
      %v5250 = vrot.slane %v5248, 5
      %v5251 = vor.u32 %v5247, %v5250
      %v5252 = vrot.slane %v5251, 4
      %v5254 = vshll.u32 %v4886, 16
      %v5256 = vrot.slane %v5254, 5
      %v5257 = vsel %vm4907, %v5252, %v5256
      %v5258 = vshrl.u32 %v4886, 16
      %v5260 = vrot.slane %v5258, 4
      %v5261 = vor.u32 %v5260, %v5256
      %v5262 = vrot.slane %v5261, 4
      %v5264 = vshll.u32 %v4903, 16
      %v5266 = vrot.slane %v5264, 5
      %v5267 = vsel %vm4907, %v5262, %v5266
      %v5269 = vshrl.u32 %v4887, 16
      %v5271 = vrot.slane %v5269, 4
      %v5272 = vshll.u32 %v4887, 16
      %v5274 = vrot.slane %v5272, 5
      %v5275 = vor.u32 %v5271, %v5274
      %v5276 = vrot.slane %v5275, 4
      %v5278 = vshll.u32 %v4888, 16
      %v5280 = vrot.slane %v5278, 5
      %v5281 = vsel %vm4907, %v5276, %v5280
      %v5282 = vshrl.u32 %v4888, 16
      %v5284 = vrot.slane %v5282, 4
      %v5285 = vor.u32 %v5284, %v5280
      %v5286 = vrot.slane %v5285, 4
      %v5288 = vshll.u32 %v4904, 16
      %v5290 = vrot.slane %v5288, 5
      %v5291 = vsel %vm4907, %v5286, %v5290
      %v5292 = vld [vmem:[#allocation2] sm:$0xe]
      %v5293 = vld [vmem:[#allocation2 + $0xc] sm:$0xe]
      %v5294 = vld [vmem:[#allocation2 + $0x18] sm:$0xe]
      %v5295 = vld [vmem:[#allocation2 + $0x24] sm:$0xe]
      %v5296 = vld [vmem:[#allocation2 + $0x30] sm:$0xe]
      %v5297 = vld [vmem:[#allocation2 + $0x3c] sm:$0xe]
      %v5298 = vld [vmem:[#allocation2 + $0x48] sm:$0xe]
      %v5299 = vld [vmem:[#allocation2 + $0x54] sm:$0xe]
      %v5300 = vld [vmem:[#allocation2 + $0x60] sm:$0xe]
      %v5301 = vld [vmem:[#allocation2 + $0x6c] sm:$0xe]
      %v5302 = vld [vmem:[#allocation2 + $0x78] sm:$0xe]
      %v5303 = vld [vmem:[#allocation2 + $0x84] sm:$0xe]
      %v5304 = vld [vmem:[#allocation2 + $0x90] sm:$0xe]
      %v5305 = vld [vmem:[#allocation2 + $0x9c] sm:$0xe]
      %v5306 = vld [vmem:[#allocation2 + $0xa8] sm:$0xe]
      %v5307 = vld [vmem:[#allocation2 + $0xb4] sm:$0xe]
      %v5356 = vrot.slane %v5292, 5
      %v5357 = vrot.slane %v5356, 4
      %v5358 = vrot.slane %v4858, 5
      %v5359 = vsel %vm589, %v5357, %v5358
      %v5360 = vrot.slane %v5358, 4
      %v5361 = vrot.slane %v4889, 5
      %v5362 = vsel %vm589, %v5360, %v5361
      %v5363 = vrot.slane %v5293, 5
      %v5364 = vrot.slane %v5363, 4
      %v5365 = vrot.slane %v4860, 5
      %v5366 = vsel %vm589, %v5364, %v5365
      %v5367 = vrot.slane %v5365, 4
      %v5368 = vrot.slane %v4890, 5
      %v5369 = vsel %vm589, %v5367, %v5368
      %v5370 = vrot.slane %v5294, 5
      %v5371 = vrot.slane %v5370, 4
      %v5372 = vrot.slane %v4862, 5
      %v5373 = vsel %vm589, %v5371, %v5372
      %v5374 = vrot.slane %v5372, 4
      %v5375 = vrot.slane %v4891, 5
      %v5376 = vsel %vm589, %v5374, %v5375
      %v5377 = vrot.slane %v5295, 5
      %v5378 = vrot.slane %v5377, 4
      %v5379 = vrot.slane %v4864, 5
      %v5380 = vsel %vm589, %v5378, %v5379
      %v5381 = vrot.slane %v5379, 4
      %v5382 = vrot.slane %v4892, 5
      %v5383 = vsel %vm589, %v5381, %v5382
      %v5384 = vrot.slane %v5296, 5
      %v5385 = vrot.slane %v5384, 4
      %v5386 = vrot.slane %v4866, 5
      %v5387 = vsel %vm589, %v5385, %v5386
      %v5388 = vrot.slane %v5386, 4
      %v5389 = vrot.slane %v4893, 5
      %v5390 = vsel %vm589, %v5388, %v5389
      %v5391 = vrot.slane %v5297, 5
      %v5392 = vrot.slane %v5391, 4
      %v5393 = vrot.slane %v4868, 5
      %v5394 = vsel %vm589, %v5392, %v5393
      %v5395 = vrot.slane %v5393, 4
      %v5396 = vrot.slane %v4894, 5
      %v5397 = vsel %vm589, %v5395, %v5396
      %v5398 = vrot.slane %v5298, 5
      %v5399 = vrot.slane %v5398, 4
      %v5400 = vrot.slane %v4870, 5
      %v5401 = vsel %vm589, %v5399, %v5400
      %v5402 = vrot.slane %v5400, 4
      %v5403 = vrot.slane %v4895, 5
      %v5404 = vsel %vm589, %v5402, %v5403
      %v5405 = vrot.slane %v5299, 5
      %v5406 = vrot.slane %v5405, 4
      %v5407 = vrot.slane %v4872, 5
      %v5408 = vsel %vm589, %v5406, %v5407
      %v5409 = vrot.slane %v5407, 4
      %v5410 = vrot.slane %v4896, 5
      %v5411 = vsel %vm589, %v5409, %v5410
      %v5412 = vrot.slane %v5300, 5
      %v5413 = vrot.slane %v5412, 4
      %v5414 = vrot.slane %v4874, 5
      %v5415 = vsel %vm589, %v5413, %v5414
      %v5416 = vrot.slane %v5414, 4
      %v5417 = vrot.slane %v4897, 5
      %v5418 = vsel %vm589, %v5416, %v5417
      %v5419 = vrot.slane %v5301, 5
      %v5420 = vrot.slane %v5419, 4
      %v5421 = vrot.slane %v4876, 5
      %v5422 = vsel %vm589, %v5420, %v5421
      %v5423 = vrot.slane %v5421, 4
      %v5424 = vrot.slane %v4898, 5
      %v5425 = vsel %vm589, %v5423, %v5424
      %v5426 = vrot.slane %v5302, 5
      %v5427 = vrot.slane %v5426, 4
      %v5428 = vrot.slane %v4878, 5
      %v5429 = vsel %vm589, %v5427, %v5428
      %v5430 = vrot.slane %v5428, 4
      %v5431 = vrot.slane %v4899, 5
      %v5432 = vsel %vm589, %v5430, %v5431
      %v5433 = vrot.slane %v5303, 5
      %v5434 = vrot.slane %v5433, 4
      %v5435 = vrot.slane %v4880, 5
      %v5436 = vsel %vm589, %v5434, %v5435
      %v5437 = vrot.slane %v5435, 4
      %v5438 = vrot.slane %v4900, 5
      %v5439 = vsel %vm589, %v5437, %v5438
      %v5440 = vrot.slane %v5304, 5
      %v5441 = vrot.slane %v5440, 4
      %v5442 = vrot.slane %v4882, 5
      %v5443 = vsel %vm589, %v5441, %v5442
      %v5444 = vrot.slane %v5442, 4
      %v5445 = vrot.slane %v4901, 5
      %v5446 = vsel %vm589, %v5444, %v5445
      %v5447 = vrot.slane %v5305, 5
      %v5448 = vrot.slane %v5447, 4
      %v5449 = vrot.slane %v4884, 5
      %v5450 = vsel %vm589, %v5448, %v5449
      %v5451 = vrot.slane %v5449, 4
      %v5452 = vrot.slane %v4902, 5
      %v5453 = vsel %vm589, %v5451, %v5452
      %v5454 = vrot.slane %v5306, 5
      %v5455 = vrot.slane %v5454, 4
      %v5456 = vrot.slane %v4886, 5
      %v5457 = vsel %vm589, %v5455, %v5456
      %v5458 = vrot.slane %v5456, 4
      %v5459 = vrot.slane %v4903, 5
      %v5460 = vsel %vm589, %v5458, %v5459
      %v5461 = vrot.slane %v5307, 5
      %v5462 = vrot.slane %v5461, 4
      %v5463 = vrot.slane %v4888, 5
      %v5464 = vsel %vm589, %v5462, %v5463
      %v5465 = vrot.slane %v5463, 4
      %v5466 = vrot.slane %v4904, 5
      %v5467 = vsel %vm589, %v5465, %v5466
      %v5468 = vld [vmem:[%s4223] sm:$0xf]
      %v5469 = vld [vmem:[%s4223 + $0x4] sm:$0xf]
      %v5470 = vld [vmem:[%s4223 + $0xc] sm:$0xf]
      %v5471 = vld [vmem:[%s4223 + $0x10] sm:$0xf]
      %v5472 = vld [vmem:[%s4223 + $0x18] sm:$0xf]
      %v5473 = vld [vmem:[%s4223 + $0x1c] sm:$0xf]
      %v5474 = vld [vmem:[%s4223 + $0x24] sm:$0xf]
      %v5475 = vld [vmem:[%s4223 + $0x28] sm:$0xf]
      %v5476 = vld [vmem:[%s4223 + $0x30] sm:$0xf]
      %v5477 = vld [vmem:[%s4223 + $0x34] sm:$0xf]
      %v5478 = vld [vmem:[%s4223 + $0x3c] sm:$0xf]
      %v5479 = vld [vmem:[%s4223 + $0x40] sm:$0xf]
      %v5480 = vld [vmem:[%s4223 + $0x48] sm:$0xf]
      %v5481 = vld [vmem:[%s4223 + $0x4c] sm:$0xf]
      %v5482 = vld [vmem:[%s4223 + $0x54] sm:$0xf]
      %v5483 = vld [vmem:[%s4223 + $0x58] sm:$0xf]
      %v5484 = vld [vmem:[%s4223 + $0x60] sm:$0xf]
      %v5485 = vld [vmem:[%s4223 + $0x64] sm:$0xf]
      %v5486 = vld [vmem:[%s4223 + $0x6c] sm:$0xf]
      %v5487 = vld [vmem:[%s4223 + $0x70] sm:$0xf]
      %v5488 = vld [vmem:[%s4223 + $0x78] sm:$0xf]
      %v5489 = vld [vmem:[%s4223 + $0x7c] sm:$0xf]
      %v5490 = vld [vmem:[%s4223 + $0x84] sm:$0xf]
      %v5491 = vld [vmem:[%s4223 + $0x88] sm:$0xf]
      %v5492 = vld [vmem:[%s4223 + $0x90] sm:$0xf]
      %v5493 = vld [vmem:[%s4223 + $0x94] sm:$0xf]
      %v5494 = vld [vmem:[%s4223 + $0x9c] sm:$0xf]
      %v5495 = vld [vmem:[%s4223 + $0xa0] sm:$0xf]
      %v5496 = vld [vmem:[%s4223 + $0xa8] sm:$0xf]
      %v5497 = vld [vmem:[%s4223 + $0xac] sm:$0xf]
      %v5498 = vld [vmem:[%s4223 + $0xb4] sm:$0xf]
      %v5499 = vld [vmem:[%s4223 + $0xb8] sm:$0xf]
      %v5500 = vld [vmem:[%s4223 + $0x8] sm:$0x1]
      %v5501 = vld [vmem:[%s4223 + $0x14] sm:$0x1]
      %v5502 = vld [vmem:[%s4223 + $0x20] sm:$0x1]
      %v5503 = vld [vmem:[%s4223 + $0x2c] sm:$0x1]
      %v5504 = vld [vmem:[%s4223 + $0x38] sm:$0x1]
      %v5505 = vld [vmem:[%s4223 + $0x44] sm:$0x1]
      %v5506 = vld [vmem:[%s4223 + $0x50] sm:$0x1]
      %v5507 = vld [vmem:[%s4223 + $0x5c] sm:$0x1]
      %v5508 = vld [vmem:[%s4223 + $0x68] sm:$0x1]
      %v5509 = vld [vmem:[%s4223 + $0x74] sm:$0x1]
      %v5510 = vld [vmem:[%s4223 + $0x80] sm:$0x1]
      %v5511 = vld [vmem:[%s4223 + $0x8c] sm:$0x1]
      %v5512 = vld [vmem:[%s4223 + $0x98] sm:$0x1]
      %v5513 = vld [vmem:[%s4223 + $0xa4] sm:$0x1]
      %v5514 = vld [vmem:[%s4223 + $0xb0] sm:$0x1]
      %v5515 = vld [vmem:[%s4223 + $0xbc] sm:$0x1]
      %v5517 = vshrl.u32 %v5468, 16
      %v5519 = vrot.slane %v5517, 4
      %v5520 = vshll.u32 %v5468, 16
      %v5522 = vrot.slane %v5520, 5
      %v5523 = vor.u32 %v5519, %v5522
      %v5524 = vrot.slane %v5523, 4
      %v5526 = vshll.u32 %v5469, 16
      %v5528 = vrot.slane %v5526, 5
      %v5529 = vsel %vm4907, %v5524, %v5528
      %v5530 = vshrl.u32 %v5469, 16
      %v5532 = vrot.slane %v5530, 4
      %v5533 = vor.u32 %v5532, %v5528
      %v5534 = vrot.slane %v5533, 4
      %v5536 = vshll.u32 %v5500, 16
      %v5538 = vrot.slane %v5536, 5
      %v5539 = vsel %vm4907, %v5534, %v5538
      %v5541 = vshrl.u32 %v5470, 16
      %v5543 = vrot.slane %v5541, 4
      %v5544 = vshll.u32 %v5470, 16
      %v5546 = vrot.slane %v5544, 5
      %v5547 = vor.u32 %v5543, %v5546
      %v5548 = vrot.slane %v5547, 4
      %v5550 = vshll.u32 %v5471, 16
      %v5552 = vrot.slane %v5550, 5
      %v5553 = vsel %vm4907, %v5548, %v5552
      %v5554 = vshrl.u32 %v5471, 16
      %v5556 = vrot.slane %v5554, 4
      %v5557 = vor.u32 %v5556, %v5552
      %v5558 = vrot.slane %v5557, 4
      %v5560 = vshll.u32 %v5501, 16
      %v5562 = vrot.slane %v5560, 5
      %v5563 = vsel %vm4907, %v5558, %v5562
      %v5565 = vshrl.u32 %v5472, 16
      %v5567 = vrot.slane %v5565, 4
      %v5568 = vshll.u32 %v5472, 16
      %v5570 = vrot.slane %v5568, 5
      %v5571 = vor.u32 %v5567, %v5570
      %v5572 = vrot.slane %v5571, 4
      %v5574 = vshll.u32 %v5473, 16
      %v5576 = vrot.slane %v5574, 5
      %v5577 = vsel %vm4907, %v5572, %v5576
      %v5578 = vshrl.u32 %v5473, 16
      %v5580 = vrot.slane %v5578, 4
      %v5581 = vor.u32 %v5580, %v5576
      %v5582 = vrot.slane %v5581, 4
      %v5584 = vshll.u32 %v5502, 16
      %v5586 = vrot.slane %v5584, 5
      %v5587 = vsel %vm4907, %v5582, %v5586
      %v5589 = vshrl.u32 %v5474, 16
      %v5591 = vrot.slane %v5589, 4
      %v5592 = vshll.u32 %v5474, 16
      %v5594 = vrot.slane %v5592, 5
      %v5595 = vor.u32 %v5591, %v5594
      %v5596 = vrot.slane %v5595, 4
      %v5598 = vshll.u32 %v5475, 16
      %v5600 = vrot.slane %v5598, 5
      %v5601 = vsel %vm4907, %v5596, %v5600
      %v5602 = vshrl.u32 %v5475, 16
      %v5604 = vrot.slane %v5602, 4
      %v5605 = vor.u32 %v5604, %v5600
      %v5606 = vrot.slane %v5605, 4
      %v5608 = vshll.u32 %v5503, 16
      %v5610 = vrot.slane %v5608, 5
      %v5611 = vsel %vm4907, %v5606, %v5610
      %v5613 = vshrl.u32 %v5476, 16
      %v5615 = vrot.slane %v5613, 4
      %v5616 = vshll.u32 %v5476, 16
      %v5618 = vrot.slane %v5616, 5
      %v5619 = vor.u32 %v5615, %v5618
      %v5620 = vrot.slane %v5619, 4
      %v5622 = vshll.u32 %v5477, 16
      %v5624 = vrot.slane %v5622, 5
      %v5625 = vsel %vm4907, %v5620, %v5624
      %v5626 = vshrl.u32 %v5477, 16
      %v5628 = vrot.slane %v5626, 4
      %v5629 = vor.u32 %v5628, %v5624
      %v5630 = vrot.slane %v5629, 4
      %v5632 = vshll.u32 %v5504, 16
      %v5634 = vrot.slane %v5632, 5
      %v5635 = vsel %vm4907, %v5630, %v5634
      %v5637 = vshrl.u32 %v5478, 16
      %v5639 = vrot.slane %v5637, 4
      %v5640 = vshll.u32 %v5478, 16
      %v5642 = vrot.slane %v5640, 5
      %v5643 = vor.u32 %v5639, %v5642
      %v5644 = vrot.slane %v5643, 4
      %v5646 = vshll.u32 %v5479, 16
      %v5648 = vrot.slane %v5646, 5
      %v5649 = vsel %vm4907, %v5644, %v5648
      %v5650 = vshrl.u32 %v5479, 16
      %v5652 = vrot.slane %v5650, 4
      %v5653 = vor.u32 %v5652, %v5648
      %v5654 = vrot.slane %v5653, 4
      %v5656 = vshll.u32 %v5505, 16
      %v5658 = vrot.slane %v5656, 5
      %v5659 = vsel %vm4907, %v5654, %v5658
      %v5661 = vshrl.u32 %v5480, 16
      %v5663 = vrot.slane %v5661, 4
      %v5664 = vshll.u32 %v5480, 16
      %v5666 = vrot.slane %v5664, 5
      %v5667 = vor.u32 %v5663, %v5666
      %v5668 = vrot.slane %v5667, 4
      %v5670 = vshll.u32 %v5481, 16
      %v5672 = vrot.slane %v5670, 5
      %v5673 = vsel %vm4907, %v5668, %v5672
      %v5674 = vshrl.u32 %v5481, 16
      %v5676 = vrot.slane %v5674, 4
      %v5677 = vor.u32 %v5676, %v5672
      %v5678 = vrot.slane %v5677, 4
      %v5680 = vshll.u32 %v5506, 16
      %v5682 = vrot.slane %v5680, 5
      %v5683 = vsel %vm4907, %v5678, %v5682
      %v5685 = vshrl.u32 %v5482, 16
      %v5687 = vrot.slane %v5685, 4
      %v5688 = vshll.u32 %v5482, 16
      %v5690 = vrot.slane %v5688, 5
      %v5691 = vor.u32 %v5687, %v5690
      %v5692 = vrot.slane %v5691, 4
      %v5694 = vshll.u32 %v5483, 16
      %v5696 = vrot.slane %v5694, 5
      %v5697 = vsel %vm4907, %v5692, %v5696
      %v5698 = vshrl.u32 %v5483, 16
      %v5700 = vrot.slane %v5698, 4
      %v5701 = vor.u32 %v5700, %v5696
      %v5702 = vrot.slane %v5701, 4
      %v5704 = vshll.u32 %v5507, 16
      %v5706 = vrot.slane %v5704, 5
      %v5707 = vsel %vm4907, %v5702, %v5706
      %v5709 = vshrl.u32 %v5484, 16
      %v5711 = vrot.slane %v5709, 4
      %v5712 = vshll.u32 %v5484, 16
      %v5714 = vrot.slane %v5712, 5
      %v5715 = vor.u32 %v5711, %v5714
      %v5716 = vrot.slane %v5715, 4
      %v5718 = vshll.u32 %v5485, 16
      %v5720 = vrot.slane %v5718, 5
      %v5721 = vsel %vm4907, %v5716, %v5720
      %v5722 = vshrl.u32 %v5485, 16
      %v5724 = vrot.slane %v5722, 4
      %v5725 = vor.u32 %v5724, %v5720
      %v5726 = vrot.slane %v5725, 4
      %v5728 = vshll.u32 %v5508, 16
      %v5730 = vrot.slane %v5728, 5
      %v5731 = vsel %vm4907, %v5726, %v5730
      %v5733 = vshrl.u32 %v5486, 16
      %v5735 = vrot.slane %v5733, 4
      %v5736 = vshll.u32 %v5486, 16
      %v5738 = vrot.slane %v5736, 5
      %v5739 = vor.u32 %v5735, %v5738
      %v5740 = vrot.slane %v5739, 4
      %v5742 = vshll.u32 %v5487, 16
      %v5744 = vrot.slane %v5742, 5
      %v5745 = vsel %vm4907, %v5740, %v5744
      %v5746 = vshrl.u32 %v5487, 16
      %v5748 = vrot.slane %v5746, 4
      %v5749 = vor.u32 %v5748, %v5744
      %v5750 = vrot.slane %v5749, 4
      %v5752 = vshll.u32 %v5509, 16
      %v5754 = vrot.slane %v5752, 5
      %v5755 = vsel %vm4907, %v5750, %v5754
      %v5757 = vshrl.u32 %v5488, 16
      %v5759 = vrot.slane %v5757, 4
      %v5760 = vshll.u32 %v5488, 16
      %v5762 = vrot.slane %v5760, 5
      %v5763 = vor.u32 %v5759, %v5762
      %v5764 = vrot.slane %v5763, 4
      %v5766 = vshll.u32 %v5489, 16
      %v5768 = vrot.slane %v5766, 5
      %v5769 = vsel %vm4907, %v5764, %v5768
      %v5770 = vshrl.u32 %v5489, 16
      %v5772 = vrot.slane %v5770, 4
      %v5773 = vor.u32 %v5772, %v5768
      %v5774 = vrot.slane %v5773, 4
      %v5776 = vshll.u32 %v5510, 16
      %v5778 = vrot.slane %v5776, 5
      %v5779 = vsel %vm4907, %v5774, %v5778
      %v5781 = vshrl.u32 %v5490, 16
      %v5783 = vrot.slane %v5781, 4
      %v5784 = vshll.u32 %v5490, 16
      %v5786 = vrot.slane %v5784, 5
      %v5787 = vor.u32 %v5783, %v5786
      %v5788 = vrot.slane %v5787, 4
      %v5790 = vshll.u32 %v5491, 16
      %v5792 = vrot.slane %v5790, 5
      %v5793 = vsel %vm4907, %v5788, %v5792
      %v5794 = vshrl.u32 %v5491, 16
      %v5796 = vrot.slane %v5794, 4
      %v5797 = vor.u32 %v5796, %v5792
      %v5798 = vrot.slane %v5797, 4
      %v5800 = vshll.u32 %v5511, 16
      %v5802 = vrot.slane %v5800, 5
      %v5803 = vsel %vm4907, %v5798, %v5802
      %v5805 = vshrl.u32 %v5492, 16
      %v5807 = vrot.slane %v5805, 4
      %v5808 = vshll.u32 %v5492, 16
      %v5810 = vrot.slane %v5808, 5
      %v5811 = vor.u32 %v5807, %v5810
      %v5812 = vrot.slane %v5811, 4
      %v5814 = vshll.u32 %v5493, 16
      %v5816 = vrot.slane %v5814, 5
      %v5817 = vsel %vm4907, %v5812, %v5816
      %v5818 = vshrl.u32 %v5493, 16
      %v5820 = vrot.slane %v5818, 4
      %v5821 = vor.u32 %v5820, %v5816
      %v5822 = vrot.slane %v5821, 4
      %v5824 = vshll.u32 %v5512, 16
      %v5826 = vrot.slane %v5824, 5
      %v5827 = vsel %vm4907, %v5822, %v5826
      %v5829 = vshrl.u32 %v5494, 16
      %v5831 = vrot.slane %v5829, 4
      %v5832 = vshll.u32 %v5494, 16
      %v5834 = vrot.slane %v5832, 5
      %v5835 = vor.u32 %v5831, %v5834
      %v5836 = vrot.slane %v5835, 4
      %v5838 = vshll.u32 %v5495, 16
      %v5840 = vrot.slane %v5838, 5
      %v5841 = vsel %vm4907, %v5836, %v5840
      %v5842 = vshrl.u32 %v5495, 16
      %v5844 = vrot.slane %v5842, 4
      %v5845 = vor.u32 %v5844, %v5840
      %v5846 = vrot.slane %v5845, 4
      %v5848 = vshll.u32 %v5513, 16
      %v5850 = vrot.slane %v5848, 5
      %v5851 = vsel %vm4907, %v5846, %v5850
      %v5853 = vshrl.u32 %v5496, 16
      %v5855 = vrot.slane %v5853, 4
      %v5856 = vshll.u32 %v5496, 16
      %v5858 = vrot.slane %v5856, 5
      %v5859 = vor.u32 %v5855, %v5858
      %v5860 = vrot.slane %v5859, 4
      %v5862 = vshll.u32 %v5497, 16
      %v5864 = vrot.slane %v5862, 5
      %v5865 = vsel %vm4907, %v5860, %v5864
      %v5866 = vshrl.u32 %v5497, 16
      %v5868 = vrot.slane %v5866, 4
      %v5869 = vor.u32 %v5868, %v5864
      %v5870 = vrot.slane %v5869, 4
      %v5872 = vshll.u32 %v5514, 16
      %v5874 = vrot.slane %v5872, 5
      %v5875 = vsel %vm4907, %v5870, %v5874
      %v5877 = vshrl.u32 %v5498, 16
      %v5879 = vrot.slane %v5877, 4
      %v5880 = vshll.u32 %v5498, 16
      %v5882 = vrot.slane %v5880, 5
      %v5883 = vor.u32 %v5879, %v5882
      %v5884 = vrot.slane %v5883, 4
      %v5886 = vshll.u32 %v5499, 16
      %v5888 = vrot.slane %v5886, 5
      %v5889 = vsel %vm4907, %v5884, %v5888
      %v5890 = vshrl.u32 %v5499, 16
      %v5892 = vrot.slane %v5890, 4
      %v5893 = vor.u32 %v5892, %v5888
      %v5894 = vrot.slane %v5893, 4
      %v5896 = vshll.u32 %v5515, 16
      %v5898 = vrot.slane %v5896, 5
      %v5899 = vsel %vm4907, %v5894, %v5898
      %v5900 = vld [vmem:[%s4223] sm:$0xe]
      %v5901 = vld [vmem:[%s4223 + $0xc] sm:$0xe]
      %v5902 = vld [vmem:[%s4223 + $0x18] sm:$0xe]
      %v5903 = vld [vmem:[%s4223 + $0x24] sm:$0xe]
      %v5904 = vld [vmem:[%s4223 + $0x30] sm:$0xe]
      %v5905 = vld [vmem:[%s4223 + $0x3c] sm:$0xe]
      %v5906 = vld [vmem:[%s4223 + $0x48] sm:$0xe]
      %v5907 = vld [vmem:[%s4223 + $0x54] sm:$0xe]
      %v5908 = vld [vmem:[%s4223 + $0x60] sm:$0xe]
      %v5909 = vld [vmem:[%s4223 + $0x6c] sm:$0xe]
      %v5910 = vld [vmem:[%s4223 + $0x78] sm:$0xe]
      %v5911 = vld [vmem:[%s4223 + $0x84] sm:$0xe]
      %v5912 = vld [vmem:[%s4223 + $0x90] sm:$0xe]
      %v5913 = vld [vmem:[%s4223 + $0x9c] sm:$0xe]
      %v5914 = vld [vmem:[%s4223 + $0xa8] sm:$0xe]
      %v5915 = vld [vmem:[%s4223 + $0xb4] sm:$0xe]
      %v5964 = vrot.slane %v5900, 5
      %v5965 = vrot.slane %v5964, 4
      %v5966 = vrot.slane %v5469, 5
      %v5967 = vsel %vm589, %v5965, %v5966
      %v5968 = vrot.slane %v5966, 4
      %v5969 = vrot.slane %v5500, 5
      %v5970 = vsel %vm589, %v5968, %v5969
      %v5971 = vrot.slane %v5901, 5
      %v5972 = vrot.slane %v5971, 4
      %v5973 = vrot.slane %v5471, 5
      %v5974 = vsel %vm589, %v5972, %v5973
      %v5975 = vrot.slane %v5973, 4
      %v5976 = vrot.slane %v5501, 5
      %v5977 = vsel %vm589, %v5975, %v5976
      %v5978 = vrot.slane %v5902, 5
      %v5979 = vrot.slane %v5978, 4
      %v5980 = vrot.slane %v5473, 5
      %v5981 = vsel %vm589, %v5979, %v5980
      %v5982 = vrot.slane %v5980, 4
      %v5983 = vrot.slane %v5502, 5
      %v5984 = vsel %vm589, %v5982, %v5983
      %v5985 = vrot.slane %v5903, 5
      %v5986 = vrot.slane %v5985, 4
      %v5987 = vrot.slane %v5475, 5
      %v5988 = vsel %vm589, %v5986, %v5987
      %v5989 = vrot.slane %v5987, 4
      %v5990 = vrot.slane %v5503, 5
      %v5991 = vsel %vm589, %v5989, %v5990
      %v5992 = vrot.slane %v5904, 5
      %v5993 = vrot.slane %v5992, 4
      %v5994 = vrot.slane %v5477, 5
      %v5995 = vsel %vm589, %v5993, %v5994
      %v5996 = vrot.slane %v5994, 4
      %v5997 = vrot.slane %v5504, 5
      %v5998 = vsel %vm589, %v5996, %v5997
      %v5999 = vrot.slane %v5905, 5
      %v6000 = vrot.slane %v5999, 4
      %v6001 = vrot.slane %v5479, 5
      %v6002 = vsel %vm589, %v6000, %v6001
      %v6003 = vrot.slane %v6001, 4
      %v6004 = vrot.slane %v5505, 5
      %v6005 = vsel %vm589, %v6003, %v6004
      %v6006 = vrot.slane %v5906, 5
      %v6007 = vrot.slane %v6006, 4
      %v6008 = vrot.slane %v5481, 5
      %v6009 = vsel %vm589, %v6007, %v6008
      %v6010 = vrot.slane %v6008, 4
      %v6011 = vrot.slane %v5506, 5
      %v6012 = vsel %vm589, %v6010, %v6011
      %v6013 = vrot.slane %v5907, 5
      %v6014 = vrot.slane %v6013, 4
      %v6015 = vrot.slane %v5483, 5
      %v6016 = vsel %vm589, %v6014, %v6015
      %v6017 = vrot.slane %v6015, 4
      %v6018 = vrot.slane %v5507, 5
      %v6019 = vsel %vm589, %v6017, %v6018
      %v6020 = vrot.slane %v5908, 5
      %v6021 = vrot.slane %v6020, 4
      %v6022 = vrot.slane %v5485, 5
      %v6023 = vsel %vm589, %v6021, %v6022
      %v6024 = vrot.slane %v6022, 4
      %v6025 = vrot.slane %v5508, 5
      %v6026 = vsel %vm589, %v6024, %v6025
      %v6027 = vrot.slane %v5909, 5
      %v6028 = vrot.slane %v6027, 4
      %v6029 = vrot.slane %v5487, 5
      %v6030 = vsel %vm589, %v6028, %v6029
      %v6031 = vrot.slane %v6029, 4
      %v6032 = vrot.slane %v5509, 5
      %v6033 = vsel %vm589, %v6031, %v6032
      %v6034 = vrot.slane %v5910, 5
      %v6035 = vrot.slane %v6034, 4
      %v6036 = vrot.slane %v5489, 5
      %v6037 = vsel %vm589, %v6035, %v6036
      %v6038 = vrot.slane %v6036, 4
      %v6039 = vrot.slane %v5510, 5
      %v6040 = vsel %vm589, %v6038, %v6039
      %v6041 = vrot.slane %v5911, 5
      %v6042 = vrot.slane %v6041, 4
      %v6043 = vrot.slane %v5491, 5
      %v6044 = vsel %vm589, %v6042, %v6043
      %v6045 = vrot.slane %v6043, 4
      %v6046 = vrot.slane %v5511, 5
      %v6047 = vsel %vm589, %v6045, %v6046
      %v6048 = vrot.slane %v5912, 5
      %v6049 = vrot.slane %v6048, 4
      %v6050 = vrot.slane %v5493, 5
      %v6051 = vsel %vm589, %v6049, %v6050
      %v6052 = vrot.slane %v6050, 4
      %v6053 = vrot.slane %v5512, 5
      %v6054 = vsel %vm589, %v6052, %v6053
      %v6055 = vrot.slane %v5913, 5
      %v6056 = vrot.slane %v6055, 4
      %v6057 = vrot.slane %v5495, 5
      %v6058 = vsel %vm589, %v6056, %v6057
      %v6059 = vrot.slane %v6057, 4
      %v6060 = vrot.slane %v5513, 5
      %v6061 = vsel %vm589, %v6059, %v6060
      %v6062 = vrot.slane %v5914, 5
      %v6063 = vrot.slane %v6062, 4
      %v6064 = vrot.slane %v5497, 5
      %v6065 = vsel %vm589, %v6063, %v6064
      %v6066 = vrot.slane %v6064, 4
      %v6067 = vrot.slane %v5514, 5
      %v6068 = vsel %vm589, %v6066, %v6067
      %v6069 = vrot.slane %v5915, 5
      %v6070 = vrot.slane %v6069, 4
      %v6071 = vrot.slane %v5499, 5
      %v6072 = vsel %vm589, %v6070, %v6071
      %v6073 = vrot.slane %v6071, 4
      %v6074 = vrot.slane %v5515, 5
      %v6075 = vsel %vm589, %v6073, %v6074
      %s6076 = scalar_lea.vmem [#allocation2], 24
      %v6077 = vld [vmem:[%s6076] sm:$0xf]
      %v6078 = vld [vmem:[%s6076 + $0x4] sm:$0xf]
      %v6079 = vld [vmem:[%s6076 + $0xc] sm:$0xf]
      %v6080 = vld [vmem:[%s6076 + $0x10] sm:$0xf]
      %v6081 = vld [vmem:[%s6076 + $0x18] sm:$0xf]
      %v6082 = vld [vmem:[%s6076 + $0x1c] sm:$0xf]
      %v6083 = vld [vmem:[%s6076 + $0x24] sm:$0xf]
      %v6084 = vld [vmem:[%s6076 + $0x28] sm:$0xf]
      %v6085 = vld [vmem:[%s6076 + $0x30] sm:$0xf]
      %v6086 = vld [vmem:[%s6076 + $0x34] sm:$0xf]
      %v6087 = vld [vmem:[%s6076 + $0x3c] sm:$0xf]
      %v6088 = vld [vmem:[%s6076 + $0x40] sm:$0xf]
      %v6089 = vld [vmem:[%s6076 + $0x48] sm:$0xf]
      %v6090 = vld [vmem:[%s6076 + $0x4c] sm:$0xf]
      %v6091 = vld [vmem:[%s6076 + $0x54] sm:$0xf]
      %v6092 = vld [vmem:[%s6076 + $0x58] sm:$0xf]
      %v6093 = vld [vmem:[%s6076 + $0x60] sm:$0xf]
      %v6094 = vld [vmem:[%s6076 + $0x64] sm:$0xf]
      %v6095 = vld [vmem:[%s6076 + $0x6c] sm:$0xf]
      %v6096 = vld [vmem:[%s6076 + $0x70] sm:$0xf]
      %v6097 = vld [vmem:[%s6076 + $0x78] sm:$0xf]
      %v6098 = vld [vmem:[%s6076 + $0x7c] sm:$0xf]
      %v6099 = vld [vmem:[%s6076 + $0x84] sm:$0xf]
      %v6100 = vld [vmem:[%s6076 + $0x88] sm:$0xf]
      %v6101 = vld [vmem:[%s6076 + $0x90] sm:$0xf]
      %v6102 = vld [vmem:[%s6076 + $0x94] sm:$0xf]
      %v6103 = vld [vmem:[%s6076 + $0x9c] sm:$0xf]
      %v6104 = vld [vmem:[%s6076 + $0xa0] sm:$0xf]
      %v6105 = vld [vmem:[%s6076 + $0xa8] sm:$0xf]
      %v6106 = vld [vmem:[%s6076 + $0xac] sm:$0xf]
      %v6107 = vld [vmem:[%s6076 + $0xb4] sm:$0xf]
      %v6108 = vld [vmem:[%s6076 + $0xb8] sm:$0xf]
      %v6109 = vld [vmem:[%s6076 + $0x8] sm:$0x1]
      %v6110 = vld [vmem:[%s6076 + $0x14] sm:$0x1]
      %v6111 = vld [vmem:[%s6076 + $0x20] sm:$0x1]
      %v6112 = vld [vmem:[%s6076 + $0x2c] sm:$0x1]
      %v6113 = vld [vmem:[%s6076 + $0x38] sm:$0x1]
      %v6114 = vld [vmem:[%s6076 + $0x44] sm:$0x1]
      %v6115 = vld [vmem:[%s6076 + $0x50] sm:$0x1]
      %v6116 = vld [vmem:[%s6076 + $0x5c] sm:$0x1]
      %v6117 = vld [vmem:[%s6076 + $0x68] sm:$0x1]
      %v6118 = vld [vmem:[%s6076 + $0x74] sm:$0x1]
      %v6119 = vld [vmem:[%s6076 + $0x80] sm:$0x1]
      %v6120 = vld [vmem:[%s6076 + $0x8c] sm:$0x1]
      %v6121 = vld [vmem:[%s6076 + $0x98] sm:$0x1]
      %v6122 = vld [vmem:[%s6076 + $0xa4] sm:$0x1]
      %v6123 = vld [vmem:[%s6076 + $0xb0] sm:$0x1]
      %v6124 = vld [vmem:[%s6076 + $0xbc] sm:$0x1]
      %v6126 = vshrl.u32 %v6077, 16
      %v6128 = vrot.slane %v6126, 4
      %v6129 = vshll.u32 %v6077, 16
      %v6131 = vrot.slane %v6129, 5
      %v6132 = vor.u32 %v6128, %v6131
      %v6133 = vrot.slane %v6132, 4
      %v6135 = vshll.u32 %v6078, 16
      %v6137 = vrot.slane %v6135, 5
      %v6138 = vsel %vm4907, %v6133, %v6137
      %v6139 = vshrl.u32 %v6078, 16
      %v6141 = vrot.slane %v6139, 4
      %v6142 = vor.u32 %v6141, %v6137
      %v6143 = vrot.slane %v6142, 4
      %v6145 = vshll.u32 %v6109, 16
      %v6147 = vrot.slane %v6145, 5
      %v6148 = vsel %vm4907, %v6143, %v6147
      %v6150 = vshrl.u32 %v6079, 16
      %v6152 = vrot.slane %v6150, 4
      %v6153 = vshll.u32 %v6079, 16
      %v6155 = vrot.slane %v6153, 5
      %v6156 = vor.u32 %v6152, %v6155
      %v6157 = vrot.slane %v6156, 4
      %v6159 = vshll.u32 %v6080, 16
      %v6161 = vrot.slane %v6159, 5
      %v6162 = vsel %vm4907, %v6157, %v6161
      %v6163 = vshrl.u32 %v6080, 16
      %v6165 = vrot.slane %v6163, 4
      %v6166 = vor.u32 %v6165, %v6161
      %v6167 = vrot.slane %v6166, 4
      %v6169 = vshll.u32 %v6110, 16
      %v6171 = vrot.slane %v6169, 5
      %v6172 = vsel %vm4907, %v6167, %v6171
      %v6174 = vshrl.u32 %v6081, 16
      %v6176 = vrot.slane %v6174, 4
      %v6177 = vshll.u32 %v6081, 16
      %v6179 = vrot.slane %v6177, 5
      %v6180 = vor.u32 %v6176, %v6179
      %v6181 = vrot.slane %v6180, 4
      %v6183 = vshll.u32 %v6082, 16
      %v6185 = vrot.slane %v6183, 5
      %v6186 = vsel %vm4907, %v6181, %v6185
      %v6187 = vshrl.u32 %v6082, 16
      %v6189 = vrot.slane %v6187, 4
      %v6190 = vor.u32 %v6189, %v6185
      %v6191 = vrot.slane %v6190, 4
      %v6193 = vshll.u32 %v6111, 16
      %v6195 = vrot.slane %v6193, 5
      %v6196 = vsel %vm4907, %v6191, %v6195
      %v6198 = vshrl.u32 %v6083, 16
      %v6200 = vrot.slane %v6198, 4
      %v6201 = vshll.u32 %v6083, 16
      %v6203 = vrot.slane %v6201, 5
      %v6204 = vor.u32 %v6200, %v6203
      %v6205 = vrot.slane %v6204, 4
      %v6207 = vshll.u32 %v6084, 16
      %v6209 = vrot.slane %v6207, 5
      %v6210 = vsel %vm4907, %v6205, %v6209
      %v6211 = vshrl.u32 %v6084, 16
      %v6213 = vrot.slane %v6211, 4
      %v6214 = vor.u32 %v6213, %v6209
      %v6215 = vrot.slane %v6214, 4
      %v6217 = vshll.u32 %v6112, 16
      %v6219 = vrot.slane %v6217, 5
      %v6220 = vsel %vm4907, %v6215, %v6219
      %v6222 = vshrl.u32 %v6085, 16
      %v6224 = vrot.slane %v6222, 4
      %v6225 = vshll.u32 %v6085, 16
      %v6227 = vrot.slane %v6225, 5
      %v6228 = vor.u32 %v6224, %v6227
      %v6229 = vrot.slane %v6228, 4
      %v6231 = vshll.u32 %v6086, 16
      %v6233 = vrot.slane %v6231, 5
      %v6234 = vsel %vm4907, %v6229, %v6233
      %v6235 = vshrl.u32 %v6086, 16
      %v6237 = vrot.slane %v6235, 4
      %v6238 = vor.u32 %v6237, %v6233
      %v6239 = vrot.slane %v6238, 4
      %v6241 = vshll.u32 %v6113, 16
      %v6243 = vrot.slane %v6241, 5
      %v6244 = vsel %vm4907, %v6239, %v6243
      %v6246 = vshrl.u32 %v6087, 16
      %v6248 = vrot.slane %v6246, 4
      %v6249 = vshll.u32 %v6087, 16
      %v6251 = vrot.slane %v6249, 5
      %v6252 = vor.u32 %v6248, %v6251
      %v6253 = vrot.slane %v6252, 4
      %v6255 = vshll.u32 %v6088, 16
      %v6257 = vrot.slane %v6255, 5
      %v6258 = vsel %vm4907, %v6253, %v6257
      %v6259 = vshrl.u32 %v6088, 16
      %v6261 = vrot.slane %v6259, 4
      %v6262 = vor.u32 %v6261, %v6257
      %v6263 = vrot.slane %v6262, 4
      %v6265 = vshll.u32 %v6114, 16
      %v6267 = vrot.slane %v6265, 5
      %v6268 = vsel %vm4907, %v6263, %v6267
      %v6270 = vshrl.u32 %v6089, 16
      %v6272 = vrot.slane %v6270, 4
      %v6273 = vshll.u32 %v6089, 16
      %v6275 = vrot.slane %v6273, 5
      %v6276 = vor.u32 %v6272, %v6275
      %v6277 = vrot.slane %v6276, 4
      %v6279 = vshll.u32 %v6090, 16
      %v6281 = vrot.slane %v6279, 5
      %v6282 = vsel %vm4907, %v6277, %v6281
      %v6283 = vshrl.u32 %v6090, 16
      %v6285 = vrot.slane %v6283, 4
      %v6286 = vor.u32 %v6285, %v6281
      %v6287 = vrot.slane %v6286, 4
      %v6289 = vshll.u32 %v6115, 16
      %v6291 = vrot.slane %v6289, 5
      %v6292 = vsel %vm4907, %v6287, %v6291
      %v6294 = vshrl.u32 %v6091, 16
      %v6296 = vrot.slane %v6294, 4
      %v6297 = vshll.u32 %v6091, 16
      %v6299 = vrot.slane %v6297, 5
      %v6300 = vor.u32 %v6296, %v6299
      %v6301 = vrot.slane %v6300, 4
      %v6303 = vshll.u32 %v6092, 16
      %v6305 = vrot.slane %v6303, 5
      %v6306 = vsel %vm4907, %v6301, %v6305
      %v6307 = vshrl.u32 %v6092, 16
      %v6309 = vrot.slane %v6307, 4
      %v6310 = vor.u32 %v6309, %v6305
      %v6311 = vrot.slane %v6310, 4
      %v6313 = vshll.u32 %v6116, 16
      %v6315 = vrot.slane %v6313, 5
      %v6316 = vsel %vm4907, %v6311, %v6315
      %v6318 = vshrl.u32 %v6093, 16
      %v6320 = vrot.slane %v6318, 4
      %v6321 = vshll.u32 %v6093, 16
      %v6323 = vrot.slane %v6321, 5
      %v6324 = vor.u32 %v6320, %v6323
      %v6325 = vrot.slane %v6324, 4
      %v6327 = vshll.u32 %v6094, 16
      %v6329 = vrot.slane %v6327, 5
      %v6330 = vsel %vm4907, %v6325, %v6329
      %v6331 = vshrl.u32 %v6094, 16
      %v6333 = vrot.slane %v6331, 4
      %v6334 = vor.u32 %v6333, %v6329
      %v6335 = vrot.slane %v6334, 4
      %v6337 = vshll.u32 %v6117, 16
      %v6339 = vrot.slane %v6337, 5
      %v6340 = vsel %vm4907, %v6335, %v6339
      %v6342 = vshrl.u32 %v6095, 16
      %v6344 = vrot.slane %v6342, 4
      %v6345 = vshll.u32 %v6095, 16
      %v6347 = vrot.slane %v6345, 5
      %v6348 = vor.u32 %v6344, %v6347
      %v6349 = vrot.slane %v6348, 4
      %v6351 = vshll.u32 %v6096, 16
      %v6353 = vrot.slane %v6351, 5
      %v6354 = vsel %vm4907, %v6349, %v6353
      %v6355 = vshrl.u32 %v6096, 16
      %v6357 = vrot.slane %v6355, 4
      %v6358 = vor.u32 %v6357, %v6353
      %v6359 = vrot.slane %v6358, 4
      %v6361 = vshll.u32 %v6118, 16
      %v6363 = vrot.slane %v6361, 5
      %v6364 = vsel %vm4907, %v6359, %v6363
      %v6366 = vshrl.u32 %v6097, 16
      %v6368 = vrot.slane %v6366, 4
      %v6369 = vshll.u32 %v6097, 16
      %v6371 = vrot.slane %v6369, 5
      %v6372 = vor.u32 %v6368, %v6371
      %v6373 = vrot.slane %v6372, 4
      %v6375 = vshll.u32 %v6098, 16
      %v6377 = vrot.slane %v6375, 5
      %v6378 = vsel %vm4907, %v6373, %v6377
      %v6379 = vshrl.u32 %v6098, 16
      %v6381 = vrot.slane %v6379, 4
      %v6382 = vor.u32 %v6381, %v6377
      %v6383 = vrot.slane %v6382, 4
      %v6385 = vshll.u32 %v6119, 16
      %v6387 = vrot.slane %v6385, 5
      %v6388 = vsel %vm4907, %v6383, %v6387
      %v6390 = vshrl.u32 %v6099, 16
      %v6392 = vrot.slane %v6390, 4
      %v6393 = vshll.u32 %v6099, 16
      %v6395 = vrot.slane %v6393, 5
      %v6396 = vor.u32 %v6392, %v6395
      %v6397 = vrot.slane %v6396, 4
      %v6399 = vshll.u32 %v6100, 16
      %v6401 = vrot.slane %v6399, 5
      %v6402 = vsel %vm4907, %v6397, %v6401
      %v6403 = vshrl.u32 %v6100, 16
      %v6405 = vrot.slane %v6403, 4
      %v6406 = vor.u32 %v6405, %v6401
      %v6407 = vrot.slane %v6406, 4
      %v6409 = vshll.u32 %v6120, 16
      %v6411 = vrot.slane %v6409, 5
      %v6412 = vsel %vm4907, %v6407, %v6411
      %v6414 = vshrl.u32 %v6101, 16
      %v6416 = vrot.slane %v6414, 4
      %v6417 = vshll.u32 %v6101, 16
      %v6419 = vrot.slane %v6417, 5
      %v6420 = vor.u32 %v6416, %v6419
      %v6421 = vrot.slane %v6420, 4
      %v6423 = vshll.u32 %v6102, 16
      %v6425 = vrot.slane %v6423, 5
      %v6426 = vsel %vm4907, %v6421, %v6425
      %v6427 = vshrl.u32 %v6102, 16
      %v6429 = vrot.slane %v6427, 4
      %v6430 = vor.u32 %v6429, %v6425
      %v6431 = vrot.slane %v6430, 4
      %v6433 = vshll.u32 %v6121, 16
      %v6435 = vrot.slane %v6433, 5
      %v6436 = vsel %vm4907, %v6431, %v6435
      %v6438 = vshrl.u32 %v6103, 16
      %v6440 = vrot.slane %v6438, 4
      %v6441 = vshll.u32 %v6103, 16
      %v6443 = vrot.slane %v6441, 5
      %v6444 = vor.u32 %v6440, %v6443
      %v6445 = vrot.slane %v6444, 4
      %v6447 = vshll.u32 %v6104, 16
      %v6449 = vrot.slane %v6447, 5
      %v6450 = vsel %vm4907, %v6445, %v6449
      %v6451 = vshrl.u32 %v6104, 16
      %v6453 = vrot.slane %v6451, 4
      %v6454 = vor.u32 %v6453, %v6449
      %v6455 = vrot.slane %v6454, 4
      %v6457 = vshll.u32 %v6122, 16
      %v6459 = vrot.slane %v6457, 5
      %v6460 = vsel %vm4907, %v6455, %v6459
      %v6462 = vshrl.u32 %v6105, 16
      %v6464 = vrot.slane %v6462, 4
      %v6465 = vshll.u32 %v6105, 16
      %v6467 = vrot.slane %v6465, 5
      %v6468 = vor.u32 %v6464, %v6467
      %v6469 = vrot.slane %v6468, 4
      %v6471 = vshll.u32 %v6106, 16
      %v6473 = vrot.slane %v6471, 5
      %v6474 = vsel %vm4907, %v6469, %v6473
      %v6475 = vshrl.u32 %v6106, 16
      %v6477 = vrot.slane %v6475, 4
      %v6478 = vor.u32 %v6477, %v6473
      %v6479 = vrot.slane %v6478, 4
      %v6481 = vshll.u32 %v6123, 16
      %v6483 = vrot.slane %v6481, 5
      %v6484 = vsel %vm4907, %v6479, %v6483
      %v6486 = vshrl.u32 %v6107, 16
      %v6488 = vrot.slane %v6486, 4
      %v6489 = vshll.u32 %v6107, 16
      %v6491 = vrot.slane %v6489, 5
      %v6492 = vor.u32 %v6488, %v6491
      %v6493 = vrot.slane %v6492, 4
      %v6495 = vshll.u32 %v6108, 16
      %v6497 = vrot.slane %v6495, 5
      %v6498 = vsel %vm4907, %v6493, %v6497
      %v6499 = vshrl.u32 %v6108, 16
      %v6501 = vrot.slane %v6499, 4
      %v6502 = vor.u32 %v6501, %v6497
      %v6503 = vrot.slane %v6502, 4
      %v6505 = vshll.u32 %v6124, 16
      %v6507 = vrot.slane %v6505, 5
      %v6508 = vsel %vm4907, %v6503, %v6507
      %v6509 = vld [vmem:[%s6076] sm:$0xe]
      %v6510 = vld [vmem:[%s6076 + $0xc] sm:$0xe]
      %v6511 = vld [vmem:[%s6076 + $0x18] sm:$0xe]
      %v6512 = vld [vmem:[%s6076 + $0x24] sm:$0xe]
      %v6513 = vld [vmem:[%s6076 + $0x30] sm:$0xe]
      %v6514 = vld [vmem:[%s6076 + $0x3c] sm:$0xe]
      %v6515 = vld [vmem:[%s6076 + $0x48] sm:$0xe]
      %v6516 = vld [vmem:[%s6076 + $0x54] sm:$0xe]
      %v6517 = vld [vmem:[%s6076 + $0x60] sm:$0xe]
      %v6518 = vld [vmem:[%s6076 + $0x6c] sm:$0xe]
      %v6519 = vld [vmem:[%s6076 + $0x78] sm:$0xe]
      %v6520 = vld [vmem:[%s6076 + $0x84] sm:$0xe]
      %v6521 = vld [vmem:[%s6076 + $0x90] sm:$0xe]
      %v6522 = vld [vmem:[%s6076 + $0x9c] sm:$0xe]
      %v6523 = vld [vmem:[%s6076 + $0xa8] sm:$0xe]
      %v6524 = vld [vmem:[%s6076 + $0xb4] sm:$0xe]
      %v6573 = vrot.slane %v6509, 5
      %v6574 = vrot.slane %v6573, 4
      %v6575 = vrot.slane %v6078, 5
      %v6576 = vsel %vm589, %v6574, %v6575
      %v6577 = vrot.slane %v6575, 4
      %v6578 = vrot.slane %v6109, 5
      %v6579 = vsel %vm589, %v6577, %v6578
      %v6580 = vrot.slane %v6510, 5
      %v6581 = vrot.slane %v6580, 4
      %v6582 = vrot.slane %v6080, 5
      %v6583 = vsel %vm589, %v6581, %v6582
      %v6584 = vrot.slane %v6582, 4
      %v6585 = vrot.slane %v6110, 5
      %v6586 = vsel %vm589, %v6584, %v6585
      %v6587 = vrot.slane %v6511, 5
      %v6588 = vrot.slane %v6587, 4
      %v6589 = vrot.slane %v6082, 5
      %v6590 = vsel %vm589, %v6588, %v6589
      %v6591 = vrot.slane %v6589, 4
      %v6592 = vrot.slane %v6111, 5
      %v6593 = vsel %vm589, %v6591, %v6592
      %v6594 = vrot.slane %v6512, 5
      %v6595 = vrot.slane %v6594, 4
      %v6596 = vrot.slane %v6084, 5
      %v6597 = vsel %vm589, %v6595, %v6596
      %v6598 = vrot.slane %v6596, 4
      %v6599 = vrot.slane %v6112, 5
      %v6600 = vsel %vm589, %v6598, %v6599
      %v6601 = vrot.slane %v6513, 5
      %v6602 = vrot.slane %v6601, 4
      %v6603 = vrot.slane %v6086, 5
      %v6604 = vsel %vm589, %v6602, %v6603
      %v6605 = vrot.slane %v6603, 4
      %v6606 = vrot.slane %v6113, 5
      %v6607 = vsel %vm589, %v6605, %v6606
      %v6608 = vrot.slane %v6514, 5
      %v6609 = vrot.slane %v6608, 4
      %v6610 = vrot.slane %v6088, 5
      %v6611 = vsel %vm589, %v6609, %v6610
      %v6612 = vrot.slane %v6610, 4
      %v6613 = vrot.slane %v6114, 5
      %v6614 = vsel %vm589, %v6612, %v6613
      %v6615 = vrot.slane %v6515, 5
      %v6616 = vrot.slane %v6615, 4
      %v6617 = vrot.slane %v6090, 5
      %v6618 = vsel %vm589, %v6616, %v6617
      %v6619 = vrot.slane %v6617, 4
      %v6620 = vrot.slane %v6115, 5
      %v6621 = vsel %vm589, %v6619, %v6620
      %v6622 = vrot.slane %v6516, 5
      %v6623 = vrot.slane %v6622, 4
      %v6624 = vrot.slane %v6092, 5
      %v6625 = vsel %vm589, %v6623, %v6624
      %v6626 = vrot.slane %v6624, 4
      %v6627 = vrot.slane %v6116, 5
      %v6628 = vsel %vm589, %v6626, %v6627
      %v6629 = vrot.slane %v6517, 5
      %v6630 = vrot.slane %v6629, 4
      %v6631 = vrot.slane %v6094, 5
      %v6632 = vsel %vm589, %v6630, %v6631
      %v6633 = vrot.slane %v6631, 4
      %v6634 = vrot.slane %v6117, 5
      %v6635 = vsel %vm589, %v6633, %v6634
      %v6636 = vrot.slane %v6518, 5
      %v6637 = vrot.slane %v6636, 4
      %v6638 = vrot.slane %v6096, 5
      %v6639 = vsel %vm589, %v6637, %v6638
      %v6640 = vrot.slane %v6638, 4
      %v6641 = vrot.slane %v6118, 5
      %v6642 = vsel %vm589, %v6640, %v6641
      %v6643 = vrot.slane %v6519, 5
      %v6644 = vrot.slane %v6643, 4
      %v6645 = vrot.slane %v6098, 5
      %v6646 = vsel %vm589, %v6644, %v6645
      %v6647 = vrot.slane %v6645, 4
      %v6648 = vrot.slane %v6119, 5
      %v6649 = vsel %vm589, %v6647, %v6648
      %v6650 = vrot.slane %v6520, 5
      %v6651 = vrot.slane %v6650, 4
      %v6652 = vrot.slane %v6100, 5
      %v6653 = vsel %vm589, %v6651, %v6652
      %v6654 = vrot.slane %v6652, 4
      %v6655 = vrot.slane %v6120, 5
      %v6656 = vsel %vm589, %v6654, %v6655
      %v6657 = vrot.slane %v6521, 5
      %v6658 = vrot.slane %v6657, 4
      %v6659 = vrot.slane %v6102, 5
      %v6660 = vsel %vm589, %v6658, %v6659
      %v6661 = vrot.slane %v6659, 4
      %v6662 = vrot.slane %v6121, 5
      %v6663 = vsel %vm589, %v6661, %v6662
      %v6664 = vrot.slane %v6522, 5
      %v6665 = vrot.slane %v6664, 4
      %v6666 = vrot.slane %v6104, 5
      %v6667 = vsel %vm589, %v6665, %v6666
      %v6668 = vrot.slane %v6666, 4
      %v6669 = vrot.slane %v6122, 5
      %v6670 = vsel %vm589, %v6668, %v6669
      %v6671 = vrot.slane %v6523, 5
      %v6672 = vrot.slane %v6671, 4
      %v6673 = vrot.slane %v6106, 5
      %v6674 = vsel %vm589, %v6672, %v6673
      %v6675 = vrot.slane %v6673, 4
      %v6676 = vrot.slane %v6123, 5
      %v6677 = vsel %vm589, %v6675, %v6676
      %v6678 = vrot.slane %v6524, 5
      %v6679 = vrot.slane %v6678, 4
      %v6680 = vrot.slane %v6108, 5
      %v6681 = vsel %vm589, %v6679, %v6680
      %v6682 = vrot.slane %v6680, 4
      %v6683 = vrot.slane %v6124, 5
      %v6684 = vsel %vm589, %v6682, %v6683
      %v6701 = vunpack.c.l.b16 %v4857
      %v6702 = vunpack.c.l.b16 %v4858
      %v6703 = vunpack.c.l.b16 %v4859
      %v6704 = vunpack.c.l.b16 %v4860
      %v6705 = vunpack.c.l.b16 %v4861
      %v6706 = vunpack.c.l.b16 %v4862
      %v6707 = vunpack.c.l.b16 %v4863
      %v6708 = vunpack.c.l.b16 %v4864
      %v6709 = vunpack.c.l.b16 %v4865
      %v6710 = vunpack.c.l.b16 %v4866
      %v6711 = vunpack.c.l.b16 %v4867
      %v6712 = vunpack.c.l.b16 %v4868
      %v6713 = vunpack.c.l.b16 %v4869
      %v6714 = vunpack.c.l.b16 %v4870
      %v6715 = vunpack.c.l.b16 %v4871
      %v6716 = vunpack.c.l.b16 %v4872
      %v6717 = vunpack.c.l.b16 %v4873
      %v6718 = vunpack.c.l.b16 %v4874
      %v6719 = vunpack.c.l.b16 %v4875
      %v6720 = vunpack.c.l.b16 %v4876
      %v6721 = vunpack.c.l.b16 %v4877
      %v6722 = vunpack.c.l.b16 %v4878
      %v6723 = vunpack.c.l.b16 %v4879
      %v6724 = vunpack.c.l.b16 %v4880
      %v6725 = vunpack.c.l.b16 %v4881
      %v6726 = vunpack.c.l.b16 %v4882
      %v6727 = vunpack.c.l.b16 %v4883
      %v6728 = vunpack.c.l.b16 %v4884
      %v6729 = vunpack.c.l.b16 %v4885
      %v6730 = vunpack.c.l.b16 %v4886
      %v6731 = vunpack.c.l.b16 %v4887
      %v6732 = vunpack.c.l.b16 %v4888
      %v6733 = vpack.c.b16 %v6702, %v6701
      %v6734 = vpack.c.b16 %v6704, %v6703
      %v6735 = vpack.c.b16 %v6706, %v6705
      %v6736 = vpack.c.b16 %v6708, %v6707
      %v6737 = vpack.c.b16 %v6710, %v6709
      %v6738 = vpack.c.b16 %v6712, %v6711
      %v6739 = vpack.c.b16 %v6714, %v6713
      %v6740 = vpack.c.b16 %v6716, %v6715
      %v6741 = vpack.c.b16 %v6718, %v6717
      %v6742 = vpack.c.b16 %v6720, %v6719
      %v6743 = vpack.c.b16 %v6722, %v6721
      %v6744 = vpack.c.b16 %v6724, %v6723
      %v6745 = vpack.c.b16 %v6726, %v6725
      %v6746 = vpack.c.b16 %v6728, %v6727
      %v6747 = vpack.c.b16 %v6730, %v6729
      %v6748 = vpack.c.b16 %v6732, %v6731
      %v6749 = vunpack.c.l.b16 %v4921
      %v6750 = vunpack.c.l.b16 %v4931
      %v6751 = vunpack.c.l.b16 %v4945
      %v6752 = vunpack.c.l.b16 %v4955
      %v6753 = vunpack.c.l.b16 %v4969
      %v6754 = vunpack.c.l.b16 %v4979
      %v6755 = vunpack.c.l.b16 %v4993
      %v6756 = vunpack.c.l.b16 %v5003
      %v6757 = vunpack.c.l.b16 %v5017
      %v6758 = vunpack.c.l.b16 %v5027
      %v6759 = vunpack.c.l.b16 %v5041
      %v6760 = vunpack.c.l.b16 %v5051
      %v6761 = vunpack.c.l.b16 %v5065
      %v6762 = vunpack.c.l.b16 %v5075
      %v6763 = vunpack.c.l.b16 %v5089
      %v6764 = vunpack.c.l.b16 %v5099
      %v6765 = vunpack.c.l.b16 %v5113
      %v6766 = vunpack.c.l.b16 %v5123
      %v6767 = vunpack.c.l.b16 %v5137
      %v6768 = vunpack.c.l.b16 %v5147
      %v6769 = vunpack.c.l.b16 %v5161
      %v6770 = vunpack.c.l.b16 %v5171
      %v6771 = vunpack.c.l.b16 %v5185
      %v6772 = vunpack.c.l.b16 %v5195
      %v6773 = vunpack.c.l.b16 %v5209
      %v6774 = vunpack.c.l.b16 %v5219
      %v6775 = vunpack.c.l.b16 %v5233
      %v6776 = vunpack.c.l.b16 %v5243
      %v6777 = vunpack.c.l.b16 %v5257
      %v6778 = vunpack.c.l.b16 %v5267
      %v6779 = vunpack.c.l.b16 %v5281
      %v6780 = vunpack.c.l.b16 %v5291
      %v6781 = vpack.c.b16 %v6750, %v6749
      %v6782 = vpack.c.b16 %v6752, %v6751
      %v6783 = vpack.c.b16 %v6754, %v6753
      %v6784 = vpack.c.b16 %v6756, %v6755
      %v6785 = vpack.c.b16 %v6758, %v6757
      %v6786 = vpack.c.b16 %v6760, %v6759
      %v6787 = vpack.c.b16 %v6762, %v6761
      %v6788 = vpack.c.b16 %v6764, %v6763
      %v6789 = vpack.c.b16 %v6766, %v6765
      %v6790 = vpack.c.b16 %v6768, %v6767
      %v6791 = vpack.c.b16 %v6770, %v6769
      %v6792 = vpack.c.b16 %v6772, %v6771
      %v6793 = vpack.c.b16 %v6774, %v6773
      %v6794 = vpack.c.b16 %v6776, %v6775
      %v6795 = vpack.c.b16 %v6778, %v6777
      %v6796 = vpack.c.b16 %v6780, %v6779
      %6797 = vrot.lane.b32.xlu0 %v6781, 8
      %v6798 = vpop.permute.xlu0 %6797
      %6799 = vrot.lane.b32.xlu0 %v6782, 8
      %v6800 = vpop.permute.xlu0 %6799
      %6801 = vrot.lane.b32.xlu0 %v6783, 8
      %v6802 = vpop.permute.xlu0 %6801
      %6803 = vrot.lane.b32.xlu0 %v6784, 8
      %v6804 = vpop.permute.xlu0 %6803
      %6805 = vrot.lane.b32.xlu0 %v6785, 8
      %v6806 = vpop.permute.xlu0 %6805
      %6807 = vrot.lane.b32.xlu0 %v6786, 8
      %v6808 = vpop.permute.xlu0 %6807
      %6809 = vrot.lane.b32.xlu0 %v6787, 8
      %v6810 = vpop.permute.xlu0 %6809
      %6811 = vrot.lane.b32.xlu0 %v6788, 8
      %v6812 = vpop.permute.xlu0 %6811
      %6813 = vrot.lane.b32.xlu0 %v6789, 8
      %v6814 = vpop.permute.xlu0 %6813
      %6815 = vrot.lane.b32.xlu0 %v6790, 8
      %v6816 = vpop.permute.xlu0 %6815
      %6817 = vrot.lane.b32.xlu0 %v6791, 8
      %v6818 = vpop.permute.xlu0 %6817
      %6819 = vrot.lane.b32.xlu0 %v6792, 8
      %v6820 = vpop.permute.xlu0 %6819
      %6821 = vrot.lane.b32.xlu0 %v6793, 8
      %v6822 = vpop.permute.xlu0 %6821
      %6823 = vrot.lane.b32.xlu0 %v6794, 8
      %v6824 = vpop.permute.xlu0 %6823
      %6825 = vrot.lane.b32.xlu0 %v6795, 8
      %v6826 = vpop.permute.xlu0 %6825
      %6827 = vrot.lane.b32.xlu0 %v6796, 8
      %v6828 = vpop.permute.xlu0 %6827
      %v6829 = vunpack.c.l.b16 %v5359
      %v6830 = vunpack.c.l.b16 %v5362
      %v6831 = vunpack.c.l.b16 %v5366
      %v6832 = vunpack.c.l.b16 %v5369
      %v6833 = vunpack.c.l.b16 %v5373
      %v6834 = vunpack.c.l.b16 %v5376
      %v6835 = vunpack.c.l.b16 %v5380
      %v6836 = vunpack.c.l.b16 %v5383
      %v6837 = vunpack.c.l.b16 %v5387
      %v6838 = vunpack.c.l.b16 %v5390
      %v6839 = vunpack.c.l.b16 %v5394
      %v6840 = vunpack.c.l.b16 %v5397
      %v6841 = vunpack.c.l.b16 %v5401
      %v6842 = vunpack.c.l.b16 %v5404
      %v6843 = vunpack.c.l.b16 %v5408
      %v6844 = vunpack.c.l.b16 %v5411
      %v6845 = vunpack.c.l.b16 %v5415
      %v6846 = vunpack.c.l.b16 %v5418
      %v6847 = vunpack.c.l.b16 %v5422
      %v6848 = vunpack.c.l.b16 %v5425
      %v6849 = vunpack.c.l.b16 %v5429
      %v6850 = vunpack.c.l.b16 %v5432
      %v6851 = vunpack.c.l.b16 %v5436
      %v6852 = vunpack.c.l.b16 %v5439
      %v6853 = vunpack.c.l.b16 %v5443
      %v6854 = vunpack.c.l.b16 %v5446
      %v6855 = vunpack.c.l.b16 %v5450
      %v6856 = vunpack.c.l.b16 %v5453
      %v6857 = vunpack.c.l.b16 %v5457
      %v6858 = vunpack.c.l.b16 %v5460
      %v6859 = vunpack.c.l.b16 %v5464
      %v6860 = vunpack.c.l.b16 %v5467
      %v6861 = vpack.c.b16 %v6830, %v6829
      %v6862 = vpack.c.b16 %v6832, %v6831
      %v6863 = vpack.c.b16 %v6834, %v6833
      %v6864 = vpack.c.b16 %v6836, %v6835
      %v6865 = vpack.c.b16 %v6838, %v6837
      %v6866 = vpack.c.b16 %v6840, %v6839
      %v6867 = vpack.c.b16 %v6842, %v6841
      %v6868 = vpack.c.b16 %v6844, %v6843
      %v6869 = vpack.c.b16 %v6846, %v6845
      %v6870 = vpack.c.b16 %v6848, %v6847
      %v6871 = vpack.c.b16 %v6850, %v6849
      %v6872 = vpack.c.b16 %v6852, %v6851
      %v6873 = vpack.c.b16 %v6854, %v6853
      %v6874 = vpack.c.b16 %v6856, %v6855
      %v6875 = vpack.c.b16 %v6858, %v6857
      %v6876 = vpack.c.b16 %v6860, %v6859
      %6877 = vrot.lane.b32.xlu0 %v6861, 16
      %v6878 = vpop.permute.xlu0 %6877
      %6879 = vrot.lane.b32.xlu0 %v6862, 16
      %v6880 = vpop.permute.xlu0 %6879
      %6881 = vrot.lane.b32.xlu0 %v6863, 16
      %v6882 = vpop.permute.xlu0 %6881
      %6883 = vrot.lane.b32.xlu0 %v6864, 16
      %v6884 = vpop.permute.xlu0 %6883
      %6885 = vrot.lane.b32.xlu0 %v6865, 16
      %v6886 = vpop.permute.xlu0 %6885
      %6887 = vrot.lane.b32.xlu0 %v6866, 16
      %v6888 = vpop.permute.xlu0 %6887
      %6889 = vrot.lane.b32.xlu0 %v6867, 16
      %v6890 = vpop.permute.xlu0 %6889
      %6891 = vrot.lane.b32.xlu0 %v6868, 16
      %v6892 = vpop.permute.xlu0 %6891
      %6893 = vrot.lane.b32.xlu0 %v6869, 16
      %v6894 = vpop.permute.xlu0 %6893
      %6895 = vrot.lane.b32.xlu0 %v6870, 16
      %v6896 = vpop.permute.xlu0 %6895
      %6897 = vrot.lane.b32.xlu0 %v6871, 16
      %v6898 = vpop.permute.xlu0 %6897
      %6899 = vrot.lane.b32.xlu0 %v6872, 16
      %v6900 = vpop.permute.xlu0 %6899
      %6901 = vrot.lane.b32.xlu0 %v6873, 16
      %v6902 = vpop.permute.xlu0 %6901
      %6903 = vrot.lane.b32.xlu0 %v6874, 16
      %v6904 = vpop.permute.xlu0 %6903
      %6905 = vrot.lane.b32.xlu0 %v6875, 16
      %v6906 = vpop.permute.xlu0 %6905
      %6907 = vrot.lane.b32.xlu0 %v6876, 16
      %v6908 = vpop.permute.xlu0 %6907
      %v6925 = vunpack.c.l.b16 %v5468
      %v6926 = vunpack.c.l.b16 %v5469
      %v6927 = vunpack.c.l.b16 %v5470
      %v6928 = vunpack.c.l.b16 %v5471
      %v6929 = vunpack.c.l.b16 %v5472
      %v6930 = vunpack.c.l.b16 %v5473
      %v6931 = vunpack.c.l.b16 %v5474
      %v6932 = vunpack.c.l.b16 %v5475
      %v6933 = vunpack.c.l.b16 %v5476
      %v6934 = vunpack.c.l.b16 %v5477
      %v6935 = vunpack.c.l.b16 %v5478
      %v6936 = vunpack.c.l.b16 %v5479
      %v6937 = vunpack.c.l.b16 %v5480
      %v6938 = vunpack.c.l.b16 %v5481
      %v6939 = vunpack.c.l.b16 %v5482
      %v6940 = vunpack.c.l.b16 %v5483
      %v6941 = vunpack.c.l.b16 %v5484
      %v6942 = vunpack.c.l.b16 %v5485
      %v6943 = vunpack.c.l.b16 %v5486
      %v6944 = vunpack.c.l.b16 %v5487
      %v6945 = vunpack.c.l.b16 %v5488
      %v6946 = vunpack.c.l.b16 %v5489
      %v6947 = vunpack.c.l.b16 %v5490
      %v6948 = vunpack.c.l.b16 %v5491
      %v6949 = vunpack.c.l.b16 %v5492
      %v6950 = vunpack.c.l.b16 %v5493
      %v6951 = vunpack.c.l.b16 %v5494
      %v6952 = vunpack.c.l.b16 %v5495
      %v6953 = vunpack.c.l.b16 %v5496
      %v6954 = vunpack.c.l.b16 %v5497
      %v6955 = vunpack.c.l.b16 %v5498
      %v6956 = vunpack.c.l.b16 %v5499
      %v6957 = vpack.c.b16 %v6926, %v6925
      %v6958 = vpack.c.b16 %v6928, %v6927
      %v6959 = vpack.c.b16 %v6930, %v6929
      %v6960 = vpack.c.b16 %v6932, %v6931
      %v6961 = vpack.c.b16 %v6934, %v6933
      %v6962 = vpack.c.b16 %v6936, %v6935
      %v6963 = vpack.c.b16 %v6938, %v6937
      %v6964 = vpack.c.b16 %v6940, %v6939
      %v6965 = vpack.c.b16 %v6942, %v6941
      %v6966 = vpack.c.b16 %v6944, %v6943
      %v6967 = vpack.c.b16 %v6946, %v6945
      %v6968 = vpack.c.b16 %v6948, %v6947
      %v6969 = vpack.c.b16 %v6950, %v6949
      %v6970 = vpack.c.b16 %v6952, %v6951
      %v6971 = vpack.c.b16 %v6954, %v6953
      %v6972 = vpack.c.b16 %v6956, %v6955
      %6973 = vrot.lane.b32.xlu0 %v6957, 24
      %v6974 = vpop.permute.xlu0 %6973
      %6975 = vrot.lane.b32.xlu0 %v6958, 24
      %v6976 = vpop.permute.xlu0 %6975
      %6977 = vrot.lane.b32.xlu0 %v6959, 24
      %v6978 = vpop.permute.xlu0 %6977
      %6979 = vrot.lane.b32.xlu0 %v6960, 24
      %v6980 = vpop.permute.xlu0 %6979
      %6981 = vrot.lane.b32.xlu0 %v6961, 24
      %v6982 = vpop.permute.xlu0 %6981
      %6983 = vrot.lane.b32.xlu0 %v6962, 24
      %v6984 = vpop.permute.xlu0 %6983
      %6985 = vrot.lane.b32.xlu0 %v6963, 24
      %v6986 = vpop.permute.xlu0 %6985
      %6987 = vrot.lane.b32.xlu0 %v6964, 24
      %v6988 = vpop.permute.xlu0 %6987
      %6989 = vrot.lane.b32.xlu0 %v6965, 24
      %v6990 = vpop.permute.xlu0 %6989
      %6991 = vrot.lane.b32.xlu0 %v6966, 24
      %v6992 = vpop.permute.xlu0 %6991
      %6993 = vrot.lane.b32.xlu0 %v6967, 24
      %v6994 = vpop.permute.xlu0 %6993
      %6995 = vrot.lane.b32.xlu0 %v6968, 24
      %v6996 = vpop.permute.xlu0 %6995
      %6997 = vrot.lane.b32.xlu0 %v6969, 24
      %v6998 = vpop.permute.xlu0 %6997
      %6999 = vrot.lane.b32.xlu0 %v6970, 24
      %v7000 = vpop.permute.xlu0 %6999
      %7001 = vrot.lane.b32.xlu0 %v6971, 24
      %v7002 = vpop.permute.xlu0 %7001
      %7003 = vrot.lane.b32.xlu0 %v6972, 24
      %v7004 = vpop.permute.xlu0 %7003
      %v7005 = vunpack.c.l.b16 %v5529
      %v7006 = vunpack.c.l.b16 %v5539
      %v7007 = vunpack.c.l.b16 %v5553
      %v7008 = vunpack.c.l.b16 %v5563
      %v7009 = vunpack.c.l.b16 %v5577
      %v7010 = vunpack.c.l.b16 %v5587
      %v7011 = vunpack.c.l.b16 %v5601
      %v7012 = vunpack.c.l.b16 %v5611
      %v7013 = vunpack.c.l.b16 %v5625
      %v7014 = vunpack.c.l.b16 %v5635
      %v7015 = vunpack.c.l.b16 %v5649
      %v7016 = vunpack.c.l.b16 %v5659
      %v7017 = vunpack.c.l.b16 %v5673
      %v7018 = vunpack.c.l.b16 %v5683
      %v7019 = vunpack.c.l.b16 %v5697
      %v7020 = vunpack.c.l.b16 %v5707
      %v7021 = vunpack.c.l.b16 %v5721
      %v7022 = vunpack.c.l.b16 %v5731
      %v7023 = vunpack.c.l.b16 %v5745
      %v7024 = vunpack.c.l.b16 %v5755
      %v7025 = vunpack.c.l.b16 %v5769
      %v7026 = vunpack.c.l.b16 %v5779
      %v7027 = vunpack.c.l.b16 %v5793
      %v7028 = vunpack.c.l.b16 %v5803
      %v7029 = vunpack.c.l.b16 %v5817
      %v7030 = vunpack.c.l.b16 %v5827
      %v7031 = vunpack.c.l.b16 %v5841
      %v7032 = vunpack.c.l.b16 %v5851
      %v7033 = vunpack.c.l.b16 %v5865
      %v7034 = vunpack.c.l.b16 %v5875
      %v7035 = vunpack.c.l.b16 %v5889
      %v7036 = vunpack.c.l.b16 %v5899
      %v7037 = vpack.c.b16 %v7006, %v7005
      %v7038 = vpack.c.b16 %v7008, %v7007
      %v7039 = vpack.c.b16 %v7010, %v7009
      %v7040 = vpack.c.b16 %v7012, %v7011
      %v7041 = vpack.c.b16 %v7014, %v7013
      %v7042 = vpack.c.b16 %v7016, %v7015
      %v7043 = vpack.c.b16 %v7018, %v7017
      %v7044 = vpack.c.b16 %v7020, %v7019
      %v7045 = vpack.c.b16 %v7022, %v7021
      %v7046 = vpack.c.b16 %v7024, %v7023
      %v7047 = vpack.c.b16 %v7026, %v7025
      %v7048 = vpack.c.b16 %v7028, %v7027
      %v7049 = vpack.c.b16 %v7030, %v7029
      %v7050 = vpack.c.b16 %v7032, %v7031
      %v7051 = vpack.c.b16 %v7034, %v7033
      %v7052 = vpack.c.b16 %v7036, %v7035
      %7053 = vrot.lane.b32.xlu0 %v7037, 32
      %v7054 = vpop.permute.xlu0 %7053
      %7055 = vrot.lane.b32.xlu0 %v7038, 32
      %v7056 = vpop.permute.xlu0 %7055
      %7057 = vrot.lane.b32.xlu0 %v7039, 32
      %v7058 = vpop.permute.xlu0 %7057
      %7059 = vrot.lane.b32.xlu0 %v7040, 32
      %v7060 = vpop.permute.xlu0 %7059
      %7061 = vrot.lane.b32.xlu0 %v7041, 32
      %v7062 = vpop.permute.xlu0 %7061
      %7063 = vrot.lane.b32.xlu0 %v7042, 32
      %v7064 = vpop.permute.xlu0 %7063
      %7065 = vrot.lane.b32.xlu0 %v7043, 32
      %v7066 = vpop.permute.xlu0 %7065
      %7067 = vrot.lane.b32.xlu0 %v7044, 32
      %v7068 = vpop.permute.xlu0 %7067
      %7069 = vrot.lane.b32.xlu0 %v7045, 32
      %v7070 = vpop.permute.xlu0 %7069
      %7071 = vrot.lane.b32.xlu0 %v7046, 32
      %v7072 = vpop.permute.xlu0 %7071
      %7073 = vrot.lane.b32.xlu0 %v7047, 32
      %v7074 = vpop.permute.xlu0 %7073
      %7075 = vrot.lane.b32.xlu0 %v7048, 32
      %v7076 = vpop.permute.xlu0 %7075
      %7077 = vrot.lane.b32.xlu0 %v7049, 32
      %v7078 = vpop.permute.xlu0 %7077
      %7079 = vrot.lane.b32.xlu0 %v7050, 32
      %v7080 = vpop.permute.xlu0 %7079
      %7081 = vrot.lane.b32.xlu0 %v7051, 32
      %v7082 = vpop.permute.xlu0 %7081
      %7083 = vrot.lane.b32.xlu0 %v7052, 32
      %v7084 = vpop.permute.xlu0 %7083
      %v7085 = vunpack.c.l.b16 %v5967
      %v7086 = vunpack.c.l.b16 %v5970
      %v7087 = vunpack.c.l.b16 %v5974
      %v7088 = vunpack.c.l.b16 %v5977
      %v7089 = vunpack.c.l.b16 %v5981
      %v7090 = vunpack.c.l.b16 %v5984
      %v7091 = vunpack.c.l.b16 %v5988
      %v7092 = vunpack.c.l.b16 %v5991
      %v7093 = vunpack.c.l.b16 %v5995
      %v7094 = vunpack.c.l.b16 %v5998
      %v7095 = vunpack.c.l.b16 %v6002
      %v7096 = vunpack.c.l.b16 %v6005
      %v7097 = vunpack.c.l.b16 %v6009
      %v7098 = vunpack.c.l.b16 %v6012
      %v7099 = vunpack.c.l.b16 %v6016
      %v7100 = vunpack.c.l.b16 %v6019
      %v7101 = vunpack.c.l.b16 %v6023
      %v7102 = vunpack.c.l.b16 %v6026
      %v7103 = vunpack.c.l.b16 %v6030
      %v7104 = vunpack.c.l.b16 %v6033
      %v7105 = vunpack.c.l.b16 %v6037
      %v7106 = vunpack.c.l.b16 %v6040
      %v7107 = vunpack.c.l.b16 %v6044
      %v7108 = vunpack.c.l.b16 %v6047
      %v7109 = vunpack.c.l.b16 %v6051
      %v7110 = vunpack.c.l.b16 %v6054
      %v7111 = vunpack.c.l.b16 %v6058
      %v7112 = vunpack.c.l.b16 %v6061
      %v7113 = vunpack.c.l.b16 %v6065
      %v7114 = vunpack.c.l.b16 %v6068
      %v7115 = vunpack.c.l.b16 %v6072
      %v7116 = vunpack.c.l.b16 %v6075
      %v7117 = vpack.c.b16 %v7086, %v7085
      %v7118 = vpack.c.b16 %v7088, %v7087
      %v7119 = vpack.c.b16 %v7090, %v7089
      %v7120 = vpack.c.b16 %v7092, %v7091
      %v7121 = vpack.c.b16 %v7094, %v7093
      %v7122 = vpack.c.b16 %v7096, %v7095
      %v7123 = vpack.c.b16 %v7098, %v7097
      %v7124 = vpack.c.b16 %v7100, %v7099
      %v7125 = vpack.c.b16 %v7102, %v7101
      %v7126 = vpack.c.b16 %v7104, %v7103
      %v7127 = vpack.c.b16 %v7106, %v7105
      %v7128 = vpack.c.b16 %v7108, %v7107
      %v7129 = vpack.c.b16 %v7110, %v7109
      %v7130 = vpack.c.b16 %v7112, %v7111
      %v7131 = vpack.c.b16 %v7114, %v7113
      %v7132 = vpack.c.b16 %v7116, %v7115
      %7133 = vrot.lane.b32.xlu0 %v7117, 40
      %v7134 = vpop.permute.xlu0 %7133
      %7135 = vrot.lane.b32.xlu0 %v7118, 40
      %v7136 = vpop.permute.xlu0 %7135
      %7137 = vrot.lane.b32.xlu0 %v7119, 40
      %v7138 = vpop.permute.xlu0 %7137
      %7139 = vrot.lane.b32.xlu0 %v7120, 40
      %v7140 = vpop.permute.xlu0 %7139
      %7141 = vrot.lane.b32.xlu0 %v7121, 40
      %v7142 = vpop.permute.xlu0 %7141
      %7143 = vrot.lane.b32.xlu0 %v7122, 40
      %v7144 = vpop.permute.xlu0 %7143
      %7145 = vrot.lane.b32.xlu0 %v7123, 40
      %v7146 = vpop.permute.xlu0 %7145
      %7147 = vrot.lane.b32.xlu0 %v7124, 40
      %v7148 = vpop.permute.xlu0 %7147
      %7149 = vrot.lane.b32.xlu0 %v7125, 40
      %v7150 = vpop.permute.xlu0 %7149
      %7151 = vrot.lane.b32.xlu0 %v7126, 40
      %v7152 = vpop.permute.xlu0 %7151
      %7153 = vrot.lane.b32.xlu0 %v7127, 40
      %v7154 = vpop.permute.xlu0 %7153
      %7155 = vrot.lane.b32.xlu0 %v7128, 40
      %v7156 = vpop.permute.xlu0 %7155
      %7157 = vrot.lane.b32.xlu0 %v7129, 40
      %v7158 = vpop.permute.xlu0 %7157
      %7159 = vrot.lane.b32.xlu0 %v7130, 40
      %v7160 = vpop.permute.xlu0 %7159
      %7161 = vrot.lane.b32.xlu0 %v7131, 40
      %v7162 = vpop.permute.xlu0 %7161
      %7163 = vrot.lane.b32.xlu0 %v7132, 40
      %v7164 = vpop.permute.xlu0 %7163
      %v7181 = vunpack.c.l.b16 %v6077
      %v7182 = vunpack.c.l.b16 %v6078
      %v7183 = vunpack.c.l.b16 %v6079
      %v7184 = vunpack.c.l.b16 %v6080
      %v7185 = vunpack.c.l.b16 %v6081
      %v7186 = vunpack.c.l.b16 %v6082
      %v7187 = vunpack.c.l.b16 %v6083
      %v7188 = vunpack.c.l.b16 %v6084
      %v7189 = vunpack.c.l.b16 %v6085
      %v7190 = vunpack.c.l.b16 %v6086
      %v7191 = vunpack.c.l.b16 %v6087
      %v7192 = vunpack.c.l.b16 %v6088
      %v7193 = vunpack.c.l.b16 %v6089
      %v7194 = vunpack.c.l.b16 %v6090
      %v7195 = vunpack.c.l.b16 %v6091
      %v7196 = vunpack.c.l.b16 %v6092
      %v7197 = vunpack.c.l.b16 %v6093
      %v7198 = vunpack.c.l.b16 %v6094
      %v7199 = vunpack.c.l.b16 %v6095
      %v7200 = vunpack.c.l.b16 %v6096
      %v7201 = vunpack.c.l.b16 %v6097
      %v7202 = vunpack.c.l.b16 %v6098
      %v7203 = vunpack.c.l.b16 %v6099
      %v7204 = vunpack.c.l.b16 %v6100
      %v7205 = vunpack.c.l.b16 %v6101
      %v7206 = vunpack.c.l.b16 %v6102
      %v7207 = vunpack.c.l.b16 %v6103
      %v7208 = vunpack.c.l.b16 %v6104
      %v7209 = vunpack.c.l.b16 %v6105
      %v7210 = vunpack.c.l.b16 %v6106
      %v7211 = vunpack.c.l.b16 %v6107
      %v7212 = vunpack.c.l.b16 %v6108
      %v7213 = vpack.c.b16 %v7182, %v7181
      %v7214 = vpack.c.b16 %v7184, %v7183
      %v7215 = vpack.c.b16 %v7186, %v7185
      %v7216 = vpack.c.b16 %v7188, %v7187
      %v7217 = vpack.c.b16 %v7190, %v7189
      %v7218 = vpack.c.b16 %v7192, %v7191
      %v7219 = vpack.c.b16 %v7194, %v7193
      %v7220 = vpack.c.b16 %v7196, %v7195
      %v7221 = vpack.c.b16 %v7198, %v7197
      %v7222 = vpack.c.b16 %v7200, %v7199
      %v7223 = vpack.c.b16 %v7202, %v7201
      %v7224 = vpack.c.b16 %v7204, %v7203
      %v7225 = vpack.c.b16 %v7206, %v7205
      %v7226 = vpack.c.b16 %v7208, %v7207
      %v7227 = vpack.c.b16 %v7210, %v7209
      %v7228 = vpack.c.b16 %v7212, %v7211
      %7229 = vrot.lane.b32.xlu0 %v7213, 48
      %v7230 = vpop.permute.xlu0 %7229
      %7231 = vrot.lane.b32.xlu0 %v7214, 48
      %v7232 = vpop.permute.xlu0 %7231
      %7233 = vrot.lane.b32.xlu0 %v7215, 48
      %v7234 = vpop.permute.xlu0 %7233
      %7235 = vrot.lane.b32.xlu0 %v7216, 48
      %v7236 = vpop.permute.xlu0 %7235
      %7237 = vrot.lane.b32.xlu0 %v7217, 48
      %v7238 = vpop.permute.xlu0 %7237
      %7239 = vrot.lane.b32.xlu0 %v7218, 48
      %v7240 = vpop.permute.xlu0 %7239
      %7241 = vrot.lane.b32.xlu0 %v7219, 48
      %v7242 = vpop.permute.xlu0 %7241
      %7243 = vrot.lane.b32.xlu0 %v7220, 48
      %v7244 = vpop.permute.xlu0 %7243
      %7245 = vrot.lane.b32.xlu0 %v7221, 48
      %v7246 = vpop.permute.xlu0 %7245
      %7247 = vrot.lane.b32.xlu0 %v7222, 48
      %v7248 = vpop.permute.xlu0 %7247
      %7249 = vrot.lane.b32.xlu0 %v7223, 48
      %v7250 = vpop.permute.xlu0 %7249
      %7251 = vrot.lane.b32.xlu0 %v7224, 48
      %v7252 = vpop.permute.xlu0 %7251
      %7253 = vrot.lane.b32.xlu0 %v7225, 48
      %v7254 = vpop.permute.xlu0 %7253
      %7255 = vrot.lane.b32.xlu0 %v7226, 48
      %v7256 = vpop.permute.xlu0 %7255
      %7257 = vrot.lane.b32.xlu0 %v7227, 48
      %v7258 = vpop.permute.xlu0 %7257
      %7259 = vrot.lane.b32.xlu0 %v7228, 48
      %v7260 = vpop.permute.xlu0 %7259
      %v7261 = vunpack.c.l.b16 %v6138
      %v7262 = vunpack.c.l.b16 %v6148
      %v7263 = vunpack.c.l.b16 %v6162
      %v7264 = vunpack.c.l.b16 %v6172
      %v7265 = vunpack.c.l.b16 %v6186
      %v7266 = vunpack.c.l.b16 %v6196
      %v7267 = vunpack.c.l.b16 %v6210
      %v7268 = vunpack.c.l.b16 %v6220
      %v7269 = vunpack.c.l.b16 %v6234
      %v7270 = vunpack.c.l.b16 %v6244
      %v7271 = vunpack.c.l.b16 %v6258
      %v7272 = vunpack.c.l.b16 %v6268
      %v7273 = vunpack.c.l.b16 %v6282
      %v7274 = vunpack.c.l.b16 %v6292
      %v7275 = vunpack.c.l.b16 %v6306
      %v7276 = vunpack.c.l.b16 %v6316
      %v7277 = vunpack.c.l.b16 %v6330
      %v7278 = vunpack.c.l.b16 %v6340
      %v7279 = vunpack.c.l.b16 %v6354
      %v7280 = vunpack.c.l.b16 %v6364
      %v7281 = vunpack.c.l.b16 %v6378
      %v7282 = vunpack.c.l.b16 %v6388
      %v7283 = vunpack.c.l.b16 %v6402
      %v7284 = vunpack.c.l.b16 %v6412
      %v7285 = vunpack.c.l.b16 %v6426
      %v7286 = vunpack.c.l.b16 %v6436
      %v7287 = vunpack.c.l.b16 %v6450
      %v7288 = vunpack.c.l.b16 %v6460
      %v7289 = vunpack.c.l.b16 %v6474
      %v7290 = vunpack.c.l.b16 %v6484
      %v7291 = vunpack.c.l.b16 %v6498
      %v7292 = vunpack.c.l.b16 %v6508
      %v7293 = vpack.c.b16 %v7262, %v7261
      %v7294 = vpack.c.b16 %v7264, %v7263
      %v7295 = vpack.c.b16 %v7266, %v7265
      %v7296 = vpack.c.b16 %v7268, %v7267
      %v7297 = vpack.c.b16 %v7270, %v7269
      %v7298 = vpack.c.b16 %v7272, %v7271
      %v7299 = vpack.c.b16 %v7274, %v7273
      %v7300 = vpack.c.b16 %v7276, %v7275
      %v7301 = vpack.c.b16 %v7278, %v7277
      %v7302 = vpack.c.b16 %v7280, %v7279
      %v7303 = vpack.c.b16 %v7282, %v7281
      %v7304 = vpack.c.b16 %v7284, %v7283
      %v7305 = vpack.c.b16 %v7286, %v7285
      %v7306 = vpack.c.b16 %v7288, %v7287
      %v7307 = vpack.c.b16 %v7290, %v7289
      %v7308 = vpack.c.b16 %v7292, %v7291
      %7309 = vrot.lane.b32.xlu0 %v7293, 56
      %v7310 = vpop.permute.xlu0 %7309
      %7311 = vrot.lane.b32.xlu0 %v7294, 56
      %v7312 = vpop.permute.xlu0 %7311
      %7313 = vrot.lane.b32.xlu0 %v7295, 56
      %v7314 = vpop.permute.xlu0 %7313
      %7315 = vrot.lane.b32.xlu0 %v7296, 56
      %v7316 = vpop.permute.xlu0 %7315
      %7317 = vrot.lane.b32.xlu0 %v7297, 56
      %v7318 = vpop.permute.xlu0 %7317
      %7319 = vrot.lane.b32.xlu0 %v7298, 56
      %v7320 = vpop.permute.xlu0 %7319
      %7321 = vrot.lane.b32.xlu0 %v7299, 56
      %v7322 = vpop.permute.xlu0 %7321
      %7323 = vrot.lane.b32.xlu0 %v7300, 56
      %v7324 = vpop.permute.xlu0 %7323
      %7325 = vrot.lane.b32.xlu0 %v7301, 56
      %v7326 = vpop.permute.xlu0 %7325
      %7327 = vrot.lane.b32.xlu0 %v7302, 56
      %v7328 = vpop.permute.xlu0 %7327
      %7329 = vrot.lane.b32.xlu0 %v7303, 56
      %v7330 = vpop.permute.xlu0 %7329
      %7331 = vrot.lane.b32.xlu0 %v7304, 56
      %v7332 = vpop.permute.xlu0 %7331
      %7333 = vrot.lane.b32.xlu0 %v7305, 56
      %v7334 = vpop.permute.xlu0 %7333
      %7335 = vrot.lane.b32.xlu0 %v7306, 56
      %v7336 = vpop.permute.xlu0 %7335
      %7337 = vrot.lane.b32.xlu0 %v7307, 56
      %v7338 = vpop.permute.xlu0 %7337
      %7339 = vrot.lane.b32.xlu0 %v7308, 56
      %v7340 = vpop.permute.xlu0 %7339
      %v7341 = vunpack.c.l.b16 %v6576
      %v7342 = vunpack.c.l.b16 %v6579
      %v7343 = vunpack.c.l.b16 %v6583
      %v7344 = vunpack.c.l.b16 %v6586
      %v7345 = vunpack.c.l.b16 %v6590
      %v7346 = vunpack.c.l.b16 %v6593
      %v7347 = vunpack.c.l.b16 %v6597
      %v7348 = vunpack.c.l.b16 %v6600
      %v7349 = vunpack.c.l.b16 %v6604
      %v7350 = vunpack.c.l.b16 %v6607
      %v7351 = vunpack.c.l.b16 %v6611
      %v7352 = vunpack.c.l.b16 %v6614
      %v7353 = vunpack.c.l.b16 %v6618
      %v7354 = vunpack.c.l.b16 %v6621
      %v7355 = vunpack.c.l.b16 %v6625
      %v7356 = vunpack.c.l.b16 %v6628
      %v7357 = vunpack.c.l.b16 %v6632
      %v7358 = vunpack.c.l.b16 %v6635
      %v7359 = vunpack.c.l.b16 %v6639
      %v7360 = vunpack.c.l.b16 %v6642
      %v7361 = vunpack.c.l.b16 %v6646
      %v7362 = vunpack.c.l.b16 %v6649
      %v7363 = vunpack.c.l.b16 %v6653
      %v7364 = vunpack.c.l.b16 %v6656
      %v7365 = vunpack.c.l.b16 %v6660
      %v7366 = vunpack.c.l.b16 %v6663
      %v7367 = vunpack.c.l.b16 %v6667
      %v7368 = vunpack.c.l.b16 %v6670
      %v7369 = vunpack.c.l.b16 %v6674
      %v7370 = vunpack.c.l.b16 %v6677
      %v7371 = vunpack.c.l.b16 %v6681
      %v7372 = vunpack.c.l.b16 %v6684
      %v7373 = vpack.c.b16 %v7342, %v7341
      %v7374 = vpack.c.b16 %v7344, %v7343
      %v7375 = vpack.c.b16 %v7346, %v7345
      %v7376 = vpack.c.b16 %v7348, %v7347
      %v7377 = vpack.c.b16 %v7350, %v7349
      %v7378 = vpack.c.b16 %v7352, %v7351
      %v7379 = vpack.c.b16 %v7354, %v7353
      %v7380 = vpack.c.b16 %v7356, %v7355
      %v7381 = vpack.c.b16 %v7358, %v7357
      %v7382 = vpack.c.b16 %v7360, %v7359
      %v7383 = vpack.c.b16 %v7362, %v7361
      %v7384 = vpack.c.b16 %v7364, %v7363
      %v7385 = vpack.c.b16 %v7366, %v7365
      %v7386 = vpack.c.b16 %v7368, %v7367
      %v7387 = vpack.c.b16 %v7370, %v7369
      %v7388 = vpack.c.b16 %v7372, %v7371
      %7389 = vrot.lane.b32.xlu0 %v7373, 64
      %v7390 = vpop.permute.xlu0 %7389
      %7391 = vrot.lane.b32.xlu0 %v7374, 64
      %v7392 = vpop.permute.xlu0 %7391
      %7393 = vrot.lane.b32.xlu0 %v7375, 64
      %v7394 = vpop.permute.xlu0 %7393
      %7395 = vrot.lane.b32.xlu0 %v7376, 64
      %v7396 = vpop.permute.xlu0 %7395
      %7397 = vrot.lane.b32.xlu0 %v7377, 64
      %v7398 = vpop.permute.xlu0 %7397
      %7399 = vrot.lane.b32.xlu0 %v7378, 64
      %v7400 = vpop.permute.xlu0 %7399
      %7401 = vrot.lane.b32.xlu0 %v7379, 64
      %v7402 = vpop.permute.xlu0 %7401
      %7403 = vrot.lane.b32.xlu0 %v7380, 64
      %v7404 = vpop.permute.xlu0 %7403
      %7405 = vrot.lane.b32.xlu0 %v7381, 64
      %v7406 = vpop.permute.xlu0 %7405
      %7407 = vrot.lane.b32.xlu0 %v7382, 64
      %v7408 = vpop.permute.xlu0 %7407
      %7409 = vrot.lane.b32.xlu0 %v7383, 64
      %v7410 = vpop.permute.xlu0 %7409
      %7411 = vrot.lane.b32.xlu0 %v7384, 64
      %v7412 = vpop.permute.xlu0 %7411
      %7413 = vrot.lane.b32.xlu0 %v7385, 64
      %v7414 = vpop.permute.xlu0 %7413
      %7415 = vrot.lane.b32.xlu0 %v7386, 64
      %v7416 = vpop.permute.xlu0 %7415
      %7417 = vrot.lane.b32.xlu0 %v7387, 64
      %v7418 = vpop.permute.xlu0 %7417
      %7419 = vrot.lane.b32.xlu0 %v7388, 64
      %v7420 = vpop.permute.xlu0 %7419
      %v7423 = vsel %vm2468, %v6733, %v6798
      %v7426 = vsel %vm2468, %v6734, %v6800
      %v7429 = vsel %vm2468, %v6735, %v6802
      %v7432 = vsel %vm2468, %v6736, %v6804
      %v7435 = vsel %vm2468, %v6737, %v6806
      %v7438 = vsel %vm2468, %v6738, %v6808
      %v7441 = vsel %vm2468, %v6739, %v6810
      %v7444 = vsel %vm2468, %v6740, %v6812
      %v7447 = vsel %vm2468, %v6741, %v6814
      %v7450 = vsel %vm2468, %v6742, %v6816
      %v7453 = vsel %vm2468, %v6743, %v6818
      %v7456 = vsel %vm2468, %v6744, %v6820
      %v7459 = vsel %vm2468, %v6745, %v6822
      %v7462 = vsel %vm2468, %v6746, %v6824
      %v7465 = vsel %vm2468, %v6747, %v6826
      %v7468 = vsel %vm2468, %v6748, %v6828
      %v7470 = vsel %vm2534, %v7423, %v6878
      %v7472 = vsel %vm2534, %v7426, %v6880
      %v7474 = vsel %vm2534, %v7429, %v6882
      %v7476 = vsel %vm2534, %v7432, %v6884
      %v7478 = vsel %vm2534, %v7435, %v6886
      %v7480 = vsel %vm2534, %v7438, %v6888
      %v7482 = vsel %vm2534, %v7441, %v6890
      %v7484 = vsel %vm2534, %v7444, %v6892
      %v7486 = vsel %vm2534, %v7447, %v6894
      %v7488 = vsel %vm2534, %v7450, %v6896
      %v7490 = vsel %vm2534, %v7453, %v6898
      %v7492 = vsel %vm2534, %v7456, %v6900
      %v7494 = vsel %vm2534, %v7459, %v6902
      %v7496 = vsel %vm2534, %v7462, %v6904
      %v7498 = vsel %vm2534, %v7465, %v6906
      %v7500 = vsel %vm2534, %v7468, %v6908
      %v7502 = vsel %vm2600, %v7470, %v6974
      %v7504 = vsel %vm2600, %v7472, %v6976
      %v7506 = vsel %vm2600, %v7474, %v6978
      %v7508 = vsel %vm2600, %v7476, %v6980
      %v7510 = vsel %vm2600, %v7478, %v6982
      %v7512 = vsel %vm2600, %v7480, %v6984
      %v7514 = vsel %vm2600, %v7482, %v6986
      %v7516 = vsel %vm2600, %v7484, %v6988
      %v7518 = vsel %vm2600, %v7486, %v6990
      %v7520 = vsel %vm2600, %v7488, %v6992
      %v7522 = vsel %vm2600, %v7490, %v6994
      %v7524 = vsel %vm2600, %v7492, %v6996
      %v7526 = vsel %vm2600, %v7494, %v6998
      %v7528 = vsel %vm2600, %v7496, %v7000
      %v7530 = vsel %vm2600, %v7498, %v7002
      %v7532 = vsel %vm2600, %v7500, %v7004
      %v7534 = vsel %vm2666, %v7502, %v7054
      %v7536 = vsel %vm2666, %v7504, %v7056
      %v7538 = vsel %vm2666, %v7506, %v7058
      %v7540 = vsel %vm2666, %v7508, %v7060
      %v7542 = vsel %vm2666, %v7510, %v7062
      %v7544 = vsel %vm2666, %v7512, %v7064
      %v7546 = vsel %vm2666, %v7514, %v7066
      %v7548 = vsel %vm2666, %v7516, %v7068
      %v7550 = vsel %vm2666, %v7518, %v7070
      %v7552 = vsel %vm2666, %v7520, %v7072
      %v7554 = vsel %vm2666, %v7522, %v7074
      %v7556 = vsel %vm2666, %v7524, %v7076
      %v7558 = vsel %vm2666, %v7526, %v7078
      %v7560 = vsel %vm2666, %v7528, %v7080
      %v7562 = vsel %vm2666, %v7530, %v7082
      %v7564 = vsel %vm2666, %v7532, %v7084
      %v7566 = vsel %vm3669, %v7534, %v7134
      %v7568 = vsel %vm3669, %v7536, %v7136
      %v7570 = vsel %vm3669, %v7538, %v7138
      %v7572 = vsel %vm3669, %v7540, %v7140
      %v7574 = vsel %vm3669, %v7542, %v7142
      %v7576 = vsel %vm3669, %v7544, %v7144
      %v7578 = vsel %vm3669, %v7546, %v7146
      %v7580 = vsel %vm3669, %v7548, %v7148
      %v7582 = vsel %vm3669, %v7550, %v7150
      %v7584 = vsel %vm3669, %v7552, %v7152
      %v7586 = vsel %vm3669, %v7554, %v7154
      %v7588 = vsel %vm3669, %v7556, %v7156
      %v7590 = vsel %vm3669, %v7558, %v7158
      %v7592 = vsel %vm3669, %v7560, %v7160
      %v7594 = vsel %vm3669, %v7562, %v7162
      %v7596 = vsel %vm3669, %v7564, %v7164
      %v7598 = vsel %vm3678, %v7566, %v7230
      %v7600 = vsel %vm3678, %v7568, %v7232
      %v7602 = vsel %vm3678, %v7570, %v7234
      %v7604 = vsel %vm3678, %v7572, %v7236
      %v7606 = vsel %vm3678, %v7574, %v7238
      %v7608 = vsel %vm3678, %v7576, %v7240
      %v7610 = vsel %vm3678, %v7578, %v7242
      %v7612 = vsel %vm3678, %v7580, %v7244
      %v7614 = vsel %vm3678, %v7582, %v7246
      %v7616 = vsel %vm3678, %v7584, %v7248
      %v7618 = vsel %vm3678, %v7586, %v7250
      %v7620 = vsel %vm3678, %v7588, %v7252
      %v7622 = vsel %vm3678, %v7590, %v7254
      %v7624 = vsel %vm3678, %v7592, %v7256
      %v7626 = vsel %vm3678, %v7594, %v7258
      %v7628 = vsel %vm3678, %v7596, %v7260
      %v7630 = vsel %vm3687, %v7598, %v7310
      %v7632 = vsel %vm3687, %v7600, %v7312
      %v7634 = vsel %vm3687, %v7602, %v7314
      %v7636 = vsel %vm3687, %v7604, %v7316
      %v7638 = vsel %vm3687, %v7606, %v7318
      %v7640 = vsel %vm3687, %v7608, %v7320
      %v7642 = vsel %vm3687, %v7610, %v7322
      %v7644 = vsel %vm3687, %v7612, %v7324
      %v7646 = vsel %vm3687, %v7614, %v7326
      %v7648 = vsel %vm3687, %v7616, %v7328
      %v7650 = vsel %vm3687, %v7618, %v7330
      %v7652 = vsel %vm3687, %v7620, %v7332
      %v7654 = vsel %vm3687, %v7622, %v7334
      %v7656 = vsel %vm3687, %v7624, %v7336
      %v7658 = vsel %vm3687, %v7626, %v7338
      %v7660 = vsel %vm3687, %v7628, %v7340
      %v7662 = vsel %vm3696, %v7630, %v7390
      %v7664 = vsel %vm3696, %v7632, %v7392
      %v7666 = vsel %vm3696, %v7634, %v7394
      %v7668 = vsel %vm3696, %v7636, %v7396
      %v7670 = vsel %vm3696, %v7638, %v7398
      %v7672 = vsel %vm3696, %v7640, %v7400
      %v7674 = vsel %vm3696, %v7642, %v7402
      %v7676 = vsel %vm3696, %v7644, %v7404
      %v7678 = vsel %vm3696, %v7646, %v7406
      %v7680 = vsel %vm3696, %v7648, %v7408
      %v7682 = vsel %vm3696, %v7650, %v7410
      %v7684 = vsel %vm3696, %v7652, %v7412
      %v7686 = vsel %vm3696, %v7654, %v7414
      %v7688 = vsel %vm3696, %v7656, %v7416
      %v7690 = vsel %vm3696, %v7658, %v7418
      %v7692 = vsel %vm3696, %v7660, %v7420
      %v7693 = vld [vmem:[%s4] sm:$0xf]
      %v7694 = vld [vmem:[%s4 + $0x4] sm:$0xf]
      %v7695 = vld [vmem:[%s4 + $0x8] sm:$0xf]
      %v7696 = vld [vmem:[%s4 + $0xc] sm:$0xf]
      %v7697 = vld [vmem:[%s4 + $0x10] sm:$0xf]
      %v7698 = vld [vmem:[%s4 + $0x14] sm:$0xf]
      %v7699 = vld [vmem:[%s4 + $0x18] sm:$0xf]
      %v7700 = vld [vmem:[%s4 + $0x1c] sm:$0xf]
      %v7701 = vld [vmem:[%s4 + $0x20] sm:$0xf]
      %v7711 = vunpack.c.l.b16 %v7693
      %v7712 = vunpack.c.l.b16 %v7694
      %v7713 = vunpack.c.l.b16 %v7695
      %v7714 = vunpack.c.l.b16 %v7696
      %v7715 = vunpack.c.l.b16 %v7697
      %v7716 = vunpack.c.l.b16 %v7698
      %v7717 = vunpack.c.l.b16 %v7699
      %v7718 = vunpack.c.l.b16 %v7700
      %v7719 = vunpack.c.l.b16 %v7701
      %v7720 = vpack.c.b16 %v7712, %v7711
      %v7721 = vpack.c.b16 %v7714, %v7713
      %v7722 = vpack.c.b16 %v7716, %v7715
      %v7723 = vpack.c.b16 %v7718, %v7717
      %v7724 = vpack.c.b16 %v7719, %v7719
      %v7729 = vsel %vm3741, %v7662, 0
      %v7731 = vsel %vm3741, %v7664, 0
      %v7733 = vsel %vm3741, %v7666, 0
      %v7735 = vsel %vm3741, %v7668, 0
      %v7737 = vsel %vm3741, %v7670, 0
      %v7739 = vsel %vm3741, %v7672, 0
      %v7741 = vsel %vm3741, %v7674, 0
      %v7743 = vsel %vm3741, %v7676, 0
      %v7745 = vsel %vm3741, %v7678, 0
      %v7747 = vsel %vm3741, %v7680, 0
      %v7749 = vsel %vm3741, %v7682, 0
      %v7751 = vsel %vm3741, %v7684, 0
      %v7753 = vsel %vm3741, %v7686, 0
      %v7755 = vsel %vm3741, %v7688, 0
      %v7757 = vsel %vm3741, %v7690, 0
      %v7759 = vsel %vm3741, %v7692, 0
      %v7762 = vsel %vm3750, %v7724, 0
      %7764 = vmatprep.subr.bf16.mxu0 0
      %7765 = vmatpush1.bf16.msra.mxu0 %v7720
      %7766 = vmatprep.subr.bf16.mxu0 0
      %7767 = vmatpush1.bf16.msra.mxu0 %v7721
      %7768 = vmatprep.subr.bf16.mxu0 0
      %7769 = vmatpush1.bf16.msra.mxu0 %v7722
      %7770 = vmatprep.subr.bf16.mxu0 0
      %7771 = vmatpush1.bf16.msra.mxu0 %v7723
      %7772 = vmatprep.subr.bf16.mxu0 0
      %7773 = vmatpush1.bf16.msra.mxu0 %v7762
      %7774 = vmatprep.subr.bf16.mxu0 0
      %7775 = vmatpush1.bf16.msra.mxu0 0
      %7776 = vmatprep.subr.bf16.mxu0 0
      %7777 = vmatpush1.bf16.msra.mxu0 0
      %7778 = vmatprep.subr.bf16.mxu0 0
      %7779 = vmatpush1.bf16.msra.mxu0 0
      %7780 = vmatprep.subr.bf16.mxu0 0
      %7781 = vmatpush1.bf16.msra.mxu0 0
      %7782 = vmatprep.subr.bf16.mxu0 0
      %7783 = vmatpush1.bf16.msra.mxu0 0
      %7784 = vmatprep.subr.bf16.mxu0 0
      %7785 = vmatpush1.bf16.msra.mxu0 0
      %7786 = vmatprep.subr.bf16.mxu0 0
      %7787 = vmatpush1.bf16.msra.mxu0 0
      %7788 = vmatprep.subr.bf16.mxu0 0
      %7789 = vmatpush1.bf16.msra.mxu0 0
      %7790 = vmatprep.subr.bf16.mxu0 0
      %7791 = vmatpush1.bf16.msra.mxu0 0
      %7792 = vmatprep.subr.bf16.mxu0 0
      %7793 = vmatpush1.bf16.msra.mxu0 0
      %7794 = vmatprep.subr.bf16.mxu0 0
      %7795 = vmatpush1.bf16.msra.mxu0 0
      %7796 = vmatprep.mubr.bf16.mxu0 0
      %7797 = vmatmul.mubr.bf16.gmra.mrb[0].mxu0 %v7729
      %v7798 = vpop.f32.mrb[0].mxu0
      %v7799 = vadd.f32 0.0, %v7798
      %v7800 = vpop.f32.mrb[0].mxu0
      %v7801 = vpop.f32.mrb[0].mxu0
      %v7802 = vadd.f32 0.0, %v7801
      %v7803 = vpop.f32.mrb[0].mxu0
      %7804 = vmatprep.mubr.bf16.mxu0 0
      %7805 = vmatmul.mubr.bf16.gmra.mrb[0].mxu0 %v7731
      %v7806 = vpop.f32.mrb[0].mxu0
      %v7807 = vadd.f32 0.0, %v7806
      %v7808 = vpop.f32.mrb[0].mxu0
      %v7809 = vpop.f32.mrb[0].mxu0
      %v7810 = vadd.f32 0.0, %v7809
      %v7811 = vpop.f32.mrb[0].mxu0
      %7812 = vmatprep.mubr.bf16.mxu0 0
      %7813 = vmatmul.mubr.bf16.gmra.mrb[0].mxu0 %v7733
      %v7814 = vpop.f32.mrb[0].mxu0
      %v7815 = vadd.f32 0.0, %v7814
      %v7816 = vpop.f32.mrb[0].mxu0
      %v7817 = vpop.f32.mrb[0].mxu0
      %v7818 = vadd.f32 0.0, %v7817
      %v7819 = vpop.f32.mrb[0].mxu0
      %7820 = vmatprep.mubr.bf16.mxu0 0
      %7821 = vmatmul.mubr.bf16.gmra.mrb[0].mxu0 %v7735
      %v7822 = vpop.f32.mrb[0].mxu0
      %v7823 = vadd.f32 0.0, %v7822
      %v7824 = vpop.f32.mrb[0].mxu0
      %v7825 = vpop.f32.mrb[0].mxu0
      %v7826 = vadd.f32 0.0, %v7825
      %v7827 = vpop.f32.mrb[0].mxu0
      %7828 = vmatprep.mubr.bf16.mxu0 0
      %7829 = vmatmul.mubr.bf16.gmra.mrb[0].mxu0 %v7737
      %v7830 = vpop.f32.mrb[0].mxu0
      %v7831 = vadd.f32 0.0, %v7830
      %v7832 = vpop.f32.mrb[0].mxu0
      %v7833 = vpop.f32.mrb[0].mxu0
      %v7834 = vadd.f32 0.0, %v7833
      %v7835 = vpop.f32.mrb[0].mxu0
      %7836 = vmatprep.mubr.bf16.mxu0 0
      %7837 = vmatmul.mubr.bf16.gmra.mrb[0].mxu0 %v7739
      %v7838 = vpop.f32.mrb[0].mxu0
      %v7839 = vadd.f32 0.0, %v7838
      %v7840 = vpop.f32.mrb[0].mxu0
      %v7841 = vpop.f32.mrb[0].mxu0
      %v7842 = vadd.f32 0.0, %v7841
      %v7843 = vpop.f32.mrb[0].mxu0
      %7844 = vmatprep.mubr.bf16.mxu0 0
      %7845 = vmatmul.mubr.bf16.gmra.mrb[0].mxu0 %v7741
      %v7846 = vpop.f32.mrb[0].mxu0
      %v7847 = vadd.f32 0.0, %v7846
      %v7848 = vpop.f32.mrb[0].mxu0
      %v7849 = vpop.f32.mrb[0].mxu0
      %v7850 = vadd.f32 0.0, %v7849
      %v7851 = vpop.f32.mrb[0].mxu0
      %7852 = vmatprep.mubr.bf16.mxu0 0
      %7853 = vmatmul.mubr.bf16.gmra.mrb[0].mxu0 %v7743
      %v7854 = vpop.f32.mrb[0].mxu0
      %v7855 = vadd.f32 0.0, %v7854
      %v7856 = vpop.f32.mrb[0].mxu0
      %v7857 = vpop.f32.mrb[0].mxu0
      %v7858 = vadd.f32 0.0, %v7857
      %v7859 = vpop.f32.mrb[0].mxu0
      %7860 = vmatprep.mubr.bf16.mxu0 0
      %7861 = vmatmul.mubr.bf16.gmra.mrb[0].mxu0 %v7745
      %v7862 = vpop.f32.mrb[0].mxu0
      %v7863 = vadd.f32 0.0, %v7862
      %v7864 = vpop.f32.mrb[0].mxu0
      %v7865 = vpop.f32.mrb[0].mxu0
      %v7866 = vadd.f32 0.0, %v7865
      %v7867 = vpop.f32.mrb[0].mxu0
      %7868 = vmatprep.mubr.bf16.mxu0 0
      %7869 = vmatmul.mubr.bf16.gmra.mrb[0].mxu0 %v7747
      %v7870 = vpop.f32.mrb[0].mxu0
      %v7871 = vadd.f32 0.0, %v7870
      %v7872 = vpop.f32.mrb[0].mxu0
      %v7873 = vpop.f32.mrb[0].mxu0
      %v7874 = vadd.f32 0.0, %v7873
      %v7875 = vpop.f32.mrb[0].mxu0
      %7876 = vmatprep.mubr.bf16.mxu0 0
      %7877 = vmatmul.mubr.bf16.gmra.mrb[0].mxu0 %v7749
      %v7878 = vpop.f32.mrb[0].mxu0
      %v7879 = vadd.f32 0.0, %v7878
      %v7880 = vpop.f32.mrb[0].mxu0
      %v7881 = vpop.f32.mrb[0].mxu0
      %v7882 = vadd.f32 0.0, %v7881
      %v7883 = vpop.f32.mrb[0].mxu0
      %7884 = vmatprep.mubr.bf16.mxu0 0
      %7885 = vmatmul.mubr.bf16.gmra.mrb[0].mxu0 %v7751
      %v7886 = vpop.f32.mrb[0].mxu0
      %v7887 = vadd.f32 0.0, %v7886
      %v7888 = vpop.f32.mrb[0].mxu0
      %v7889 = vpop.f32.mrb[0].mxu0
      %v7890 = vadd.f32 0.0, %v7889
      %v7891 = vpop.f32.mrb[0].mxu0
      %7892 = vmatprep.mubr.bf16.mxu0 0
      %7893 = vmatmul.mubr.bf16.gmra.mrb[0].mxu0 %v7753
      %v7894 = vpop.f32.mrb[0].mxu0
      %v7895 = vadd.f32 0.0, %v7894
      %v7896 = vpop.f32.mrb[0].mxu0
      %v7897 = vpop.f32.mrb[0].mxu0
      %v7898 = vadd.f32 0.0, %v7897
      %v7899 = vpop.f32.mrb[0].mxu0
      %7900 = vmatprep.mubr.bf16.mxu0 0
      %7901 = vmatmul.mubr.bf16.gmra.mrb[0].mxu0 %v7755
      %v7902 = vpop.f32.mrb[0].mxu0
      %v7903 = vadd.f32 0.0, %v7902
      %v7904 = vpop.f32.mrb[0].mxu0
      %v7905 = vpop.f32.mrb[0].mxu0
      %v7906 = vadd.f32 0.0, %v7905
      %v7907 = vpop.f32.mrb[0].mxu0
      %7908 = vmatprep.mubr.bf16.mxu0 0
      %7909 = vmatmul.mubr.bf16.gmra.mrb[0].mxu0 %v7757
      %v7910 = vpop.f32.mrb[0].mxu0
      %v7911 = vadd.f32 0.0, %v7910
      %v7912 = vpop.f32.mrb[0].mxu0
      %v7913 = vpop.f32.mrb[0].mxu0
      %v7914 = vadd.f32 0.0, %v7913
      %v7915 = vpop.f32.mrb[0].mxu0
      %7916 = vmatprep.mubr.bf16.mxu0 0
      %7917 = vmatmul.mubr.bf16.gmra.mrb[0].mxu0 %v7759
      %v7918 = vpop.f32.mrb[0].mxu0
      %v7919 = vadd.f32 0.0, %v7918
      %v7920 = vpop.f32.mrb[0].mxu0
      %v7921 = vpop.f32.mrb[0].mxu0
      %v7922 = vadd.f32 0.0, %v7921
      %v7923 = vpop.f32.mrb[0].mxu0
      %7924 = vdwg.mxu0
      %v7925 = vld [vmem:[%s9] sm:$0x1]
      %v7927 = vlaneseq
      %v7928 = vshrl.u32 %v7927, 7
      %v7929 = vsub.s32 0, %v7928
      %v7930 = vrot.slane %v7925, %v7929
      %v7932 = vmul.f32 %v7799, %v7930
      %v7933 = vmul.f32 %v7802, %v7930
      %v7934 = vmul.f32 %v7807, %v7930
      %v7935 = vmul.f32 %v7810, %v7930
      %v7936 = vmul.f32 %v7815, %v7930
      %v7937 = vmul.f32 %v7818, %v7930
      %v7938 = vmul.f32 %v7823, %v7930
      %v7939 = vmul.f32 %v7826, %v7930
      %v7940 = vmul.f32 %v7831, %v7930
      %v7941 = vmul.f32 %v7834, %v7930
      %v7942 = vmul.f32 %v7839, %v7930
      %v7943 = vmul.f32 %v7842, %v7930
      %v7944 = vmul.f32 %v7847, %v7930
      %v7945 = vmul.f32 %v7850, %v7930
      %v7946 = vmul.f32 %v7855, %v7930
      %v7947 = vmul.f32 %v7858, %v7930
      %v7948 = vmul.f32 %v7863, %v7930
      %v7949 = vmul.f32 %v7866, %v7930
      %v7950 = vmul.f32 %v7871, %v7930
      %v7951 = vmul.f32 %v7874, %v7930
      %v7952 = vmul.f32 %v7879, %v7930
      %v7953 = vmul.f32 %v7882, %v7930
      %v7954 = vmul.f32 %v7887, %v7930
      %v7955 = vmul.f32 %v7890, %v7930
      %v7956 = vmul.f32 %v7895, %v7930
      %v7957 = vmul.f32 %v7898, %v7930
      %v7958 = vmul.f32 %v7903, %v7930
      %v7959 = vmul.f32 %v7906, %v7930
      %v7960 = vmul.f32 %v7911, %v7930
      %v7961 = vmul.f32 %v7914, %v7930
      %v7962 = vmul.f32 %v7919, %v7930
      %v7963 = vmul.f32 %v7922, %v7930
      %v7964 = vld [vmem:[%s10] sm:$0x1]
      %v7966 = vlaneseq
      %v7967 = vshrl.u32 %v7966, 7
      %v7968 = vsub.s32 0, %v7967
      %v7969 = vrot.slane %v7964, %v7968
      %v7971 = vadd.f32 %v7932, %v7969
      %v7972 = vadd.f32 %v7933, %v7969
      %v7973 = vadd.f32 %v7934, %v7969
      %v7974 = vadd.f32 %v7935, %v7969
      %v7975 = vadd.f32 %v7936, %v7969
      %v7976 = vadd.f32 %v7937, %v7969
      %v7977 = vadd.f32 %v7938, %v7969
      %v7978 = vadd.f32 %v7939, %v7969
      %v7979 = vadd.f32 %v7940, %v7969
      %v7980 = vadd.f32 %v7941, %v7969
      %v7981 = vadd.f32 %v7942, %v7969
      %v7982 = vadd.f32 %v7943, %v7969
      %v7983 = vadd.f32 %v7944, %v7969
      %v7984 = vadd.f32 %v7945, %v7969
      %v7985 = vadd.f32 %v7946, %v7969
      %v7986 = vadd.f32 %v7947, %v7969
      %v7987 = vadd.f32 %v7948, %v7969
      %v7988 = vadd.f32 %v7949, %v7969
      %v7989 = vadd.f32 %v7950, %v7969
      %v7990 = vadd.f32 %v7951, %v7969
      %v7991 = vadd.f32 %v7952, %v7969
      %v7992 = vadd.f32 %v7953, %v7969
      %v7993 = vadd.f32 %v7954, %v7969
      %v7994 = vadd.f32 %v7955, %v7969
      %v7995 = vadd.f32 %v7956, %v7969
      %v7996 = vadd.f32 %v7957, %v7969
      %v7997 = vadd.f32 %v7958, %v7969
      %v7998 = vadd.f32 %v7959, %v7969
      %v7999 = vadd.f32 %v7960, %v7969
      %v8000 = vadd.f32 %v7961, %v7969
      %v8001 = vadd.f32 %v7962, %v7969
      %v8002 = vadd.f32 %v7963, %v7969
      %v8003 = vxor.u32 %v7971, 2147483648
      %v8004 = vxor.u32 %v7972, 2147483648
      %v8005 = vxor.u32 %v7973, 2147483648
      %v8006 = vxor.u32 %v7974, 2147483648
      %v8007 = vxor.u32 %v7975, 2147483648
      %v8008 = vxor.u32 %v7976, 2147483648
      %v8009 = vxor.u32 %v7977, 2147483648
      %v8010 = vxor.u32 %v7978, 2147483648
      %v8011 = vxor.u32 %v7979, 2147483648
      %v8012 = vxor.u32 %v7980, 2147483648
      %v8013 = vxor.u32 %v7981, 2147483648
      %v8014 = vxor.u32 %v7982, 2147483648
      %v8015 = vxor.u32 %v7983, 2147483648
      %v8016 = vxor.u32 %v7984, 2147483648
      %v8017 = vxor.u32 %v7985, 2147483648
      %v8018 = vxor.u32 %v7986, 2147483648
      %v8019 = vxor.u32 %v7987, 2147483648
      %v8020 = vxor.u32 %v7988, 2147483648
      %v8021 = vxor.u32 %v7989, 2147483648
      %v8022 = vxor.u32 %v7990, 2147483648
      %v8023 = vxor.u32 %v7991, 2147483648
      %v8024 = vxor.u32 %v7992, 2147483648
      %v8025 = vxor.u32 %v7993, 2147483648
      %v8026 = vxor.u32 %v7994, 2147483648
      %v8027 = vxor.u32 %v7995, 2147483648
      %v8028 = vxor.u32 %v7996, 2147483648
      %v8029 = vxor.u32 %v7997, 2147483648
      %v8030 = vxor.u32 %v7998, 2147483648
      %v8031 = vxor.u32 %v7999, 2147483648
      %v8032 = vxor.u32 %v8000, 2147483648
      %v8033 = vxor.u32 %v8001, 2147483648
      %v8034 = vxor.u32 %v8002, 2147483648
      %v8035 = vmul.f32 %v8003, 1.442695
      %v8036 = vpow.pop %v8035
      %v8037 = vmul.f32 %v8004, 1.442695
      %v8038 = vpow.pop %v8037
      %v8039 = vmul.f32 %v8005, 1.442695
      %v8040 = vpow.pop %v8039
      %v8041 = vmul.f32 %v8006, 1.442695
      %v8042 = vpow.pop %v8041
      %v8043 = vmul.f32 %v8007, 1.442695
      %v8044 = vpow.pop %v8043
      %v8045 = vmul.f32 %v8008, 1.442695
      %v8046 = vpow.pop %v8045
      %v8047 = vmul.f32 %v8009, 1.442695
      %v8048 = vpow.pop %v8047
      %v8049 = vmul.f32 %v8010, 1.442695
      %v8050 = vpow.pop %v8049
      %v8051 = vmul.f32 %v8011, 1.442695
      %v8052 = vpow.pop %v8051
      %v8053 = vmul.f32 %v8012, 1.442695
      %v8054 = vpow.pop %v8053
      %v8055 = vmul.f32 %v8013, 1.442695
      %v8056 = vpow.pop %v8055
      %v8057 = vmul.f32 %v8014, 1.442695
      %v8058 = vpow.pop %v8057
      %v8059 = vmul.f32 %v8015, 1.442695
      %v8060 = vpow.pop %v8059
      %v8061 = vmul.f32 %v8016, 1.442695
      %v8062 = vpow.pop %v8061
      %v8063 = vmul.f32 %v8017, 1.442695
      %v8064 = vpow.pop %v8063
      %v8065 = vmul.f32 %v8018, 1.442695
      %v8066 = vpow.pop %v8065
      %v8067 = vmul.f32 %v8019, 1.442695
      %v8068 = vpow.pop %v8067
      %v8069 = vmul.f32 %v8020, 1.442695
      %v8070 = vpow.pop %v8069
      %v8071 = vmul.f32 %v8021, 1.442695
      %v8072 = vpow.pop %v8071
      %v8073 = vmul.f32 %v8022, 1.442695
      %v8074 = vpow.pop %v8073
      %v8075 = vmul.f32 %v8023, 1.442695
      %v8076 = vpow.pop %v8075
      %v8077 = vmul.f32 %v8024, 1.442695
      %v8078 = vpow.pop %v8077
      %v8079 = vmul.f32 %v8025, 1.442695
      %v8080 = vpow.pop %v8079
      %v8081 = vmul.f32 %v8026, 1.442695
      %v8082 = vpow.pop %v8081
      %v8083 = vmul.f32 %v8027, 1.442695
      %v8084 = vpow.pop %v8083
      %v8085 = vmul.f32 %v8028, 1.442695
      %v8086 = vpow.pop %v8085
      %v8087 = vmul.f32 %v8029, 1.442695
      %v8088 = vpow.pop %v8087
      %v8089 = vmul.f32 %v8030, 1.442695
      %v8090 = vpow.pop %v8089
      %v8091 = vmul.f32 %v8031, 1.442695
      %v8092 = vpow.pop %v8091
      %v8093 = vmul.f32 %v8032, 1.442695
      %v8094 = vpow.pop %v8093
      %v8095 = vmul.f32 %v8033, 1.442695
      %v8096 = vpow.pop %v8095
      %v8097 = vmul.f32 %v8034, 1.442695
      %v8098 = vpow.pop %v8097
      %v8099 = vadd.f32 %v8036, 1.0
      %v8100 = vadd.f32 %v8038, 1.0
      %v8101 = vadd.f32 %v8040, 1.0
      %v8102 = vadd.f32 %v8042, 1.0
      %v8103 = vadd.f32 %v8044, 1.0
      %v8104 = vadd.f32 %v8046, 1.0
      %v8105 = vadd.f32 %v8048, 1.0
      %v8106 = vadd.f32 %v8050, 1.0
      %v8107 = vadd.f32 %v8052, 1.0
      %v8108 = vadd.f32 %v8054, 1.0
      %v8109 = vadd.f32 %v8056, 1.0
      %v8110 = vadd.f32 %v8058, 1.0
      %v8111 = vadd.f32 %v8060, 1.0
      %v8112 = vadd.f32 %v8062, 1.0
      %v8113 = vadd.f32 %v8064, 1.0
      %v8114 = vadd.f32 %v8066, 1.0
      %v8115 = vadd.f32 %v8068, 1.0
      %v8116 = vadd.f32 %v8070, 1.0
      %v8117 = vadd.f32 %v8072, 1.0
      %v8118 = vadd.f32 %v8074, 1.0
      %v8119 = vadd.f32 %v8076, 1.0
      %v8120 = vadd.f32 %v8078, 1.0
      %v8121 = vadd.f32 %v8080, 1.0
      %v8122 = vadd.f32 %v8082, 1.0
      %v8123 = vadd.f32 %v8084, 1.0
      %v8124 = vadd.f32 %v8086, 1.0
      %v8125 = vadd.f32 %v8088, 1.0
      %v8126 = vadd.f32 %v8090, 1.0
      %v8127 = vadd.f32 %v8092, 1.0
      %v8128 = vadd.f32 %v8094, 1.0
      %v8129 = vadd.f32 %v8096, 1.0
      %v8130 = vadd.f32 %v8098, 1.0
      %v8131 = vrcp.pop %v8099
      %v8132 = vmul.f32 1.0, %v8131
      %v8133 = vrcp.pop %v8100
      %v8134 = vmul.f32 1.0, %v8133
      %v8135 = vrcp.pop %v8101
      %v8136 = vmul.f32 1.0, %v8135
      %v8137 = vrcp.pop %v8102
      %v8138 = vmul.f32 1.0, %v8137
      %v8139 = vrcp.pop %v8103
      %v8140 = vmul.f32 1.0, %v8139
      %v8141 = vrcp.pop %v8104
      %v8142 = vmul.f32 1.0, %v8141
      %v8143 = vrcp.pop %v8105
      %v8144 = vmul.f32 1.0, %v8143
      %v8145 = vrcp.pop %v8106
      %v8146 = vmul.f32 1.0, %v8145
      %v8147 = vrcp.pop %v8107
      %v8148 = vmul.f32 1.0, %v8147
      %v8149 = vrcp.pop %v8108
      %v8150 = vmul.f32 1.0, %v8149
      %v8151 = vrcp.pop %v8109
      %v8152 = vmul.f32 1.0, %v8151
      %v8153 = vrcp.pop %v8110
      %v8154 = vmul.f32 1.0, %v8153
      %v8155 = vrcp.pop %v8111
      %v8156 = vmul.f32 1.0, %v8155
      %v8157 = vrcp.pop %v8112
      %v8158 = vmul.f32 1.0, %v8157
      %v8159 = vrcp.pop %v8113
      %v8160 = vmul.f32 1.0, %v8159
      %v8161 = vrcp.pop %v8114
      %v8162 = vmul.f32 1.0, %v8161
      %v8163 = vrcp.pop %v8115
      %v8164 = vmul.f32 1.0, %v8163
      %v8165 = vrcp.pop %v8116
      %v8166 = vmul.f32 1.0, %v8165
      %v8167 = vrcp.pop %v8117
      %v8168 = vmul.f32 1.0, %v8167
      %v8169 = vrcp.pop %v8118
      %v8170 = vmul.f32 1.0, %v8169
      %v8171 = vrcp.pop %v8119
      %v8172 = vmul.f32 1.0, %v8171
      %v8173 = vrcp.pop %v8120
      %v8174 = vmul.f32 1.0, %v8173
      %v8175 = vrcp.pop %v8121
      %v8176 = vmul.f32 1.0, %v8175
      %v8177 = vrcp.pop %v8122
      %v8178 = vmul.f32 1.0, %v8177
      %v8179 = vrcp.pop %v8123
      %v8180 = vmul.f32 1.0, %v8179
      %v8181 = vrcp.pop %v8124
      %v8182 = vmul.f32 1.0, %v8181
      %v8183 = vrcp.pop %v8125
      %v8184 = vmul.f32 1.0, %v8183
      %v8185 = vrcp.pop %v8126
      %v8186 = vmul.f32 1.0, %v8185
      %v8187 = vrcp.pop %v8127
      %v8188 = vmul.f32 1.0, %v8187
      %v8189 = vrcp.pop %v8128
      %v8190 = vmul.f32 1.0, %v8189
      %v8191 = vrcp.pop %v8129
      %v8192 = vmul.f32 1.0, %v8191
      %v8193 = vrcp.pop %v8130
      %v8194 = vmul.f32 1.0, %v8193
      %8195 = vst.msk [vmem:[%s468] sm:$0xff] %vm2419, %v8132
      %8196 = vst.msk [vmem:[%s468 + $0x8] sm:$0xff] %vm2419, %v8134
      %8197 = vst.msk [vmem:[%s468 + $0x10] sm:$0xff] %vm2419, %v8136
      %8198 = vst.msk [vmem:[%s468 + $0x18] sm:$0xff] %vm2419, %v8138
      %8199 = vst.msk [vmem:[%s468 + $0x20] sm:$0xff] %vm2419, %v8140
      %8200 = vst.msk [vmem:[%s468 + $0x28] sm:$0xff] %vm2419, %v8142
      %8201 = vst.msk [vmem:[%s468 + $0x30] sm:$0xff] %vm2419, %v8144
      %8202 = vst.msk [vmem:[%s468 + $0x38] sm:$0xff] %vm2419, %v8146
      %8203 = vst.msk [vmem:[%s468 + $0x40] sm:$0xff] %vm2419, %v8148
      %8204 = vst.msk [vmem:[%s468 + $0x48] sm:$0xff] %vm2419, %v8150
      %8205 = vst.msk [vmem:[%s468 + $0x50] sm:$0xff] %vm2419, %v8152
      %8206 = vst.msk [vmem:[%s468 + $0x58] sm:$0xff] %vm2419, %v8154
      %8207 = vst.msk [vmem:[%s468 + $0x60] sm:$0xff] %vm2419, %v8156
      %8208 = vst.msk [vmem:[%s468 + $0x68] sm:$0xff] %vm2419, %v8158
      %8209 = vst.msk [vmem:[%s468 + $0x70] sm:$0xff] %vm2419, %v8160
      %8210 = vst.msk [vmem:[%s468 + $0x78] sm:$0xff] %vm2419, %v8162
      %8211 = vst.msk [vmem:[%s468 + $0x80] sm:$0xff] %vm2419, %v8164
      %8212 = vst.msk [vmem:[%s468 + $0x88] sm:$0xff] %vm2419, %v8166
      %8213 = vst.msk [vmem:[%s468 + $0x90] sm:$0xff] %vm2419, %v8168
      %8214 = vst.msk [vmem:[%s468 + $0x98] sm:$0xff] %vm2419, %v8170
      %8215 = vst.msk [vmem:[%s468 + $0xa0] sm:$0xff] %vm2419, %v8172
      %8216 = vst.msk [vmem:[%s468 + $0xa8] sm:$0xff] %vm2419, %v8174
      %8217 = vst.msk [vmem:[%s468 + $0xb0] sm:$0xff] %vm2419, %v8176
      %8218 = vst.msk [vmem:[%s468 + $0xb8] sm:$0xff] %vm2419, %v8178
      %8219 = vst.msk [vmem:[%s468 + $0xc0] sm:$0xff] %vm2419, %v8180
      %8220 = vst.msk [vmem:[%s468 + $0xc8] sm:$0xff] %vm2419, %v8182
      %8221 = vst.msk [vmem:[%s468 + $0xd0] sm:$0xff] %vm2419, %v8184
      %8222 = vst.msk [vmem:[%s468 + $0xd8] sm:$0xff] %vm2419, %v8186
      %8223 = vst.msk [vmem:[%s468 + $0xe0] sm:$0xff] %vm2419, %v8188
      %8224 = vst.msk [vmem:[%s468 + $0xe8] sm:$0xff] %vm2419, %v8190
      %8225 = vst.msk [vmem:[%s468 + $0xf0] sm:$0xff] %vm2419, %v8192
      %8226 = vst.msk [vmem:[%s468 + $0xf8] sm:$0xff] %vm2419, %v8194
      %v8227 = vmax.f32 %v4182, 0.0
      %v8228 = vmax.f32 %v4183, 0.0
      %v8229 = vmax.f32 %v4184, 0.0
      %v8230 = vmax.f32 %v4185, 0.0
      %v8231 = vmax.f32 %v4186, 0.0
      %v8232 = vmax.f32 %v4187, 0.0
      %v8233 = vmax.f32 %v4188, 0.0
      %v8234 = vmax.f32 %v4189, 0.0
      %v8235 = vmax.f32 %v4190, 0.0
      %v8236 = vmax.f32 %v4191, 0.0
      %v8237 = vmax.f32 %v4192, 0.0
      %v8238 = vmax.f32 %v4193, 0.0
      %v8239 = vmax.f32 %v4194, 0.0
      %v8240 = vmax.f32 %v4195, 0.0
      %v8241 = vmax.f32 %v4196, 0.0
      %v8242 = vmax.f32 %v4197, 0.0
      %v8243 = vmax.f32 %v4198, 0.0
      %v8244 = vmax.f32 %v4199, 0.0
      %v8245 = vmax.f32 %v4200, 0.0
      %v8246 = vmax.f32 %v4201, 0.0
      %v8247 = vmax.f32 %v4202, 0.0
      %v8248 = vmax.f32 %v4203, 0.0
      %v8249 = vmax.f32 %v4204, 0.0
      %v8250 = vmax.f32 %v4205, 0.0
      %v8251 = vmax.f32 %v4206, 0.0
      %v8252 = vmax.f32 %v4207, 0.0
      %v8253 = vmax.f32 %v4208, 0.0
      %v8254 = vmax.f32 %v4209, 0.0
      %v8255 = vmax.f32 %v4210, 0.0
      %v8256 = vmax.f32 %v4211, 0.0
      %v8257 = vmax.f32 %v4212, 0.0
      %v8258 = vmax.f32 %v4213, 0.0
      %8259 = vst.msk [vmem:[%s473] sm:$0xff] %vm2468, %v8227
      %8260 = vst.msk [vmem:[%s473 + $0x8] sm:$0xff] %vm2468, %v8228
      %8261 = vst.msk [vmem:[%s473 + $0x10] sm:$0xff] %vm2468, %v8229
      %8262 = vst.msk [vmem:[%s473 + $0x18] sm:$0xff] %vm2468, %v8230
      %8263 = vst.msk [vmem:[%s473 + $0x20] sm:$0xff] %vm2468, %v8231
      %8264 = vst.msk [vmem:[%s473 + $0x28] sm:$0xff] %vm2468, %v8232
      %8265 = vst.msk [vmem:[%s473 + $0x30] sm:$0xff] %vm2468, %v8233
      %8266 = vst.msk [vmem:[%s473 + $0x38] sm:$0xff] %vm2468, %v8234
      %8267 = vst.msk [vmem:[%s473 + $0x40] sm:$0xff] %vm2468, %v8235
      %8268 = vst.msk [vmem:[%s473 + $0x48] sm:$0xff] %vm2468, %v8236
      %8269 = vst.msk [vmem:[%s473 + $0x50] sm:$0xff] %vm2468, %v8237
      %8270 = vst.msk [vmem:[%s473 + $0x58] sm:$0xff] %vm2468, %v8238
      %8271 = vst.msk [vmem:[%s473 + $0x60] sm:$0xff] %vm2468, %v8239
      %8272 = vst.msk [vmem:[%s473 + $0x68] sm:$0xff] %vm2468, %v8240
      %8273 = vst.msk [vmem:[%s473 + $0x70] sm:$0xff] %vm2468, %v8241
      %8274 = vst.msk [vmem:[%s473 + $0x78] sm:$0xff] %vm2468, %v8242
      %8275 = vst.msk [vmem:[%s473 + $0x80] sm:$0xff] %vm2468, %v8243
      %8276 = vst.msk [vmem:[%s473 + $0x88] sm:$0xff] %vm2468, %v8244
      %8277 = vst.msk [vmem:[%s473 + $0x90] sm:$0xff] %vm2468, %v8245
      %8278 = vst.msk [vmem:[%s473 + $0x98] sm:$0xff] %vm2468, %v8246
      %8279 = vst.msk [vmem:[%s473 + $0xa0] sm:$0xff] %vm2468, %v8247
      %8280 = vst.msk [vmem:[%s473 + $0xa8] sm:$0xff] %vm2468, %v8248
      %8281 = vst.msk [vmem:[%s473 + $0xb0] sm:$0xff] %vm2468, %v8249
      %8282 = vst.msk [vmem:[%s473 + $0xb8] sm:$0xff] %vm2468, %v8250
      %8283 = vst.msk [vmem:[%s473 + $0xc0] sm:$0xff] %vm2468, %v8251
      %8284 = vst.msk [vmem:[%s473 + $0xc8] sm:$0xff] %vm2468, %v8252
      %8285 = vst.msk [vmem:[%s473 + $0xd0] sm:$0xff] %vm2468, %v8253
      %8286 = vst.msk [vmem:[%s473 + $0xd8] sm:$0xff] %vm2468, %v8254
      %8287 = vst.msk [vmem:[%s473 + $0xe0] sm:$0xff] %vm2468, %v8255
      %8288 = vst.msk [vmem:[%s473 + $0xe8] sm:$0xff] %vm2468, %v8256
      %8289 = vst.msk [vmem:[%s473 + $0xf0] sm:$0xff] %vm2468, %v8257
      %8290 = vst.msk [vmem:[%s473 + $0xf8] sm:$0xff] %vm2468, %v8258
      %p8291 = scmp.lt.s32.totalorder %s25, 1
      %s8292 = scalar_select %p8291, %s25, 1
      %s8293 = smul.addr %s8292, 32
      %s8294 = smul.addr %s8293, 8
      %s8295 = scalar_lea.vmem %s12, %s8294
      %p8296 = scmp.lt.s32.totalorder %s25, 1
      %s8297 = scalar_select %p8296, %s25, 1
      %s8298 = smul.addr %s8297, 32
      %s8299 = smul.addr %s8298, 8
      %s8300 = scalar_lea.vmem %s13, %s8299
      // Predicated region
      $region69: #{tpu_custom_call.1} parent=67 // pred_check
        %p8301 = pneg %p305
      $region70: #{tpu_custom_call.1} parent=67 // pred_check_branch
        %8303 = sbr.rel (%p8301) target = $region72
      $region71: #{tpu_custom_call.1} parent=67 // pred_region
        _
      $region72: #{tpu_custom_call.1} parent=67 // pred_fallthru
        _
      // Predicated region
      $region73: #{tpu_custom_call.1} parent=67 // pred_check
        %p8304 = pneg %p331
      $region74: #{tpu_custom_call.1} parent=67 // pred_check_branch
        %8306 = sbr.rel (%p8304) target = $region76
      $region75: #{tpu_custom_call.1} parent=67 // pred_region
        _
      $region76: #{tpu_custom_call.1} parent=67 // pred_fallthru
        _
    $region68: #{tpu_custom_call.1} parent=5 // pred_fallthru
      _
    %p8307 = scmp.le.s32.totalorder 2, %s20
    // Predicated region
    $region77: #{tpu_custom_call.1} parent=5 // pred_check
      %p8308 = pneg %p8307
    $region78: #{tpu_custom_call.1} parent=5 // pred_check_branch
      %8310 = sbr.rel (%p8308) target = $region80
    $region79: #{tpu_custom_call.1} parent=5 // pred_region
      %s8311 = ssub.s32 %s20, 2
      // Predicated region
      $region81: #{tpu_custom_call.1} parent=79 // pred_check
        %p8312 = pneg %p311
      $region82: #{tpu_custom_call.1} parent=79 // pred_check_branch
        %8314 = sbr.rel (%p8312) target = $region84
      $region83: #{tpu_custom_call.1} parent=79 // pred_region
        %p8315 = scmp.lt.s32.totalorder %s26, 1
        %s8316 = scalar_select %p8315, %s26, 1
        %s8317 = smul.addr %s8316, 32
        %s8318 = smul.addr %s8317, 8
        %s8319 = scalar_lea.vmem %s12, %s8318
      $region84: #{tpu_custom_call.1} parent=79 // pred_fallthru
        _
      // Predicated region
      $region85: #{tpu_custom_call.1} parent=79 // pred_check
        %p8320 = pneg %p337
      $region86: #{tpu_custom_call.1} parent=79 // pred_check_branch
        %8322 = sbr.rel (%p8320) target = $region88
      $region87: #{tpu_custom_call.1} parent=79 // pred_region
        %p8323 = scmp.lt.s32.totalorder %s26, 1
        %s8324 = scalar_select %p8323, %s26, 1
        %s8325 = smul.addr %s8324, 32
        %s8326 = smul.addr %s8325, 8
        %s8327 = scalar_lea.vmem %s13, %s8326
      $region88: #{tpu_custom_call.1} parent=79 // pred_fallthru
        _
    $region80: #{tpu_custom_call.1} parent=5 // pred_fallthru
      _
  $region6: #{tpu_custom_call.1} parent=0 // loop_footer
    %s24 = sadd.s32 1, %s20
  $region7: #{tpu_custom_call.1} parent=0 // loop_footer_branch
    %19 = sbr.rel target = $region3
  $region8: #{tpu_custom_call.1} parent=0 // loop_exit
    _

</llo_original>
